<compile_context>
chip_gen: v7x
topology: tpu7x:2x2x1
jax: 0.10.0
libtpu: 0.0.40
codegen_flags: <defaults>
</compile_context>

<pallas_src>
import functools
import math

import jax
import jax.numpy as jnp
from jax.experimental import pallas as pl
from jax.experimental.pallas import tpu as pltpu


def _round_up(x, m):
    return ((x + m - 1) // m) * m


# ----------------------- embedding conv2d + LN + ReLU ------------------------

def _conv_embed_kernel(a_ref, w_ref, g_ref, b_ref, o_ref, acc_ref, *, eps):
    """Tiled matmul (im2col conv2d) with fused channel-LN + ReLU epilogue."""
    @pl.when(pl.program_id(1) == 0)
    def _():
        acc_ref[...] = jnp.zeros_like(acc_ref)

    acc_ref[...] += jnp.dot(a_ref[...], w_ref[...],
                            preferred_element_type=jnp.float32)

    @pl.when(pl.program_id(1) == pl.num_programs(1) - 1)
    def _():
        y = acc_ref[...]
        mu = jnp.mean(y, axis=-1, keepdims=True)
        yc = y - mu
        var = jnp.mean(yc * yc, axis=-1, keepdims=True)
        y = (yc * jax.lax.rsqrt(var + eps)) * g_ref[...] + b_ref[...]
        o_ref[...] = jnp.maximum(y, 0.0).astype(o_ref.dtype)


def conv2d_ln_relu(x_nhwc, wm, gamma, beta, ksize, eps=1e-5):
    """nn.Conv2d (stride 1, zero pad, no bias) + channel LayerNorm + ReLU as
    channels-last im2col + one tiled Pallas matmul with fused LN/ReLU (bf16 out)."""
    B, H, W, Cin = x_nhwc.shape
    Cout = wm.shape[1]
    pad = ksize // 2
    xp = jnp.pad(x_nhwc, ((0, 0), (pad, pad), (pad, pad), (0, 0)))
    # TODO(synk): im2col materializes a K^2-expanded copy in HBM; fine at these
    # embedding sizes, switch to an in-kernel halo/tap scheme for large H*W*Cin.
    cols = [xp[:, ki:ki + H, kj:kj + W, :]
            for ki in range(ksize) for kj in range(ksize)]
    patches = (jnp.concatenate(cols, axis=-1)
               .reshape(B * H * W, ksize * ksize * Cin).astype(jnp.bfloat16))

    M, Kdim = patches.shape
    tm = min(512, _round_up(M, 8))
    Mp = _round_up(M, tm)
    if Mp != M:
        patches = jnp.pad(patches, ((0, Mp - M), (0, 0)))
    if Kdim % 128 == 0:
        tk = 512 if Kdim % 512 == 0 else (256 if Kdim % 256 == 0 else 128)
    else:
        tk = Kdim
    grid = (Mp // tm, Kdim // tk)

    out = pl.pallas_call(
        functools.partial(_conv_embed_kernel, eps=eps),
        out_shape=jax.ShapeDtypeStruct((Mp, Cout), jnp.bfloat16),
        grid=grid,
        in_specs=[
            pl.BlockSpec((tm, tk), lambda i, k: (i, k)),
            pl.BlockSpec((tk, Cout), lambda i, k: (k, 0)),
            pl.BlockSpec((1, Cout), lambda i, k: (0, 0)),
            pl.BlockSpec((1, Cout), lambda i, k: (0, 0)),
        ],
        out_specs=pl.BlockSpec((tm, Cout), lambda i, k: (i, 0)),
        scratch_shapes=[pltpu.VMEM((tm, Cout), jnp.float32)],
        compiler_params=pltpu.CompilerParams(
            dimension_semantics=("parallel", "arbitrary")),
    )(patches, wm, gamma, beta)
    return out[:M].reshape(B, H, W, Cout)


# ------------------- fully fused transformer block kernel --------------------

def _block_kernel(x_ref, ln1_ref, dw_ref, qg_ref, qb_ref,
                  w3_ref, b3_ref, wph_ref, bp_ref,
                  ln2_ref, w1_ref, b1_ref, w2_ref, b2_ref,
                  o_ref, *, n_head, stride, eps):
    T, C = x_ref.shape[1], x_ref.shape[2]
    Tq = o_ref.shape[1]
    hs = C // n_head

    x = x_ref[0].astype(jnp.float32)                       # (T, C)

    def _ln(z, g, b):
        mu = jnp.mean(z, axis=-1, keepdims=True)
        zc = z - mu
        var = jnp.mean(zc * zc, axis=-1, keepdims=True)
        return zc * jax.lax.rsqrt(var + eps) * g + b

    ln1 = ln1_ref[...]
    xn = _ln(x, ln1[0:1, :], ln1[1:2, :])

    # 3-tap depthwise conv along T (zero padding) via XLU rolls + boundary mask.
    row = jax.lax.broadcasted_iota(jnp.int32, (T, 1), 0)
    xn_prev = jnp.where(row == 0, 0.0, pltpu.roll(xn, shift=1, axis=0))
    xn_next = jnp.where(row == T - 1, 0.0, pltpu.roll(xn, shift=T - 1, axis=0))

    dw = dw_ref[...]                                       # (3 paths, 3 taps, C)
    qg = qg_ref[...]                                       # (3, C)
    qb = qb_ref[...]

    def _path(i):
        w = dw[i]
        conv = xn_prev * w[0:1, :] + xn * w[1:2, :] + xn_next * w[2:3, :]
        return _ln(conv, qg[i:i + 1, :], qb[i:i + 1, :])

    # Single block-diagonal qkv projection: (T, 3C) x (3C, 3C) -> (T, 3C).
    # Attention scale 1/sqrt(hs) is folded into the q block of w3/b3 on host.
    qkv_in = jnp.concatenate([_path(0), _path(1), _path(2)], axis=-1)
    qkv = (jnp.dot(qkv_in.astype(jnp.bfloat16), w3_ref[...],
                   preferred_element_type=jnp.float32) + b3_ref[...])
    qkv = qkv.astype(jnp.bfloat16)                         # (T, 3C)

    # Stride-s downsample of q/k/v and the max-pool skip path.
    if stride == 1:
        skip = x                                           # (Tq=T, C) f32
    else:
        x_pl = jnp.where(row == 0, x, pltpu.roll(x, shift=1, axis=0))
        x_pr = jnp.where(row == T - 1, x, pltpu.roll(x, shift=T - 1, axis=0))
        skip_full = jnp.maximum(jnp.maximum(x_pl, x), x_pr)          # (T, C)
        ri = jax.lax.broadcasted_iota(jnp.int32, (Tq, T), 0)
        ci = jax.lax.broadcasted_iota(jnp.int32, (Tq, T), 1)
        sel = jnp.where(ci == ri * stride, 1.0, 0.0).astype(jnp.bfloat16)
        qkv = jnp.dot(sel, qkv,
                      preferred_element_type=jnp.float32).astype(jnp.bfloat16)
        skip = jnp.dot(sel, skip_full.astype(jnp.bfloat16),
                       preferred_element_type=jnp.float32)           # (Tq, C)

    # Batched multi-head attention (no per-head matmul loop, no lane concat).
    q_h = jnp.stack([qkv[:, h * hs:(h + 1) * hs] for h in range(n_head)], 0)
    k_h = jnp.stack([qkv[:, C + h * hs:C + (h + 1) * hs] for h in range(n_head)], 0)
    v_h = jnp.stack([qkv[:, 2 * C + h * hs:2 * C + (h + 1) * hs]
                     for h in range(n_head)], 0)                     # (h, Tq, hs)

    s = jnp.einsum('hqd,hkd->hqk', q_h, k_h,
                   preferred_element_type=jnp.float32)               # (h, Tq, Tk)
    s = s - jnp.max(s, axis=-1, keepdims=True)
    p = jnp.exp(s)
    p = p * pl.reciprocal(jnp.sum(p, axis=-1, keepdims=True), approx=True)
    ctx = jnp.einsum('hqk,hkd->hqd', p.astype(jnp.bfloat16), v_h,
                     preferred_element_type=jnp.float32)             # (h, Tq, hs)

    # Per-head output projection, summed over heads (lane-dense N=C matmuls).
    att = jnp.einsum('hqd,hdc->hqc', ctx.astype(jnp.bfloat16), wph_ref[...],
                     preferred_element_type=jnp.float32)             # (h, Tq, C)
    x1 = skip + jnp.sum(att, axis=0) + bp_ref[...]                   # (Tq, C)

    # Fused LN2 + MLP + residual; the 4C activation never leaves VMEM.
    ln2 = ln2_ref[...]
    h1 = _ln(x1, ln2[0:1, :], ln2[1:2, :])
    h1 = (jnp.dot(h1.astype(jnp.bfloat16), w1_ref[...],
                  preferred_element_type=jnp.float32) + b1_ref[...])
    # TODO(synk): PyTorch nn.GELU default is exact erf; tanh approximation used here.
    h1 = jax.nn.gelu(h1, approximate=True)
    y = (jnp.dot(h1.astype(jnp.bfloat16), w2_ref[...],
                 preferred_element_type=jnp.float32) + b2_ref[...])
    o_ref[0] = (x1 + y).astype(o_ref.dtype)


def transformer_block_fused(x_btc, bp, stride, n_head, eps=1e-5):
    """One pallas_call per transformer block: LN1 + dwconv q/k/v + maxpool skip
    + qkv proj + MHA + out proj + residual + LN2 + MLP + residual."""
    B, T, C = x_btc.shape
    if stride > 1:
        assert T % stride == 0
        Tq = T // stride
    else:
        Tq = T
    H4 = bp['w1'].shape[1]

    kernel = functools.partial(_block_kernel, n_head=n_head, stride=stride, eps=eps)
    return pl.pallas_call(
        kernel,
        out_shape=jax.ShapeDtypeStruct((B, Tq, C), jnp.bfloat16),
        grid=(B,),
        in_specs=[
            pl.BlockSpec((1, T, C), lambda b: (b, 0, 0)),
            pl.BlockSpec((2, C), lambda b: (0, 0)),
            pl.BlockSpec((3, 3, C), lambda b: (0, 0, 0)),
            pl.BlockSpec((3, C), lambda b: (0, 0)),
            pl.BlockSpec((3, C), lambda b: (0, 0)),
            pl.BlockSpec((3 * C, 3 * C), lambda b: (0, 0)),
            pl.BlockSpec((1, 3 * C), lambda b: (0, 0)),
            pl.BlockSpec((n_head, C // n_head, C), lambda b: (0, 0, 0)),
            pl.BlockSpec((1, C), lambda b: (0, 0)),
            pl.BlockSpec((2, C), lambda b: (0, 0)),
            pl.BlockSpec((C, H4), lambda b: (0, 0)),
            pl.BlockSpec((1, H4), lambda b: (0, 0)),
            pl.BlockSpec((H4, C), lambda b: (0, 0)),
            pl.BlockSpec((1, C), lambda b: (0, 0)),
        ],
        out_specs=pl.BlockSpec((1, Tq, C), lambda b: (b, 0, 0)),
        compiler_params=pltpu.CompilerParams(
            dimension_semantics=("parallel",),
            # TODO(synk): at production n_embd (>=512) tile the 4C MLP dim and
            # re-derive resident-weight footprint against v7x's 64 MiB VMEM.
            vmem_limit_bytes=32 * 1024 * 1024),
    )(x_btc, bp['ln1'], bp['dw'], bp['qkv_ln_g'], bp['qkv_ln_b'],
      bp['w_qkv'], bp['b_qkv'], bp['w_proj_h'], bp['b_proj'],
      bp['ln2'], bp['w1'], bp['b1'], bp['w2'], bp['b2'])


# ------------------------------ JAX glue ops ---------------------------------

def upsample_linear(x_btc, scale):
    # nn.Upsample(scale_factor=scale, mode='linear'), align_corners=False
    x = x_btc.astype(jnp.float32)
    B, T, C = x.shape
    To = int(T * scale)
    dst = jnp.arange(To, dtype=jnp.float32)
    src = jnp.clip((dst + 0.5) * (T / To) - 0.5, 0.0, T - 1)
    i0 = jnp.floor(src).astype(jnp.int32)
    i1 = jnp.minimum(i0 + 1, T - 1)
    lam = (src - i0.astype(jnp.float32))[None, :, None]
    return x[:, i0, :] * (1.0 - lam) + x[:, i1, :] * lam


def get_sinusoid_encoding(n_position, d_hid):
    pos = jnp.arange(n_position, dtype=jnp.float32)[:, None]
    i = jnp.arange(d_hid)
    angle = pos / jnp.power(10000.0, (2 * (i // 2)) / d_hid)[None, :]
    table = jnp.where((i % 2 == 0)[None, :], jnp.sin(angle), jnp.cos(angle))
    return table.T[None]                                   # (1, d_hid, n_position)


# ------------------------------- full forward --------------------------------

def conv_transformer_forward(x_bchw, prep, cfg):
    B, Cin, H, W = x_bchw.shape
    T = H * W
    n_embd = cfg['n_embd']

    # single layout change NCHW -> NHWC; embedding conv stays channels-last bf16
    x = x_bchw.transpose(0, 2, 3, 1).astype(jnp.bfloat16)
    for pe_ in prep['embd']:
        x = conv2d_ln_relu(x, pe_['w'], pe_['ln_g'], pe_['ln_b'], cfg['n_embd_ks'])
    x = x.reshape(B, T, n_embd)                            # (B, T, C) bf16

    # absolute positional encoding (inference path, T < max_len)
    # TODO(synk): T >= max_len linear-interp of pos_embd not needed at these sizes.
    pe = prep['pos_embd'][:, :, :T].transpose(0, 2, 1).astype(jnp.bfloat16)
    x = x + pe

    for bp in prep['stem']:
        x = transformer_block_fused(x, bp, 1, cfg['n_head'])

    outs = [x]
    for idx, bp in enumerate(prep['branch']):
        x = transformer_block_fused(x, bp, cfg['scale_factor'], cfg['n_head'])
        outs.append(upsample_linear(x, 2 ** (idx + 1)))

    # return in PyTorch (B, C, T) layout, f32
    return tuple(o.astype(jnp.float32).transpose(0, 2, 1) for o in outs)


# --------------------------- parameter preparation ---------------------------

def init_params(key, cfg, n_in):
    n_embd = cfg['n_embd']
    keys = iter(jax.random.split(key, 256))

    def nrm(shape, std=0.02):
        return std * jax.random.normal(next(keys), shape, jnp.float32)

    params = {}
    embd = []
    for idx in range(cfg['arch'][0]):
        cin = n_in if idx == 0 else n_embd
        embd.append(dict(
            w=nrm((n_embd, cin, cfg['n_embd_ks'], cfg['n_embd_ks'])),
            ln_g=jnp.ones((n_embd,), jnp.float32),
            ln_b=jnp.zeros((n_embd,), jnp.float32)))
    params['embd'] = embd
    params['pos_embd'] = get_sinusoid_encoding(cfg['max_len'], n_embd) / (n_embd ** 0.5)

    def make_block():
        C = n_embd
        H4 = 4 * C
        return dict(
            ln1_g=jnp.ones((C,)), ln1_b=jnp.zeros((C,)),
            ln2_g=jnp.ones((C,)), ln2_b=jnp.zeros((C,)),
            q_dw=nrm((C, 3)), k_dw=nrm((C, 3)), v_dw=nrm((C, 3)),
            qn_g=jnp.ones((C,)), qn_b=jnp.zeros((C,)),
            kn_g=jnp.ones((C,)), kn_b=jnp.zeros((C,)),
            vn_g=jnp.ones((C,)), vn_b=jnp.zeros((C,)),
            Wq=nrm((C, C)), bq=jnp.zeros((C,)),
            Wk=nrm((C, C)), bk=jnp.zeros((C,)),
            Wv=nrm((C, C)), bv=jnp.zeros((C,)),
            Wproj=nrm((C, C)), bproj=jnp.zeros((C,)),
            W1=nrm((H4, C)), b1=jnp.zeros((H4,)),
            W2=nrm((C, H4)), b2=jnp.zeros((C,)),
        )

    params['stem'] = [make_block() for _ in range(cfg['arch'][1])]
    params['branch'] = [make_block() for _ in range(cfg['arch'][2])]
    return params


def prepare_params(params, cfg):
    """One-time host-side weight prep: bf16 casts, block-diag qkv weight with
    the attention scale folded into the q block, head-split output projection."""
    n_head = cfg['n_head']
    K = cfg['n_embd_ks']

    embd = []
    for pe_ in params['embd']:
        Cout, Cin, _, _ = pe_['w'].shape
        wm = (pe_['w'].transpose(0, 2, 3, 1).reshape(Cout, K * K * Cin).T
              .astype(jnp.bfloat16))
        embd.append(dict(w=wm,
                         ln_g=pe_['ln_g'].reshape(1, Cout).astype(jnp.float32),
                         ln_b=pe_['ln_b'].reshape(1, Cout).astype(jnp.float32)))

    def prep_block(p):
        C = p['Wq'].shape[0]
        assert C % n_head == 0
        hs = C // n_head
        scale = 1.0 / math.sqrt(hs)
        w3 = jnp.zeros((3 * C, 3 * C), jnp.float32)
        w3 = w3.at[0:C, 0:C].set(p['Wq'].T * scale)
        w3 = w3.at[C:2 * C, C:2 * C].set(p['Wk'].T)
        w3 = w3.at[2 * C:, 2 * C:].set(p['Wv'].T)
        b3 = jnp.concatenate([p['bq'] * scale, p['bk'], p['bv']]).reshape(1, 3 * C)
        return dict(
            ln1=jnp.stack([p['ln1_g'], p['ln1_b']]).astype(jnp.float32),
            dw=jnp.stack([p['q_dw'].T, p['k_dw'].T, p['v_dw'].T]).astype(jnp.float32),
            qkv_ln_g=jnp.stack([p['qn_g'], p['kn_g'], p['vn_g']]).astype(jnp.float32),
            qkv_ln_b=jnp.stack([p['qn_b'], p['kn_b'], p['vn_b']]).astype(jnp.float32),
            w_qkv=w3.astype(jnp.bfloat16),
            b_qkv=b3.astype(jnp.float32),
            w_proj_h=p['Wproj'].T.reshape(n_head, hs, C).astype(jnp.bfloat16),
            b_proj=p['bproj'].reshape(1, C).astype(jnp.float32),
            ln2=jnp.stack([p['ln2_g'], p['ln2_b']]).astype(jnp.float32),
            w1=p['W1'].T.astype(jnp.bfloat16),
            b1=p['b1'].reshape(1, -1).astype(jnp.float32),
            w2=p['W2'].T.astype(jnp.bfloat16),
            b2=p['b2'].reshape(1, -1).astype(jnp.float32),
        )

    return dict(
        embd=embd,
        pos_embd=params['pos_embd'].astype(jnp.float32),
        stem=[prep_block(p) for p in params['stem']],
        branch=[prep_block(p) for p in params['branch']],
    )


# ----------------------------------- main -------------------------------------

if __name__ == "__main__":
    key = jax.random.PRNGKey(0)
    k_par, k_x = jax.random.split(key)

    B, n_in, H, W = 2, 4, 8, 8                 # T = H*W = 64
    cfg = dict(arch=(1, 1, 2), n_embd=32, n_head=4, n_embd_ks=3,
               scale_factor=2, max_len=128)

    params = init_params(k_par, cfg, n_in)
    prep = prepare_params(params, cfg)
    x = jax.random.normal(k_x, (B, n_in, H, W), jnp.float32)

    fwd = jax.jit(lambda inp: conv_transformer_forward(inp, prep, cfg))
    outs = fwd(x)
    outs = jax.block_until_ready(outs)

    # sanity: FPN-style outputs, each (B, n_embd, T)
    assert len(outs) == 1 + cfg['arch'][2]
    for o in outs:
        assert o.shape == (B, cfg['n_embd'], H * W)
        assert bool(jnp.all(jnp.isfinite(o)))

    print("KERNEL_OK")
</pallas_src>

<mosaic_0001>
module attributes {stable_mosaic.version = 11 : i64} {
  func.func @_conv_embed_kernel(%arg0: i32, %arg1: i32, %arg2: memref<128x36xbf16, #tpu.memory_space<vmem>>, %arg3: memref<36x32xbf16, #tpu.memory_space<vmem>>, %arg4: memref<1x32xf32, #tpu.memory_space<vmem>>, %arg5: memref<1x32xf32, #tpu.memory_space<vmem>>, %arg6: memref<128x32xbf16, #tpu.memory_space<vmem>>, %arg7: memref<128x32xf32, #tpu.memory_space<vmem>>) attributes {dimension_semantics = [#tpu.dimension_semantics<parallel>, #tpu.dimension_semantics<arbitrary>], iteration_bounds = array<i64: 1, 1>, scalar_prefetch = 0 : i64, scratch_operands = 1 : i64, tpu.core_type = #tpu.core_type<tc>, window_params = [{transform_indices = @transform_0, window_bounds = array<i64: 128, 36>}, {transform_indices = @transform_1, window_bounds = array<i64: 36, 32>}, {pipeline_mode = #tpu.pipeline_mode<synchronous>, transform_indices = @transform_2, window_bounds = array<i64: 1, 32>}, {pipeline_mode = #tpu.pipeline_mode<synchronous>, transform_indices = @transform_3, window_bounds = array<i64: 1, 32>}, {transform_indices = @transform_4, window_bounds = array<i64: 128, 32>}]} {
    %c0_i32 = arith.constant 0 : i32
    %0 = arith.cmpi eq, %arg1, %c0_i32 : i32
    %1 = arith.extui %0 : i1 to i32
    %c0_i32_0 = arith.constant 0 : i32
    %2 = arith.cmpi ne, %1, %c0_i32_0 : i32
    scf.if %2 {
      %cst_10 = arith.constant 0.000000e+00 : f32
      %12 = vector.broadcast %cst_10 : f32 to vector<128x32xf32>
      %c0_11 = arith.constant 0 : index
      %c0_12 = arith.constant 0 : index
      %13 = vector.load %arg7[%c0_11, %c0_12] : memref<128x32xf32, #tpu.memory_space<vmem>>, vector<128x32xf32>
      tpu.vector_store %arg7[%c0_11, %c0_12], %12 {strides = array<i32>} : memref<128x32xf32, #tpu.memory_space<vmem>>, vector<128x32xf32>,
    } else {
    }
    %c0 = arith.constant 0 : index
    %c0_1 = arith.constant 0 : index
    %3 = vector.load %arg7[%c0, %c0_1] : memref<128x32xf32, #tpu.memory_space<vmem>>, vector<128x32xf32>
    %c0_2 = arith.constant 0 : index
    %c0_3 = arith.constant 0 : index
    %4 = vector.load %arg2[%c0_2, %c0_3] : memref<128x36xbf16, #tpu.memory_space<vmem>>, vector<128x36xbf16>
    %c0_4 = arith.constant 0 : index
    %c0_5 = arith.constant 0 : index
    %5 = vector.load %arg3[%c0_4, %c0_5] : memref<36x32xbf16, #tpu.memory_space<vmem>>, vector<36x32xbf16>
    %cst = arith.constant dense<0.000000e+00> : vector<128x32xf32>
    %6 = tpu.matmul %4, %5, %cst {dimension_numbers = #tpu.dot_dimension_numbers<[1], [0], [0], [1], [0, 0, 1, 1], [], []>} : vector<128x36xbf16>, vector<36x32xbf16>, vector<128x32xf32> -> vector<128x32xf32>
    %7 = arith.addf %3, %6 : vector<128x32xf32>
    %c0_6 = arith.constant 0 : index
    %c0_7 = arith.constant 0 : index
    %8 = vector.load %arg7[%c0_6, %c0_7] : memref<128x32xf32, #tpu.memory_space<vmem>>, vector<128x32xf32>
    tpu.vector_store %arg7[%c0_6, %c0_7], %7 {strides = array<i32>} : memref<128x32xf32, #tpu.memory_space<vmem>>, vector<128x32xf32>,
    %c0_i32_8 = arith.constant 0 : i32
    %9 = arith.cmpi eq, %arg1, %c0_i32_8 : i32
    %10 = arith.extui %9 : i1 to i32
    %c0_i32_9 = arith.constant 0 : i32
    %11 = arith.cmpi ne, %10, %c0_i32_9 : i32
    scf.if %11 {
      %c0_10 = arith.constant 0 : index
      %c0_11 = arith.constant 0 : index
      %12 = vector.load %arg7[%c0_10, %c0_11] : memref<128x32xf32, #tpu.memory_space<vmem>>, vector<128x32xf32>
      %cst_12 = arith.constant dense<0.000000e+00> : vector<128xf32>
      %13 = vector.multi_reduction <add>, %12, %cst_12 [1] : vector<128x32xf32> to vector<128xf32>
      %14 = vector.shape_cast %13 : vector<128xf32> to vector<128x1xf32>
      %cst_13 = arith.constant 3.200000e+01 : f32
      %15 = vector.broadcast %cst_13 : f32 to vector<128x1xf32>
      %16 = arith.divf %14, %15 : vector<128x1xf32>
      %17 = vector.broadcast %16 : vector<128x1xf32> to vector<128x32xf32>
      %18 = arith.subf %12, %17 : vector<128x32xf32>
      %19 = arith.mulf %18, %18 : vector<128x32xf32>
      %cst_14 = arith.constant dense<0.000000e+00> : vector<128xf32>
      %20 = vector.multi_reduction <add>, %19, %cst_14 [1] : vector<128x32xf32> to vector<128xf32>
      %21 = vector.shape_cast %20 : vector<128xf32> to vector<128x1xf32>
      %cst_15 = arith.constant 3.200000e+01 : f32
      %22 = vector.broadcast %cst_15 : f32 to vector<128x1xf32>
      %23 = arith.divf %21, %22 : vector<128x1xf32>
      %cst_16 = arith.constant 9.99999974E-6 : f32
      %24 = vector.broadcast %cst_16 : f32 to vector<128x1xf32>
      %25 = arith.addf %23, %24 : vector<128x1xf32>
      %26 = math.rsqrt %25 : vector<128x1xf32>
      %27 = vector.broadcast %26 : vector<128x1xf32> to vector<128x32xf32>
      %28 = arith.mulf %18, %27 : vector<128x32xf32>
      %c0_17 = arith.constant 0 : index
      %c0_18 = arith.constant 0 : index
      %29 = vector.load %arg4[%c0_17, %c0_18] : memref<1x32xf32, #tpu.memory_space<vmem>>, vector<1x32xf32>
      %30 = vector.broadcast %29 : vector<1x32xf32> to vector<128x32xf32>
      %31 = arith.mulf %28, %30 : vector<128x32xf32>
      %c0_19 = arith.constant 0 : index
      %c0_20 = arith.constant 0 : index
      %32 = vector.load %arg5[%c0_19, %c0_20] : memref<1x32xf32, #tpu.memory_space<vmem>>, vector<1x32xf32>
      %33 = vector.broadcast %32 : vector<1x32xf32> to vector<128x32xf32>
      %34 = arith.addf %31, %33 : vector<128x32xf32>
      %cst_21 = arith.constant 0.000000e+00 : f32
      %35 = vector.broadcast %cst_21 : f32 to vector<128x32xf32>
      %36 = arith.maximumf %34, %35 : vector<128x32xf32>
      %37 = arith.truncf %36 : vector<128x32xf32> to vector<128x32xbf16>
      %c0_22 = arith.constant 0 : index
      %c0_23 = arith.constant 0 : index
      %38 = vector.load %arg6[%c0_22, %c0_23] : memref<128x32xbf16, #tpu.memory_space<vmem>>, vector<128x32xbf16>
      tpu.vector_store %arg6[%c0_22, %c0_23], %37 {strides = array<i32>} : memref<128x32xbf16, #tpu.memory_space<vmem>>, vector<128x32xbf16>,
    } else {
    }
    return
  }
  func.func @transform_0(%arg0: i32, %arg1: i32) -> (i32, i32) {
    %c0_i32 = arith.constant 0 : i32
    return %arg0, %arg1 : i32, i32
  }
  func.func @transform_1(%arg0: i32, %arg1: i32) -> (i32, i32) {
    %c0_i32 = arith.constant 0 : i32
    %c0_i32_0 = arith.constant 0 : i32
    return %arg1, %c0_i32 : i32, i32
  }
  func.func @transform_2(%arg0: i32, %arg1: i32) -> (i32, i32) {
    %c0_i32 = arith.constant 0 : i32
    %c0_i32_0 = arith.constant 0 : i32
    %c0_i32_1 = arith.constant 0 : i32
    return %c0_i32, %c0_i32_0 : i32, i32
  }
  func.func @transform_3(%arg0: i32, %arg1: i32) -> (i32, i32) {
    %c0_i32 = arith.constant 0 : i32
    %c0_i32_0 = arith.constant 0 : i32
    %c0_i32_1 = arith.constant 0 : i32
    return %c0_i32, %c0_i32_0 : i32, i32
  }
  func.func @transform_4(%arg0: i32, %arg1: i32) -> (i32, i32) {
    %c0_i32 = arith.constant 0 : i32
    %c0_i32_0 = arith.constant 0 : i32
    return %arg0, %c0_i32 : i32, i32
  }
}

module attributes {stable_mosaic.version = 11 : i64} {
  func.func @_block_kernel(%arg0: i32, %arg1: memref<1x32x32xbf16, #tpu.memory_space<vmem>>, %arg2: memref<2x32xf32, #tpu.memory_space<vmem>>, %arg3: memref<3x3x32xf32, #tpu.memory_space<vmem>>, %arg4: memref<3x32xf32, #tpu.memory_space<vmem>>, %arg5: memref<3x32xf32, #tpu.memory_space<vmem>>, %arg6: memref<96x96xbf16, #tpu.memory_space<vmem>>, %arg7: memref<1x96xf32, #tpu.memory_space<vmem>>, %arg8: memref<4x8x32xbf16, #tpu.memory_space<vmem>>, %arg9: memref<1x32xf32, #tpu.memory_space<vmem>>, %arg10: memref<2x32xf32, #tpu.memory_space<vmem>>, %arg11: memref<32x128xbf16, #tpu.memory_space<vmem>>, %arg12: memref<1x128xf32, #tpu.memory_space<vmem>>, %arg13: memref<128x32xbf16, #tpu.memory_space<vmem>>, %arg14: memref<1x32xf32, #tpu.memory_space<vmem>>, %arg15: memref<1x16x32xbf16, #tpu.memory_space<vmem>>) attributes {dimension_semantics = [#tpu.dimension_semantics<parallel>], iteration_bounds = array<i64: 2>, scalar_prefetch = 0 : i64, scratch_operands = 0 : i64, tpu.core_type = #tpu.core_type<tc>, window_params = [{transform_indices = @transform_0, window_bounds = array<i64: 1, 32, 32>}, {pipeline_mode = #tpu.pipeline_mode<synchronous>, transform_indices = @transform_1, window_bounds = array<i64: 2, 32>}, {pipeline_mode = #tpu.pipeline_mode<synchronous>, transform_indices = @transform_2, window_bounds = array<i64: 3, 3, 32>}, {pipeline_mode = #tpu.pipeline_mode<synchronous>, transform_indices = @transform_3, window_bounds = array<i64: 3, 32>}, {pipeline_mode = #tpu.pipeline_mode<synchronous>, transform_indices = @transform_4, window_bounds = array<i64: 3, 32>}, {pipeline_mode = #tpu.pipeline_mode<synchronous>, transform_indices = @transform_5, window_bounds = array<i64: 96, 96>}, {pipeline_mode = #tpu.pipeline_mode<synchronous>, transform_indices = @transform_6, window_bounds = array<i64: 1, 96>}, {pipeline_mode = #tpu.pipeline_mode<synchronous>, transform_indices = @transform_7, window_bounds = array<i64: 4, 8, 32>}, {pipeline_mode = #tpu.pipeline_mode<synchronous>, transform_indices = @transform_8, window_bounds = array<i64: 1, 32>}, {pipeline_mode = #tpu.pipeline_mode<synchronous>, transform_indices = @transform_9, window_bounds = array<i64: 2, 32>}, {pipeline_mode = #tpu.pipeline_mode<synchronous>, transform_indices = @transform_10, window_bounds = array<i64: 32, 128>}, {pipeline_mode = #tpu.pipeline_mode<synchronous>, transform_indices = @transform_11, window_bounds = array<i64: 1, 128>}, {pipeline_mode = #tpu.pipeline_mode<synchronous>, transform_indices = @transform_12, window_bounds = array<i64: 128, 32>}, {pipeline_mode = #tpu.pipeline_mode<synchronous>, transform_indices = @transform_13, window_bounds = array<i64: 1, 32>}, {transform_indices = @transform_14, window_bounds = array<i64: 1, 16, 32>}]} {
    %c0 = arith.constant 0 : index
    %c0_0 = arith.constant 0 : index
    %c0_1 = arith.constant 0 : index
    %0 = vector.load %arg1[%c0, %c0_0, %c0_1] : memref<1x32x32xbf16, #tpu.memory_space<vmem>>, vector<1x32x32xbf16>
    %1 = vector.shape_cast %0 : vector<1x32x32xbf16> to vector<32x32xbf16>
    %2 = arith.extf %1 : vector<32x32xbf16> to vector<32x32xf32>
    %c0_2 = arith.constant 0 : index
    %c0_3 = arith.constant 0 : index
    %3 = vector.load %arg2[%c0_2, %c0_3] : memref<2x32xf32, #tpu.memory_space<vmem>>, vector<2x32xf32>
    %4 = vector.extract_strided_slice %3 {offsets = [0, 0], sizes = [1, 32], strides = [1, 1]} : vector<2x32xf32> to vector<1x32xf32>
    %5 = vector.extract_strided_slice %3 {offsets = [1, 0], sizes = [1, 32], strides = [1, 1]} : vector<2x32xf32> to vector<1x32xf32>
    %cst = arith.constant dense<0.000000e+00> : vector<32xf32>
    %6 = vector.multi_reduction <add>, %2, %cst [1] : vector<32x32xf32> to vector<32xf32>
    %7 = vector.shape_cast %6 : vector<32xf32> to vector<32x1xf32>
    %cst_4 = arith.constant 3.200000e+01 : f32
    %8 = vector.broadcast %cst_4 : f32 to vector<32x1xf32>
    %9 = arith.divf %7, %8 : vector<32x1xf32>
    %10 = vector.broadcast %9 : vector<32x1xf32> to vector<32x32xf32>
    %11 = arith.subf %2, %10 : vector<32x32xf32>
    %12 = arith.mulf %11, %11 : vector<32x32xf32>
    %cst_5 = arith.constant dense<0.000000e+00> : vector<32xf32>
    %13 = vector.multi_reduction <add>, %12, %cst_5 [1] : vector<32x32xf32> to vector<32xf32>
    %14 = vector.shape_cast %13 : vector<32xf32> to vector<32x1xf32>
    %cst_6 = arith.constant 3.200000e+01 : f32
    %15 = vector.broadcast %cst_6 : f32 to vector<32x1xf32>
    %16 = arith.divf %14, %15 : vector<32x1xf32>
    %cst_7 = arith.constant 9.99999974E-6 : f32
    %17 = vector.broadcast %cst_7 : f32 to vector<32x1xf32>
    %18 = arith.addf %16, %17 : vector<32x1xf32>
    %19 = math.rsqrt %18 : vector<32x1xf32>
    %20 = vector.broadcast %19 : vector<32x1xf32> to vector<32x32xf32>
    %21 = arith.mulf %11, %20 : vector<32x32xf32>
    %22 = vector.broadcast %4 : vector<1x32xf32> to vector<32x32xf32>
    %23 = arith.mulf %21, %22 : vector<32x32xf32>
    %24 = vector.broadcast %5 : vector<1x32xf32> to vector<32x32xf32>
    %25 = arith.addf %23, %24 : vector<32x32xf32>
    %26 = tpu.iota {dimensions = array<i32: 0>} : vector<32x1xi32>
    %c0_i32 = arith.constant 0 : i32
    %27 = vector.broadcast %c0_i32 : i32 to vector<32x1xi32>
    %28 = arith.cmpi eq, %26, %27 : vector<32x1xi32>
    %c1_i32 = arith.constant 1 : i32
    %29 = tpu.dynamic_rotate %25 by %c1_i32 dim 0 : vector<32x32xf32>, i32 -> vector<32x32xf32>
    %cst_8 = arith.constant 0.000000e+00 : f32
    %30 = vector.shape_cast %28 : vector<32x1xi1> to vector<32x1xi1>
    %31 = vector.broadcast %30 : vector<32x1xi1> to vector<32x32xi1>
    %32 = vector.broadcast %cst_8 : f32 to vector<32x32xf32>
    %33 = arith.select %31, %32, %29 : vector<32x32xi1>, vector<32x32xf32>
    %c31_i32 = arith.constant 31 : i32
    %34 = vector.broadcast %c31_i32 : i32 to vector<32x1xi32>
    %35 = arith.cmpi eq, %26, %34 : vector<32x1xi32>
    %c31_i32_9 = arith.constant 31 : i32
    %36 = tpu.dynamic_rotate %25 by %c31_i32_9 dim 0 : vector<32x32xf32>, i32 -> vector<32x32xf32>
    %cst_10 = arith.constant 0.000000e+00 : f32
    %37 = vector.shape_cast %35 : vector<32x1xi1> to vector<32x1xi1>
    %38 = vector.broadcast %37 : vector<32x1xi1> to vector<32x32xi1>
    %39 = vector.broadcast %cst_10 : f32 to vector<32x32xf32>
    %40 = arith.select %38, %39, %36 : vector<32x32xi1>, vector<32x32xf32>
    %c0_11 = arith.constant 0 : index
    %c0_12 = arith.constant 0 : index
    %c0_13 = arith.constant 0 : index
    %41 = vector.load %arg3[%c0_11, %c0_12, %c0_13] : memref<3x3x32xf32, #tpu.memory_space<vmem>>, vector<3x3x32xf32>
    %c0_14 = arith.constant 0 : index
    %c0_15 = arith.constant 0 : index
    %42 = vector.load %arg4[%c0_14, %c0_15] : memref<3x32xf32, #tpu.memory_space<vmem>>, vector<3x32xf32>
    %c0_16 = arith.constant 0 : index
    %c0_17 = arith.constant 0 : index
    %43 = vector.load %arg5[%c0_16, %c0_17] : memref<3x32xf32, #tpu.memory_space<vmem>>, vector<3x32xf32>
    %44 = vector.extract_strided_slice %41 {offsets = [0, 0, 0], sizes = [1, 3, 32], strides = [1, 1, 1]} : vector<3x3x32xf32> to vector<1x3x32xf32>
    %45 = vector.shape_cast %44 : vector<1x3x32xf32> to vector<3x32xf32>
    %46 = vector.extract_strided_slice %45 {offsets = [0, 0], sizes = [1, 32], strides = [1, 1]} : vector<3x32xf32> to vector<1x32xf32>
    %47 = vector.broadcast %46 : vector<1x32xf32> to vector<32x32xf32>
    %48 = arith.mulf %33, %47 : vector<32x32xf32>
    %49 = vector.extract_strided_slice %45 {offsets = [1, 0], sizes = [1, 32], strides = [1, 1]} : vector<3x32xf32> to vector<1x32xf32>
    %50 = vector.broadcast %49 : vector<1x32xf32> to vector<32x32xf32>
    %51 = arith.mulf %25, %50 : vector<32x32xf32>
    %52 = arith.addf %48, %51 : vector<32x32xf32>
    %53 = vector.extract_strided_slice %45 {offsets = [2, 0], sizes = [1, 32], strides = [1, 1]} : vector<3x32xf32> to vector<1x32xf32>
    %54 = vector.broadcast %53 : vector<1x32xf32> to vector<32x32xf32>
    %55 = arith.mulf %40, %54 : vector<32x32xf32>
    %56 = arith.addf %52, %55 : vector<32x32xf32>
    %57 = vector.extract_strided_slice %42 {offsets = [0, 0], sizes = [1, 32], strides = [1, 1]} : vector<3x32xf32> to vector<1x32xf32>
    %58 = vector.extract_strided_slice %43 {offsets = [0, 0], sizes = [1, 32], strides = [1, 1]} : vector<3x32xf32> to vector<1x32xf32>
    %cst_18 = arith.constant dense<0.000000e+00> : vector<32xf32>
    %59 = vector.multi_reduction <add>, %56, %cst_18 [1] : vector<32x32xf32> to vector<32xf32>
    %60 = vector.shape_cast %59 : vector<32xf32> to vector<32x1xf32>
    %cst_19 = arith.constant 3.200000e+01 : f32
    %61 = vector.broadcast %cst_19 : f32 to vector<32x1xf32>
    %62 = arith.divf %60, %61 : vector<32x1xf32>
    %63 = vector.broadcast %62 : vector<32x1xf32> to vector<32x32xf32>
    %64 = arith.subf %56, %63 : vector<32x32xf32>
    %65 = arith.mulf %64, %64 : vector<32x32xf32>
    %cst_20 = arith.constant dense<0.000000e+00> : vector<32xf32>
    %66 = vector.multi_reduction <add>, %65, %cst_20 [1] : vector<32x32xf32> to vector<32xf32>
    %67 = vector.shape_cast %66 : vector<32xf32> to vector<32x1xf32>
    %cst_21 = arith.constant 3.200000e+01 : f32
    %68 = vector.broadcast %cst_21 : f32 to vector<32x1xf32>
    %69 = arith.divf %67, %68 : vector<32x1xf32>
    %cst_22 = arith.constant 9.99999974E-6 : f32
    %70 = vector.broadcast %cst_22 : f32 to vector<32x1xf32>
    %71 = arith.addf %69, %70 : vector<32x1xf32>
    %72 = math.rsqrt %71 : vector<32x1xf32>
    %73 = vector.broadcast %72 : vector<32x1xf32> to vector<32x32xf32>
    %74 = arith.mulf %64, %73 : vector<32x32xf32>
    %75 = vector.broadcast %57 : vector<1x32xf32> to vector<32x32xf32>
    %76 = arith.mulf %74, %75 : vector<32x32xf32>
    %77 = vector.broadcast %58 : vector<1x32xf32> to vector<32x32xf32>
    %78 = arith.addf %76, %77 : vector<32x32xf32>
    %79 = vector.extract_strided_slice %41 {offsets = [1, 0, 0], sizes = [1, 3, 32], strides = [1, 1, 1]} : vector<3x3x32xf32> to vector<1x3x32xf32>
    %80 = vector.shape_cast %79 : vector<1x3x32xf32> to vector<3x32xf32>
    %81 = vector.extract_strided_slice %80 {offsets = [0, 0], sizes = [1, 32], strides = [1, 1]} : vector<3x32xf32> to vector<1x32xf32>
    %82 = vector.broadcast %81 : vector<1x32xf32> to vector<32x32xf32>
    %83 = arith.mulf %33, %82 : vector<32x32xf32>
    %84 = vector.extract_strided_slice %80 {offsets = [1, 0], sizes = [1, 32], strides = [1, 1]} : vector<3x32xf32> to vector<1x32xf32>
    %85 = vector.broadcast %84 : vector<1x32xf32> to vector<32x32xf32>
    %86 = arith.mulf %25, %85 : vector<32x32xf32>
    %87 = arith.addf %83, %86 : vector<32x32xf32>
    %88 = vector.extract_strided_slice %80 {offsets = [2, 0], sizes = [1, 32], strides = [1, 1]} : vector<3x32xf32> to vector<1x32xf32>
    %89 = vector.broadcast %88 : vector<1x32xf32> to vector<32x32xf32>
    %90 = arith.mulf %40, %89 : vector<32x32xf32>
    %91 = arith.addf %87, %90 : vector<32x32xf32>
    %92 = vector.extract_strided_slice %42 {offsets = [1, 0], sizes = [1, 32], strides = [1, 1]} : vector<3x32xf32> to vector<1x32xf32>
    %93 = vector.extract_strided_slice %43 {offsets = [1, 0], sizes = [1, 32], strides = [1, 1]} : vector<3x32xf32> to vector<1x32xf32>
    %cst_23 = arith.constant dense<0.000000e+00> : vector<32xf32>
    %94 = vector.multi_reduction <add>, %91, %cst_23 [1] : vector<32x32xf32> to vector<32xf32>
    %95 = vector.shape_cast %94 : vector<32xf32> to vector<32x1xf32>
    %cst_24 = arith.constant 3.200000e+01 : f32
    %96 = vector.broadcast %cst_24 : f32 to vector<32x1xf32>
    %97 = arith.divf %95, %96 : vector<32x1xf32>
    %98 = vector.broadcast %97 : vector<32x1xf32> to vector<32x32xf32>
    %99 = arith.subf %91, %98 : vector<32x32xf32>
    %100 = arith.mulf %99, %99 : vector<32x32xf32>
    %cst_25 = arith.constant dense<0.000000e+00> : vector<32xf32>
    %101 = vector.multi_reduction <add>, %100, %cst_25 [1] : vector<32x32xf32> to vector<32xf32>
    %102 = vector.shape_cast %101 : vector<32xf32> to vector<32x1xf32>
    %cst_26 = arith.constant 3.200000e+01 : f32
    %103 = vector.broadcast %cst_26 : f32 to vector<32x1xf32>
    %104 = arith.divf %102, %103 : vector<32x1xf32>
    %cst_27 = arith.constant 9.99999974E-6 : f32
    %105 = vector.broadcast %cst_27 : f32 to vector<32x1xf32>
    %106 = arith.addf %104, %105 : vector<32x1xf32>
    %107 = math.rsqrt %106 : vector<32x1xf32>
    %108 = vector.broadcast %107 : vector<32x1xf32> to vector<32x32xf32>
    %109 = arith.mulf %99, %108 : vector<32x32xf32>
    %110 = vector.broadcast %92 : vector<1x32xf32> to vector<32x32xf32>
    %111 = arith.mulf %109, %110 : vector<32x32xf32>
    %112 = vector.broadcast %93 : vector<1x32xf32> to vector<32x32xf32>
    %113 = arith.addf %111, %112 : vector<32x32xf32>
    %114 = vector.extract_strided_slice %41 {offsets = [2, 0, 0], sizes = [1, 3, 32], strides = [1, 1, 1]} : vector<3x3x32xf32> to vector<1x3x32xf32>
    %115 = vector.shape_cast %114 : vector<1x3x32xf32> to vector<3x32xf32>
    %116 = vector.extract_strided_slice %115 {offsets = [0, 0], sizes = [1, 32], strides = [1, 1]} : vector<3x32xf32> to vector<1x32xf32>
    %117 = vector.broadcast %116 : vector<1x32xf32> to vector<32x32xf32>
    %118 = arith.mulf %33, %117 : vector<32x32xf32>
    %119 = vector.extract_strided_slice %115 {offsets = [1, 0], sizes = [1, 32], strides = [1, 1]} : vector<3x32xf32> to vector<1x32xf32>
    %120 = vector.broadcast %119 : vector<1x32xf32> to vector<32x32xf32>
    %121 = arith.mulf %25, %120 : vector<32x32xf32>
    %122 = arith.addf %118, %121 : vector<32x32xf32>
    %123 = vector.extract_strided_slice %115 {offsets = [2, 0], sizes = [1, 32], strides = [1, 1]} : vector<3x32xf32> to vector<1x32xf32>
    %124 = vector.broadcast %123 : vector<1x32xf32> to vector<32x32xf32>
    %125 = arith.mulf %40, %124 : vector<32x32xf32>
    %126 = arith.addf %122, %125 : vector<32x32xf32>
    %127 = vector.extract_strided_slice %42 {offsets = [2, 0], sizes = [1, 32], strides = [1, 1]} : vector<3x32xf32> to vector<1x32xf32>
    %128 = vector.extract_strided_slice %43 {offsets = [2, 0], sizes = [1, 32], strides = [1, 1]} : vector<3x32xf32> to vector<1x32xf32>
    %cst_28 = arith.constant dense<0.000000e+00> : vector<32xf32>
    %129 = vector.multi_reduction <add>, %126, %cst_28 [1] : vector<32x32xf32> to vector<32xf32>
    %130 = vector.shape_cast %129 : vector<32xf32> to vector<32x1xf32>
    %cst_29 = arith.constant 3.200000e+01 : f32
    %131 = vector.broadcast %cst_29 : f32 to vector<32x1xf32>
    %132 = arith.divf %130, %131 : vector<32x1xf32>
    %133 = vector.broadcast %132 : vector<32x1xf32> to vector<32x32xf32>
    %134 = arith.subf %126, %133 : vector<32x32xf32>
    %135 = arith.mulf %134, %134 : vector<32x32xf32>
    %cst_30 = arith.constant dense<0.000000e+00> : vector<32xf32>
    %136 = vector.multi_reduction <add>, %135, %cst_30 [1] : vector<32x32xf32> to vector<32xf32>
    %137 = vector.shape_cast %136 : vector<32xf32> to vector<32x1xf32>
    %cst_31 = arith.constant 3.200000e+01 : f32
    %138 = vector.broadcast %cst_31 : f32 to vector<32x1xf32>
    %139 = arith.divf %137, %138 : vector<32x1xf32>
    %cst_32 = arith.constant 9.99999974E-6 : f32
    %140 = vector.broadcast %cst_32 : f32 to vector<32x1xf32>
    %141 = arith.addf %139, %140 : vector<32x1xf32>
    %142 = math.rsqrt %141 : vector<32x1xf32>
    %143 = vector.broadcast %142 : vector<32x1xf32> to vector<32x32xf32>
    %144 = arith.mulf %134, %143 : vector<32x32xf32>
    %145 = vector.broadcast %127 : vector<1x32xf32> to vector<32x32xf32>
    %146 = arith.mulf %144, %145 : vector<32x32xf32>
    %147 = vector.broadcast %128 : vector<1x32xf32> to vector<32x32xf32>
    %148 = arith.addf %146, %147 : vector<32x32xf32>
    %149 = tpu.concatenate %78, %113, %148 in 1 : vector<32x32xf32>, vector<32x32xf32>, vector<32x32xf32> -> vector<32x96xf32>
    %150 = arith.truncf %149 : vector<32x96xf32> to vector<32x96xbf16>
    %c0_33 = arith.constant 0 : index
    %c0_34 = arith.constant 0 : index
    %151 = vector.load %arg6[%c0_33, %c0_34] : memref<96x96xbf16, #tpu.memory_space<vmem>>, vector<96x96xbf16>
    %cst_35 = arith.constant dense<0.000000e+00> : vector<32x96xf32>
    %152 = tpu.matmul %150, %151, %cst_35 {dimension_numbers = #tpu.dot_dimension_numbers<[1], [0], [0], [1], [0, 0, 1, 1], [], []>} : vector<32x96xbf16>, vector<96x96xbf16>, vector<32x96xf32> -> vector<32x96xf32>
    %c0_36 = arith.constant 0 : index
    %c0_37 = arith.constant 0 : index
    %153 = vector.load %arg7[%c0_36, %c0_37] : memref<1x96xf32, #tpu.memory_space<vmem>>, vector<1x96xf32>
    %154 = vector.broadcast %153 : vector<1x96xf32> to vector<32x96xf32>
    %155 = arith.addf %152, %154 : vector<32x96xf32>
    %156 = arith.truncf %155 : vector<32x96xf32> to vector<32x96xbf16>
    %c0_i32_38 = arith.constant 0 : i32
    %157 = vector.broadcast %c0_i32_38 : i32 to vector<32x1xi32>
    %158 = arith.cmpi eq, %26, %157 : vector<32x1xi32>
    %c1_i32_39 = arith.constant 1 : i32
    %159 = tpu.dynamic_rotate %2 by %c1_i32_39 dim 0 : vector<32x32xf32>, i32 -> vector<32x32xf32>
    %160 = vector.shape_cast %158 : vector<32x1xi1> to vector<32x1xi1>
    %161 = vector.broadcast %160 : vector<32x1xi1> to vector<32x32xi1>
    %162 = arith.select %161, %2, %159 : vector<32x32xi1>, vector<32x32xf32>
    %c31_i32_40 = arith.constant 31 : i32
    %163 = vector.broadcast %c31_i32_40 : i32 to vector<32x1xi32>
    %164 = arith.cmpi eq, %26, %163 : vector<32x1xi32>
    %c31_i32_41 = arith.constant 31 : i32
    %165 = tpu.dynamic_rotate %2 by %c31_i32_41 dim 0 : vector<32x32xf32>, i32 -> vector<32x32xf32>
    %166 = vector.shape_cast %164 : vector<32x1xi1> to vector<32x1xi1>
    %167 = vector.broadcast %166 : vector<32x1xi1> to vector<32x32xi1>
    %168 = arith.select %167, %2, %165 : vector<32x32xi1>, vector<32x32xf32>
    %169 = arith.maximumf %162, %2 : vector<32x32xf32>
    %170 = arith.maximumf %169, %168 : vector<32x32xf32>
    %171 = tpu.iota {dimensions = array<i32: 0>} : vector<16x32xi32>
    %172 = tpu.iota {dimensions = array<i32: 1>} : vector<16x32xi32>
    %c2_i32 = arith.constant 2 : i32
    %173 = vector.broadcast %c2_i32 : i32 to vector<16x32xi32>
    %174 = arith.muli %171, %173 : vector<16x32xi32>
    %175 = arith.cmpi eq, %172, %174 : vector<16x32xi32>
    %cst_42 = arith.constant 1.000000e+00 : f32
    %cst_43 = arith.constant 0.000000e+00 : f32
    %176 = vector.broadcast %cst_42 : f32 to vector<16x32xf32>
    %177 = vector.broadcast %cst_43 : f32 to vector<16x32xf32>
    %178 = arith.select %175, %176, %177 : vector<16x32xi1>, vector<16x32xf32>
    %179 = arith.truncf %178 : vector<16x32xf32> to vector<16x32xbf16>
    %cst_44 = arith.constant dense<0.000000e+00> : vector<16x96xf32>
    %180 = tpu.matmul %179, %156, %cst_44 {dimension_numbers = #tpu.dot_dimension_numbers<[1], [0], [0], [1], [0, 0, 1, 1], [], []>} : vector<16x32xbf16>, vector<32x96xbf16>, vector<16x96xf32> -> vector<16x96xf32>
    %181 = arith.truncf %180 : vector<16x96xf32> to vector<16x96xbf16>
    %182 = arith.truncf %170 : vector<32x32xf32> to vector<32x32xbf16>
    %cst_45 = arith.constant dense<0.000000e+00> : vector<16x32xf32>
    %183 = tpu.matmul %179, %182, %cst_45 {dimension_numbers = #tpu.dot_dimension_numbers<[1], [0], [0], [1], [0, 0, 1, 1], [], []>} : vector<16x32xbf16>, vector<32x32xbf16>, vector<16x32xf32> -> vector<16x32xf32>
    %184 = vector.extract_strided_slice %181 {offsets = [0, 0], sizes = [16, 8], strides = [1, 1]} : vector<16x96xbf16> to vector<16x8xbf16>
    %185 = vector.extract_strided_slice %181 {offsets = [0, 8], sizes = [16, 8], strides = [1, 1]} : vector<16x96xbf16> to vector<16x8xbf16>
    %186 = vector.extract_strided_slice %181 {offsets = [0, 16], sizes = [16, 8], strides = [1, 1]} : vector<16x96xbf16> to vector<16x8xbf16>
    %187 = vector.extract_strided_slice %181 {offsets = [0, 24], sizes = [16, 8], strides = [1, 1]} : vector<16x96xbf16> to vector<16x8xbf16>
    %188 = vector.shape_cast %184 : vector<16x8xbf16> to vector<1x16x8xbf16>
    %189 = vector.shape_cast %185 : vector<16x8xbf16> to vector<1x16x8xbf16>
    %190 = vector.shape_cast %186 : vector<16x8xbf16> to vector<1x16x8xbf16>
    %191 = vector.shape_cast %187 : vector<16x8xbf16> to vector<1x16x8xbf16>
    %192 = tpu.concatenate %188, %189, %190, %191 in 0 : vector<1x16x8xbf16>, vector<1x16x8xbf16>, vector<1x16x8xbf16>, vector<1x16x8xbf16> -> vector<4x16x8xbf16>
    %193 = vector.extract_strided_slice %181 {offsets = [0, 32], sizes = [16, 8], strides = [1, 1]} : vector<16x96xbf16> to vector<16x8xbf16>
    %194 = vector.extract_strided_slice %181 {offsets = [0, 40], sizes = [16, 8], strides = [1, 1]} : vector<16x96xbf16> to vector<16x8xbf16>
    %195 = vector.extract_strided_slice %181 {offsets = [0, 48], sizes = [16, 8], strides = [1, 1]} : vector<16x96xbf16> to vector<16x8xbf16>
    %196 = vector.extract_strided_slice %181 {offsets = [0, 56], sizes = [16, 8], strides = [1, 1]} : vector<16x96xbf16> to vector<16x8xbf16>
    %197 = vector.shape_cast %193 : vector<16x8xbf16> to vector<1x16x8xbf16>
    %198 = vector.shape_cast %194 : vector<16x8xbf16> to vector<1x16x8xbf16>
    %199 = vector.shape_cast %195 : vector<16x8xbf16> to vector<1x16x8xbf16>
    %200 = vector.shape_cast %196 : vector<16x8xbf16> to vector<1x16x8xbf16>
    %201 = tpu.concatenate %197, %198, %199, %200 in 0 : vector<1x16x8xbf16>, vector<1x16x8xbf16>, vector<1x16x8xbf16>, vector<1x16x8xbf16> -> vector<4x16x8xbf16>
    %202 = vector.extract_strided_slice %181 {offsets = [0, 64], sizes = [16, 8], strides = [1, 1]} : vector<16x96xbf16> to vector<16x8xbf16>
    %203 = vector.extract_strided_slice %181 {offsets = [0, 72], sizes = [16, 8], strides = [1, 1]} : vector<16x96xbf16> to vector<16x8xbf16>
    %204 = vector.extract_strided_slice %181 {offsets = [0, 80], sizes = [16, 8], strides = [1, 1]} : vector<16x96xbf16> to vector<16x8xbf16>
    %205 = vector.extract_strided_slice %181 {offsets = [0, 88], sizes = [16, 8], strides = [1, 1]} : vector<16x96xbf16> to vector<16x8xbf16>
    %206 = vector.shape_cast %202 : vector<16x8xbf16> to vector<1x16x8xbf16>
    %207 = vector.shape_cast %203 : vector<16x8xbf16> to vector<1x16x8xbf16>
    %208 = vector.shape_cast %204 : vector<16x8xbf16> to vector<1x16x8xbf16>
    %209 = vector.shape_cast %205 : vector<16x8xbf16> to vector<1x16x8xbf16>
    %210 = tpu.concatenate %206, %207, %208, %209 in 0 : vector<1x16x8xbf16>, vector<1x16x8xbf16>, vector<1x16x8xbf16>, vector<1x16x8xbf16> -> vector<4x16x8xbf16>
    "tpu.trace_start"() <{level = 10 : i32, message = "hqd,hkd->hqk"}> : () -> ()
    %cst_46 = arith.constant dense<0.000000e+00> : vector<4x16x16xf32>
    %211 = tpu.matmul %192, %201, %cst_46 {dimension_numbers = #tpu.dot_dimension_numbers<[2], [2], [1], [1], [0, 0, 0, 1, 1, 1], [0], [0]>} : vector<4x16x8xbf16>, vector<4x16x8xbf16>, vector<4x16x16xf32> -> vector<4x16x16xf32>
    "tpu.trace_stop"() : () -> ()
    %cst_47 = arith.constant dense<0xFF800000> : vector<4x16xf32>
    %212 = vector.multi_reduction <maximumf>, %211, %cst_47 [2] : vector<4x16x16xf32> to vector<4x16xf32>
    %213 = vector.shape_cast %212 : vector<4x16xf32> to vector<4x16x1xf32>
    %214 = vector.broadcast %213 : vector<4x16x1xf32> to vector<4x16x16xf32>
    %215 = arith.subf %211, %214 : vector<4x16x16xf32>
    %216 = math.exp %215 : vector<4x16x16xf32>
    %cst_48 = arith.constant dense<0.000000e+00> : vector<4x16xf32>
    %217 = vector.multi_reduction <add>, %216, %cst_48 [2] : vector<4x16x16xf32> to vector<4x16xf32>
    %218 = vector.shape_cast %217 : vector<4x16xf32> to vector<4x16x1xf32>
    %219 = tpu.reciprocal %218 {approx = true} : vector<4x16x1xf32> -> vector<4x16x1xf32>
    %220 = vector.broadcast %219 : vector<4x16x1xf32> to vector<4x16x16xf32>
    %221 = arith.mulf %216, %220 : vector<4x16x16xf32>
    %222 = arith.truncf %221 : vector<4x16x16xf32> to vector<4x16x16xbf16>
    "tpu.trace_start"() <{level = 10 : i32, message = "hqk,hkd->hqd"}> : () -> ()
    %cst_49 = arith.constant dense<0.000000e+00> : vector<4x16x8xf32>
    %223 = tpu.matmul %222, %210, %cst_49 {dimension_numbers = #tpu.dot_dimension_numbers<[2], [1], [1], [2], [0, 0, 0, 1, 1, 2], [0], [0]>} : vector<4x16x16xbf16>, vector<4x16x8xbf16>, vector<4x16x8xf32> -> vector<4x16x8xf32>
    "tpu.trace_stop"() : () -> ()
    %224 = arith.truncf %223 : vector<4x16x8xf32> to vector<4x16x8xbf16>
    %c0_50 = arith.constant 0 : index
    %c0_51 = arith.constant 0 : index
    %c0_52 = arith.constant 0 : index
    %225 = vector.load %arg8[%c0_50, %c0_51, %c0_52] : memref<4x8x32xbf16, #tpu.memory_space<vmem>>, vector<4x8x32xbf16>
    "tpu.trace_start"() <{level = 10 : i32, message = "hqd,hdc->hqc"}> : () -> ()
    %cst_53 = arith.constant dense<0.000000e+00> : vector<4x16x32xf32>
    %226 = tpu.matmul %224, %225, %cst_53 {dimension_numbers = #tpu.dot_dimension_numbers<[2], [1], [1], [2], [0, 0, 0, 1, 1, 2], [0], [0]>} : vector<4x16x8xbf16>, vector<4x8x32xbf16>, vector<4x16x32xf32> -> vector<4x16x32xf32>
    "tpu.trace_stop"() : () -> ()
    %cst_54 = arith.constant dense<0.000000e+00> : vector<16x32xf32>
    %227 = vector.multi_reduction <add>, %226, %cst_54 [0] : vector<4x16x32xf32> to vector<16x32xf32>
    %228 = arith.addf %183, %227 : vector<16x32xf32>
    %c0_55 = arith.constant 0 : index
    %c0_56 = arith.constant 0 : index
    %229 = vector.load %arg9[%c0_55, %c0_56] : memref<1x32xf32, #tpu.memory_space<vmem>>, vector<1x32xf32>
    %230 = vector.broadcast %229 : vector<1x32xf32> to vector<16x32xf32>
    %231 = arith.addf %228, %230 : vector<16x32xf32>
    %c0_57 = arith.constant 0 : index
    %c0_58 = arith.constant 0 : index
    %232 = vector.load %arg10[%c0_57, %c0_58] : memref<2x32xf32, #tpu.memory_space<vmem>>, vector<2x32xf32>
    %233 = vector.extract_strided_slice %232 {offsets = [0, 0], sizes = [1, 32], strides = [1, 1]} : vector<2x32xf32> to vector<1x32xf32>
    %234 = vector.extract_strided_slice %232 {offsets = [1, 0], sizes = [1, 32], strides = [1, 1]} : vector<2x32xf32> to vector<1x32xf32>
    %cst_59 = arith.constant dense<0.000000e+00> : vector<16xf32>
    %235 = vector.multi_reduction <add>, %231, %cst_59 [1] : vector<16x32xf32> to vector<16xf32>
    %236 = vector.shape_cast %235 : vector<16xf32> to vector<16x1xf32>
    %cst_60 = arith.constant 3.200000e+01 : f32
    %237 = vector.broadcast %cst_60 : f32 to vector<16x1xf32>
    %238 = arith.divf %236, %237 : vector<16x1xf32>
    %239 = vector.broadcast %238 : vector<16x1xf32> to vector<16x32xf32>
    %240 = arith.subf %231, %239 : vector<16x32xf32>
    %241 = arith.mulf %240, %240 : vector<16x32xf32>
    %cst_61 = arith.constant dense<0.000000e+00> : vector<16xf32>
    %242 = vector.multi_reduction <add>, %241, %cst_61 [1] : vector<16x32xf32> to vector<16xf32>
    %243 = vector.shape_cast %242 : vector<16xf32> to vector<16x1xf32>
    %cst_62 = arith.constant 3.200000e+01 : f32
    %244 = vector.broadcast %cst_62 : f32 to vector<16x1xf32>
    %245 = arith.divf %243, %244 : vector<16x1xf32>
    %cst_63 = arith.constant 9.99999974E-6 : f32
    %246 = vector.broadcast %cst_63 : f32 to vector<16x1xf32>
    %247 = arith.addf %245, %246 : vector<16x1xf32>
    %248 = math.rsqrt %247 : vector<16x1xf32>
    %249 = vector.broadcast %248 : vector<16x1xf32> to vector<16x32xf32>
    %250 = arith.mulf %240, %249 : vector<16x32xf32>
    %251 = vector.broadcast %233 : vector<1x32xf32> to vector<16x32xf32>
    %252 = arith.mulf %250, %251 : vector<16x32xf32>
    %253 = vector.broadcast %234 : vector<1x32xf32> to vector<16x32xf32>
    %254 = arith.addf %252, %253 : vector<16x32xf32>
    %255 = arith.truncf %254 : vector<16x32xf32> to vector<16x32xbf16>
    %c0_64 = arith.constant 0 : index
    %c0_65 = arith.constant 0 : index
    %256 = vector.load %arg11[%c0_64, %c0_65] : memref<32x128xbf16, #tpu.memory_space<vmem>>, vector<32x128xbf16>
    %cst_66 = arith.constant dense<0.000000e+00> : vector<16x128xf32>
    %257 = tpu.matmul %255, %256, %cst_66 {dimension_numbers = #tpu.dot_dimension_numbers<[1], [0], [0], [1], [0, 0, 1, 1], [], []>} : vector<16x32xbf16>, vector<32x128xbf16>, vector<16x128xf32> -> vector<16x128xf32>
    %c0_67 = arith.constant 0 : index
    %c0_68 = arith.constant 0 : index
    %258 = vector.load %arg12[%c0_67, %c0_68] : memref<1x128xf32, #tpu.memory_space<vmem>>, vector<1x128xf32>
    %259 = vector.broadcast %258 : vector<1x128xf32> to vector<16x128xf32>
    %260 = arith.addf %257, %259 : vector<16x128xf32>
    %261 = arith.mulf %260, %260 : vector<16x128xf32>
    %262 = arith.mulf %260, %261 : vector<16x128xf32>
    %cst_69 = arith.constant 4.471500e-02 : f32
    %263 = vector.broadcast %cst_69 : f32 to vector<16x128xf32>
    %264 = arith.mulf %263, %262 : vector<16x128xf32>
    %265 = arith.addf %260, %264 : vector<16x128xf32>
    %cst_70 = arith.constant 0.797884583 : f32
    %266 = vector.broadcast %cst_70 : f32 to vector<16x128xf32>
    %267 = arith.mulf %266, %265 : vector<16x128xf32>
    %268 = math.tanh %267 : vector<16x128xf32>
    %cst_71 = arith.constant 1.000000e+00 : f32
    %269 = vector.broadcast %cst_71 : f32 to vector<16x128xf32>
    %270 = arith.addf %269, %268 : vector<16x128xf32>
    %cst_72 = arith.constant 5.000000e-01 : f32
    %271 = vector.broadcast %cst_72 : f32 to vector<16x128xf32>
    %272 = arith.mulf %271, %270 : vector<16x128xf32>
    %273 = arith.mulf %260, %272 : vector<16x128xf32>
    %274 = arith.truncf %273 : vector<16x128xf32> to vector<16x128xbf16>
    %c0_73 = arith.constant 0 : index
    %c0_74 = arith.constant 0 : index
    %275 = vector.load %arg13[%c0_73, %c0_74] : memref<128x32xbf16, #tpu.memory_space<vmem>>, vector<128x32xbf16>
    %cst_75 = arith.constant dense<0.000000e+00> : vector<16x32xf32>
    %276 = tpu.matmul %274, %275, %cst_75 {dimension_numbers = #tpu.dot_dimension_numbers<[1], [0], [0], [1], [0, 0, 1, 1], [], []>} : vector<16x128xbf16>, vector<128x32xbf16>, vector<16x32xf32> -> vector<16x32xf32>
    %c0_76 = arith.constant 0 : index
    %c0_77 = arith.constant 0 : index
    %277 = vector.load %arg14[%c0_76, %c0_77] : memref<1x32xf32, #tpu.memory_space<vmem>>, vector<1x32xf32>
    %278 = vector.broadcast %277 : vector<1x32xf32> to vector<16x32xf32>
    %279 = arith.addf %276, %278 : vector<16x32xf32>
    %280 = arith.addf %231, %279 : vector<16x32xf32>
    %281 = arith.truncf %280 : vector<16x32xf32> to vector<16x32xbf16>
    %c0_78 = arith.constant 0 : index
    %c0_79 = arith.constant 0 : index
    %c0_80 = arith.constant 0 : index
    %282 = vector.load %arg15[%c0_78, %c0_79, %c0_80] : memref<1x16x32xbf16, #tpu.memory_space<vmem>>, vector<1x16x32xbf16>
    %283 = vector.shape_cast %282 : vector<1x16x32xbf16> to vector<16x32xbf16>
    %284 = vector.shape_cast %281 : vector<16x32xbf16> to vector<1x16x32xbf16>
    tpu.vector_store %arg15[%c0_78, %c0_79, %c0_80], %284 {strides = array<i32>} : memref<1x16x32xbf16, #tpu.memory_space<vmem>>, vector<1x16x32xbf16>,
    return
  }
  func.func @transform_0(%arg0: i32) -> (i32, i32, i32) {
    %c0_i32 = arith.constant 0 : i32
    %c0_i32_0 = arith.constant 0 : i32
    %c0_i32_1 = arith.constant 0 : i32
    return %arg0, %c0_i32, %c0_i32_0 : i32, i32, i32
  }
  func.func @transform_1(%arg0: i32) -> (i32, i32) {
    %c0_i32 = arith.constant 0 : i32
    %c0_i32_0 = arith.constant 0 : i32
    %c0_i32_1 = arith.constant 0 : i32
    return %c0_i32, %c0_i32_0 : i32, i32
  }
  func.func @transform_2(%arg0: i32) -> (i32, i32, i32) {
    %c0_i32 = arith.constant 0 : i32
    %c0_i32_0 = arith.constant 0 : i32
    %c0_i32_1 = arith.constant 0 : i32
    %c0_i32_2 = arith.constant 0 : i32
    return %c0_i32, %c0_i32_0, %c0_i32_1 : i32, i32, i32
  }
  func.func @transform_3(%arg0: i32) -> (i32, i32) {
    %c0_i32 = arith.constant 0 : i32
    %c0_i32_0 = arith.constant 0 : i32
    %c0_i32_1 = arith.constant 0 : i32
    return %c0_i32, %c0_i32_0 : i32, i32
  }
  func.func @transform_4(%arg0: i32) -> (i32, i32) {
    %c0_i32 = arith.constant 0 : i32
    %c0_i32_0 = arith.constant 0 : i32
    %c0_i32_1 = arith.constant 0 : i32
    return %c0_i32, %c0_i32_0 : i32, i32
  }
  func.func @transform_5(%arg0: i32) -> (i32, i32) {
    %c0_i32 = arith.constant 0 : i32
    %c0_i32_0 = arith.constant 0 : i32
    %c0_i32_1 = arith.constant 0 : i32
    return %c0_i32, %c0_i32_0 : i32, i32
  }
  func.func @transform_6(%arg0: i32) -> (i32, i32) {
    %c0_i32 = arith.constant 0 : i32
    %c0_i32_0 = arith.constant 0 : i32
    %c0_i32_1 = arith.constant 0 : i32
    return %c0_i32, %c0_i32_0 : i32, i32
  }
  func.func @transform_7(%arg0: i32) -> (i32, i32, i32) {
    %c0_i32 = arith.constant 0 : i32
    %c0_i32_0 = arith.constant 0 : i32
    %c0_i32_1 = arith.constant 0 : i32
    %c0_i32_2 = arith.constant 0 : i32
    return %c0_i32, %c0_i32_0, %c0_i32_1 : i32, i32, i32
  }
  func.func @transform_8(%arg0: i32) -> (i32, i32) {
    %c0_i32 = arith.constant 0 : i32
    %c0_i32_0 = arith.constant 0 : i32
    %c0_i32_1 = arith.constant 0 : i32
    return %c0_i32, %c0_i32_0 : i32, i32
  }
  func.func @transform_9(%arg0: i32) -> (i32, i32) {
    %c0_i32 = arith.constant 0 : i32
    %c0_i32_0 = arith.constant 0 : i32
    %c0_i32_1 = arith.constant 0 : i32
    return %c0_i32, %c0_i32_0 : i32, i32
  }
  func.func @transform_10(%arg0: i32) -> (i32, i32) {
    %c0_i32 = arith.constant 0 : i32
    %c0_i32_0 = arith.constant 0 : i32
    %c0_i32_1 = arith.constant 0 : i32
    return %c0_i32, %c0_i32_0 : i32, i32
  }
  func.func @transform_11(%arg0: i32) -> (i32, i32) {
    %c0_i32 = arith.constant 0 : i32
    %c0_i32_0 = arith.constant 0 : i32
    %c0_i32_1 = arith.constant 0 : i32
    return %c0_i32, %c0_i32_0 : i32, i32
  }
  func.func @transform_12(%arg0: i32) -> (i32, i32) {
    %c0_i32 = arith.constant 0 : i32
    %c0_i32_0 = arith.constant 0 : i32
    %c0_i32_1 = arith.constant 0 : i32
    return %c0_i32, %c0_i32_0 : i32, i32
  }
  func.func @transform_13(%arg0: i32) -> (i32, i32) {
    %c0_i32 = arith.constant 0 : i32
    %c0_i32_0 = arith.constant 0 : i32
    %c0_i32_1 = arith.constant 0 : i32
    return %c0_i32, %c0_i32_0 : i32, i32
  }
  func.func @transform_14(%arg0: i32) -> (i32, i32, i32) {
    %c0_i32 = arith.constant 0 : i32
    %c0_i32_0 = arith.constant 0 : i32
    %c0_i32_1 = arith.constant 0 : i32
    return %arg0, %c0_i32, %c0_i32_0 : i32, i32, i32
  }
}

module attributes {stable_mosaic.version = 11 : i64} {
  func.func @_block_kernel(%arg0: i32, %arg1: memref<1x64x32xbf16, #tpu.memory_space<vmem>>, %arg2: memref<2x32xf32, #tpu.memory_space<vmem>>, %arg3: memref<3x3x32xf32, #tpu.memory_space<vmem>>, %arg4: memref<3x32xf32, #tpu.memory_space<vmem>>, %arg5: memref<3x32xf32, #tpu.memory_space<vmem>>, %arg6: memref<96x96xbf16, #tpu.memory_space<vmem>>, %arg7: memref<1x96xf32, #tpu.memory_space<vmem>>, %arg8: memref<4x8x32xbf16, #tpu.memory_space<vmem>>, %arg9: memref<1x32xf32, #tpu.memory_space<vmem>>, %arg10: memref<2x32xf32, #tpu.memory_space<vmem>>, %arg11: memref<32x128xbf16, #tpu.memory_space<vmem>>, %arg12: memref<1x128xf32, #tpu.memory_space<vmem>>, %arg13: memref<128x32xbf16, #tpu.memory_space<vmem>>, %arg14: memref<1x32xf32, #tpu.memory_space<vmem>>, %arg15: memref<1x32x32xbf16, #tpu.memory_space<vmem>>) attributes {dimension_semantics = [#tpu.dimension_semantics<parallel>], iteration_bounds = array<i64: 2>, scalar_prefetch = 0 : i64, scratch_operands = 0 : i64, tpu.core_type = #tpu.core_type<tc>, window_params = [{transform_indices = @transform_0, window_bounds = array<i64: 1, 64, 32>}, {pipeline_mode = #tpu.pipeline_mode<synchronous>, transform_indices = @transform_1, window_bounds = array<i64: 2, 32>}, {pipeline_mode = #tpu.pipeline_mode<synchronous>, transform_indices = @transform_2, window_bounds = array<i64: 3, 3, 32>}, {pipeline_mode = #tpu.pipeline_mode<synchronous>, transform_indices = @transform_3, window_bounds = array<i64: 3, 32>}, {pipeline_mode = #tpu.pipeline_mode<synchronous>, transform_indices = @transform_4, window_bounds = array<i64: 3, 32>}, {pipeline_mode = #tpu.pipeline_mode<synchronous>, transform_indices = @transform_5, window_bounds = array<i64: 96, 96>}, {pipeline_mode = #tpu.pipeline_mode<synchronous>, transform_indices = @transform_6, window_bounds = array<i64: 1, 96>}, {pipeline_mode = #tpu.pipeline_mode<synchronous>, transform_indices = @transform_7, window_bounds = array<i64: 4, 8, 32>}, {pipeline_mode = #tpu.pipeline_mode<synchronous>, transform_indices = @transform_8, window_bounds = array<i64: 1, 32>}, {pipeline_mode = #tpu.pipeline_mode<synchronous>, transform_indices = @transform_9, window_bounds = array<i64: 2, 32>}, {pipeline_mode = #tpu.pipeline_mode<synchronous>, transform_indices = @transform_10, window_bounds = array<i64: 32, 128>}, {pipeline_mode = #tpu.pipeline_mode<synchronous>, transform_indices = @transform_11, window_bounds = array<i64: 1, 128>}, {pipeline_mode = #tpu.pipeline_mode<synchronous>, transform_indices = @transform_12, window_bounds = array<i64: 128, 32>}, {pipeline_mode = #tpu.pipeline_mode<synchronous>, transform_indices = @transform_13, window_bounds = array<i64: 1, 32>}, {transform_indices = @transform_14, window_bounds = array<i64: 1, 32, 32>}]} {
    %c0 = arith.constant 0 : index
    %c0_0 = arith.constant 0 : index
    %c0_1 = arith.constant 0 : index
    %0 = vector.load %arg1[%c0, %c0_0, %c0_1] : memref<1x64x32xbf16, #tpu.memory_space<vmem>>, vector<1x64x32xbf16>
    %1 = vector.shape_cast %0 : vector<1x64x32xbf16> to vector<64x32xbf16>
    %2 = arith.extf %1 : vector<64x32xbf16> to vector<64x32xf32>
    %c0_2 = arith.constant 0 : index
    %c0_3 = arith.constant 0 : index
    %3 = vector.load %arg2[%c0_2, %c0_3] : memref<2x32xf32, #tpu.memory_space<vmem>>, vector<2x32xf32>
    %4 = vector.extract_strided_slice %3 {offsets = [0, 0], sizes = [1, 32], strides = [1, 1]} : vector<2x32xf32> to vector<1x32xf32>
    %5 = vector.extract_strided_slice %3 {offsets = [1, 0], sizes = [1, 32], strides = [1, 1]} : vector<2x32xf32> to vector<1x32xf32>
    %cst = arith.constant dense<0.000000e+00> : vector<64xf32>
    %6 = vector.multi_reduction <add>, %2, %cst [1] : vector<64x32xf32> to vector<64xf32>
    %7 = vector.shape_cast %6 : vector<64xf32> to vector<64x1xf32>
    %cst_4 = arith.constant 3.200000e+01 : f32
    %8 = vector.broadcast %cst_4 : f32 to vector<64x1xf32>
    %9 = arith.divf %7, %8 : vector<64x1xf32>
    %10 = vector.broadcast %9 : vector<64x1xf32> to vector<64x32xf32>
    %11 = arith.subf %2, %10 : vector<64x32xf32>
    %12 = arith.mulf %11, %11 : vector<64x32xf32>
    %cst_5 = arith.constant dense<0.000000e+00> : vector<64xf32>
    %13 = vector.multi_reduction <add>, %12, %cst_5 [1] : vector<64x32xf32> to vector<64xf32>
    %14 = vector.shape_cast %13 : vector<64xf32> to vector<64x1xf32>
    %cst_6 = arith.constant 3.200000e+01 : f32
    %15 = vector.broadcast %cst_6 : f32 to vector<64x1xf32>
    %16 = arith.divf %14, %15 : vector<64x1xf32>
    %cst_7 = arith.constant 9.99999974E-6 : f32
    %17 = vector.broadcast %cst_7 : f32 to vector<64x1xf32>
    %18 = arith.addf %16, %17 : vector<64x1xf32>
    %19 = math.rsqrt %18 : vector<64x1xf32>
    %20 = vector.broadcast %19 : vector<64x1xf32> to vector<64x32xf32>
    %21 = arith.mulf %11, %20 : vector<64x32xf32>
    %22 = vector.broadcast %4 : vector<1x32xf32> to vector<64x32xf32>
    %23 = arith.mulf %21, %22 : vector<64x32xf32>
    %24 = vector.broadcast %5 : vector<1x32xf32> to vector<64x32xf32>
    %25 = arith.addf %23, %24 : vector<64x32xf32>
    %26 = tpu.iota {dimensions = array<i32: 0>} : vector<64x1xi32>
    %c0_i32 = arith.constant 0 : i32
    %27 = vector.broadcast %c0_i32 : i32 to vector<64x1xi32>
    %28 = arith.cmpi eq, %26, %27 : vector<64x1xi32>
    %c1_i32 = arith.constant 1 : i32
    %29 = tpu.dynamic_rotate %25 by %c1_i32 dim 0 : vector<64x32xf32>, i32 -> vector<64x32xf32>
    %cst_8 = arith.constant 0.000000e+00 : f32
    %30 = vector.shape_cast %28 : vector<64x1xi1> to vector<64x1xi1>
    %31 = vector.broadcast %30 : vector<64x1xi1> to vector<64x32xi1>
    %32 = vector.broadcast %cst_8 : f32 to vector<64x32xf32>
    %33 = arith.select %31, %32, %29 : vector<64x32xi1>, vector<64x32xf32>
    %c63_i32 = arith.constant 63 : i32
    %34 = vector.broadcast %c63_i32 : i32 to vector<64x1xi32>
    %35 = arith.cmpi eq, %26, %34 : vector<64x1xi32>
    %c63_i32_9 = arith.constant 63 : i32
    %36 = tpu.dynamic_rotate %25 by %c63_i32_9 dim 0 : vector<64x32xf32>, i32 -> vector<64x32xf32>
    %cst_10 = arith.constant 0.000000e+00 : f32
    %37 = vector.shape_cast %35 : vector<64x1xi1> to vector<64x1xi1>
    %38 = vector.broadcast %37 : vector<64x1xi1> to vector<64x32xi1>
    %39 = vector.broadcast %cst_10 : f32 to vector<64x32xf32>
    %40 = arith.select %38, %39, %36 : vector<64x32xi1>, vector<64x32xf32>
    %c0_11 = arith.constant 0 : index
    %c0_12 = arith.constant 0 : index
    %c0_13 = arith.constant 0 : index
    %41 = vector.load %arg3[%c0_11, %c0_12, %c0_13] : memref<3x3x32xf32, #tpu.memory_space<vmem>>, vector<3x3x32xf32>
    %c0_14 = arith.constant 0 : index
    %c0_15 = arith.constant 0 : index
    %42 = vector.load %arg4[%c0_14, %c0_15] : memref<3x32xf32, #tpu.memory_space<vmem>>, vector<3x32xf32>
    %c0_16 = arith.constant 0 : index
    %c0_17 = arith.constant 0 : index
    %43 = vector.load %arg5[%c0_16, %c0_17] : memref<3x32xf32, #tpu.memory_space<vmem>>, vector<3x32xf32>
    %44 = vector.extract_strided_slice %41 {offsets = [0, 0, 0], sizes = [1, 3, 32], strides = [1, 1, 1]} : vector<3x3x32xf32> to vector<1x3x32xf32>
    %45 = vector.shape_cast %44 : vector<1x3x32xf32> to vector<3x32xf32>
    %46 = vector.extract_strided_slice %45 {offsets = [0, 0], sizes = [1, 32], strides = [1, 1]} : vector<3x32xf32> to vector<1x32xf32>
    %47 = vector.broadcast %46 : vector<1x32xf32> to vector<64x32xf32>
    %48 = arith.mulf %33, %47 : vector<64x32xf32>
    %49 = vector.extract_strided_slice %45 {offsets = [1, 0], sizes = [1, 32], strides = [1, 1]} : vector<3x32xf32> to vector<1x32xf32>
    %50 = vector.broadcast %49 : vector<1x32xf32> to vector<64x32xf32>
    %51 = arith.mulf %25, %50 : vector<64x32xf32>
    %52 = arith.addf %48, %51 : vector<64x32xf32>
    %53 = vector.extract_strided_slice %45 {offsets = [2, 0], sizes = [1, 32], strides = [1, 1]} : vector<3x32xf32> to vector<1x32xf32>
    %54 = vector.broadcast %53 : vector<1x32xf32> to vector<64x32xf32>
    %55 = arith.mulf %40, %54 : vector<64x32xf32>
    %56 = arith.addf %52, %55 : vector<64x32xf32>
    %57 = vector.extract_strided_slice %42 {offsets = [0, 0], sizes = [1, 32], strides = [1, 1]} : vector<3x32xf32> to vector<1x32xf32>
    %58 = vector.extract_strided_slice %43 {offsets = [0, 0], sizes = [1, 32], strides = [1, 1]} : vector<3x32xf32> to vector<1x32xf32>
    %cst_18 = arith.constant dense<0.000000e+00> : vector<64xf32>
    %59 = vector.multi_reduction <add>, %56, %cst_18 [1] : vector<64x32xf32> to vector<64xf32>
    %60 = vector.shape_cast %59 : vector<64xf32> to vector<64x1xf32>
    %cst_19 = arith.constant 3.200000e+01 : f32
    %61 = vector.broadcast %cst_19 : f32 to vector<64x1xf32>
    %62 = arith.divf %60, %61 : vector<64x1xf32>
    %63 = vector.broadcast %62 : vector<64x1xf32> to vector<64x32xf32>
    %64 = arith.subf %56, %63 : vector<64x32xf32>
    %65 = arith.mulf %64, %64 : vector<64x32xf32>
    %cst_20 = arith.constant dense<0.000000e+00> : vector<64xf32>
    %66 = vector.multi_reduction <add>, %65, %cst_20 [1] : vector<64x32xf32> to vector<64xf32>
    %67 = vector.shape_cast %66 : vector<64xf32> to vector<64x1xf32>
    %cst_21 = arith.constant 3.200000e+01 : f32
    %68 = vector.broadcast %cst_21 : f32 to vector<64x1xf32>
    %69 = arith.divf %67, %68 : vector<64x1xf32>
    %cst_22 = arith.constant 9.99999974E-6 : f32
    %70 = vector.broadcast %cst_22 : f32 to vector<64x1xf32>
    %71 = arith.addf %69, %70 : vector<64x1xf32>
    %72 = math.rsqrt %71 : vector<64x1xf32>
    %73 = vector.broadcast %72 : vector<64x1xf32> to vector<64x32xf32>
    %74 = arith.mulf %64, %73 : vector<64x32xf32>
    %75 = vector.broadcast %57 : vector<1x32xf32> to vector<64x32xf32>
    %76 = arith.mulf %74, %75 : vector<64x32xf32>
    %77 = vector.broadcast %58 : vector<1x32xf32> to vector<64x32xf32>
    %78 = arith.addf %76, %77 : vector<64x32xf32>
    %79 = vector.extract_strided_slice %41 {offsets = [1, 0, 0], sizes = [1, 3, 32], strides = [1, 1, 1]} : vector<3x3x32xf32> to vector<1x3x32xf32>
    %80 = vector.shape_cast %79 : vector<1x3x32xf32> to vector<3x32xf32>
    %81 = vector.extract_strided_slice %80 {offsets = [0, 0], sizes = [1, 32], strides = [1, 1]} : vector<3x32xf32> to vector<1x32xf32>
    %82 = vector.broadcast %81 : vector<1x32xf32> to vector<64x32xf32>
    %83 = arith.mulf %33, %82 : vector<64x32xf32>
    %84 = vector.extract_strided_slice %80 {offsets = [1, 0], sizes = [1, 32], strides = [1, 1]} : vector<3x32xf32> to vector<1x32xf32>
    %85 = vector.broadcast %84 : vector<1x32xf32> to vector<64x32xf32>
    %86 = arith.mulf %25, %85 : vector<64x32xf32>
    %87 = arith.addf %83, %86 : vector<64x32xf32>
    %88 = vector.extract_strided_slice %80 {offsets = [2, 0], sizes = [1, 32], strides = [1, 1]} : vector<3x32xf32> to vector<1x32xf32>
    %89 = vector.broadcast %88 : vector<1x32xf32> to vector<64x32xf32>
    %90 = arith.mulf %40, %89 : vector<64x32xf32>
    %91 = arith.addf %87, %90 : vector<64x32xf32>
    %92 = vector.extract_strided_slice %42 {offsets = [1, 0], sizes = [1, 32], strides = [1, 1]} : vector<3x32xf32> to vector<1x32xf32>
    %93 = vector.extract_strided_slice %43 {offsets = [1, 0], sizes = [1, 32], strides = [1, 1]} : vector<3x32xf32> to vector<1x32xf32>
    %cst_23 = arith.constant dense<0.000000e+00> : vector<64xf32>
    %94 = vector.multi_reduction <add>, %91, %cst_23 [1] : vector<64x32xf32> to vector<64xf32>
    %95 = vector.shape_cast %94 : vector<64xf32> to vector<64x1xf32>
    %cst_24 = arith.constant 3.200000e+01 : f32
    %96 = vector.broadcast %cst_24 : f32 to vector<64x1xf32>
    %97 = arith.divf %95, %96 : vector<64x1xf32>
    %98 = vector.broadcast %97 : vector<64x1xf32> to vector<64x32xf32>
    %99 = arith.subf %91, %98 : vector<64x32xf32>
    %100 = arith.mulf %99, %99 : vector<64x32xf32>
    %cst_25 = arith.constant dense<0.000000e+00> : vector<64xf32>
    %101 = vector.multi_reduction <add>, %100, %cst_25 [1] : vector<64x32xf32> to vector<64xf32>
    %102 = vector.shape_cast %101 : vector<64xf32> to vector<64x1xf32>
    %cst_26 = arith.constant 3.200000e+01 : f32
    %103 = vector.broadcast %cst_26 : f32 to vector<64x1xf32>
    %104 = arith.divf %102, %103 : vector<64x1xf32>
    %cst_27 = arith.constant 9.99999974E-6 : f32
    %105 = vector.broadcast %cst_27 : f32 to vector<64x1xf32>
    %106 = arith.addf %104, %105 : vector<64x1xf32>
    %107 = math.rsqrt %106 : vector<64x1xf32>
    %108 = vector.broadcast %107 : vector<64x1xf32> to vector<64x32xf32>
    %109 = arith.mulf %99, %108 : vector<64x32xf32>
    %110 = vector.broadcast %92 : vector<1x32xf32> to vector<64x32xf32>
    %111 = arith.mulf %109, %110 : vector<64x32xf32>
    %112 = vector.broadcast %93 : vector<1x32xf32> to vector<64x32xf32>
    %113 = arith.addf %111, %112 : vector<64x32xf32>
    %114 = vector.extract_strided_slice %41 {offsets = [2, 0, 0], sizes = [1, 3, 32], strides = [1, 1, 1]} : vector<3x3x32xf32> to vector<1x3x32xf32>
    %115 = vector.shape_cast %114 : vector<1x3x32xf32> to vector<3x32xf32>
    %116 = vector.extract_strided_slice %115 {offsets = [0, 0], sizes = [1, 32], strides = [1, 1]} : vector<3x32xf32> to vector<1x32xf32>
    %117 = vector.broadcast %116 : vector<1x32xf32> to vector<64x32xf32>
    %118 = arith.mulf %33, %117 : vector<64x32xf32>
    %119 = vector.extract_strided_slice %115 {offsets = [1, 0], sizes = [1, 32], strides = [1, 1]} : vector<3x32xf32> to vector<1x32xf32>
    %120 = vector.broadcast %119 : vector<1x32xf32> to vector<64x32xf32>
    %121 = arith.mulf %25, %120 : vector<64x32xf32>
    %122 = arith.addf %118, %121 : vector<64x32xf32>
    %123 = vector.extract_strided_slice %115 {offsets = [2, 0], sizes = [1, 32], strides = [1, 1]} : vector<3x32xf32> to vector<1x32xf32>
    %124 = vector.broadcast %123 : vector<1x32xf32> to vector<64x32xf32>
    %125 = arith.mulf %40, %124 : vector<64x32xf32>
    %126 = arith.addf %122, %125 : vector<64x32xf32>
    %127 = vector.extract_strided_slice %42 {offsets = [2, 0], sizes = [1, 32], strides = [1, 1]} : vector<3x32xf32> to vector<1x32xf32>
    %128 = vector.extract_strided_slice %43 {offsets = [2, 0], sizes = [1, 32], strides = [1, 1]} : vector<3x32xf32> to vector<1x32xf32>
    %cst_28 = arith.constant dense<0.000000e+00> : vector<64xf32>
    %129 = vector.multi_reduction <add>, %126, %cst_28 [1] : vector<64x32xf32> to vector<64xf32>
    %130 = vector.shape_cast %129 : vector<64xf32> to vector<64x1xf32>
    %cst_29 = arith.constant 3.200000e+01 : f32
    %131 = vector.broadcast %cst_29 : f32 to vector<64x1xf32>
    %132 = arith.divf %130, %131 : vector<64x1xf32>
    %133 = vector.broadcast %132 : vector<64x1xf32> to vector<64x32xf32>
    %134 = arith.subf %126, %133 : vector<64x32xf32>
    %135 = arith.mulf %134, %134 : vector<64x32xf32>
    %cst_30 = arith.constant dense<0.000000e+00> : vector<64xf32>
    %136 = vector.multi_reduction <add>, %135, %cst_30 [1] : vector<64x32xf32> to vector<64xf32>
    %137 = vector.shape_cast %136 : vector<64xf32> to vector<64x1xf32>
    %cst_31 = arith.constant 3.200000e+01 : f32
    %138 = vector.broadcast %cst_31 : f32 to vector<64x1xf32>
    %139 = arith.divf %137, %138 : vector<64x1xf32>
    %cst_32 = arith.constant 9.99999974E-6 : f32
    %140 = vector.broadcast %cst_32 : f32 to vector<64x1xf32>
    %141 = arith.addf %139, %140 : vector<64x1xf32>
    %142 = math.rsqrt %141 : vector<64x1xf32>
    %143 = vector.broadcast %142 : vector<64x1xf32> to vector<64x32xf32>
    %144 = arith.mulf %134, %143 : vector<64x32xf32>
    %145 = vector.broadcast %127 : vector<1x32xf32> to vector<64x32xf32>
    %146 = arith.mulf %144, %145 : vector<64x32xf32>
    %147 = vector.broadcast %128 : vector<1x32xf32> to vector<64x32xf32>
    %148 = arith.addf %146, %147 : vector<64x32xf32>
    %149 = tpu.concatenate %78, %113, %148 in 1 : vector<64x32xf32>, vector<64x32xf32>, vector<64x32xf32> -> vector<64x96xf32>
    %150 = arith.truncf %149 : vector<64x96xf32> to vector<64x96xbf16>
    %c0_33 = arith.constant 0 : index
    %c0_34 = arith.constant 0 : index
    %151 = vector.load %arg6[%c0_33, %c0_34] : memref<96x96xbf16, #tpu.memory_space<vmem>>, vector<96x96xbf16>
    %cst_35 = arith.constant dense<0.000000e+00> : vector<64x96xf32>
    %152 = tpu.matmul %150, %151, %cst_35 {dimension_numbers = #tpu.dot_dimension_numbers<[1], [0], [0], [1], [0, 0, 1, 1], [], []>} : vector<64x96xbf16>, vector<96x96xbf16>, vector<64x96xf32> -> vector<64x96xf32>
    %c0_36 = arith.constant 0 : index
    %c0_37 = arith.constant 0 : index
    %153 = vector.load %arg7[%c0_36, %c0_37] : memref<1x96xf32, #tpu.memory_space<vmem>>, vector<1x96xf32>
    %154 = vector.broadcast %153 : vector<1x96xf32> to vector<64x96xf32>
    %155 = arith.addf %152, %154 : vector<64x96xf32>
    %156 = arith.truncf %155 : vector<64x96xf32> to vector<64x96xbf16>
    %c0_i32_38 = arith.constant 0 : i32
    %157 = vector.broadcast %c0_i32_38 : i32 to vector<64x1xi32>
    %158 = arith.cmpi eq, %26, %157 : vector<64x1xi32>
    %c1_i32_39 = arith.constant 1 : i32
    %159 = tpu.dynamic_rotate %2 by %c1_i32_39 dim 0 : vector<64x32xf32>, i32 -> vector<64x32xf32>
    %160 = vector.shape_cast %158 : vector<64x1xi1> to vector<64x1xi1>
    %161 = vector.broadcast %160 : vector<64x1xi1> to vector<64x32xi1>
    %162 = arith.select %161, %2, %159 : vector<64x32xi1>, vector<64x32xf32>
    %c63_i32_40 = arith.constant 63 : i32
    %163 = vector.broadcast %c63_i32_40 : i32 to vector<64x1xi32>
    %164 = arith.cmpi eq, %26, %163 : vector<64x1xi32>
    %c63_i32_41 = arith.constant 63 : i32
    %165 = tpu.dynamic_rotate %2 by %c63_i32_41 dim 0 : vector<64x32xf32>, i32 -> vector<64x32xf32>
    %166 = vector.shape_cast %164 : vector<64x1xi1> to vector<64x1xi1>
    %167 = vector.broadcast %166 : vector<64x1xi1> to vector<64x32xi1>
    %168 = arith.select %167, %2, %165 : vector<64x32xi1>, vector<64x32xf32>
    %169 = arith.maximumf %162, %2 : vector<64x32xf32>
    %170 = arith.maximumf %169, %168 : vector<64x32xf32>
    %171 = tpu.iota {dimensions = array<i32: 0>} : vector<32x64xi32>
    %172 = tpu.iota {dimensions = array<i32: 1>} : vector<32x64xi32>
    %c2_i32 = arith.constant 2 : i32
    %173 = vector.broadcast %c2_i32 : i32 to vector<32x64xi32>
    %174 = arith.muli %171, %173 : vector<32x64xi32>
    %175 = arith.cmpi eq, %172, %174 : vector<32x64xi32>
    %cst_42 = arith.constant 1.000000e+00 : f32
    %cst_43 = arith.constant 0.000000e+00 : f32
    %176 = vector.broadcast %cst_42 : f32 to vector<32x64xf32>
    %177 = vector.broadcast %cst_43 : f32 to vector<32x64xf32>
    %178 = arith.select %175, %176, %177 : vector<32x64xi1>, vector<32x64xf32>
    %179 = arith.truncf %178 : vector<32x64xf32> to vector<32x64xbf16>
    %cst_44 = arith.constant dense<0.000000e+00> : vector<32x96xf32>
    %180 = tpu.matmul %179, %156, %cst_44 {dimension_numbers = #tpu.dot_dimension_numbers<[1], [0], [0], [1], [0, 0, 1, 1], [], []>} : vector<32x64xbf16>, vector<64x96xbf16>, vector<32x96xf32> -> vector<32x96xf32>
    %181 = arith.truncf %180 : vector<32x96xf32> to vector<32x96xbf16>
    %182 = arith.truncf %170 : vector<64x32xf32> to vector<64x32xbf16>
    %cst_45 = arith.constant dense<0.000000e+00> : vector<32x32xf32>
    %183 = tpu.matmul %179, %182, %cst_45 {dimension_numbers = #tpu.dot_dimension_numbers<[1], [0], [0], [1], [0, 0, 1, 1], [], []>} : vector<32x64xbf16>, vector<64x32xbf16>, vector<32x32xf32> -> vector<32x32xf32>
    %184 = vector.extract_strided_slice %181 {offsets = [0, 0], sizes = [32, 8], strides = [1, 1]} : vector<32x96xbf16> to vector<32x8xbf16>
    %185 = vector.extract_strided_slice %181 {offsets = [0, 8], sizes = [32, 8], strides = [1, 1]} : vector<32x96xbf16> to vector<32x8xbf16>
    %186 = vector.extract_strided_slice %181 {offsets = [0, 16], sizes = [32, 8], strides = [1, 1]} : vector<32x96xbf16> to vector<32x8xbf16>
    %187 = vector.extract_strided_slice %181 {offsets = [0, 24], sizes = [32, 8], strides = [1, 1]} : vector<32x96xbf16> to vector<32x8xbf16>
    %188 = vector.shape_cast %184 : vector<32x8xbf16> to vector<1x32x8xbf16>
    %189 = vector.shape_cast %185 : vector<32x8xbf16> to vector<1x32x8xbf16>
    %190 = vector.shape_cast %186 : vector<32x8xbf16> to vector<1x32x8xbf16>
    %191 = vector.shape_cast %187 : vector<32x8xbf16> to vector<1x32x8xbf16>
    %192 = tpu.concatenate %188, %189, %190, %191 in 0 : vector<1x32x8xbf16>, vector<1x32x8xbf16>, vector<1x32x8xbf16>, vector<1x32x8xbf16> -> vector<4x32x8xbf16>
    %193 = vector.extract_strided_slice %181 {offsets = [0, 32], sizes = [32, 8], strides = [1, 1]} : vector<32x96xbf16> to vector<32x8xbf16>
    %194 = vector.extract_strided_slice %181 {offsets = [0, 40], sizes = [32, 8], strides = [1, 1]} : vector<32x96xbf16> to vector<32x8xbf16>
    %195 = vector.extract_strided_slice %181 {offsets = [0, 48], sizes = [32, 8], strides = [1, 1]} : vector<32x96xbf16> to vector<32x8xbf16>
    %196 = vector.extract_strided_slice %181 {offsets = [0, 56], sizes = [32, 8], strides = [1, 1]} : vector<32x96xbf16> to vector<32x8xbf16>
    %197 = vector.shape_cast %193 : vector<32x8xbf16> to vector<1x32x8xbf16>
    %198 = vector.shape_cast %194 : vector<32x8xbf16> to vector<1x32x8xbf16>
    %199 = vector.shape_cast %195 : vector<32x8xbf16> to vector<1x32x8xbf16>
    %200 = vector.shape_cast %196 : vector<32x8xbf16> to vector<1x32x8xbf16>
    %201 = tpu.concatenate %197, %198, %199, %200 in 0 : vector<1x32x8xbf16>, vector<1x32x8xbf16>, vector<1x32x8xbf16>, vector<1x32x8xbf16> -> vector<4x32x8xbf16>
    %202 = vector.extract_strided_slice %181 {offsets = [0, 64], sizes = [32, 8], strides = [1, 1]} : vector<32x96xbf16> to vector<32x8xbf16>
    %203 = vector.extract_strided_slice %181 {offsets = [0, 72], sizes = [32, 8], strides = [1, 1]} : vector<32x96xbf16> to vector<32x8xbf16>
    %204 = vector.extract_strided_slice %181 {offsets = [0, 80], sizes = [32, 8], strides = [1, 1]} : vector<32x96xbf16> to vector<32x8xbf16>
    %205 = vector.extract_strided_slice %181 {offsets = [0, 88], sizes = [32, 8], strides = [1, 1]} : vector<32x96xbf16> to vector<32x8xbf16>
    %206 = vector.shape_cast %202 : vector<32x8xbf16> to vector<1x32x8xbf16>
    %207 = vector.shape_cast %203 : vector<32x8xbf16> to vector<1x32x8xbf16>
    %208 = vector.shape_cast %204 : vector<32x8xbf16> to vector<1x32x8xbf16>
    %209 = vector.shape_cast %205 : vector<32x8xbf16> to vector<1x32x8xbf16>
    %210 = tpu.concatenate %206, %207, %208, %209 in 0 : vector<1x32x8xbf16>, vector<1x32x8xbf16>, vector<1x32x8xbf16>, vector<1x32x8xbf16> -> vector<4x32x8xbf16>
    "tpu.trace_start"() <{level = 10 : i32, message = "hqd,hkd->hqk"}> : () -> ()
    %cst_46 = arith.constant dense<0.000000e+00> : vector<4x32x32xf32>
    %211 = tpu.matmul %192, %201, %cst_46 {dimension_numbers = #tpu.dot_dimension_numbers<[2], [2], [1], [1], [0, 0, 0, 1, 1, 1], [0], [0]>} : vector<4x32x8xbf16>, vector<4x32x8xbf16>, vector<4x32x32xf32> -> vector<4x32x32xf32>
    "tpu.trace_stop"() : () -> ()
    %cst_47 = arith.constant dense<0xFF800000> : vector<4x32xf32>
    %212 = vector.multi_reduction <maximumf>, %211, %cst_47 [2] : vector<4x32x32xf32> to vector<4x32xf32>
    %213 = vector.shape_cast %212 : vector<4x32xf32> to vector<4x32x1xf32>
    %214 = vector.broadcast %213 : vector<4x32x1xf32> to vector<4x32x32xf32>
    %215 = arith.subf %211, %214 : vector<4x32x32xf32>
    %216 = math.exp %215 : vector<4x32x32xf32>
    %cst_48 = arith.constant dense<0.000000e+00> : vector<4x32xf32>
    %217 = vector.multi_reduction <add>, %216, %cst_48 [2] : vector<4x32x32xf32> to vector<4x32xf32>
    %218 = vector.shape_cast %217 : vector<4x32xf32> to vector<4x32x1xf32>
    %219 = tpu.reciprocal %218 {approx = true} : vector<4x32x1xf32> -> vector<4x32x1xf32>
    %220 = vector.broadcast %219 : vector<4x32x1xf32> to vector<4x32x32xf32>
    %221 = arith.mulf %216, %220 : vector<4x32x32xf32>
    %222 = arith.truncf %221 : vector<4x32x32xf32> to vector<4x32x32xbf16>
    "tpu.trace_start"() <{level = 10 : i32, message = "hqk,hkd->hqd"}> : () -> ()
    %cst_49 = arith.constant dense<0.000000e+00> : vector<4x32x8xf32>
    %223 = tpu.matmul %222, %210, %cst_49 {dimension_numbers = #tpu.dot_dimension_numbers<[2], [1], [1], [2], [0, 0, 0, 1, 1, 2], [0], [0]>} : vector<4x32x32xbf16>, vector<4x32x8xbf16>, vector<4x32x8xf32> -> vector<4x32x8xf32>
    "tpu.trace_stop"() : () -> ()
    %224 = arith.truncf %223 : vector<4x32x8xf32> to vector<4x32x8xbf16>
    %c0_50 = arith.constant 0 : index
    %c0_51 = arith.constant 0 : index
    %c0_52 = arith.constant 0 : index
    %225 = vector.load %arg8[%c0_50, %c0_51, %c0_52] : memref<4x8x32xbf16, #tpu.memory_space<vmem>>, vector<4x8x32xbf16>
    "tpu.trace_start"() <{level = 10 : i32, message = "hqd,hdc->hqc"}> : () -> ()
    %cst_53 = arith.constant dense<0.000000e+00> : vector<4x32x32xf32>
    %226 = tpu.matmul %224, %225, %cst_53 {dimension_numbers = #tpu.dot_dimension_numbers<[2], [1], [1], [2], [0, 0, 0, 1, 1, 2], [0], [0]>} : vector<4x32x8xbf16>, vector<4x8x32xbf16>, vector<4x32x32xf32> -> vector<4x32x32xf32>
    "tpu.trace_stop"() : () -> ()
    %cst_54 = arith.constant dense<0.000000e+00> : vector<32x32xf32>
    %227 = vector.multi_reduction <add>, %226, %cst_54 [0] : vector<4x32x32xf32> to vector<32x32xf32>
    %228 = arith.addf %183, %227 : vector<32x32xf32>
    %c0_55 = arith.constant 0 : index
    %c0_56 = arith.constant 0 : index
    %229 = vector.load %arg9[%c0_55, %c0_56] : memref<1x32xf32, #tpu.memory_space<vmem>>, vector<1x32xf32>
    %230 = vector.broadcast %229 : vector<1x32xf32> to vector<32x32xf32>
    %231 = arith.addf %228, %230 : vector<32x32xf32>
    %c0_57 = arith.constant 0 : index
    %c0_58 = arith.constant 0 : index
    %232 = vector.load %arg10[%c0_57, %c0_58] : memref<2x32xf32, #tpu.memory_space<vmem>>, vector<2x32xf32>
    %233 = vector.extract_strided_slice %232 {offsets = [0, 0], sizes = [1, 32], strides = [1, 1]} : vector<2x32xf32> to vector<1x32xf32>
    %234 = vector.extract_strided_slice %232 {offsets = [1, 0], sizes = [1, 32], strides = [1, 1]} : vector<2x32xf32> to vector<1x32xf32>
    %cst_59 = arith.constant dense<0.000000e+00> : vector<32xf32>
    %235 = vector.multi_reduction <add>, %231, %cst_59 [1] : vector<32x32xf32> to vector<32xf32>
    %236 = vector.shape_cast %235 : vector<32xf32> to vector<32x1xf32>
    %cst_60 = arith.constant 3.200000e+01 : f32
    %237 = vector.broadcast %cst_60 : f32 to vector<32x1xf32>
    %238 = arith.divf %236, %237 : vector<32x1xf32>
    %239 = vector.broadcast %238 : vector<32x1xf32> to vector<32x32xf32>
    %240 = arith.subf %231, %239 : vector<32x32xf32>
    %241 = arith.mulf %240, %240 : vector<32x32xf32>
    %cst_61 = arith.constant dense<0.000000e+00> : vector<32xf32>
    %242 = vector.multi_reduction <add>, %241, %cst_61 [1] : vector<32x32xf32> to vector<32xf32>
    %243 = vector.shape_cast %242 : vector<32xf32> to vector<32x1xf32>
    %cst_62 = arith.constant 3.200000e+01 : f32
    %244 = vector.broadcast %cst_62 : f32 to vector<32x1xf32>
    %245 = arith.divf %243, %244 : vector<32x1xf32>
    %cst_63 = arith.constant 9.99999974E-6 : f32
    %246 = vector.broadcast %cst_63 : f32 to vector<32x1xf32>
    %247 = arith.addf %245, %246 : vector<32x1xf32>
    %248 = math.rsqrt %247 : vector<32x1xf32>
    %249 = vector.broadcast %248 : vector<32x1xf32> to vector<32x32xf32>
    %250 = arith.mulf %240, %249 : vector<32x32xf32>
    %251 = vector.broadcast %233 : vector<1x32xf32> to vector<32x32xf32>
    %252 = arith.mulf %250, %251 : vector<32x32xf32>
    %253 = vector.broadcast %234 : vector<1x32xf32> to vector<32x32xf32>
    %254 = arith.addf %252, %253 : vector<32x32xf32>
    %255 = arith.truncf %254 : vector<32x32xf32> to vector<32x32xbf16>
    %c0_64 = arith.constant 0 : index
    %c0_65 = arith.constant 0 : index
    %256 = vector.load %arg11[%c0_64, %c0_65] : memref<32x128xbf16, #tpu.memory_space<vmem>>, vector<32x128xbf16>
    %cst_66 = arith.constant dense<0.000000e+00> : vector<32x128xf32>
    %257 = tpu.matmul %255, %256, %cst_66 {dimension_numbers = #tpu.dot_dimension_numbers<[1], [0], [0], [1], [0, 0, 1, 1], [], []>} : vector<32x32xbf16>, vector<32x128xbf16>, vector<32x128xf32> -> vector<32x128xf32>
    %c0_67 = arith.constant 0 : index
    %c0_68 = arith.constant 0 : index
    %258 = vector.load %arg12[%c0_67, %c0_68] : memref<1x128xf32, #tpu.memory_space<vmem>>, vector<1x128xf32>
    %259 = vector.broadcast %258 : vector<1x128xf32> to vector<32x128xf32>
    %260 = arith.addf %257, %259 : vector<32x128xf32>
    %261 = arith.mulf %260, %260 : vector<32x128xf32>
    %262 = arith.mulf %260, %261 : vector<32x128xf32>
    %cst_69 = arith.constant 4.471500e-02 : f32
    %263 = vector.broadcast %cst_69 : f32 to vector<32x128xf32>
    %264 = arith.mulf %263, %262 : vector<32x128xf32>
    %265 = arith.addf %260, %264 : vector<32x128xf32>
    %cst_70 = arith.constant 0.797884583 : f32
    %266 = vector.broadcast %cst_70 : f32 to vector<32x128xf32>
    %267 = arith.mulf %266, %265 : vector<32x128xf32>
    %268 = math.tanh %267 : vector<32x128xf32>
    %cst_71 = arith.constant 1.000000e+00 : f32
    %269 = vector.broadcast %cst_71 : f32 to vector<32x128xf32>
    %270 = arith.addf %269, %268 : vector<32x128xf32>
    %cst_72 = arith.constant 5.000000e-01 : f32
    %271 = vector.broadcast %cst_72 : f32 to vector<32x128xf32>
    %272 = arith.mulf %271, %270 : vector<32x128xf32>
    %273 = arith.mulf %260, %272 : vector<32x128xf32>
    %274 = arith.truncf %273 : vector<32x128xf32> to vector<32x128xbf16>
    %c0_73 = arith.constant 0 : index
    %c0_74 = arith.constant 0 : index
    %275 = vector.load %arg13[%c0_73, %c0_74] : memref<128x32xbf16, #tpu.memory_space<vmem>>, vector<128x32xbf16>
    %cst_75 = arith.constant dense<0.000000e+00> : vector<32x32xf32>
    %276 = tpu.matmul %274, %275, %cst_75 {dimension_numbers = #tpu.dot_dimension_numbers<[1], [0], [0], [1], [0, 0, 1, 1], [], []>} : vector<32x128xbf16>, vector<128x32xbf16>, vector<32x32xf32> -> vector<32x32xf32>
    %c0_76 = arith.constant 0 : index
    %c0_77 = arith.constant 0 : index
    %277 = vector.load %arg14[%c0_76, %c0_77] : memref<1x32xf32, #tpu.memory_space<vmem>>, vector<1x32xf32>
    %278 = vector.broadcast %277 : vector<1x32xf32> to vector<32x32xf32>
    %279 = arith.addf %276, %278 : vector<32x32xf32>
    %280 = arith.addf %231, %279 : vector<32x32xf32>
    %281 = arith.truncf %280 : vector<32x32xf32> to vector<32x32xbf16>
    %c0_78 = arith.constant 0 : index
    %c0_79 = arith.constant 0 : index
    %c0_80 = arith.constant 0 : index
    %282 = vector.load %arg15[%c0_78, %c0_79, %c0_80] : memref<1x32x32xbf16, #tpu.memory_space<vmem>>, vector<1x32x32xbf16>
    %283 = vector.shape_cast %282 : vector<1x32x32xbf16> to vector<32x32xbf16>
    %284 = vector.shape_cast %281 : vector<32x32xbf16> to vector<1x32x32xbf16>
    tpu.vector_store %arg15[%c0_78, %c0_79, %c0_80], %284 {strides = array<i32>} : memref<1x32x32xbf16, #tpu.memory_space<vmem>>, vector<1x32x32xbf16>,
    return
  }
  func.func @transform_0(%arg0: i32) -> (i32, i32, i32) {
    %c0_i32 = arith.constant 0 : i32
    %c0_i32_0 = arith.constant 0 : i32
    %c0_i32_1 = arith.constant 0 : i32
    return %arg0, %c0_i32, %c0_i32_0 : i32, i32, i32
  }
  func.func @transform_1(%arg0: i32) -> (i32, i32) {
    %c0_i32 = arith.constant 0 : i32
    %c0_i32_0 = arith.constant 0 : i32
    %c0_i32_1 = arith.constant 0 : i32
    return %c0_i32, %c0_i32_0 : i32, i32
  }
  func.func @transform_2(%arg0: i32) -> (i32, i32, i32) {
    %c0_i32 = arith.constant 0 : i32
    %c0_i32_0 = arith.constant 0 : i32
    %c0_i32_1 = arith.constant 0 : i32
    %c0_i32_2 = arith.constant 0 : i32
    return %c0_i32, %c0_i32_0, %c0_i32_1 : i32, i32, i32
  }
  func.func @transform_3(%arg0: i32) -> (i32, i32) {
    %c0_i32 = arith.constant 0 : i32
    %c0_i32_0 = arith.constant 0 : i32
    %c0_i32_1 = arith.constant 0 : i32
    return %c0_i32, %c0_i32_0 : i32, i32
  }
  func.func @transform_4(%arg0: i32) -> (i32, i32) {
    %c0_i32 = arith.constant 0 : i32
    %c0_i32_0 = arith.constant 0 : i32
    %c0_i32_1 = arith.constant 0 : i32
    return %c0_i32, %c0_i32_0 : i32, i32
  }
  func.func @transform_5(%arg0: i32) -> (i32, i32) {
    %c0_i32 = arith.constant 0 : i32
    %c0_i32_0 = arith.constant 0 : i32
    %c0_i32_1 = arith.constant 0 : i32
    return %c0_i32, %c0_i32_0 : i32, i32
  }
  func.func @transform_6(%arg0: i32) -> (i32, i32) {
    %c0_i32 = arith.constant 0 : i32
    %c0_i32_0 = arith.constant 0 : i32
    %c0_i32_1 = arith.constant 0 : i32
    return %c0_i32, %c0_i32_0 : i32, i32
  }
  func.func @transform_7(%arg0: i32) -> (i32, i32, i32) {
    %c0_i32 = arith.constant 0 : i32
    %c0_i32_0 = arith.constant 0 : i32
    %c0_i32_1 = arith.constant 0 : i32
    %c0_i32_2 = arith.constant 0 : i32
    return %c0_i32, %c0_i32_0, %c0_i32_1 : i32, i32, i32
  }
  func.func @transform_8(%arg0: i32) -> (i32, i32) {
    %c0_i32 = arith.constant 0 : i32
    %c0_i32_0 = arith.constant 0 : i32
    %c0_i32_1 = arith.constant 0 : i32
    return %c0_i32, %c0_i32_0 : i32, i32
  }
  func.func @transform_9(%arg0: i32) -> (i32, i32) {
    %c0_i32 = arith.constant 0 : i32
    %c0_i32_0 = arith.constant 0 : i32
    %c0_i32_1 = arith.constant 0 : i32
    return %c0_i32, %c0_i32_0 : i32, i32
  }
  func.func @transform_10(%arg0: i32) -> (i32, i32) {
    %c0_i32 = arith.constant 0 : i32
    %c0_i32_0 = arith.constant 0 : i32
    %c0_i32_1 = arith.constant 0 : i32
    return %c0_i32, %c0_i32_0 : i32, i32
  }
  func.func @transform_11(%arg0: i32) -> (i32, i32) {
    %c0_i32 = arith.constant 0 : i32
    %c0_i32_0 = arith.constant 0 : i32
    %c0_i32_1 = arith.constant 0 : i32
    return %c0_i32, %c0_i32_0 : i32, i32
  }
  func.func @transform_12(%arg0: i32) -> (i32, i32) {
    %c0_i32 = arith.constant 0 : i32
    %c0_i32_0 = arith.constant 0 : i32
    %c0_i32_1 = arith.constant 0 : i32
    return %c0_i32, %c0_i32_0 : i32, i32
  }
  func.func @transform_13(%arg0: i32) -> (i32, i32) {
    %c0_i32 = arith.constant 0 : i32
    %c0_i32_0 = arith.constant 0 : i32
    %c0_i32_1 = arith.constant 0 : i32
    return %c0_i32, %c0_i32_0 : i32, i32
  }
  func.func @transform_14(%arg0: i32) -> (i32, i32, i32) {
    %c0_i32 = arith.constant 0 : i32
    %c0_i32_0 = arith.constant 0 : i32
    %c0_i32_1 = arith.constant 0 : i32
    return %arg0, %c0_i32, %c0_i32_0 : i32, i32, i32
  }
}

module attributes {stable_mosaic.version = 11 : i64} {
  func.func @_block_kernel(%arg0: i32, %arg1: memref<1x64x32xbf16, #tpu.memory_space<vmem>>, %arg2: memref<2x32xf32, #tpu.memory_space<vmem>>, %arg3: memref<3x3x32xf32, #tpu.memory_space<vmem>>, %arg4: memref<3x32xf32, #tpu.memory_space<vmem>>, %arg5: memref<3x32xf32, #tpu.memory_space<vmem>>, %arg6: memref<96x96xbf16, #tpu.memory_space<vmem>>, %arg7: memref<1x96xf32, #tpu.memory_space<vmem>>, %arg8: memref<4x8x32xbf16, #tpu.memory_space<vmem>>, %arg9: memref<1x32xf32, #tpu.memory_space<vmem>>, %arg10: memref<2x32xf32, #tpu.memory_space<vmem>>, %arg11: memref<32x128xbf16, #tpu.memory_space<vmem>>, %arg12: memref<1x128xf32, #tpu.memory_space<vmem>>, %arg13: memref<128x32xbf16, #tpu.memory_space<vmem>>, %arg14: memref<1x32xf32, #tpu.memory_space<vmem>>, %arg15: memref<1x64x32xbf16, #tpu.memory_space<vmem>>) attributes {dimension_semantics = [#tpu.dimension_semantics<parallel>], iteration_bounds = array<i64: 2>, scalar_prefetch = 0 : i64, scratch_operands = 0 : i64, tpu.core_type = #tpu.core_type<tc>, window_params = [{transform_indices = @transform_0, window_bounds = array<i64: 1, 64, 32>}, {pipeline_mode = #tpu.pipeline_mode<synchronous>, transform_indices = @transform_1, window_bounds = array<i64: 2, 32>}, {pipeline_mode = #tpu.pipeline_mode<synchronous>, transform_indices = @transform_2, window_bounds = array<i64: 3, 3, 32>}, {pipeline_mode = #tpu.pipeline_mode<synchronous>, transform_indices = @transform_3, window_bounds = array<i64: 3, 32>}, {pipeline_mode = #tpu.pipeline_mode<synchronous>, transform_indices = @transform_4, window_bounds = array<i64: 3, 32>}, {pipeline_mode = #tpu.pipeline_mode<synchronous>, transform_indices = @transform_5, window_bounds = array<i64: 96, 96>}, {pipeline_mode = #tpu.pipeline_mode<synchronous>, transform_indices = @transform_6, window_bounds = array<i64: 1, 96>}, {pipeline_mode = #tpu.pipeline_mode<synchronous>, transform_indices = @transform_7, window_bounds = array<i64: 4, 8, 32>}, {pipeline_mode = #tpu.pipeline_mode<synchronous>, transform_indices = @transform_8, window_bounds = array<i64: 1, 32>}, {pipeline_mode = #tpu.pipeline_mode<synchronous>, transform_indices = @transform_9, window_bounds = array<i64: 2, 32>}, {pipeline_mode = #tpu.pipeline_mode<synchronous>, transform_indices = @transform_10, window_bounds = array<i64: 32, 128>}, {pipeline_mode = #tpu.pipeline_mode<synchronous>, transform_indices = @transform_11, window_bounds = array<i64: 1, 128>}, {pipeline_mode = #tpu.pipeline_mode<synchronous>, transform_indices = @transform_12, window_bounds = array<i64: 128, 32>}, {pipeline_mode = #tpu.pipeline_mode<synchronous>, transform_indices = @transform_13, window_bounds = array<i64: 1, 32>}, {transform_indices = @transform_14, window_bounds = array<i64: 1, 64, 32>}]} {
    %c0 = arith.constant 0 : index
    %c0_0 = arith.constant 0 : index
    %c0_1 = arith.constant 0 : index
    %0 = vector.load %arg1[%c0, %c0_0, %c0_1] : memref<1x64x32xbf16, #tpu.memory_space<vmem>>, vector<1x64x32xbf16>
    %1 = vector.shape_cast %0 : vector<1x64x32xbf16> to vector<64x32xbf16>
    %2 = arith.extf %1 : vector<64x32xbf16> to vector<64x32xf32>
    %c0_2 = arith.constant 0 : index
    %c0_3 = arith.constant 0 : index
    %3 = vector.load %arg2[%c0_2, %c0_3] : memref<2x32xf32, #tpu.memory_space<vmem>>, vector<2x32xf32>
    %4 = vector.extract_strided_slice %3 {offsets = [0, 0], sizes = [1, 32], strides = [1, 1]} : vector<2x32xf32> to vector<1x32xf32>
    %5 = vector.extract_strided_slice %3 {offsets = [1, 0], sizes = [1, 32], strides = [1, 1]} : vector<2x32xf32> to vector<1x32xf32>
    %cst = arith.constant dense<0.000000e+00> : vector<64xf32>
    %6 = vector.multi_reduction <add>, %2, %cst [1] : vector<64x32xf32> to vector<64xf32>
    %7 = vector.shape_cast %6 : vector<64xf32> to vector<64x1xf32>
    %cst_4 = arith.constant 3.200000e+01 : f32
    %8 = vector.broadcast %cst_4 : f32 to vector<64x1xf32>
    %9 = arith.divf %7, %8 : vector<64x1xf32>
    %10 = vector.broadcast %9 : vector<64x1xf32> to vector<64x32xf32>
    %11 = arith.subf %2, %10 : vector<64x32xf32>
    %12 = arith.mulf %11, %11 : vector<64x32xf32>
    %cst_5 = arith.constant dense<0.000000e+00> : vector<64xf32>
    %13 = vector.multi_reduction <add>, %12, %cst_5 [1] : vector<64x32xf32> to vector<64xf32>
    %14 = vector.shape_cast %13 : vector<64xf32> to vector<64x1xf32>
    %cst_6 = arith.constant 3.200000e+01 : f32
    %15 = vector.broadcast %cst_6 : f32 to vector<64x1xf32>
    %16 = arith.divf %14, %15 : vector<64x1xf32>
    %cst_7 = arith.constant 9.99999974E-6 : f32
    %17 = vector.broadcast %cst_7 : f32 to vector<64x1xf32>
    %18 = arith.addf %16, %17 : vector<64x1xf32>
    %19 = math.rsqrt %18 : vector<64x1xf32>
    %20 = vector.broadcast %19 : vector<64x1xf32> to vector<64x32xf32>
    %21 = arith.mulf %11, %20 : vector<64x32xf32>
    %22 = vector.broadcast %4 : vector<1x32xf32> to vector<64x32xf32>
    %23 = arith.mulf %21, %22 : vector<64x32xf32>
    %24 = vector.broadcast %5 : vector<1x32xf32> to vector<64x32xf32>
    %25 = arith.addf %23, %24 : vector<64x32xf32>
    %26 = tpu.iota {dimensions = array<i32: 0>} : vector<64x1xi32>
    %c0_i32 = arith.constant 0 : i32
    %27 = vector.broadcast %c0_i32 : i32 to vector<64x1xi32>
    %28 = arith.cmpi eq, %26, %27 : vector<64x1xi32>
    %c1_i32 = arith.constant 1 : i32
    %29 = tpu.dynamic_rotate %25 by %c1_i32 dim 0 : vector<64x32xf32>, i32 -> vector<64x32xf32>
    %cst_8 = arith.constant 0.000000e+00 : f32
    %30 = vector.shape_cast %28 : vector<64x1xi1> to vector<64x1xi1>
    %31 = vector.broadcast %30 : vector<64x1xi1> to vector<64x32xi1>
    %32 = vector.broadcast %cst_8 : f32 to vector<64x32xf32>
    %33 = arith.select %31, %32, %29 : vector<64x32xi1>, vector<64x32xf32>
    %c63_i32 = arith.constant 63 : i32
    %34 = vector.broadcast %c63_i32 : i32 to vector<64x1xi32>
    %35 = arith.cmpi eq, %26, %34 : vector<64x1xi32>
    %c63_i32_9 = arith.constant 63 : i32
    %36 = tpu.dynamic_rotate %25 by %c63_i32_9 dim 0 : vector<64x32xf32>, i32 -> vector<64x32xf32>
    %cst_10 = arith.constant 0.000000e+00 : f32
    %37 = vector.shape_cast %35 : vector<64x1xi1> to vector<64x1xi1>
    %38 = vector.broadcast %37 : vector<64x1xi1> to vector<64x32xi1>
    %39 = vector.broadcast %cst_10 : f32 to vector<64x32xf32>
    %40 = arith.select %38, %39, %36 : vector<64x32xi1>, vector<64x32xf32>
    %c0_11 = arith.constant 0 : index
    %c0_12 = arith.constant 0 : index
    %c0_13 = arith.constant 0 : index
    %41 = vector.load %arg3[%c0_11, %c0_12, %c0_13] : memref<3x3x32xf32, #tpu.memory_space<vmem>>, vector<3x3x32xf32>
    %c0_14 = arith.constant 0 : index
    %c0_15 = arith.constant 0 : index
    %42 = vector.load %arg4[%c0_14, %c0_15] : memref<3x32xf32, #tpu.memory_space<vmem>>, vector<3x32xf32>
    %c0_16 = arith.constant 0 : index
    %c0_17 = arith.constant 0 : index
    %43 = vector.load %arg5[%c0_16, %c0_17] : memref<3x32xf32, #tpu.memory_space<vmem>>, vector<3x32xf32>
    %44 = vector.extract_strided_slice %41 {offsets = [0, 0, 0], sizes = [1, 3, 32], strides = [1, 1, 1]} : vector<3x3x32xf32> to vector<1x3x32xf32>
    %45 = vector.shape_cast %44 : vector<1x3x32xf32> to vector<3x32xf32>
    %46 = vector.extract_strided_slice %45 {offsets = [0, 0], sizes = [1, 32], strides = [1, 1]} : vector<3x32xf32> to vector<1x32xf32>
    %47 = vector.broadcast %46 : vector<1x32xf32> to vector<64x32xf32>
    %48 = arith.mulf %33, %47 : vector<64x32xf32>
    %49 = vector.extract_strided_slice %45 {offsets = [1, 0], sizes = [1, 32], strides = [1, 1]} : vector<3x32xf32> to vector<1x32xf32>
    %50 = vector.broadcast %49 : vector<1x32xf32> to vector<64x32xf32>
    %51 = arith.mulf %25, %50 : vector<64x32xf32>
    %52 = arith.addf %48, %51 : vector<64x32xf32>
    %53 = vector.extract_strided_slice %45 {offsets = [2, 0], sizes = [1, 32], strides = [1, 1]} : vector<3x32xf32> to vector<1x32xf32>
    %54 = vector.broadcast %53 : vector<1x32xf32> to vector<64x32xf32>
    %55 = arith.mulf %40, %54 : vector<64x32xf32>
    %56 = arith.addf %52, %55 : vector<64x32xf32>
    %57 = vector.extract_strided_slice %42 {offsets = [0, 0], sizes = [1, 32], strides = [1, 1]} : vector<3x32xf32> to vector<1x32xf32>
    %58 = vector.extract_strided_slice %43 {offsets = [0, 0], sizes = [1, 32], strides = [1, 1]} : vector<3x32xf32> to vector<1x32xf32>
    %cst_18 = arith.constant dense<0.000000e+00> : vector<64xf32>
    %59 = vector.multi_reduction <add>, %56, %cst_18 [1] : vector<64x32xf32> to vector<64xf32>
    %60 = vector.shape_cast %59 : vector<64xf32> to vector<64x1xf32>
    %cst_19 = arith.constant 3.200000e+01 : f32
    %61 = vector.broadcast %cst_19 : f32 to vector<64x1xf32>
    %62 = arith.divf %60, %61 : vector<64x1xf32>
    %63 = vector.broadcast %62 : vector<64x1xf32> to vector<64x32xf32>
    %64 = arith.subf %56, %63 : vector<64x32xf32>
    %65 = arith.mulf %64, %64 : vector<64x32xf32>
    %cst_20 = arith.constant dense<0.000000e+00> : vector<64xf32>
    %66 = vector.multi_reduction <add>, %65, %cst_20 [1] : vector<64x32xf32> to vector<64xf32>
    %67 = vector.shape_cast %66 : vector<64xf32> to vector<64x1xf32>
    %cst_21 = arith.constant 3.200000e+01 : f32
    %68 = vector.broadcast %cst_21 : f32 to vector<64x1xf32>
    %69 = arith.divf %67, %68 : vector<64x1xf32>
    %cst_22 = arith.constant 9.99999974E-6 : f32
    %70 = vector.broadcast %cst_22 : f32 to vector<64x1xf32>
    %71 = arith.addf %69, %70 : vector<64x1xf32>
    %72 = math.rsqrt %71 : vector<64x1xf32>
    %73 = vector.broadcast %72 : vector<64x1xf32> to vector<64x32xf32>
    %74 = arith.mulf %64, %73 : vector<64x32xf32>
    %75 = vector.broadcast %57 : vector<1x32xf32> to vector<64x32xf32>
    %76 = arith.mulf %74, %75 : vector<64x32xf32>
    %77 = vector.broadcast %58 : vector<1x32xf32> to vector<64x32xf32>
    %78 = arith.addf %76, %77 : vector<64x32xf32>
    %79 = vector.extract_strided_slice %41 {offsets = [1, 0, 0], sizes = [1, 3, 32], strides = [1, 1, 1]} : vector<3x3x32xf32> to vector<1x3x32xf32>
    %80 = vector.shape_cast %79 : vector<1x3x32xf32> to vector<3x32xf32>
    %81 = vector.extract_strided_slice %80 {offsets = [0, 0], sizes = [1, 32], strides = [1, 1]} : vector<3x32xf32> to vector<1x32xf32>
    %82 = vector.broadcast %81 : vector<1x32xf32> to vector<64x32xf32>
    %83 = arith.mulf %33, %82 : vector<64x32xf32>
    %84 = vector.extract_strided_slice %80 {offsets = [1, 0], sizes = [1, 32], strides = [1, 1]} : vector<3x32xf32> to vector<1x32xf32>
    %85 = vector.broadcast %84 : vector<1x32xf32> to vector<64x32xf32>
    %86 = arith.mulf %25, %85 : vector<64x32xf32>
    %87 = arith.addf %83, %86 : vector<64x32xf32>
    %88 = vector.extract_strided_slice %80 {offsets = [2, 0], sizes = [1, 32], strides = [1, 1]} : vector<3x32xf32> to vector<1x32xf32>
    %89 = vector.broadcast %88 : vector<1x32xf32> to vector<64x32xf32>
    %90 = arith.mulf %40, %89 : vector<64x32xf32>
    %91 = arith.addf %87, %90 : vector<64x32xf32>
    %92 = vector.extract_strided_slice %42 {offsets = [1, 0], sizes = [1, 32], strides = [1, 1]} : vector<3x32xf32> to vector<1x32xf32>
    %93 = vector.extract_strided_slice %43 {offsets = [1, 0], sizes = [1, 32], strides = [1, 1]} : vector<3x32xf32> to vector<1x32xf32>
    %cst_23 = arith.constant dense<0.000000e+00> : vector<64xf32>
    %94 = vector.multi_reduction <add>, %91, %cst_23 [1] : vector<64x32xf32> to vector<64xf32>
    %95 = vector.shape_cast %94 : vector<64xf32> to vector<64x1xf32>
    %cst_24 = arith.constant 3.200000e+01 : f32
    %96 = vector.broadcast %cst_24 : f32 to vector<64x1xf32>
    %97 = arith.divf %95, %96 : vector<64x1xf32>
    %98 = vector.broadcast %97 : vector<64x1xf32> to vector<64x32xf32>
    %99 = arith.subf %91, %98 : vector<64x32xf32>
    %100 = arith.mulf %99, %99 : vector<64x32xf32>
    %cst_25 = arith.constant dense<0.000000e+00> : vector<64xf32>
    %101 = vector.multi_reduction <add>, %100, %cst_25 [1] : vector<64x32xf32> to vector<64xf32>
    %102 = vector.shape_cast %101 : vector<64xf32> to vector<64x1xf32>
    %cst_26 = arith.constant 3.200000e+01 : f32
    %103 = vector.broadcast %cst_26 : f32 to vector<64x1xf32>
    %104 = arith.divf %102, %103 : vector<64x1xf32>
    %cst_27 = arith.constant 9.99999974E-6 : f32
    %105 = vector.broadcast %cst_27 : f32 to vector<64x1xf32>
    %106 = arith.addf %104, %105 : vector<64x1xf32>
    %107 = math.rsqrt %106 : vector<64x1xf32>
    %108 = vector.broadcast %107 : vector<64x1xf32> to vector<64x32xf32>
    %109 = arith.mulf %99, %108 : vector<64x32xf32>
    %110 = vector.broadcast %92 : vector<1x32xf32> to vector<64x32xf32>
    %111 = arith.mulf %109, %110 : vector<64x32xf32>
    %112 = vector.broadcast %93 : vector<1x32xf32> to vector<64x32xf32>
    %113 = arith.addf %111, %112 : vector<64x32xf32>
    %114 = vector.extract_strided_slice %41 {offsets = [2, 0, 0], sizes = [1, 3, 32], strides = [1, 1, 1]} : vector<3x3x32xf32> to vector<1x3x32xf32>
    %115 = vector.shape_cast %114 : vector<1x3x32xf32> to vector<3x32xf32>
    %116 = vector.extract_strided_slice %115 {offsets = [0, 0], sizes = [1, 32], strides = [1, 1]} : vector<3x32xf32> to vector<1x32xf32>
    %117 = vector.broadcast %116 : vector<1x32xf32> to vector<64x32xf32>
    %118 = arith.mulf %33, %117 : vector<64x32xf32>
    %119 = vector.extract_strided_slice %115 {offsets = [1, 0], sizes = [1, 32], strides = [1, 1]} : vector<3x32xf32> to vector<1x32xf32>
    %120 = vector.broadcast %119 : vector<1x32xf32> to vector<64x32xf32>
    %121 = arith.mulf %25, %120 : vector<64x32xf32>
    %122 = arith.addf %118, %121 : vector<64x32xf32>
    %123 = vector.extract_strided_slice %115 {offsets = [2, 0], sizes = [1, 32], strides = [1, 1]} : vector<3x32xf32> to vector<1x32xf32>
    %124 = vector.broadcast %123 : vector<1x32xf32> to vector<64x32xf32>
    %125 = arith.mulf %40, %124 : vector<64x32xf32>
    %126 = arith.addf %122, %125 : vector<64x32xf32>
    %127 = vector.extract_strided_slice %42 {offsets = [2, 0], sizes = [1, 32], strides = [1, 1]} : vector<3x32xf32> to vector<1x32xf32>
    %128 = vector.extract_strided_slice %43 {offsets = [2, 0], sizes = [1, 32], strides = [1, 1]} : vector<3x32xf32> to vector<1x32xf32>
    %cst_28 = arith.constant dense<0.000000e+00> : vector<64xf32>
    %129 = vector.multi_reduction <add>, %126, %cst_28 [1] : vector<64x32xf32> to vector<64xf32>
    %130 = vector.shape_cast %129 : vector<64xf32> to vector<64x1xf32>
    %cst_29 = arith.constant 3.200000e+01 : f32
    %131 = vector.broadcast %cst_29 : f32 to vector<64x1xf32>
    %132 = arith.divf %130, %131 : vector<64x1xf32>
    %133 = vector.broadcast %132 : vector<64x1xf32> to vector<64x32xf32>
    %134 = arith.subf %126, %133 : vector<64x32xf32>
    %135 = arith.mulf %134, %134 : vector<64x32xf32>
    %cst_30 = arith.constant dense<0.000000e+00> : vector<64xf32>
    %136 = vector.multi_reduction <add>, %135, %cst_30 [1] : vector<64x32xf32> to vector<64xf32>
    %137 = vector.shape_cast %136 : vector<64xf32> to vector<64x1xf32>
    %cst_31 = arith.constant 3.200000e+01 : f32
    %138 = vector.broadcast %cst_31 : f32 to vector<64x1xf32>
    %139 = arith.divf %137, %138 : vector<64x1xf32>
    %cst_32 = arith.constant 9.99999974E-6 : f32
    %140 = vector.broadcast %cst_32 : f32 to vector<64x1xf32>
    %141 = arith.addf %139, %140 : vector<64x1xf32>
    %142 = math.rsqrt %141 : vector<64x1xf32>
    %143 = vector.broadcast %142 : vector<64x1xf32> to vector<64x32xf32>
    %144 = arith.mulf %134, %143 : vector<64x32xf32>
    %145 = vector.broadcast %127 : vector<1x32xf32> to vector<64x32xf32>
    %146 = arith.mulf %144, %145 : vector<64x32xf32>
    %147 = vector.broadcast %128 : vector<1x32xf32> to vector<64x32xf32>
    %148 = arith.addf %146, %147 : vector<64x32xf32>
    %149 = tpu.concatenate %78, %113, %148 in 1 : vector<64x32xf32>, vector<64x32xf32>, vector<64x32xf32> -> vector<64x96xf32>
    %150 = arith.truncf %149 : vector<64x96xf32> to vector<64x96xbf16>
    %c0_33 = arith.constant 0 : index
    %c0_34 = arith.constant 0 : index
    %151 = vector.load %arg6[%c0_33, %c0_34] : memref<96x96xbf16, #tpu.memory_space<vmem>>, vector<96x96xbf16>
    %cst_35 = arith.constant dense<0.000000e+00> : vector<64x96xf32>
    %152 = tpu.matmul %150, %151, %cst_35 {dimension_numbers = #tpu.dot_dimension_numbers<[1], [0], [0], [1], [0, 0, 1, 1], [], []>} : vector<64x96xbf16>, vector<96x96xbf16>, vector<64x96xf32> -> vector<64x96xf32>
    %c0_36 = arith.constant 0 : index
    %c0_37 = arith.constant 0 : index
    %153 = vector.load %arg7[%c0_36, %c0_37] : memref<1x96xf32, #tpu.memory_space<vmem>>, vector<1x96xf32>
    %154 = vector.broadcast %153 : vector<1x96xf32> to vector<64x96xf32>
    %155 = arith.addf %152, %154 : vector<64x96xf32>
    %156 = arith.truncf %155 : vector<64x96xf32> to vector<64x96xbf16>
    %157 = vector.extract_strided_slice %156 {offsets = [0, 0], sizes = [64, 8], strides = [1, 1]} : vector<64x96xbf16> to vector<64x8xbf16>
    %158 = vector.extract_strided_slice %156 {offsets = [0, 8], sizes = [64, 8], strides = [1, 1]} : vector<64x96xbf16> to vector<64x8xbf16>
    %159 = vector.extract_strided_slice %156 {offsets = [0, 16], sizes = [64, 8], strides = [1, 1]} : vector<64x96xbf16> to vector<64x8xbf16>
    %160 = vector.extract_strided_slice %156 {offsets = [0, 24], sizes = [64, 8], strides = [1, 1]} : vector<64x96xbf16> to vector<64x8xbf16>
    %161 = vector.shape_cast %157 : vector<64x8xbf16> to vector<1x64x8xbf16>
    %162 = vector.shape_cast %158 : vector<64x8xbf16> to vector<1x64x8xbf16>
    %163 = vector.shape_cast %159 : vector<64x8xbf16> to vector<1x64x8xbf16>
    %164 = vector.shape_cast %160 : vector<64x8xbf16> to vector<1x64x8xbf16>
    %165 = tpu.concatenate %161, %162, %163, %164 in 0 : vector<1x64x8xbf16>, vector<1x64x8xbf16>, vector<1x64x8xbf16>, vector<1x64x8xbf16> -> vector<4x64x8xbf16>
    %166 = vector.extract_strided_slice %156 {offsets = [0, 32], sizes = [64, 8], strides = [1, 1]} : vector<64x96xbf16> to vector<64x8xbf16>
    %167 = vector.extract_strided_slice %156 {offsets = [0, 40], sizes = [64, 8], strides = [1, 1]} : vector<64x96xbf16> to vector<64x8xbf16>
    %168 = vector.extract_strided_slice %156 {offsets = [0, 48], sizes = [64, 8], strides = [1, 1]} : vector<64x96xbf16> to vector<64x8xbf16>
    %169 = vector.extract_strided_slice %156 {offsets = [0, 56], sizes = [64, 8], strides = [1, 1]} : vector<64x96xbf16> to vector<64x8xbf16>
    %170 = vector.shape_cast %166 : vector<64x8xbf16> to vector<1x64x8xbf16>
    %171 = vector.shape_cast %167 : vector<64x8xbf16> to vector<1x64x8xbf16>
    %172 = vector.shape_cast %168 : vector<64x8xbf16> to vector<1x64x8xbf16>
    %173 = vector.shape_cast %169 : vector<64x8xbf16> to vector<1x64x8xbf16>
    %174 = tpu.concatenate %170, %171, %172, %173 in 0 : vector<1x64x8xbf16>, vector<1x64x8xbf16>, vector<1x64x8xbf16>, vector<1x64x8xbf16> -> vector<4x64x8xbf16>
    %175 = vector.extract_strided_slice %156 {offsets = [0, 64], sizes = [64, 8], strides = [1, 1]} : vector<64x96xbf16> to vector<64x8xbf16>
    %176 = vector.extract_strided_slice %156 {offsets = [0, 72], sizes = [64, 8], strides = [1, 1]} : vector<64x96xbf16> to vector<64x8xbf16>
    %177 = vector.extract_strided_slice %156 {offsets = [0, 80], sizes = [64, 8], strides = [1, 1]} : vector<64x96xbf16> to vector<64x8xbf16>
    %178 = vector.extract_strided_slice %156 {offsets = [0, 88], sizes = [64, 8], strides = [1, 1]} : vector<64x96xbf16> to vector<64x8xbf16>
    %179 = vector.shape_cast %175 : vector<64x8xbf16> to vector<1x64x8xbf16>
    %180 = vector.shape_cast %176 : vector<64x8xbf16> to vector<1x64x8xbf16>
    %181 = vector.shape_cast %177 : vector<64x8xbf16> to vector<1x64x8xbf16>
    %182 = vector.shape_cast %178 : vector<64x8xbf16> to vector<1x64x8xbf16>
    %183 = tpu.concatenate %179, %180, %181, %182 in 0 : vector<1x64x8xbf16>, vector<1x64x8xbf16>, vector<1x64x8xbf16>, vector<1x64x8xbf16> -> vector<4x64x8xbf16>
    "tpu.trace_start"() <{level = 10 : i32, message = "hqd,hkd->hqk"}> : () -> ()
    %cst_38 = arith.constant dense<0.000000e+00> : vector<4x64x64xf32>
    %184 = tpu.matmul %165, %174, %cst_38 {dimension_numbers = #tpu.dot_dimension_numbers<[2], [2], [1], [1], [0, 0, 0, 1, 1, 1], [0], [0]>} : vector<4x64x8xbf16>, vector<4x64x8xbf16>, vector<4x64x64xf32> -> vector<4x64x64xf32>
    "tpu.trace_stop"() : () -> ()
    %cst_39 = arith.constant dense<0xFF800000> : vector<4x64xf32>
    %185 = vector.multi_reduction <maximumf>, %184, %cst_39 [2] : vector<4x64x64xf32> to vector<4x64xf32>
    %186 = vector.shape_cast %185 : vector<4x64xf32> to vector<4x64x1xf32>
    %187 = vector.broadcast %186 : vector<4x64x1xf32> to vector<4x64x64xf32>
    %188 = arith.subf %184, %187 : vector<4x64x64xf32>
    %189 = math.exp %188 : vector<4x64x64xf32>
    %cst_40 = arith.constant dense<0.000000e+00> : vector<4x64xf32>
    %190 = vector.multi_reduction <add>, %189, %cst_40 [2] : vector<4x64x64xf32> to vector<4x64xf32>
    %191 = vector.shape_cast %190 : vector<4x64xf32> to vector<4x64x1xf32>
    %192 = tpu.reciprocal %191 {approx = true} : vector<4x64x1xf32> -> vector<4x64x1xf32>
    %193 = vector.broadcast %192 : vector<4x64x1xf32> to vector<4x64x64xf32>
    %194 = arith.mulf %189, %193 : vector<4x64x64xf32>
    %195 = arith.truncf %194 : vector<4x64x64xf32> to vector<4x64x64xbf16>
    "tpu.trace_start"() <{level = 10 : i32, message = "hqk,hkd->hqd"}> : () -> ()
    %cst_41 = arith.constant dense<0.000000e+00> : vector<4x64x8xf32>
    %196 = tpu.matmul %195, %183, %cst_41 {dimension_numbers = #tpu.dot_dimension_numbers<[2], [1], [1], [2], [0, 0, 0, 1, 1, 2], [0], [0]>} : vector<4x64x64xbf16>, vector<4x64x8xbf16>, vector<4x64x8xf32> -> vector<4x64x8xf32>
    "tpu.trace_stop"() : () -> ()
    %197 = arith.truncf %196 : vector<4x64x8xf32> to vector<4x64x8xbf16>
    %c0_42 = arith.constant 0 : index
    %c0_43 = arith.constant 0 : index
    %c0_44 = arith.constant 0 : index
    %198 = vector.load %arg8[%c0_42, %c0_43, %c0_44] : memref<4x8x32xbf16, #tpu.memory_space<vmem>>, vector<4x8x32xbf16>
    "tpu.trace_start"() <{level = 10 : i32, message = "hqd,hdc->hqc"}> : () -> ()
    %cst_45 = arith.constant dense<0.000000e+00> : vector<4x64x32xf32>
    %199 = tpu.matmul %197, %198, %cst_45 {dimension_numbers = #tpu.dot_dimension_numbers<[2], [1], [1], [2], [0, 0, 0, 1, 1, 2], [0], [0]>} : vector<4x64x8xbf16>, vector<4x8x32xbf16>, vector<4x64x32xf32> -> vector<4x64x32xf32>
    "tpu.trace_stop"() : () -> ()
    %cst_46 = arith.constant dense<0.000000e+00> : vector<64x32xf32>
    %200 = vector.multi_reduction <add>, %199, %cst_46 [0] : vector<4x64x32xf32> to vector<64x32xf32>
    %201 = arith.addf %2, %200 : vector<64x32xf32>
    %c0_47 = arith.constant 0 : index
    %c0_48 = arith.constant 0 : index
    %202 = vector.load %arg9[%c0_47, %c0_48] : memref<1x32xf32, #tpu.memory_space<vmem>>, vector<1x32xf32>
    %203 = vector.broadcast %202 : vector<1x32xf32> to vector<64x32xf32>
    %204 = arith.addf %201, %203 : vector<64x32xf32>
    %c0_49 = arith.constant 0 : index
    %c0_50 = arith.constant 0 : index
    %205 = vector.load %arg10[%c0_49, %c0_50] : memref<2x32xf32, #tpu.memory_space<vmem>>, vector<2x32xf32>
    %206 = vector.extract_strided_slice %205 {offsets = [0, 0], sizes = [1, 32], strides = [1, 1]} : vector<2x32xf32> to vector<1x32xf32>
    %207 = vector.extract_strided_slice %205 {offsets = [1, 0], sizes = [1, 32], strides = [1, 1]} : vector<2x32xf32> to vector<1x32xf32>
    %cst_51 = arith.constant dense<0.000000e+00> : vector<64xf32>
    %208 = vector.multi_reduction <add>, %204, %cst_51 [1] : vector<64x32xf32> to vector<64xf32>
    %209 = vector.shape_cast %208 : vector<64xf32> to vector<64x1xf32>
    %cst_52 = arith.constant 3.200000e+01 : f32
    %210 = vector.broadcast %cst_52 : f32 to vector<64x1xf32>
    %211 = arith.divf %209, %210 : vector<64x1xf32>
    %212 = vector.broadcast %211 : vector<64x1xf32> to vector<64x32xf32>
    %213 = arith.subf %204, %212 : vector<64x32xf32>
    %214 = arith.mulf %213, %213 : vector<64x32xf32>
    %cst_53 = arith.constant dense<0.000000e+00> : vector<64xf32>
    %215 = vector.multi_reduction <add>, %214, %cst_53 [1] : vector<64x32xf32> to vector<64xf32>
    %216 = vector.shape_cast %215 : vector<64xf32> to vector<64x1xf32>
    %cst_54 = arith.constant 3.200000e+01 : f32
    %217 = vector.broadcast %cst_54 : f32 to vector<64x1xf32>
    %218 = arith.divf %216, %217 : vector<64x1xf32>
    %cst_55 = arith.constant 9.99999974E-6 : f32
    %219 = vector.broadcast %cst_55 : f32 to vector<64x1xf32>
    %220 = arith.addf %218, %219 : vector<64x1xf32>
    %221 = math.rsqrt %220 : vector<64x1xf32>
    %222 = vector.broadcast %221 : vector<64x1xf32> to vector<64x32xf32>
    %223 = arith.mulf %213, %222 : vector<64x32xf32>
    %224 = vector.broadcast %206 : vector<1x32xf32> to vector<64x32xf32>
    %225 = arith.mulf %223, %224 : vector<64x32xf32>
    %226 = vector.broadcast %207 : vector<1x32xf32> to vector<64x32xf32>
    %227 = arith.addf %225, %226 : vector<64x32xf32>
    %228 = arith.truncf %227 : vector<64x32xf32> to vector<64x32xbf16>
    %c0_56 = arith.constant 0 : index
    %c0_57 = arith.constant 0 : index
    %229 = vector.load %arg11[%c0_56, %c0_57] : memref<32x128xbf16, #tpu.memory_space<vmem>>, vector<32x128xbf16>
    %cst_58 = arith.constant dense<0.000000e+00> : vector<64x128xf32>
    %230 = tpu.matmul %228, %229, %cst_58 {dimension_numbers = #tpu.dot_dimension_numbers<[1], [0], [0], [1], [0, 0, 1, 1], [], []>} : vector<64x32xbf16>, vector<32x128xbf16>, vector<64x128xf32> -> vector<64x128xf32>
    %c0_59 = arith.constant 0 : index
    %c0_60 = arith.constant 0 : index
    %231 = vector.load %arg12[%c0_59, %c0_60] : memref<1x128xf32, #tpu.memory_space<vmem>>, vector<1x128xf32>
    %232 = vector.broadcast %231 : vector<1x128xf32> to vector<64x128xf32>
    %233 = arith.addf %230, %232 : vector<64x128xf32>
    %234 = arith.mulf %233, %233 : vector<64x128xf32>
    %235 = arith.mulf %233, %234 : vector<64x128xf32>
    %cst_61 = arith.constant 4.471500e-02 : f32
    %236 = vector.broadcast %cst_61 : f32 to vector<64x128xf32>
    %237 = arith.mulf %236, %235 : vector<64x128xf32>
    %238 = arith.addf %233, %237 : vector<64x128xf32>
    %cst_62 = arith.constant 0.797884583 : f32
    %239 = vector.broadcast %cst_62 : f32 to vector<64x128xf32>
    %240 = arith.mulf %239, %238 : vector<64x128xf32>
    %241 = math.tanh %240 : vector<64x128xf32>
    %cst_63 = arith.constant 1.000000e+00 : f32
    %242 = vector.broadcast %cst_63 : f32 to vector<64x128xf32>
    %243 = arith.addf %242, %241 : vector<64x128xf32>
    %cst_64 = arith.constant 5.000000e-01 : f32
    %244 = vector.broadcast %cst_64 : f32 to vector<64x128xf32>
    %245 = arith.mulf %244, %243 : vector<64x128xf32>
    %246 = arith.mulf %233, %245 : vector<64x128xf32>
    %247 = arith.truncf %246 : vector<64x128xf32> to vector<64x128xbf16>
    %c0_65 = arith.constant 0 : index
    %c0_66 = arith.constant 0 : index
    %248 = vector.load %arg13[%c0_65, %c0_66] : memref<128x32xbf16, #tpu.memory_space<vmem>>, vector<128x32xbf16>
    %cst_67 = arith.constant dense<0.000000e+00> : vector<64x32xf32>
    %249 = tpu.matmul %247, %248, %cst_67 {dimension_numbers = #tpu.dot_dimension_numbers<[1], [0], [0], [1], [0, 0, 1, 1], [], []>} : vector<64x128xbf16>, vector<128x32xbf16>, vector<64x32xf32> -> vector<64x32xf32>
    %c0_68 = arith.constant 0 : index
    %c0_69 = arith.constant 0 : index
    %250 = vector.load %arg14[%c0_68, %c0_69] : memref<1x32xf32, #tpu.memory_space<vmem>>, vector<1x32xf32>
    %251 = vector.broadcast %250 : vector<1x32xf32> to vector<64x32xf32>
    %252 = arith.addf %249, %251 : vector<64x32xf32>
    %253 = arith.addf %204, %252 : vector<64x32xf32>
    %254 = arith.truncf %253 : vector<64x32xf32> to vector<64x32xbf16>
    %c0_70 = arith.constant 0 : index
    %c0_71 = arith.constant 0 : index
    %c0_72 = arith.constant 0 : index
    %255 = vector.load %arg15[%c0_70, %c0_71, %c0_72] : memref<1x64x32xbf16, #tpu.memory_space<vmem>>, vector<1x64x32xbf16>
    %256 = vector.shape_cast %255 : vector<1x64x32xbf16> to vector<64x32xbf16>
    %257 = vector.shape_cast %254 : vector<64x32xbf16> to vector<1x64x32xbf16>
    tpu.vector_store %arg15[%c0_70, %c0_71, %c0_72], %257 {strides = array<i32>} : memref<1x64x32xbf16, #tpu.memory_space<vmem>>, vector<1x64x32xbf16>,
    return
  }
  func.func @transform_0(%arg0: i32) -> (i32, i32, i32) {
    %c0_i32 = arith.constant 0 : i32
    %c0_i32_0 = arith.constant 0 : i32
    %c0_i32_1 = arith.constant 0 : i32
    return %arg0, %c0_i32, %c0_i32_0 : i32, i32, i32
  }
  func.func @transform_1(%arg0: i32) -> (i32, i32) {
    %c0_i32 = arith.constant 0 : i32
    %c0_i32_0 = arith.constant 0 : i32
    %c0_i32_1 = arith.constant 0 : i32
    return %c0_i32, %c0_i32_0 : i32, i32
  }
  func.func @transform_2(%arg0: i32) -> (i32, i32, i32) {
    %c0_i32 = arith.constant 0 : i32
    %c0_i32_0 = arith.constant 0 : i32
    %c0_i32_1 = arith.constant 0 : i32
    %c0_i32_2 = arith.constant 0 : i32
    return %c0_i32, %c0_i32_0, %c0_i32_1 : i32, i32, i32
  }
  func.func @transform_3(%arg0: i32) -> (i32, i32) {
    %c0_i32 = arith.constant 0 : i32
    %c0_i32_0 = arith.constant 0 : i32
    %c0_i32_1 = arith.constant 0 : i32
    return %c0_i32, %c0_i32_0 : i32, i32
  }
  func.func @transform_4(%arg0: i32) -> (i32, i32) {
    %c0_i32 = arith.constant 0 : i32
    %c0_i32_0 = arith.constant 0 : i32
    %c0_i32_1 = arith.constant 0 : i32
    return %c0_i32, %c0_i32_0 : i32, i32
  }
  func.func @transform_5(%arg0: i32) -> (i32, i32) {
    %c0_i32 = arith.constant 0 : i32
    %c0_i32_0 = arith.constant 0 : i32
    %c0_i32_1 = arith.constant 0 : i32
    return %c0_i32, %c0_i32_0 : i32, i32
  }
  func.func @transform_6(%arg0: i32) -> (i32, i32) {
    %c0_i32 = arith.constant 0 : i32
    %c0_i32_0 = arith.constant 0 : i32
    %c0_i32_1 = arith.constant 0 : i32
    return %c0_i32, %c0_i32_0 : i32, i32
  }
  func.func @transform_7(%arg0: i32) -> (i32, i32, i32) {
    %c0_i32 = arith.constant 0 : i32
    %c0_i32_0 = arith.constant 0 : i32
    %c0_i32_1 = arith.constant 0 : i32
    %c0_i32_2 = arith.constant 0 : i32
    return %c0_i32, %c0_i32_0, %c0_i32_1 : i32, i32, i32
  }
  func.func @transform_8(%arg0: i32) -> (i32, i32) {
    %c0_i32 = arith.constant 0 : i32
    %c0_i32_0 = arith.constant 0 : i32
    %c0_i32_1 = arith.constant 0 : i32
    return %c0_i32, %c0_i32_0 : i32, i32
  }
  func.func @transform_9(%arg0: i32) -> (i32, i32) {
    %c0_i32 = arith.constant 0 : i32
    %c0_i32_0 = arith.constant 0 : i32
    %c0_i32_1 = arith.constant 0 : i32
    return %c0_i32, %c0_i32_0 : i32, i32
  }
  func.func @transform_10(%arg0: i32) -> (i32, i32) {
    %c0_i32 = arith.constant 0 : i32
    %c0_i32_0 = arith.constant 0 : i32
    %c0_i32_1 = arith.constant 0 : i32
    return %c0_i32, %c0_i32_0 : i32, i32
  }
  func.func @transform_11(%arg0: i32) -> (i32, i32) {
    %c0_i32 = arith.constant 0 : i32
    %c0_i32_0 = arith.constant 0 : i32
    %c0_i32_1 = arith.constant 0 : i32
    return %c0_i32, %c0_i32_0 : i32, i32
  }
  func.func @transform_12(%arg0: i32) -> (i32, i32) {
    %c0_i32 = arith.constant 0 : i32
    %c0_i32_0 = arith.constant 0 : i32
    %c0_i32_1 = arith.constant 0 : i32
    return %c0_i32, %c0_i32_0 : i32, i32
  }
  func.func @transform_13(%arg0: i32) -> (i32, i32) {
    %c0_i32 = arith.constant 0 : i32
    %c0_i32_0 = arith.constant 0 : i32
    %c0_i32_1 = arith.constant 0 : i32
    return %c0_i32, %c0_i32_0 : i32, i32
  }
  func.func @transform_14(%arg0: i32) -> (i32, i32, i32) {
    %c0_i32 = arith.constant 0 : i32
    %c0_i32_0 = arith.constant 0 : i32
    %c0_i32_1 = arith.constant 0 : i32
    return %arg0, %c0_i32, %c0_i32_0 : i32, i32, i32
  }
}

</mosaic_0001>

<llo_original>
// kernel: _lambda_.4
$region0: #{_lambda_.4}
  #allocation0 [shape = 'u32[]', space=smem, size = 0x4, offset = 0x4, fixed_abs, tag = 'smem constant byte address 0x4 - core index']
  #allocation1 [shape = 'u32[144,128]{1,0:T(1,128)}', space=vmem, size = 0x12000, scoped, tag = 'internal scratch']
  #allocation2 [shape = 'f32[128,32]{1,0:T(8,128)}', space=vmem, size = 0x10000, scoped, tag = 'scratch operand']
  %s0 = inlined_call_operand.vmem [shape: bf16[128,36], index: 0, kind: input, shape index: {}]
  %s1 = inlined_call_operand.vmem [shape: bf16[36,32], index: 1, kind: input, shape index: {}]
  %s2 = inlined_call_operand.vmem [shape: f32[1,32], index: 2, kind: input, shape index: {}]
  %s3 = inlined_call_operand.vmem [shape: f32[1,32], index: 3, kind: input, shape index: {}]
  %s4 = inlined_call_operand.vmem [shape: bf16[128,32], index: 4, kind: output, shape index: {}]
  %s5 = sld [smem:[#allocation0]]
  $region34: #{_lambda_.4} parent=0
    _
  %s7 = ssub.s32 1, %s5
  %s8 = scalar_select 0, %s7, %s5
  // Predicated region
  $region2: #{_lambda_.4} parent=0 // pred_check
    _
  $region3: #{_lambda_.4} parent=0 // pred_check_branch
    %10 = sbr.rel (0) target = $region5
  $region4: #{_lambda_.4} parent=0 // pred_region
    _
  $region5: #{_lambda_.4} parent=0 // pred_fallthru
    _
  // Predicated region
  $region6: #{_lambda_.4} parent=0 // pred_check
    _
  $region7: #{_lambda_.4} parent=0 // pred_check_branch
    %12 = sbr.rel (0) target = $region9
  $region8: #{_lambda_.4} parent=0 // pred_region
    _
  $region9: #{_lambda_.4} parent=0 // pred_fallthru
    _
  // Predicated region
  $region10: #{_lambda_.4} parent=0 // pred_check
    _
  $region11: #{_lambda_.4} parent=0 // pred_check_branch
    %14 = sbr.rel (0) target = $region13
  $region12: #{_lambda_.4} parent=0 // pred_region
    _
  $region13: #{_lambda_.4} parent=0 // pred_fallthru
    _
  // Predicated region
  $region14: #{_lambda_.4} parent=0 // pred_check
    _
  $region15: #{_lambda_.4} parent=0 // pred_check_branch
    %16 = sbr.rel (0) target = $region17
  $region16: #{_lambda_.4} parent=0 // pred_region
    _
  $region17: #{_lambda_.4} parent=0 // pred_fallthru
    _
  %p18 = scmp.eq.s32.totalorder 0, 0
  // Predicated region
  $region18: #{_lambda_.4} parent=0 // pred_check
    %p19 = pneg %p18
  $region19: #{_lambda_.4} parent=0 // pred_check_branch
    %21 = sbr.rel (%p19) target = $region21
  $region20: #{_lambda_.4} parent=0 // pred_region
    %vm22 = vcmask 261120
    %23 = vst.msk [vmem:[#allocation2] sm:$0xff] %vm22, 0.0
    %24 = vst.msk [vmem:[#allocation2 + $0x8] sm:$0xff] %vm22, 0.0
    %25 = vst.msk [vmem:[#allocation2 + $0x10] sm:$0xff] %vm22, 0.0
    %26 = vst.msk [vmem:[#allocation2 + $0x18] sm:$0xff] %vm22, 0.0
    %27 = vst.msk [vmem:[#allocation2 + $0x20] sm:$0xff] %vm22, 0.0
    %28 = vst.msk [vmem:[#allocation2 + $0x28] sm:$0xff] %vm22, 0.0
    %29 = vst.msk [vmem:[#allocation2 + $0x30] sm:$0xff] %vm22, 0.0
    %30 = vst.msk [vmem:[#allocation2 + $0x38] sm:$0xff] %vm22, 0.0
    %31 = vst.msk [vmem:[#allocation2 + $0x40] sm:$0xff] %vm22, 0.0
    %32 = vst.msk [vmem:[#allocation2 + $0x48] sm:$0xff] %vm22, 0.0
    %33 = vst.msk [vmem:[#allocation2 + $0x50] sm:$0xff] %vm22, 0.0
    %34 = vst.msk [vmem:[#allocation2 + $0x58] sm:$0xff] %vm22, 0.0
    %35 = vst.msk [vmem:[#allocation2 + $0x60] sm:$0xff] %vm22, 0.0
    %36 = vst.msk [vmem:[#allocation2 + $0x68] sm:$0xff] %vm22, 0.0
    %37 = vst.msk [vmem:[#allocation2 + $0x70] sm:$0xff] %vm22, 0.0
    %38 = vst.msk [vmem:[#allocation2 + $0x78] sm:$0xff] %vm22, 0.0
  $region21: #{_lambda_.4} parent=0 // pred_fallthru
    _
  %v39 = vld [vmem:[#allocation2] sm:$0xff]
  %v40 = vld [vmem:[#allocation2 + $0x8] sm:$0xff]
  %v41 = vld [vmem:[#allocation2 + $0x10] sm:$0xff]
  %v42 = vld [vmem:[#allocation2 + $0x18] sm:$0xff]
  %v43 = vld [vmem:[#allocation2 + $0x20] sm:$0xff]
  %v44 = vld [vmem:[#allocation2 + $0x28] sm:$0xff]
  %v45 = vld [vmem:[#allocation2 + $0x30] sm:$0xff]
  %v46 = vld [vmem:[#allocation2 + $0x38] sm:$0xff]
  %v47 = vld [vmem:[#allocation2 + $0x40] sm:$0xff]
  %v48 = vld [vmem:[#allocation2 + $0x48] sm:$0xff]
  %v49 = vld [vmem:[#allocation2 + $0x50] sm:$0xff]
  %v50 = vld [vmem:[#allocation2 + $0x58] sm:$0xff]
  %v51 = vld [vmem:[#allocation2 + $0x60] sm:$0xff]
  %v52 = vld [vmem:[#allocation2 + $0x68] sm:$0xff]
  %v53 = vld [vmem:[#allocation2 + $0x70] sm:$0xff]
  %v54 = vld [vmem:[#allocation2 + $0x78] sm:$0xff]
  %v55 = vld [vmem:[%s0] sm:$0xf]
  %v56 = vld [vmem:[%s0 + $0x4] sm:$0xf]
  %v57 = vld [vmem:[%s0 + $0x8] sm:$0xf]
  %v58 = vld [vmem:[%s0 + $0xc] sm:$0xf]
  %v59 = vld [vmem:[%s0 + $0x10] sm:$0xf]
  %v60 = vld [vmem:[%s0 + $0x14] sm:$0xf]
  %v61 = vld [vmem:[%s0 + $0x18] sm:$0xf]
  %v62 = vld [vmem:[%s0 + $0x1c] sm:$0xf]
  %v63 = vld [vmem:[%s0 + $0x20] sm:$0xf]
  %v64 = vld [vmem:[%s0 + $0x24] sm:$0xf]
  %v65 = vld [vmem:[%s0 + $0x28] sm:$0xf]
  %v66 = vld [vmem:[%s0 + $0x2c] sm:$0xf]
  %v67 = vld [vmem:[%s0 + $0x30] sm:$0xf]
  %v68 = vld [vmem:[%s0 + $0x34] sm:$0xf]
  %v69 = vld [vmem:[%s0 + $0x38] sm:$0xf]
  %v70 = vld [vmem:[%s0 + $0x3c] sm:$0xf]
  %v71 = vld [vmem:[%s1] sm:$0xf]
  %v72 = vld [vmem:[%s1 + $0x4] sm:$0xf]
  %v73 = vld [vmem:[%s1 + $0x8] sm:$0xf]
  %v74 = vld [vmem:[%s1 + $0xc] sm:$0xf]
  %v75 = vld [vmem:[%s1 + $0x10] sm:$0x3]
  %v92 = vunpack.c.l.b16 %v55
  %v93 = vunpack.c.l.b16 %v56
  %v94 = vunpack.c.l.b16 %v57
  %v95 = vunpack.c.l.b16 %v58
  %v96 = vunpack.c.l.b16 %v59
  %v97 = vunpack.c.l.b16 %v60
  %v98 = vunpack.c.l.b16 %v61
  %v99 = vunpack.c.l.b16 %v62
  %v100 = vunpack.c.l.b16 %v63
  %v101 = vunpack.c.l.b16 %v64
  %v102 = vunpack.c.l.b16 %v65
  %v103 = vunpack.c.l.b16 %v66
  %v104 = vunpack.c.l.b16 %v67
  %v105 = vunpack.c.l.b16 %v68
  %v106 = vunpack.c.l.b16 %v69
  %v107 = vunpack.c.l.b16 %v70
  %v108 = vpack.c.b16 %v93, %v92
  %v109 = vpack.c.b16 %v95, %v94
  %v110 = vpack.c.b16 %v97, %v96
  %v111 = vpack.c.b16 %v99, %v98
  %v112 = vpack.c.b16 %v101, %v100
  %v113 = vpack.c.b16 %v103, %v102
  %v114 = vpack.c.b16 %v105, %v104
  %v115 = vpack.c.b16 %v107, %v106
  %v121 = vunpack.c.l.b16 %v71
  %v122 = vunpack.c.l.b16 %v72
  %v123 = vunpack.c.l.b16 %v73
  %v124 = vunpack.c.l.b16 %v74
  %v125 = vunpack.c.l.b16 %v75
  %v126 = vpack.c.b16 %v122, %v121
  %v127 = vpack.c.b16 %v124, %v123
  %v128 = vpack.c.b16 %v125, %v125
  %vm131 = vcmask 293888
  %v133 = vsel %vm131, %v108, 0
  %v136 = vsel %vm131, %v109, 0
  %v139 = vsel %vm131, %v110, 0
  %v142 = vsel %vm131, %v111, 0
  %v145 = vsel %vm131, %v112, 0
  %v148 = vsel %vm131, %v113, 0
  %v151 = vsel %vm131, %v114, 0
  %v154 = vsel %vm131, %v115, 0
  %vm156 = vcmask 1041408
  %v158 = vsel %vm156, %v128, 0
  %160 = vmatprep.subr.bf16.mxu0 0
  %161 = vmatpush1.bf16.msra.mxu0 %v126
  %162 = vmatprep.subr.bf16.mxu0 0
  %163 = vmatpush1.bf16.msra.mxu0 %v127
  %164 = vmatprep.subr.bf16.mxu0 0
  %165 = vmatpush1.bf16.msra.mxu0 %v158
  %166 = vmatprep.subr.bf16.mxu0 0
  %167 = vmatpush1.bf16.msra.mxu0 0
  %168 = vmatprep.subr.bf16.mxu0 0
  %169 = vmatpush1.bf16.msra.mxu0 0
  %170 = vmatprep.subr.bf16.mxu0 0
  %171 = vmatpush1.bf16.msra.mxu0 0
  %172 = vmatprep.subr.bf16.mxu0 0
  %173 = vmatpush1.bf16.msra.mxu0 0
  %174 = vmatprep.subr.bf16.mxu0 0
  %175 = vmatpush1.bf16.msra.mxu0 0
  %176 = vmatprep.subr.bf16.mxu0 0
  %177 = vmatpush1.bf16.msra.mxu0 0
  %178 = vmatprep.subr.bf16.mxu0 0
  %179 = vmatpush1.bf16.msra.mxu0 0
  %180 = vmatprep.subr.bf16.mxu0 0
  %181 = vmatpush1.bf16.msra.mxu0 0
  %182 = vmatprep.subr.bf16.mxu0 0
  %183 = vmatpush1.bf16.msra.mxu0 0
  %184 = vmatprep.subr.bf16.mxu0 0
  %185 = vmatpush1.bf16.msra.mxu0 0
  %186 = vmatprep.subr.bf16.mxu0 0
  %187 = vmatpush1.bf16.msra.mxu0 0
  %188 = vmatprep.subr.bf16.mxu0 0
  %189 = vmatpush1.bf16.msra.mxu0 0
  %190 = vmatprep.subr.bf16.mxu0 0
  %191 = vmatpush1.bf16.msra.mxu0 0
  %192 = vmatprep.mubr.bf16.mxu0 0
  %193 = vmatmul.mubr.bf16.gmra.mrb[0].mxu0 %v133
  %v194 = vpop.f32.mrb[0].mxu0
  %v195 = vadd.f32 0.0, %v194
  %v196 = vpop.f32.mrb[0].mxu0
  %v197 = vpop.f32.mrb[0].mxu0
  %v198 = vadd.f32 0.0, %v197
  %v199 = vpop.f32.mrb[0].mxu0
  %200 = vmatprep.mubr.bf16.mxu0 0
  %201 = vmatmul.mubr.bf16.gmra.mrb[0].mxu0 %v136
  %v202 = vpop.f32.mrb[0].mxu0
  %v203 = vadd.f32 0.0, %v202
  %v204 = vpop.f32.mrb[0].mxu0
  %v205 = vpop.f32.mrb[0].mxu0
  %v206 = vadd.f32 0.0, %v205
  %v207 = vpop.f32.mrb[0].mxu0
  %208 = vmatprep.mubr.bf16.mxu0 0
  %209 = vmatmul.mubr.bf16.gmra.mrb[0].mxu0 %v139
  %v210 = vpop.f32.mrb[0].mxu0
  %v211 = vadd.f32 0.0, %v210
  %v212 = vpop.f32.mrb[0].mxu0
  %v213 = vpop.f32.mrb[0].mxu0
  %v214 = vadd.f32 0.0, %v213
  %v215 = vpop.f32.mrb[0].mxu0
  %216 = vmatprep.mubr.bf16.mxu0 0
  %217 = vmatmul.mubr.bf16.gmra.mrb[0].mxu0 %v142
  %v218 = vpop.f32.mrb[0].mxu0
  %v219 = vadd.f32 0.0, %v218
  %v220 = vpop.f32.mrb[0].mxu0
  %v221 = vpop.f32.mrb[0].mxu0
  %v222 = vadd.f32 0.0, %v221
  %v223 = vpop.f32.mrb[0].mxu0
  %224 = vmatprep.mubr.bf16.mxu0 0
  %225 = vmatmul.mubr.bf16.gmra.mrb[0].mxu0 %v145
  %v226 = vpop.f32.mrb[0].mxu0
  %v227 = vadd.f32 0.0, %v226
  %v228 = vpop.f32.mrb[0].mxu0
  %v229 = vpop.f32.mrb[0].mxu0
  %v230 = vadd.f32 0.0, %v229
  %v231 = vpop.f32.mrb[0].mxu0
  %232 = vmatprep.mubr.bf16.mxu0 0
  %233 = vmatmul.mubr.bf16.gmra.mrb[0].mxu0 %v148
  %v234 = vpop.f32.mrb[0].mxu0
  %v235 = vadd.f32 0.0, %v234
  %v236 = vpop.f32.mrb[0].mxu0
  %v237 = vpop.f32.mrb[0].mxu0
  %v238 = vadd.f32 0.0, %v237
  %v239 = vpop.f32.mrb[0].mxu0
  %240 = vmatprep.mubr.bf16.mxu0 0
  %241 = vmatmul.mubr.bf16.gmra.mrb[0].mxu0 %v151
  %v242 = vpop.f32.mrb[0].mxu0
  %v243 = vadd.f32 0.0, %v242
  %v244 = vpop.f32.mrb[0].mxu0
  %v245 = vpop.f32.mrb[0].mxu0
  %v246 = vadd.f32 0.0, %v245
  %v247 = vpop.f32.mrb[0].mxu0
  %248 = vmatprep.mubr.bf16.mxu0 0
  %249 = vmatmul.mubr.bf16.gmra.mrb[0].mxu0 %v154
  %v250 = vpop.f32.mrb[0].mxu0
  %v251 = vadd.f32 0.0, %v250
  %v252 = vpop.f32.mrb[0].mxu0
  %v253 = vpop.f32.mrb[0].mxu0
  %v254 = vadd.f32 0.0, %v253
  %v255 = vpop.f32.mrb[0].mxu0
  %256 = vdwg.mxu0
  %v257 = vadd.f32 %v39, %v195
  %v258 = vadd.f32 %v40, %v198
  %v259 = vadd.f32 %v41, %v203
  %v260 = vadd.f32 %v42, %v206
  %v261 = vadd.f32 %v43, %v211
  %v262 = vadd.f32 %v44, %v214
  %v263 = vadd.f32 %v45, %v219
  %v264 = vadd.f32 %v46, %v222
  %v265 = vadd.f32 %v47, %v227
  %v266 = vadd.f32 %v48, %v230
  %v267 = vadd.f32 %v49, %v235
  %v268 = vadd.f32 %v50, %v238
  %v269 = vadd.f32 %v51, %v243
  %v270 = vadd.f32 %v52, %v246
  %v271 = vadd.f32 %v53, %v251
  %v272 = vadd.f32 %v54, %v254
  %vm273 = vcmask 261120
  %274 = vst.msk [vmem:[#allocation2] sm:$0xff] %vm273, %v257
  %275 = vst.msk [vmem:[#allocation2 + $0x8] sm:$0xff] %vm273, %v258
  %276 = vst.msk [vmem:[#allocation2 + $0x10] sm:$0xff] %vm273, %v259
  %277 = vst.msk [vmem:[#allocation2 + $0x18] sm:$0xff] %vm273, %v260
  %278 = vst.msk [vmem:[#allocation2 + $0x20] sm:$0xff] %vm273, %v261
  %279 = vst.msk [vmem:[#allocation2 + $0x28] sm:$0xff] %vm273, %v262
  %280 = vst.msk [vmem:[#allocation2 + $0x30] sm:$0xff] %vm273, %v263
  %281 = vst.msk [vmem:[#allocation2 + $0x38] sm:$0xff] %vm273, %v264
  %282 = vst.msk [vmem:[#allocation2 + $0x40] sm:$0xff] %vm273, %v265
  %283 = vst.msk [vmem:[#allocation2 + $0x48] sm:$0xff] %vm273, %v266
  %284 = vst.msk [vmem:[#allocation2 + $0x50] sm:$0xff] %vm273, %v267
  %285 = vst.msk [vmem:[#allocation2 + $0x58] sm:$0xff] %vm273, %v268
  %286 = vst.msk [vmem:[#allocation2 + $0x60] sm:$0xff] %vm273, %v269
  %287 = vst.msk [vmem:[#allocation2 + $0x68] sm:$0xff] %vm273, %v270
  %288 = vst.msk [vmem:[#allocation2 + $0x70] sm:$0xff] %vm273, %v271
  %289 = vst.msk [vmem:[#allocation2 + $0x78] sm:$0xff] %vm273, %v272
  // Predicated region
  $region22: #{_lambda_.4} parent=0 // pred_check
    %p290 = pneg %p18
  $region23: #{_lambda_.4} parent=0 // pred_check_branch
    %292 = sbr.rel (%p290) target = $region25
  $region24: #{_lambda_.4} parent=0 // pred_region
    %v293 = vld [vmem:[#allocation2] sm:$0xff]
    %v294 = vld [vmem:[#allocation2 + $0x8] sm:$0xff]
    %v295 = vld [vmem:[#allocation2 + $0x10] sm:$0xff]
    %v296 = vld [vmem:[#allocation2 + $0x18] sm:$0xff]
    %v297 = vld [vmem:[#allocation2 + $0x20] sm:$0xff]
    %v298 = vld [vmem:[#allocation2 + $0x28] sm:$0xff]
    %v299 = vld [vmem:[#allocation2 + $0x30] sm:$0xff]
    %v300 = vld [vmem:[#allocation2 + $0x38] sm:$0xff]
    %v301 = vld [vmem:[#allocation2 + $0x40] sm:$0xff]
    %v302 = vld [vmem:[#allocation2 + $0x48] sm:$0xff]
    %v303 = vld [vmem:[#allocation2 + $0x50] sm:$0xff]
    %v304 = vld [vmem:[#allocation2 + $0x58] sm:$0xff]
    %v305 = vld [vmem:[#allocation2 + $0x60] sm:$0xff]
    %v306 = vld [vmem:[#allocation2 + $0x68] sm:$0xff]
    %v307 = vld [vmem:[#allocation2 + $0x70] sm:$0xff]
    %v308 = vld [vmem:[#allocation2 + $0x78] sm:$0xff]
    %v309 = vsel %vm273, %v293, 0.0
    %310 = vadd.xlane.f32.xlu0 %v309
    %v311 = vpop.xlane.xlu0 %310
    %v312 = vsel %vm273, %v294, 0.0
    %313 = vadd.xlane.f32.xlu0 %v312
    %v314 = vpop.xlane.xlu0 %313
    %v315 = vsel %vm273, %v295, 0.0
    %316 = vadd.xlane.f32.xlu0 %v315
    %v317 = vpop.xlane.xlu0 %316
    %v318 = vsel %vm273, %v296, 0.0
    %319 = vadd.xlane.f32.xlu0 %v318
    %v320 = vpop.xlane.xlu0 %319
    %v321 = vsel %vm273, %v297, 0.0
    %322 = vadd.xlane.f32.xlu0 %v321
    %v323 = vpop.xlane.xlu0 %322
    %v324 = vsel %vm273, %v298, 0.0
    %325 = vadd.xlane.f32.xlu0 %v324
    %v326 = vpop.xlane.xlu0 %325
    %v327 = vsel %vm273, %v299, 0.0
    %328 = vadd.xlane.f32.xlu0 %v327
    %v329 = vpop.xlane.xlu0 %328
    %v330 = vsel %vm273, %v300, 0.0
    %331 = vadd.xlane.f32.xlu0 %v330
    %v332 = vpop.xlane.xlu0 %331
    %v333 = vsel %vm273, %v301, 0.0
    %334 = vadd.xlane.f32.xlu0 %v333
    %v335 = vpop.xlane.xlu0 %334
    %v336 = vsel %vm273, %v302, 0.0
    %337 = vadd.xlane.f32.xlu0 %v336
    %v338 = vpop.xlane.xlu0 %337
    %v339 = vsel %vm273, %v303, 0.0
    %340 = vadd.xlane.f32.xlu0 %v339
    %v341 = vpop.xlane.xlu0 %340
    %v342 = vsel %vm273, %v304, 0.0
    %343 = vadd.xlane.f32.xlu0 %v342
    %v344 = vpop.xlane.xlu0 %343
    %v345 = vsel %vm273, %v305, 0.0
    %346 = vadd.xlane.f32.xlu0 %v345
    %v347 = vpop.xlane.xlu0 %346
    %v348 = vsel %vm273, %v306, 0.0
    %349 = vadd.xlane.f32.xlu0 %v348
    %v350 = vpop.xlane.xlu0 %349
    %v351 = vsel %vm273, %v307, 0.0
    %352 = vadd.xlane.f32.xlu0 %v351
    %v353 = vpop.xlane.xlu0 %352
    %v354 = vsel %vm273, %v308, 0.0
    %355 = vadd.xlane.f32.xlu0 %v354
    %v356 = vpop.xlane.xlu0 %355
    %v357 = vrcp.pop 32.0
    %v358 = vmul.f32 %v311, %v357
    %v359 = vmul.f32 %v314, %v357
    %v360 = vmul.f32 %v317, %v357
    %v361 = vmul.f32 %v320, %v357
    %v362 = vmul.f32 %v323, %v357
    %v363 = vmul.f32 %v326, %v357
    %v364 = vmul.f32 %v329, %v357
    %v365 = vmul.f32 %v332, %v357
    %v366 = vmul.f32 %v335, %v357
    %v367 = vmul.f32 %v338, %v357
    %v368 = vmul.f32 %v341, %v357
    %v369 = vmul.f32 %v344, %v357
    %v370 = vmul.f32 %v347, %v357
    %v371 = vmul.f32 %v350, %v357
    %v372 = vmul.f32 %v353, %v357
    %v373 = vmul.f32 %v356, %v357
    %v374 = vsub.f32 %v293, %v358
    %v375 = vsub.f32 %v294, %v359
    %v376 = vsub.f32 %v295, %v360
    %v377 = vsub.f32 %v296, %v361
    %v378 = vsub.f32 %v297, %v362
    %v379 = vsub.f32 %v298, %v363
    %v380 = vsub.f32 %v299, %v364
    %v381 = vsub.f32 %v300, %v365
    %v382 = vsub.f32 %v301, %v366
    %v383 = vsub.f32 %v302, %v367
    %v384 = vsub.f32 %v303, %v368
    %v385 = vsub.f32 %v304, %v369
    %v386 = vsub.f32 %v305, %v370
    %v387 = vsub.f32 %v306, %v371
    %v388 = vsub.f32 %v307, %v372
    %v389 = vsub.f32 %v308, %v373
    %v390 = vmul.f32 %v374, %v374
    %v391 = vmul.f32 %v375, %v375
    %v392 = vmul.f32 %v376, %v376
    %v393 = vmul.f32 %v377, %v377
    %v394 = vmul.f32 %v378, %v378
    %v395 = vmul.f32 %v379, %v379
    %v396 = vmul.f32 %v380, %v380
    %v397 = vmul.f32 %v381, %v381
    %v398 = vmul.f32 %v382, %v382
    %v399 = vmul.f32 %v383, %v383
    %v400 = vmul.f32 %v384, %v384
    %v401 = vmul.f32 %v385, %v385
    %v402 = vmul.f32 %v386, %v386
    %v403 = vmul.f32 %v387, %v387
    %v404 = vmul.f32 %v388, %v388
    %v405 = vmul.f32 %v389, %v389
    %v406 = vsel %vm273, %v390, 0.0
    %407 = vadd.xlane.f32.xlu0 %v406
    %v408 = vpop.xlane.xlu0 %407
    %v409 = vsel %vm273, %v391, 0.0
    %410 = vadd.xlane.f32.xlu0 %v409
    %v411 = vpop.xlane.xlu0 %410
    %v412 = vsel %vm273, %v392, 0.0
    %413 = vadd.xlane.f32.xlu0 %v412
    %v414 = vpop.xlane.xlu0 %413
    %v415 = vsel %vm273, %v393, 0.0
    %416 = vadd.xlane.f32.xlu0 %v415
    %v417 = vpop.xlane.xlu0 %416
    %v418 = vsel %vm273, %v394, 0.0
    %419 = vadd.xlane.f32.xlu0 %v418
    %v420 = vpop.xlane.xlu0 %419
    %v421 = vsel %vm273, %v395, 0.0
    %422 = vadd.xlane.f32.xlu0 %v421
    %v423 = vpop.xlane.xlu0 %422
    %v424 = vsel %vm273, %v396, 0.0
    %425 = vadd.xlane.f32.xlu0 %v424
    %v426 = vpop.xlane.xlu0 %425
    %v427 = vsel %vm273, %v397, 0.0
    %428 = vadd.xlane.f32.xlu0 %v427
    %v429 = vpop.xlane.xlu0 %428
    %v430 = vsel %vm273, %v398, 0.0
    %431 = vadd.xlane.f32.xlu0 %v430
    %v432 = vpop.xlane.xlu0 %431
    %v433 = vsel %vm273, %v399, 0.0
    %434 = vadd.xlane.f32.xlu0 %v433
    %v435 = vpop.xlane.xlu0 %434
    %v436 = vsel %vm273, %v400, 0.0
    %437 = vadd.xlane.f32.xlu0 %v436
    %v438 = vpop.xlane.xlu0 %437
    %v439 = vsel %vm273, %v401, 0.0
    %440 = vadd.xlane.f32.xlu0 %v439
    %v441 = vpop.xlane.xlu0 %440
    %v442 = vsel %vm273, %v402, 0.0
    %443 = vadd.xlane.f32.xlu0 %v442
    %v444 = vpop.xlane.xlu0 %443
    %v445 = vsel %vm273, %v403, 0.0
    %446 = vadd.xlane.f32.xlu0 %v445
    %v447 = vpop.xlane.xlu0 %446
    %v448 = vsel %vm273, %v404, 0.0
    %449 = vadd.xlane.f32.xlu0 %v448
    %v450 = vpop.xlane.xlu0 %449
    %v451 = vsel %vm273, %v405, 0.0
    %452 = vadd.xlane.f32.xlu0 %v451
    %v453 = vpop.xlane.xlu0 %452
    %v454 = vmul.f32 %v408, %v357
    %v455 = vmul.f32 %v411, %v357
    %v456 = vmul.f32 %v414, %v357
    %v457 = vmul.f32 %v417, %v357
    %v458 = vmul.f32 %v420, %v357
    %v459 = vmul.f32 %v423, %v357
    %v460 = vmul.f32 %v426, %v357
    %v461 = vmul.f32 %v429, %v357
    %v462 = vmul.f32 %v432, %v357
    %v463 = vmul.f32 %v435, %v357
    %v464 = vmul.f32 %v438, %v357
    %v465 = vmul.f32 %v441, %v357
    %v466 = vmul.f32 %v444, %v357
    %v467 = vmul.f32 %v447, %v357
    %v468 = vmul.f32 %v450, %v357
    %v469 = vmul.f32 %v453, %v357
    %v470 = vadd.f32 %v454, 1e-05
    %v471 = vadd.f32 %v455, 1e-05
    %v472 = vadd.f32 %v456, 1e-05
    %v473 = vadd.f32 %v457, 1e-05
    %v474 = vadd.f32 %v458, 1e-05
    %v475 = vadd.f32 %v459, 1e-05
    %v476 = vadd.f32 %v460, 1e-05
    %v477 = vadd.f32 %v461, 1e-05
    %v478 = vadd.f32 %v462, 1e-05
    %v479 = vadd.f32 %v463, 1e-05
    %v480 = vadd.f32 %v464, 1e-05
    %v481 = vadd.f32 %v465, 1e-05
    %v482 = vadd.f32 %v466, 1e-05
    %v483 = vadd.f32 %v467, 1e-05
    %v484 = vadd.f32 %v468, 1e-05
    %v485 = vadd.f32 %v469, 1e-05
    %v486 = vrsqrt.pop %v470
    %v487 = vrsqrt.pop %v471
    %v488 = vrsqrt.pop %v472
    %v489 = vrsqrt.pop %v473
    %v490 = vrsqrt.pop %v474
    %v491 = vrsqrt.pop %v475
    %v492 = vrsqrt.pop %v476
    %v493 = vrsqrt.pop %v477
    %v494 = vrsqrt.pop %v478
    %v495 = vrsqrt.pop %v479
    %v496 = vrsqrt.pop %v480
    %v497 = vrsqrt.pop %v481
    %v498 = vrsqrt.pop %v482
    %v499 = vrsqrt.pop %v483
    %v500 = vrsqrt.pop %v484
    %v501 = vrsqrt.pop %v485
    %v502 = vmul.f32 %v374, %v486
    %v503 = vmul.f32 %v375, %v487
    %v504 = vmul.f32 %v376, %v488
    %v505 = vmul.f32 %v377, %v489
    %v506 = vmul.f32 %v378, %v490
    %v507 = vmul.f32 %v379, %v491
    %v508 = vmul.f32 %v380, %v492
    %v509 = vmul.f32 %v381, %v493
    %v510 = vmul.f32 %v382, %v494
    %v511 = vmul.f32 %v383, %v495
    %v512 = vmul.f32 %v384, %v496
    %v513 = vmul.f32 %v385, %v497
    %v514 = vmul.f32 %v386, %v498
    %v515 = vmul.f32 %v387, %v499
    %v516 = vmul.f32 %v388, %v500
    %v517 = vmul.f32 %v389, %v501
    %v518 = vld [vmem:[%s2] sm:$0x1]
    %v520 = vlaneseq
    %v521 = vshrl.u32 %v520, 7
    %v522 = vsub.s32 0, %v521
    %v523 = vrot.slane %v518, %v522
    %v525 = vmul.f32 %v502, %v523
    %v526 = vmul.f32 %v503, %v523
    %v527 = vmul.f32 %v504, %v523
    %v528 = vmul.f32 %v505, %v523
    %v529 = vmul.f32 %v506, %v523
    %v530 = vmul.f32 %v507, %v523
    %v531 = vmul.f32 %v508, %v523
    %v532 = vmul.f32 %v509, %v523
    %v533 = vmul.f32 %v510, %v523
    %v534 = vmul.f32 %v511, %v523
    %v535 = vmul.f32 %v512, %v523
    %v536 = vmul.f32 %v513, %v523
    %v537 = vmul.f32 %v514, %v523
    %v538 = vmul.f32 %v515, %v523
    %v539 = vmul.f32 %v516, %v523
    %v540 = vmul.f32 %v517, %v523
    %v541 = vld [vmem:[%s3] sm:$0x1]
    %v543 = vlaneseq
    %v544 = vshrl.u32 %v543, 7
    %v545 = vsub.s32 0, %v544
    %v546 = vrot.slane %v541, %v545
    %v548 = vadd.f32 %v525, %v546
    %v549 = vadd.f32 %v526, %v546
    %v550 = vadd.f32 %v527, %v546
    %v551 = vadd.f32 %v528, %v546
    %v552 = vadd.f32 %v529, %v546
    %v553 = vadd.f32 %v530, %v546
    %v554 = vadd.f32 %v531, %v546
    %v555 = vadd.f32 %v532, %v546
    %v556 = vadd.f32 %v533, %v546
    %v557 = vadd.f32 %v534, %v546
    %v558 = vadd.f32 %v535, %v546
    %v559 = vadd.f32 %v536, %v546
    %v560 = vadd.f32 %v537, %v546
    %v561 = vadd.f32 %v538, %v546
    %v562 = vadd.f32 %v539, %v546
    %v563 = vadd.f32 %v540, %v546
    %v564 = vmax.f32 %v548, 0.0
    %v565 = vmax.f32 %v549, 0.0
    %v566 = vmax.f32 %v550, 0.0
    %v567 = vmax.f32 %v551, 0.0
    %v568 = vmax.f32 %v552, 0.0
    %v569 = vmax.f32 %v553, 0.0
    %v570 = vmax.f32 %v554, 0.0
    %v571 = vmax.f32 %v555, 0.0
    %v572 = vmax.f32 %v556, 0.0
    %v573 = vmax.f32 %v557, 0.0
    %v574 = vmax.f32 %v558, 0.0
    %v575 = vmax.f32 %v559, 0.0
    %v576 = vmax.f32 %v560, 0.0
    %v577 = vmax.f32 %v561, 0.0
    %v578 = vmax.f32 %v562, 0.0
    %v579 = vmax.f32 %v563, 0.0
    %v580 = vpack.c.bf16 %v565, %v564
    %v581 = vpack.c.bf16 %v567, %v566
    %v582 = vpack.c.bf16 %v569, %v568
    %v583 = vpack.c.bf16 %v571, %v570
    %v584 = vpack.c.bf16 %v573, %v572
    %v585 = vpack.c.bf16 %v575, %v574
    %v586 = vpack.c.bf16 %v577, %v576
    %v587 = vpack.c.bf16 %v579, %v578
    %v596 = vunpack.c.l.b16 %v580
    %v597 = vunpack.c.h.b16 %v580
    %v598 = vunpack.c.l.b16 %v581
    %v599 = vunpack.c.h.b16 %v581
    %v600 = vunpack.c.l.b16 %v582
    %v601 = vunpack.c.h.b16 %v582
    %v602 = vunpack.c.l.b16 %v583
    %v603 = vunpack.c.h.b16 %v583
    %v604 = vunpack.c.l.b16 %v584
    %v605 = vunpack.c.h.b16 %v584
    %v606 = vunpack.c.l.b16 %v585
    %v607 = vunpack.c.h.b16 %v585
    %v608 = vunpack.c.l.b16 %v586
    %v609 = vunpack.c.h.b16 %v586
    %v610 = vunpack.c.l.b16 %v587
    %v611 = vunpack.c.h.b16 %v587
    %v612 = vpack.c.b16 %v596, %v596
    %v613 = vpack.c.b16 %v597, %v597
    %v614 = vpack.c.b16 %v598, %v598
    %v615 = vpack.c.b16 %v599, %v599
    %v616 = vpack.c.b16 %v600, %v600
    %v617 = vpack.c.b16 %v601, %v601
    %v618 = vpack.c.b16 %v602, %v602
    %v619 = vpack.c.b16 %v603, %v603
    %v620 = vpack.c.b16 %v604, %v604
    %v621 = vpack.c.b16 %v605, %v605
    %v622 = vpack.c.b16 %v606, %v606
    %v623 = vpack.c.b16 %v607, %v607
    %v624 = vpack.c.b16 %v608, %v608
    %v625 = vpack.c.b16 %v609, %v609
    %v626 = vpack.c.b16 %v610, %v610
    %v627 = vpack.c.b16 %v611, %v611
    %vm644 = vcmask 257024
    %645 = vst.msk [vmem:[%s4] sm:$0xf] %vm644, %v612
    %646 = vst.msk [vmem:[%s4 + $0x4] sm:$0xf] %vm644, %v613
    %647 = vst.msk [vmem:[%s4 + $0x8] sm:$0xf] %vm644, %v614
    %648 = vst.msk [vmem:[%s4 + $0xc] sm:$0xf] %vm644, %v615
    %649 = vst.msk [vmem:[%s4 + $0x10] sm:$0xf] %vm644, %v616
    %650 = vst.msk [vmem:[%s4 + $0x14] sm:$0xf] %vm644, %v617
    %651 = vst.msk [vmem:[%s4 + $0x18] sm:$0xf] %vm644, %v618
    %652 = vst.msk [vmem:[%s4 + $0x1c] sm:$0xf] %vm644, %v619
    %653 = vst.msk [vmem:[%s4 + $0x20] sm:$0xf] %vm644, %v620
    %654 = vst.msk [vmem:[%s4 + $0x24] sm:$0xf] %vm644, %v621
    %655 = vst.msk [vmem:[%s4 + $0x28] sm:$0xf] %vm644, %v622
    %656 = vst.msk [vmem:[%s4 + $0x2c] sm:$0xf] %vm644, %v623
    %657 = vst.msk [vmem:[%s4 + $0x30] sm:$0xf] %vm644, %v624
    %658 = vst.msk [vmem:[%s4 + $0x34] sm:$0xf] %vm644, %v625
    %659 = vst.msk [vmem:[%s4 + $0x38] sm:$0xf] %vm644, %v626
    %660 = vst.msk [vmem:[%s4 + $0x3c] sm:$0xf] %vm644, %v627
  $region25: #{_lambda_.4} parent=0 // pred_fallthru
    _
  // Predicated region
  $region26: #{_lambda_.4} parent=0 // pred_check
    _
  $region27: #{_lambda_.4} parent=0 // pred_check_branch
    %662 = sbr.rel (0) target = $region29
  $region28: #{_lambda_.4} parent=0 // pred_region
    _
  $region29: #{_lambda_.4} parent=0 // pred_fallthru
    _
  // Predicated region
  $region30: #{_lambda_.4} parent=0 // pred_check
    _
  $region31: #{_lambda_.4} parent=0 // pred_check_branch
    %664 = sbr.rel (0) target = $region33
  $region32: #{_lambda_.4} parent=0 // pred_region
    _
  $region33: #{_lambda_.4} parent=0 // pred_fallthru
    _

// kernel: _lambda_.7
$region0: #{_lambda_.7}
  #allocation0 [shape = 'u32[]', space=smem, size = 0x4, offset = 0x4, fixed_abs, tag = 'smem constant byte address 0x4 - core index']
  #allocation1 [shape = 'u32[144,128]{1,0:T(1,128)}', space=vmem, size = 0x12000, scoped, tag = 'internal scratch']
  %s0 = inlined_call_operand.vmem [shape: bf16[2,32,32], index: 0, kind: input, shape index: {}]
  %s1 = inlined_call_operand.vmem [shape: f32[2,32], index: 1, kind: input, shape index: {}, may-alias: {1,9}]
  %s2 = inlined_call_operand.vmem [shape: f32[3,3,32], index: 2, kind: input, shape index: {}]
  %s3 = inlined_call_operand.vmem [shape: f32[3,32], index: 3, kind: input, shape index: {}]
  %s4 = inlined_call_operand.vmem [shape: f32[3,32], index: 4, kind: input, shape index: {}]
  %s5 = inlined_call_operand.vmem [shape: bf16[96,96], index: 5, kind: input, shape index: {}]
  %s6 = inlined_call_operand.vmem [shape: f32[1,96], index: 6, kind: input, shape index: {}]
  %s7 = inlined_call_operand.vmem [shape: bf16[4,8,32], index: 7, kind: input, shape index: {}]
  %s8 = inlined_call_operand.vmem [shape: f32[1,32], index: 8, kind: input, shape index: {}, may-alias: {8,13}]
  %s9 = inlined_call_operand.vmem [shape: f32[2,32], index: 9, kind: input, shape index: {}, may-alias: {1,9}]
  %s10 = inlined_call_operand.vmem [shape: bf16[32,128], index: 10, kind: input, shape index: {}]
  %s11 = inlined_call_operand.vmem [shape: f32[1,128], index: 11, kind: input, shape index: {}]
  %s12 = inlined_call_operand.vmem [shape: bf16[128,32], index: 12, kind: input, shape index: {}]
  %s13 = inlined_call_operand.vmem [shape: f32[1,32], index: 13, kind: input, shape index: {}, may-alias: {8,13}]
  %s14 = inlined_call_operand.vmem [shape: bf16[2,16,32], index: 14, kind: output, shape index: {}]
  %s15 = sld [smem:[#allocation0]]
  $region89: #{_lambda_.7} parent=0
    _
  %s17 = ssub.s32 1, %s15
  %s18 = scalar_select 0, %s17, %s15
  loop: start=0, step=1, limit=4
  $region2: #{_lambda_.7} parent=0 // loop_pre_header
    _
  $region3: #{_lambda_.7} parent=0 // loop_header
    %s20 = sphi 0, %s24
    %p21 = scmp.ge.s32.totalorder %s20, 4
    %s30 = sphi 0, %s32
    %s33 = sphi 0, %s30
    %s34 = sphi 0, %s33
    %s50 = sphi 0, %s34
    %s54 = sphi 0, %s54
    %s56 = sphi 0, %s54
    %s57 = sphi 0, %s56
    %s71 = sphi 0, %s57
    %s75 = sphi 0, %s75
    %s77 = sphi 0, %s75
    %s78 = sphi 0, %s77
    %s92 = sphi 0, %s78
    %s96 = sphi 0, %s96
    %s98 = sphi 0, %s96
    %s99 = sphi 0, %s98
    %s113 = sphi 0, %s99
    %s117 = sphi 0, %s117
    %s119 = sphi 0, %s117
    %s120 = sphi 0, %s119
    %s134 = sphi 0, %s120
    %s138 = sphi 0, %s138
    %s140 = sphi 0, %s138
    %s141 = sphi 0, %s140
    %s155 = sphi 0, %s141
    %s159 = sphi 0, %s159
    %s161 = sphi 0, %s159
    %s162 = sphi 0, %s161
    %s176 = sphi 0, %s162
    %s180 = sphi 0, %s180
    %s182 = sphi 0, %s180
    %s183 = sphi 0, %s182
    %s197 = sphi 0, %s183
    %s201 = sphi 0, %s201
    %s203 = sphi 0, %s201
    %s204 = sphi 0, %s203
    %s218 = sphi 0, %s204
    %s222 = sphi 0, %s222
    %s224 = sphi 0, %s222
    %s225 = sphi 0, %s224
    %s239 = sphi 0, %s225
    %s243 = sphi 0, %s243
    %s245 = sphi 0, %s243
    %s246 = sphi 0, %s245
    %s260 = sphi 0, %s246
    %s264 = sphi 0, %s264
    %s266 = sphi 0, %s264
    %s267 = sphi 0, %s266
    %s281 = sphi 0, %s267
    %s285 = sphi 0, %s285
    %s287 = sphi 0, %s285
    %s288 = sphi 0, %s287
    %s302 = sphi 0, %s288
    %s306 = sphi 0, %s306
    %s308 = sphi 0, %s306
    %s309 = sphi 0, %s308
    %s323 = sphi 0, %s309
    %s329 = sphi 0, %s331
    %s332 = sphi 0, %s329
    %s333 = sphi 0, %s332
    %s349 = sphi 0, %s333
  $region4: #{_lambda_.7} parent=0 // loop_header_branch
    %23 = sbr.rel (%p21) target = $region8
  $region5: #{_lambda_.7} parent=0 // loop_body
    %s25 = ssub.s32 %s20, 1
    %s26 = ssub.s32 %s20, 2
    %s27 = sadd.s32 %s20, 1
    %s28 = ssub.s32 %s20, %s27
    %p29 = scmp.eq.s32.totalorder %s28, 0
    %s31 = sadd.s32 %s30, 1
    %s32 = scalar_select %p29, %s30, %s31
    %p35 = pneg %p29
    %p36 = scmp.eq.s32.totalorder %s20, 1
    %p37 = por %p35, %p36
    %p38 = scmp.ne.s32.totalorder %s30, %s33
    %p39 = scmp.eq.s32.totalorder %s20, 0
    %p40 = por %p38, %p39
    %p41 = scmp.ne.s32.totalorder %s30, %s33
    %p42 = scmp.eq.s32.totalorder %s25, 1
    %p43 = por %p41, %p42
    %p44 = scmp.ne.s32.totalorder %s33, %s34
    %p45 = scmp.eq.s32.totalorder %s25, 0
    %p46 = por %p44, %p45
    %p47 = scmp.ne.s32.totalorder %s33, %s34
    %p48 = scmp.eq.s32.totalorder %s26, 1
    %p49 = por %p47, %p48
    %p51 = scmp.ne.s32.totalorder %s34, %s50
    %p52 = scmp.eq.s32.totalorder %s26, 0
    %p53 = por %p51, %p52
    %s55 = sadd.s32 %s54, 1
    %p58 = scmp.eq.s32.totalorder %s20, 1
    %p59 = scmp.ne.s32.totalorder %s54, %s56
    %p60 = scmp.eq.s32.totalorder %s20, 0
    %p61 = por %p59, %p60
    %p62 = scmp.ne.s32.totalorder %s54, %s56
    %p63 = scmp.eq.s32.totalorder %s25, 1
    %p64 = por %p62, %p63
    %p65 = scmp.ne.s32.totalorder %s56, %s57
    %p66 = scmp.eq.s32.totalorder %s25, 0
    %p67 = por %p65, %p66
    %p68 = scmp.ne.s32.totalorder %s56, %s57
    %p69 = scmp.eq.s32.totalorder %s26, 1
    %p70 = por %p68, %p69
    %p72 = scmp.ne.s32.totalorder %s57, %s71
    %p73 = scmp.eq.s32.totalorder %s26, 0
    %p74 = por %p72, %p73
    %s76 = sadd.s32 %s75, 1
    %p79 = scmp.eq.s32.totalorder %s20, 1
    %p80 = scmp.ne.s32.totalorder %s75, %s77
    %p81 = scmp.eq.s32.totalorder %s20, 0
    %p82 = por %p80, %p81
    %p83 = scmp.ne.s32.totalorder %s75, %s77
    %p84 = scmp.eq.s32.totalorder %s25, 1
    %p85 = por %p83, %p84
    %p86 = scmp.ne.s32.totalorder %s77, %s78
    %p87 = scmp.eq.s32.totalorder %s25, 0
    %p88 = por %p86, %p87
    %p89 = scmp.ne.s32.totalorder %s77, %s78
    %p90 = scmp.eq.s32.totalorder %s26, 1
    %p91 = por %p89, %p90
    %p93 = scmp.ne.s32.totalorder %s78, %s92
    %p94 = scmp.eq.s32.totalorder %s26, 0
    %p95 = por %p93, %p94
    %s97 = sadd.s32 %s96, 1
    %p100 = scmp.eq.s32.totalorder %s20, 1
    %p101 = scmp.ne.s32.totalorder %s96, %s98
    %p102 = scmp.eq.s32.totalorder %s20, 0
    %p103 = por %p101, %p102
    %p104 = scmp.ne.s32.totalorder %s96, %s98
    %p105 = scmp.eq.s32.totalorder %s25, 1
    %p106 = por %p104, %p105
    %p107 = scmp.ne.s32.totalorder %s98, %s99
    %p108 = scmp.eq.s32.totalorder %s25, 0
    %p109 = por %p107, %p108
    %p110 = scmp.ne.s32.totalorder %s98, %s99
    %p111 = scmp.eq.s32.totalorder %s26, 1
    %p112 = por %p110, %p111
    %p114 = scmp.ne.s32.totalorder %s99, %s113
    %p115 = scmp.eq.s32.totalorder %s26, 0
    %p116 = por %p114, %p115
    %s118 = sadd.s32 %s117, 1
    %p121 = scmp.eq.s32.totalorder %s20, 1
    %p122 = scmp.ne.s32.totalorder %s117, %s119
    %p123 = scmp.eq.s32.totalorder %s20, 0
    %p124 = por %p122, %p123
    %p125 = scmp.ne.s32.totalorder %s117, %s119
    %p126 = scmp.eq.s32.totalorder %s25, 1
    %p127 = por %p125, %p126
    %p128 = scmp.ne.s32.totalorder %s119, %s120
    %p129 = scmp.eq.s32.totalorder %s25, 0
    %p130 = por %p128, %p129
    %p131 = scmp.ne.s32.totalorder %s119, %s120
    %p132 = scmp.eq.s32.totalorder %s26, 1
    %p133 = por %p131, %p132
    %p135 = scmp.ne.s32.totalorder %s120, %s134
    %p136 = scmp.eq.s32.totalorder %s26, 0
    %p137 = por %p135, %p136
    %s139 = sadd.s32 %s138, 1
    %p142 = scmp.eq.s32.totalorder %s20, 1
    %p143 = scmp.ne.s32.totalorder %s138, %s140
    %p144 = scmp.eq.s32.totalorder %s20, 0
    %p145 = por %p143, %p144
    %p146 = scmp.ne.s32.totalorder %s138, %s140
    %p147 = scmp.eq.s32.totalorder %s25, 1
    %p148 = por %p146, %p147
    %p149 = scmp.ne.s32.totalorder %s140, %s141
    %p150 = scmp.eq.s32.totalorder %s25, 0
    %p151 = por %p149, %p150
    %p152 = scmp.ne.s32.totalorder %s140, %s141
    %p153 = scmp.eq.s32.totalorder %s26, 1
    %p154 = por %p152, %p153
    %p156 = scmp.ne.s32.totalorder %s141, %s155
    %p157 = scmp.eq.s32.totalorder %s26, 0
    %p158 = por %p156, %p157
    %s160 = sadd.s32 %s159, 1
    %p163 = scmp.eq.s32.totalorder %s20, 1
    %p164 = scmp.ne.s32.totalorder %s159, %s161
    %p165 = scmp.eq.s32.totalorder %s20, 0
    %p166 = por %p164, %p165
    %p167 = scmp.ne.s32.totalorder %s159, %s161
    %p168 = scmp.eq.s32.totalorder %s25, 1
    %p169 = por %p167, %p168
    %p170 = scmp.ne.s32.totalorder %s161, %s162
    %p171 = scmp.eq.s32.totalorder %s25, 0
    %p172 = por %p170, %p171
    %p173 = scmp.ne.s32.totalorder %s161, %s162
    %p174 = scmp.eq.s32.totalorder %s26, 1
    %p175 = por %p173, %p174
    %p177 = scmp.ne.s32.totalorder %s162, %s176
    %p178 = scmp.eq.s32.totalorder %s26, 0
    %p179 = por %p177, %p178
    %s181 = sadd.s32 %s180, 1
    %p184 = scmp.eq.s32.totalorder %s20, 1
    %p185 = scmp.ne.s32.totalorder %s180, %s182
    %p186 = scmp.eq.s32.totalorder %s20, 0
    %p187 = por %p185, %p186
    %p188 = scmp.ne.s32.totalorder %s180, %s182
    %p189 = scmp.eq.s32.totalorder %s25, 1
    %p190 = por %p188, %p189
    %p191 = scmp.ne.s32.totalorder %s182, %s183
    %p192 = scmp.eq.s32.totalorder %s25, 0
    %p193 = por %p191, %p192
    %p194 = scmp.ne.s32.totalorder %s182, %s183
    %p195 = scmp.eq.s32.totalorder %s26, 1
    %p196 = por %p194, %p195
    %p198 = scmp.ne.s32.totalorder %s183, %s197
    %p199 = scmp.eq.s32.totalorder %s26, 0
    %p200 = por %p198, %p199
    %s202 = sadd.s32 %s201, 1
    %p205 = scmp.eq.s32.totalorder %s20, 1
    %p206 = scmp.ne.s32.totalorder %s201, %s203
    %p207 = scmp.eq.s32.totalorder %s20, 0
    %p208 = por %p206, %p207
    %p209 = scmp.ne.s32.totalorder %s201, %s203
    %p210 = scmp.eq.s32.totalorder %s25, 1
    %p211 = por %p209, %p210
    %p212 = scmp.ne.s32.totalorder %s203, %s204
    %p213 = scmp.eq.s32.totalorder %s25, 0
    %p214 = por %p212, %p213
    %p215 = scmp.ne.s32.totalorder %s203, %s204
    %p216 = scmp.eq.s32.totalorder %s26, 1
    %p217 = por %p215, %p216
    %p219 = scmp.ne.s32.totalorder %s204, %s218
    %p220 = scmp.eq.s32.totalorder %s26, 0
    %p221 = por %p219, %p220
    %s223 = sadd.s32 %s222, 1
    %p226 = scmp.eq.s32.totalorder %s20, 1
    %p227 = scmp.ne.s32.totalorder %s222, %s224
    %p228 = scmp.eq.s32.totalorder %s20, 0
    %p229 = por %p227, %p228
    %p230 = scmp.ne.s32.totalorder %s222, %s224
    %p231 = scmp.eq.s32.totalorder %s25, 1
    %p232 = por %p230, %p231
    %p233 = scmp.ne.s32.totalorder %s224, %s225
    %p234 = scmp.eq.s32.totalorder %s25, 0
    %p235 = por %p233, %p234
    %p236 = scmp.ne.s32.totalorder %s224, %s225
    %p237 = scmp.eq.s32.totalorder %s26, 1
    %p238 = por %p236, %p237
    %p240 = scmp.ne.s32.totalorder %s225, %s239
    %p241 = scmp.eq.s32.totalorder %s26, 0
    %p242 = por %p240, %p241
    %s244 = sadd.s32 %s243, 1
    %p247 = scmp.eq.s32.totalorder %s20, 1
    %p248 = scmp.ne.s32.totalorder %s243, %s245
    %p249 = scmp.eq.s32.totalorder %s20, 0
    %p250 = por %p248, %p249
    %p251 = scmp.ne.s32.totalorder %s243, %s245
    %p252 = scmp.eq.s32.totalorder %s25, 1
    %p253 = por %p251, %p252
    %p254 = scmp.ne.s32.totalorder %s245, %s246
    %p255 = scmp.eq.s32.totalorder %s25, 0
    %p256 = por %p254, %p255
    %p257 = scmp.ne.s32.totalorder %s245, %s246
    %p258 = scmp.eq.s32.totalorder %s26, 1
    %p259 = por %p257, %p258
    %p261 = scmp.ne.s32.totalorder %s246, %s260
    %p262 = scmp.eq.s32.totalorder %s26, 0
    %p263 = por %p261, %p262
    %s265 = sadd.s32 %s264, 1
    %p268 = scmp.eq.s32.totalorder %s20, 1
    %p269 = scmp.ne.s32.totalorder %s264, %s266
    %p270 = scmp.eq.s32.totalorder %s20, 0
    %p271 = por %p269, %p270
    %p272 = scmp.ne.s32.totalorder %s264, %s266
    %p273 = scmp.eq.s32.totalorder %s25, 1
    %p274 = por %p272, %p273
    %p275 = scmp.ne.s32.totalorder %s266, %s267
    %p276 = scmp.eq.s32.totalorder %s25, 0
    %p277 = por %p275, %p276
    %p278 = scmp.ne.s32.totalorder %s266, %s267
    %p279 = scmp.eq.s32.totalorder %s26, 1
    %p280 = por %p278, %p279
    %p282 = scmp.ne.s32.totalorder %s267, %s281
    %p283 = scmp.eq.s32.totalorder %s26, 0
    %p284 = por %p282, %p283
    %s286 = sadd.s32 %s285, 1
    %p289 = scmp.eq.s32.totalorder %s20, 1
    %p290 = scmp.ne.s32.totalorder %s285, %s287
    %p291 = scmp.eq.s32.totalorder %s20, 0
    %p292 = por %p290, %p291
    %p293 = scmp.ne.s32.totalorder %s285, %s287
    %p294 = scmp.eq.s32.totalorder %s25, 1
    %p295 = por %p293, %p294
    %p296 = scmp.ne.s32.totalorder %s287, %s288
    %p297 = scmp.eq.s32.totalorder %s25, 0
    %p298 = por %p296, %p297
    %p299 = scmp.ne.s32.totalorder %s287, %s288
    %p300 = scmp.eq.s32.totalorder %s26, 1
    %p301 = por %p299, %p300
    %p303 = scmp.ne.s32.totalorder %s288, %s302
    %p304 = scmp.eq.s32.totalorder %s26, 0
    %p305 = por %p303, %p304
    %s307 = sadd.s32 %s306, 1
    %p310 = scmp.eq.s32.totalorder %s20, 1
    %p311 = scmp.ne.s32.totalorder %s306, %s308
    %p312 = scmp.eq.s32.totalorder %s20, 0
    %p313 = por %p311, %p312
    %p314 = scmp.ne.s32.totalorder %s306, %s308
    %p315 = scmp.eq.s32.totalorder %s25, 1
    %p316 = por %p314, %p315
    %p317 = scmp.ne.s32.totalorder %s308, %s309
    %p318 = scmp.eq.s32.totalorder %s25, 0
    %p319 = por %p317, %p318
    %p320 = scmp.ne.s32.totalorder %s308, %s309
    %p321 = scmp.eq.s32.totalorder %s26, 1
    %p322 = por %p320, %p321
    %p324 = scmp.ne.s32.totalorder %s309, %s323
    %p325 = scmp.eq.s32.totalorder %s26, 0
    %p326 = por %p324, %p325
    %s327 = ssub.s32 %s20, %s27
    %p328 = scmp.eq.s32.totalorder %s327, 0
    %s330 = sadd.s32 %s329, 1
    %s331 = scalar_select %p328, %s329, %s330
    %p334 = pneg %p328
    %p335 = scmp.eq.s32.totalorder %s20, 1
    %p336 = por %p334, %p335
    %p337 = scmp.ne.s32.totalorder %s329, %s332
    %p338 = scmp.eq.s32.totalorder %s20, 0
    %p339 = por %p337, %p338
    %p340 = scmp.ne.s32.totalorder %s329, %s332
    %p341 = scmp.eq.s32.totalorder %s25, 1
    %p342 = por %p340, %p341
    %p343 = scmp.ne.s32.totalorder %s332, %s333
    %p344 = scmp.eq.s32.totalorder %s25, 0
    %p345 = por %p343, %p344
    %p346 = scmp.ne.s32.totalorder %s332, %s333
    %p347 = scmp.eq.s32.totalorder %s26, 1
    %p348 = por %p346, %p347
    %p350 = scmp.ne.s32.totalorder %s333, %s349
    %p351 = scmp.eq.s32.totalorder %s26, 0
    %p352 = por %p350, %p351
    %p353 = scmp.le.s32.totalorder 1, %s20
    %p354 = scmp.lt.s32.totalorder %s20, 3
    %p355 = pnand %p353, %p354
    %p356 = pneg %p355
    // Predicated region
    $region9: #{_lambda_.7} parent=5 // pred_check
      _
    $region10: #{_lambda_.7} parent=5 // pred_check_branch
      %358 = sbr.rel (%p355) target = $region12
    $region11: #{_lambda_.7} parent=5 // pred_region
      %s359 = ssub.s32 %s20, 1
      // Predicated region
      $region13: #{_lambda_.7} parent=11 // pred_check
        %p360 = pneg %p67
      $region14: #{_lambda_.7} parent=11 // pred_check_branch
        %362 = sbr.rel (%p360) target = $region16
      $region15: #{_lambda_.7} parent=11 // pred_region
        _
      $region16: #{_lambda_.7} parent=11 // pred_fallthru
        _
      // Predicated region
      $region17: #{_lambda_.7} parent=11 // pred_check
        %p363 = pneg %p88
      $region18: #{_lambda_.7} parent=11 // pred_check_branch
        %365 = sbr.rel (%p363) target = $region20
      $region19: #{_lambda_.7} parent=11 // pred_region
        _
      $region20: #{_lambda_.7} parent=11 // pred_fallthru
        _
      // Predicated region
      $region21: #{_lambda_.7} parent=11 // pred_check
        %p366 = pneg %p109
      $region22: #{_lambda_.7} parent=11 // pred_check_branch
        %368 = sbr.rel (%p366) target = $region24
      $region23: #{_lambda_.7} parent=11 // pred_region
        _
      $region24: #{_lambda_.7} parent=11 // pred_fallthru
        _
      // Predicated region
      $region25: #{_lambda_.7} parent=11 // pred_check
        %p369 = pneg %p130
      $region26: #{_lambda_.7} parent=11 // pred_check_branch
        %371 = sbr.rel (%p369) target = $region28
      $region27: #{_lambda_.7} parent=11 // pred_region
        _
      $region28: #{_lambda_.7} parent=11 // pred_fallthru
        _
      // Predicated region
      $region29: #{_lambda_.7} parent=11 // pred_check
        %p372 = pneg %p151
      $region30: #{_lambda_.7} parent=11 // pred_check_branch
        %374 = sbr.rel (%p372) target = $region32
      $region31: #{_lambda_.7} parent=11 // pred_region
        _
      $region32: #{_lambda_.7} parent=11 // pred_fallthru
        _
      // Predicated region
      $region33: #{_lambda_.7} parent=11 // pred_check
        %p375 = pneg %p172
      $region34: #{_lambda_.7} parent=11 // pred_check_branch
        %377 = sbr.rel (%p375) target = $region36
      $region35: #{_lambda_.7} parent=11 // pred_region
        _
      $region36: #{_lambda_.7} parent=11 // pred_fallthru
        _
      // Predicated region
      $region37: #{_lambda_.7} parent=11 // pred_check
        %p378 = pneg %p193
      $region38: #{_lambda_.7} parent=11 // pred_check_branch
        %380 = sbr.rel (%p378) target = $region40
      $region39: #{_lambda_.7} parent=11 // pred_region
        _
      $region40: #{_lambda_.7} parent=11 // pred_fallthru
        _
      // Predicated region
      $region41: #{_lambda_.7} parent=11 // pred_check
        %p381 = pneg %p214
      $region42: #{_lambda_.7} parent=11 // pred_check_branch
        %383 = sbr.rel (%p381) target = $region44
      $region43: #{_lambda_.7} parent=11 // pred_region
        _
      $region44: #{_lambda_.7} parent=11 // pred_fallthru
        _
      // Predicated region
      $region45: #{_lambda_.7} parent=11 // pred_check
        %p384 = pneg %p235
      $region46: #{_lambda_.7} parent=11 // pred_check_branch
        %386 = sbr.rel (%p384) target = $region48
      $region47: #{_lambda_.7} parent=11 // pred_region
        _
      $region48: #{_lambda_.7} parent=11 // pred_fallthru
        _
      // Predicated region
      $region49: #{_lambda_.7} parent=11 // pred_check
        %p387 = pneg %p256
      $region50: #{_lambda_.7} parent=11 // pred_check_branch
        %389 = sbr.rel (%p387) target = $region52
      $region51: #{_lambda_.7} parent=11 // pred_region
        _
      $region52: #{_lambda_.7} parent=11 // pred_fallthru
        _
      // Predicated region
      $region53: #{_lambda_.7} parent=11 // pred_check
        %p390 = pneg %p277
      $region54: #{_lambda_.7} parent=11 // pred_check_branch
        %392 = sbr.rel (%p390) target = $region56
      $region55: #{_lambda_.7} parent=11 // pred_region
        _
      $region56: #{_lambda_.7} parent=11 // pred_fallthru
        _
      // Predicated region
      $region57: #{_lambda_.7} parent=11 // pred_check
        %p393 = pneg %p298
      $region58: #{_lambda_.7} parent=11 // pred_check_branch
        %395 = sbr.rel (%p393) target = $region60
      $region59: #{_lambda_.7} parent=11 // pred_region
        _
      $region60: #{_lambda_.7} parent=11 // pred_fallthru
        _
      // Predicated region
      $region61: #{_lambda_.7} parent=11 // pred_check
        %p396 = pneg %p319
      $region62: #{_lambda_.7} parent=11 // pred_check_branch
        %398 = sbr.rel (%p396) target = $region64
      $region63: #{_lambda_.7} parent=11 // pred_region
        _
      $region64: #{_lambda_.7} parent=11 // pred_fallthru
        _
    $region12: #{_lambda_.7} parent=5 // pred_fallthru
      _
    %p399 = scmp.lt.s32.totalorder %s20, 2
    // Predicated region
    $region65: #{_lambda_.7} parent=5 // pred_check
      %p400 = pneg %p399
    $region66: #{_lambda_.7} parent=5 // pred_check_branch
      %402 = sbr.rel (%p400) target = $region68
    $region67: #{_lambda_.7} parent=5 // pred_region
      // Predicated region
      $region69: #{_lambda_.7} parent=67 // pred_check
        %p403 = pneg %p40
      $region70: #{_lambda_.7} parent=67 // pred_check_branch
        %405 = sbr.rel (%p403) target = $region72
      $region71: #{_lambda_.7} parent=67 // pred_region
        %p406 = scmp.lt.s32.totalorder %s20, 1
        %s407 = scalar_select %p406, %s20, 1
        %s408 = smul.addr %s407, 4
        %s409 = smul.addr %s408, 4
        %s410 = scalar_lea.vmem %s0, %s409
      $region72: #{_lambda_.7} parent=67 // pred_fallthru
        _
    $region68: #{_lambda_.7} parent=5 // pred_fallthru
      _
    %p411 = scmp.le.s32.totalorder 1, %s20
    %p412 = scmp.lt.s32.totalorder %s20, 3
    %p413 = pnand %p411, %p412
    %p414 = pneg %p413
    // Predicated region
    $region73: #{_lambda_.7} parent=5 // pred_check
      _
    $region74: #{_lambda_.7} parent=5 // pred_check_branch
      %416 = sbr.rel (%p413) target = $region76
    $region75: #{_lambda_.7} parent=5 // pred_region
      %s417 = ssub.s32 %s20, 1
      %p418 = scmp.lt.s32.totalorder %s25, 1
      %s419 = scalar_select %p418, %s25, 1
      %s420 = smul.addr %s419, 4
      %s421 = smul.addr %s420, 4
      %s422 = scalar_lea.vmem %s0, %s421
      %p423 = pneg %p46
      %p424 = pneg %p43
      %p425 = pneg %p67
      %p426 = pneg %p64
      %p427 = pneg %p88
      %p428 = pneg %p85
      %p429 = pneg %p109
      %p430 = pneg %p106
      %p431 = pneg %p130
      %p432 = pneg %p127
      %p433 = pneg %p151
      %p434 = pneg %p148
      %p435 = pneg %p172
      %p436 = pneg %p169
      %p437 = pneg %p193
      %p438 = pneg %p190
      %p439 = pneg %p214
      %p440 = pneg %p211
      %p441 = pneg %p235
      %p442 = pneg %p232
      %p443 = pneg %p256
      %p444 = pneg %p253
      %p445 = pneg %p277
      %p446 = pneg %p274
      %p447 = pneg %p298
      %p448 = pneg %p295
      %p449 = pneg %p319
      %p450 = pneg %p316
      %p451 = pneg %p345
      %p452 = pneg %p342
      %p453 = scmp.lt.s32.totalorder %s25, 1
      %s454 = scalar_select %p453, %s25, 1
      %s455 = smul.addr %s454, 2
      %s456 = smul.addr %s455, 4
      %s457 = scalar_lea.vmem %s14, %s456
      %p458 = scmp.lt.s32.totalorder %s25, 1
      %s459 = scalar_select %p458, %s25, 1
      %s460 = smul.addr %s459, 4
      %s461 = smul.addr %s460, 4
      %s462 = scalar_lea.vmem %s0, %s461
      %p463 = scmp.lt.s32.totalorder %s25, 1
      %s464 = scalar_select %p463, %s25, 1
      %s465 = smul.addr %s464, 2
      %s466 = smul.addr %s465, 4
      %s467 = scalar_lea.vmem %s14, %s466
      %v469 = vld [vmem:[%s462] sm:$0xf]
      %v470 = vld [vmem:[%s462 + $0x4] sm:$0xf]
      %v471 = vld [vmem:[%s462 + $0x8] sm:$0xf]
      %v472 = vld [vmem:[%s462 + $0xc] sm:$0xf]
      %v473 = vunpack.c.l.bf16 %v469
      %v474 = vunpack.c.l.bf16 %v470
      %v475 = vunpack.c.l.bf16 %v471
      %v476 = vunpack.c.l.bf16 %v472
      %v477 = vld [vmem:[%s1] sm:$0x3]
      %vm478 = vcmask 261120
      %v479 = vsel %vm478, %v473, 0.0
      %480 = vadd.xlane.f32.xlu0 %v479
      %v481 = vpop.xlane.xlu0 %480
      %v482 = vsel %vm478, %v474, 0.0
      %483 = vadd.xlane.f32.xlu0 %v482
      %v484 = vpop.xlane.xlu0 %483
      %v485 = vsel %vm478, %v475, 0.0
      %486 = vadd.xlane.f32.xlu0 %v485
      %v487 = vpop.xlane.xlu0 %486
      %v488 = vsel %vm478, %v476, 0.0
      %489 = vadd.xlane.f32.xlu0 %v488
      %v490 = vpop.xlane.xlu0 %489
      %v491 = vrcp.pop 32.0
      %v492 = vmul.f32 %v481, %v491
      %v493 = vmul.f32 %v484, %v491
      %v494 = vmul.f32 %v487, %v491
      %v495 = vmul.f32 %v490, %v491
      %v496 = vsub.f32 %v473, %v492
      %v497 = vsub.f32 %v474, %v493
      %v498 = vsub.f32 %v475, %v494
      %v499 = vsub.f32 %v476, %v495
      %v500 = vmul.f32 %v496, %v496
      %v501 = vmul.f32 %v497, %v497
      %v502 = vmul.f32 %v498, %v498
      %v503 = vmul.f32 %v499, %v499
      %v504 = vsel %vm478, %v500, 0.0
      %505 = vadd.xlane.f32.xlu0 %v504
      %v506 = vpop.xlane.xlu0 %505
      %v507 = vsel %vm478, %v501, 0.0
      %508 = vadd.xlane.f32.xlu0 %v507
      %v509 = vpop.xlane.xlu0 %508
      %v510 = vsel %vm478, %v502, 0.0
      %511 = vadd.xlane.f32.xlu0 %v510
      %v512 = vpop.xlane.xlu0 %511
      %v513 = vsel %vm478, %v503, 0.0
      %514 = vadd.xlane.f32.xlu0 %v513
      %v515 = vpop.xlane.xlu0 %514
      %v516 = vmul.f32 %v506, %v491
      %v517 = vmul.f32 %v509, %v491
      %v518 = vmul.f32 %v512, %v491
      %v519 = vmul.f32 %v515, %v491
      %v520 = vadd.f32 %v516, 1e-05
      %v521 = vadd.f32 %v517, 1e-05
      %v522 = vadd.f32 %v518, 1e-05
      %v523 = vadd.f32 %v519, 1e-05
      %v524 = vrsqrt.pop %v520
      %v525 = vrsqrt.pop %v521
      %v526 = vrsqrt.pop %v522
      %v527 = vrsqrt.pop %v523
      %v528 = vmul.f32 %v496, %v524
      %v529 = vmul.f32 %v497, %v525
      %v530 = vmul.f32 %v498, %v526
      %v531 = vmul.f32 %v499, %v527
      %v532 = vlaneseq
      %v533 = vshrl.u32 %v532, 7
      %v534 = vsub.s32 0, %v533
      %v535 = vrot.slane %v477, %v534
      %v536 = vmul.f32 %v528, %v535
      %v537 = vmul.f32 %v529, %v535
      %v538 = vmul.f32 %v530, %v535
      %v539 = vmul.f32 %v531, %v535
      %v540 = vlaneseq
      %v541 = vshrl.u32 %v540, 7
      %v542 = vsub.s32 1, %v541
      %v543 = vrot.slane %v477, %v542
      %v544 = vadd.f32 %v536, %v543
      %v545 = vadd.f32 %v537, %v543
      %v546 = vadd.f32 %v538, %v543
      %v547 = vadd.f32 %v539, %v543
      %v548 = vlaneseq
      %v549 = vshrl.u32 %v548, 7
      %v550 = vadd.s32 %v549, 8
      %v551 = vadd.s32 %v549, 16
      %v552 = vadd.s32 %v549, 24
      %vm553 = vcmp.eq.s32.totalorder %v549, 0
      %vm554 = vcmp.eq.s32.totalorder %v550, 0
      %vm555 = vcmp.eq.s32.totalorder %v551, 0
      %vm556 = vcmp.eq.s32.totalorder %v552, 0
      %v557 = vrot.slane %v544, 7
      %v558 = vrot.slane %v545, 7
      %v559 = vrot.slane %v546, 7
      %v560 = vrot.slane %v547, 7
      %vm561 = vcmp.lt.s32.totalorder %v549, 1
      %v562 = vsel %vm561, %v559, %v560
      %v563 = vsel %vm561, %v558, %v559
      %v564 = vsel %vm561, %v557, %v558
      %v565 = vsel %vm561, %v560, %v557
      %v566 = vsel %vm553, 1, 0
      %v567 = vsel %vm554, 1, 0
      %v568 = vsel %vm555, 1, 0
      %v569 = vsel %vm556, 1, 0
      %vm570 = vcmp.eq.s32.totalorder %v566, 1
      %vm571 = vcmp.eq.s32.totalorder %v567, 1
      %vm572 = vcmp.eq.s32.totalorder %v568, 1
      %vm573 = vcmp.eq.s32.totalorder %v569, 1
      %v574 = vsel %vm570, 0.0, %v565
      %v575 = vsel %vm571, 0.0, %v564
      %v576 = vsel %vm572, 0.0, %v563
      %v577 = vsel %vm573, 0.0, %v562
      %vm578 = vcmp.eq.s32.totalorder %v549, 31
      %vm579 = vcmp.eq.s32.totalorder %v550, 31
      %vm580 = vcmp.eq.s32.totalorder %v551, 31
      %vm581 = vcmp.eq.s32.totalorder %v552, 31
      %v582 = vrot.slane %v544, 1
      %v583 = vrot.slane %v545, 1
      %v584 = vrot.slane %v546, 1
      %v585 = vrot.slane %v547, 1
      %vm586 = vcmp.lt.s32.totalorder %v549, 7
      %v587 = vsel %vm586, %v584, %v585
      %v588 = vsel %vm586, %v583, %v584
      %v589 = vsel %vm586, %v582, %v583
      %v590 = vsel %vm586, %v585, %v582
      %v591 = vsel %vm578, 1, 0
      %v592 = vsel %vm579, 1, 0
      %v593 = vsel %vm580, 1, 0
      %v594 = vsel %vm581, 1, 0
      %vm595 = vcmp.eq.s32.totalorder %v591, 1
      %vm596 = vcmp.eq.s32.totalorder %v592, 1
      %vm597 = vcmp.eq.s32.totalorder %v593, 1
      %vm598 = vcmp.eq.s32.totalorder %v594, 1
      %v599 = vsel %vm595, 0.0, %v589
      %v600 = vsel %vm596, 0.0, %v588
      %v601 = vsel %vm597, 0.0, %v587
      %v602 = vsel %vm598, 0.0, %v590
      %v603 = vld [vmem:[%s2] sm:$0x7]
      %v604 = vld [vmem:[%s2 + $0x4] sm:$0x7]
      %v605 = vld [vmem:[%s2 + $0x8] sm:$0x7]
      %v606 = vld [vmem:[%s3] sm:$0x7]
      %v607 = vld [vmem:[%s4] sm:$0x7]
      %v608 = vlaneseq
      %v609 = vshrl.u32 %v608, 7
      %v610 = vsub.s32 0, %v609
      %v611 = vrot.slane %v603, %v610
      %v612 = vmul.f32 %v574, %v611
      %v613 = vmul.f32 %v575, %v611
      %v614 = vmul.f32 %v576, %v611
      %v615 = vmul.f32 %v577, %v611
      %v616 = vlaneseq
      %v617 = vshrl.u32 %v616, 7
      %v618 = vsub.s32 1, %v617
      %v619 = vrot.slane %v603, %v618
      %v620 = vmul.f32 %v544, %v619
      %v621 = vmul.f32 %v545, %v619
      %v622 = vmul.f32 %v546, %v619
      %v623 = vmul.f32 %v547, %v619
      %v624 = vadd.f32 %v612, %v620
      %v625 = vadd.f32 %v613, %v621
      %v626 = vadd.f32 %v614, %v622
      %v627 = vadd.f32 %v615, %v623
      %v628 = vlaneseq
      %v629 = vshrl.u32 %v628, 7
      %v630 = vsub.s32 2, %v629
      %v631 = vrot.slane %v603, %v630
      %v632 = vmul.f32 %v599, %v631
      %v633 = vmul.f32 %v600, %v631
      %v634 = vmul.f32 %v601, %v631
      %v635 = vmul.f32 %v602, %v631
      %v636 = vadd.f32 %v624, %v632
      %v637 = vadd.f32 %v625, %v633
      %v638 = vadd.f32 %v626, %v634
      %v639 = vadd.f32 %v627, %v635
      %v640 = vsel %vm478, %v636, 0.0
      %641 = vadd.xlane.f32.xlu0 %v640
      %v642 = vpop.xlane.xlu0 %641
      %v643 = vsel %vm478, %v637, 0.0
      %644 = vadd.xlane.f32.xlu0 %v643
      %v645 = vpop.xlane.xlu0 %644
      %v646 = vsel %vm478, %v638, 0.0
      %647 = vadd.xlane.f32.xlu0 %v646
      %v648 = vpop.xlane.xlu0 %647
      %v649 = vsel %vm478, %v639, 0.0
      %650 = vadd.xlane.f32.xlu0 %v649
      %v651 = vpop.xlane.xlu0 %650
      %v652 = vmul.f32 %v642, %v491
      %v653 = vmul.f32 %v645, %v491
      %v654 = vmul.f32 %v648, %v491
      %v655 = vmul.f32 %v651, %v491
      %v656 = vsub.f32 %v636, %v652
      %v657 = vsub.f32 %v637, %v653
      %v658 = vsub.f32 %v638, %v654
      %v659 = vsub.f32 %v639, %v655
      %v660 = vmul.f32 %v656, %v656
      %v661 = vmul.f32 %v657, %v657
      %v662 = vmul.f32 %v658, %v658
      %v663 = vmul.f32 %v659, %v659
      %v664 = vsel %vm478, %v660, 0.0
      %665 = vadd.xlane.f32.xlu0 %v664
      %v666 = vpop.xlane.xlu0 %665
      %v667 = vsel %vm478, %v661, 0.0
      %668 = vadd.xlane.f32.xlu0 %v667
      %v669 = vpop.xlane.xlu0 %668
      %v670 = vsel %vm478, %v662, 0.0
      %671 = vadd.xlane.f32.xlu0 %v670
      %v672 = vpop.xlane.xlu0 %671
      %v673 = vsel %vm478, %v663, 0.0
      %674 = vadd.xlane.f32.xlu0 %v673
      %v675 = vpop.xlane.xlu0 %674
      %v676 = vmul.f32 %v666, %v491
      %v677 = vmul.f32 %v669, %v491
      %v678 = vmul.f32 %v672, %v491
      %v679 = vmul.f32 %v675, %v491
      %v680 = vadd.f32 %v676, 1e-05
      %v681 = vadd.f32 %v677, 1e-05
      %v682 = vadd.f32 %v678, 1e-05
      %v683 = vadd.f32 %v679, 1e-05
      %v684 = vrsqrt.pop %v680
      %v685 = vrsqrt.pop %v681
      %v686 = vrsqrt.pop %v682
      %v687 = vrsqrt.pop %v683
      %v688 = vmul.f32 %v656, %v684
      %v689 = vmul.f32 %v657, %v685
      %v690 = vmul.f32 %v658, %v686
      %v691 = vmul.f32 %v659, %v687
      %v692 = vlaneseq
      %v693 = vshrl.u32 %v692, 7
      %v694 = vsub.s32 0, %v693
      %v695 = vrot.slane %v606, %v694
      %v696 = vmul.f32 %v688, %v695
      %v697 = vmul.f32 %v689, %v695
      %v698 = vmul.f32 %v690, %v695
      %v699 = vmul.f32 %v691, %v695
      %v700 = vlaneseq
      %v701 = vshrl.u32 %v700, 7
      %v702 = vsub.s32 0, %v701
      %v703 = vrot.slane %v607, %v702
      %v704 = vadd.f32 %v696, %v703
      %v705 = vadd.f32 %v697, %v703
      %v706 = vadd.f32 %v698, %v703
      %v707 = vadd.f32 %v699, %v703
      %v708 = vlaneseq
      %v709 = vshrl.u32 %v708, 7
      %v710 = vsub.s32 0, %v709
      %v711 = vrot.slane %v604, %v710
      %v712 = vmul.f32 %v574, %v711
      %v713 = vmul.f32 %v575, %v711
      %v714 = vmul.f32 %v576, %v711
      %v715 = vmul.f32 %v577, %v711
      %v716 = vlaneseq
      %v717 = vshrl.u32 %v716, 7
      %v718 = vsub.s32 1, %v717
      %v719 = vrot.slane %v604, %v718
      %v720 = vmul.f32 %v544, %v719
      %v721 = vmul.f32 %v545, %v719
      %v722 = vmul.f32 %v546, %v719
      %v723 = vmul.f32 %v547, %v719
      %v724 = vadd.f32 %v712, %v720
      %v725 = vadd.f32 %v713, %v721
      %v726 = vadd.f32 %v714, %v722
      %v727 = vadd.f32 %v715, %v723
      %v728 = vlaneseq
      %v729 = vshrl.u32 %v728, 7
      %v730 = vsub.s32 2, %v729
      %v731 = vrot.slane %v604, %v730
      %v732 = vmul.f32 %v599, %v731
      %v733 = vmul.f32 %v600, %v731
      %v734 = vmul.f32 %v601, %v731
      %v735 = vmul.f32 %v602, %v731
      %v736 = vadd.f32 %v724, %v732
      %v737 = vadd.f32 %v725, %v733
      %v738 = vadd.f32 %v726, %v734
      %v739 = vadd.f32 %v727, %v735
      %v740 = vsel %vm478, %v736, 0.0
      %741 = vadd.xlane.f32.xlu0 %v740
      %v742 = vpop.xlane.xlu0 %741
      %v743 = vsel %vm478, %v737, 0.0
      %744 = vadd.xlane.f32.xlu0 %v743
      %v745 = vpop.xlane.xlu0 %744
      %v746 = vsel %vm478, %v738, 0.0
      %747 = vadd.xlane.f32.xlu0 %v746
      %v748 = vpop.xlane.xlu0 %747
      %v749 = vsel %vm478, %v739, 0.0
      %750 = vadd.xlane.f32.xlu0 %v749
      %v751 = vpop.xlane.xlu0 %750
      %v752 = vmul.f32 %v742, %v491
      %v753 = vmul.f32 %v745, %v491
      %v754 = vmul.f32 %v748, %v491
      %v755 = vmul.f32 %v751, %v491
      %v756 = vsub.f32 %v736, %v752
      %v757 = vsub.f32 %v737, %v753
      %v758 = vsub.f32 %v738, %v754
      %v759 = vsub.f32 %v739, %v755
      %v760 = vmul.f32 %v756, %v756
      %v761 = vmul.f32 %v757, %v757
      %v762 = vmul.f32 %v758, %v758
      %v763 = vmul.f32 %v759, %v759
      %v764 = vsel %vm478, %v760, 0.0
      %765 = vadd.xlane.f32.xlu0 %v764
      %v766 = vpop.xlane.xlu0 %765
      %v767 = vsel %vm478, %v761, 0.0
      %768 = vadd.xlane.f32.xlu0 %v767
      %v769 = vpop.xlane.xlu0 %768
      %v770 = vsel %vm478, %v762, 0.0
      %771 = vadd.xlane.f32.xlu0 %v770
      %v772 = vpop.xlane.xlu0 %771
      %v773 = vsel %vm478, %v763, 0.0
      %774 = vadd.xlane.f32.xlu0 %v773
      %v775 = vpop.xlane.xlu0 %774
      %v776 = vmul.f32 %v766, %v491
      %v777 = vmul.f32 %v769, %v491
      %v778 = vmul.f32 %v772, %v491
      %v779 = vmul.f32 %v775, %v491
      %v780 = vadd.f32 %v776, 1e-05
      %v781 = vadd.f32 %v777, 1e-05
      %v782 = vadd.f32 %v778, 1e-05
      %v783 = vadd.f32 %v779, 1e-05
      %v784 = vrsqrt.pop %v780
      %v785 = vrsqrt.pop %v781
      %v786 = vrsqrt.pop %v782
      %v787 = vrsqrt.pop %v783
      %v788 = vmul.f32 %v756, %v784
      %v789 = vmul.f32 %v757, %v785
      %v790 = vmul.f32 %v758, %v786
      %v791 = vmul.f32 %v759, %v787
      %v792 = vlaneseq
      %v793 = vshrl.u32 %v792, 7
      %v794 = vsub.s32 1, %v793
      %v795 = vrot.slane %v606, %v794
      %v796 = vmul.f32 %v788, %v795
      %v797 = vmul.f32 %v789, %v795
      %v798 = vmul.f32 %v790, %v795
      %v799 = vmul.f32 %v791, %v795
      %v800 = vlaneseq
      %v801 = vshrl.u32 %v800, 7
      %v802 = vsub.s32 1, %v801
      %v803 = vrot.slane %v607, %v802
      %v804 = vadd.f32 %v796, %v803
      %v805 = vadd.f32 %v797, %v803
      %v806 = vadd.f32 %v798, %v803
      %v807 = vadd.f32 %v799, %v803
      %v808 = vlaneseq
      %v809 = vshrl.u32 %v808, 7
      %v810 = vsub.s32 0, %v809
      %v811 = vrot.slane %v605, %v810
      %v812 = vmul.f32 %v574, %v811
      %v813 = vmul.f32 %v575, %v811
      %v814 = vmul.f32 %v576, %v811
      %v815 = vmul.f32 %v577, %v811
      %v816 = vlaneseq
      %v817 = vshrl.u32 %v816, 7
      %v818 = vsub.s32 1, %v817
      %v819 = vrot.slane %v605, %v818
      %v820 = vmul.f32 %v544, %v819
      %v821 = vmul.f32 %v545, %v819
      %v822 = vmul.f32 %v546, %v819
      %v823 = vmul.f32 %v547, %v819
      %v824 = vadd.f32 %v812, %v820
      %v825 = vadd.f32 %v813, %v821
      %v826 = vadd.f32 %v814, %v822
      %v827 = vadd.f32 %v815, %v823
      %v828 = vlaneseq
      %v829 = vshrl.u32 %v828, 7
      %v830 = vsub.s32 2, %v829
      %v831 = vrot.slane %v605, %v830
      %v832 = vmul.f32 %v599, %v831
      %v833 = vmul.f32 %v600, %v831
      %v834 = vmul.f32 %v601, %v831
      %v835 = vmul.f32 %v602, %v831
      %v836 = vadd.f32 %v824, %v832
      %v837 = vadd.f32 %v825, %v833
      %v838 = vadd.f32 %v826, %v834
      %v839 = vadd.f32 %v827, %v835
      %v840 = vsel %vm478, %v836, 0.0
      %841 = vadd.xlane.f32.xlu0 %v840
      %v842 = vpop.xlane.xlu0 %841
      %v843 = vsel %vm478, %v837, 0.0
      %844 = vadd.xlane.f32.xlu0 %v843
      %v845 = vpop.xlane.xlu0 %844
      %v846 = vsel %vm478, %v838, 0.0
      %847 = vadd.xlane.f32.xlu0 %v846
      %v848 = vpop.xlane.xlu0 %847
      %v849 = vsel %vm478, %v839, 0.0
      %850 = vadd.xlane.f32.xlu0 %v849
      %v851 = vpop.xlane.xlu0 %850
      %v852 = vmul.f32 %v842, %v491
      %v853 = vmul.f32 %v845, %v491
      %v854 = vmul.f32 %v848, %v491
      %v855 = vmul.f32 %v851, %v491
      %v856 = vsub.f32 %v836, %v852
      %v857 = vsub.f32 %v837, %v853
      %v858 = vsub.f32 %v838, %v854
      %v859 = vsub.f32 %v839, %v855
      %v860 = vmul.f32 %v856, %v856
      %v861 = vmul.f32 %v857, %v857
      %v862 = vmul.f32 %v858, %v858
      %v863 = vmul.f32 %v859, %v859
      %v864 = vsel %vm478, %v860, 0.0
      %865 = vadd.xlane.f32.xlu0 %v864
      %v866 = vpop.xlane.xlu0 %865
      %v867 = vsel %vm478, %v861, 0.0
      %868 = vadd.xlane.f32.xlu0 %v867
      %v869 = vpop.xlane.xlu0 %868
      %v870 = vsel %vm478, %v862, 0.0
      %871 = vadd.xlane.f32.xlu0 %v870
      %v872 = vpop.xlane.xlu0 %871
      %v873 = vsel %vm478, %v863, 0.0
      %874 = vadd.xlane.f32.xlu0 %v873
      %v875 = vpop.xlane.xlu0 %874
      %v876 = vmul.f32 %v866, %v491
      %v877 = vmul.f32 %v869, %v491
      %v878 = vmul.f32 %v872, %v491
      %v879 = vmul.f32 %v875, %v491
      %v880 = vadd.f32 %v876, 1e-05
      %v881 = vadd.f32 %v877, 1e-05
      %v882 = vadd.f32 %v878, 1e-05
      %v883 = vadd.f32 %v879, 1e-05
      %v884 = vrsqrt.pop %v880
      %v885 = vrsqrt.pop %v881
      %v886 = vrsqrt.pop %v882
      %v887 = vrsqrt.pop %v883
      %v888 = vmul.f32 %v856, %v884
      %v889 = vmul.f32 %v857, %v885
      %v890 = vmul.f32 %v858, %v886
      %v891 = vmul.f32 %v859, %v887
      %v892 = vlaneseq
      %v893 = vshrl.u32 %v892, 7
      %v894 = vsub.s32 2, %v893
      %v895 = vrot.slane %v606, %v894
      %v896 = vmul.f32 %v888, %v895
      %v897 = vmul.f32 %v889, %v895
      %v898 = vmul.f32 %v890, %v895
      %v899 = vmul.f32 %v891, %v895
      %v900 = vlaneseq
      %v901 = vshrl.u32 %v900, 7
      %v902 = vsub.s32 2, %v901
      %v903 = vrot.slane %v607, %v902
      %v904 = vadd.f32 %v896, %v903
      %v905 = vadd.f32 %v897, %v903
      %v906 = vadd.f32 %v898, %v903
      %v907 = vadd.f32 %v899, %v903
      %912 = vrot.lane.b32.xlu0 %v804, 32
      %v913 = vpop.permute.xlu0 %912
      %914 = vrot.lane.b32.xlu0 %v805, 32
      %v915 = vpop.permute.xlu0 %914
      %916 = vrot.lane.b32.xlu0 %v806, 32
      %v917 = vpop.permute.xlu0 %916
      %918 = vrot.lane.b32.xlu0 %v807, 32
      %v919 = vpop.permute.xlu0 %918
      %928 = vrot.lane.b32.xlu0 %v904, 64
      %v929 = vpop.permute.xlu0 %928
      %930 = vrot.lane.b32.xlu0 %v905, 64
      %v931 = vpop.permute.xlu0 %930
      %932 = vrot.lane.b32.xlu0 %v906, 64
      %v933 = vpop.permute.xlu0 %932
      %934 = vrot.lane.b32.xlu0 %v907, 64
      %v935 = vpop.permute.xlu0 %934
      %v940 = vsel %vm478, %v704, %v913
      %v941 = vsel %vm478, %v705, %v915
      %v942 = vsel %vm478, %v706, %v917
      %v943 = vsel %vm478, %v707, %v919
      %vm944 = vcmask 523264
      %v945 = vsel %vm944, %v940, %v929
      %v946 = vsel %vm944, %v941, %v931
      %v947 = vsel %vm944, %v942, %v933
      %v948 = vsel %vm944, %v943, %v935
      %v949 = vpack.c.bf16 %v946, %v945
      %v950 = vpack.c.bf16 %v948, %v947
      %v951 = vld [vmem:[%s5] sm:$0xf]
      %v952 = vld [vmem:[%s5 + $0x4] sm:$0xf]
      %v953 = vld [vmem:[%s5 + $0x8] sm:$0xf]
      %v954 = vld [vmem:[%s5 + $0xc] sm:$0xf]
      %v955 = vld [vmem:[%s5 + $0x10] sm:$0xf]
      %v956 = vld [vmem:[%s5 + $0x14] sm:$0xf]
      %v957 = vld [vmem:[%s5 + $0x18] sm:$0xf]
      %v958 = vld [vmem:[%s5 + $0x1c] sm:$0xf]
      %v959 = vld [vmem:[%s5 + $0x20] sm:$0xf]
      %v960 = vld [vmem:[%s5 + $0x24] sm:$0xf]
      %v961 = vld [vmem:[%s5 + $0x28] sm:$0xf]
      %v962 = vld [vmem:[%s5 + $0x2c] sm:$0xf]
      %v963 = vld [vmem:[%s6] sm:$0x1]
      %v965 = vlaneseq
      %v966 = vshrl.u32 %v965, 7
      %v967 = vsub.s32 0, %v966
      %v968 = vrot.slane %v963, %v967
      %v982 = vunpack.c.l.b16 %v951
      %v983 = vunpack.c.l.b16 %v952
      %v984 = vunpack.c.l.b16 %v953
      %v985 = vunpack.c.l.b16 %v954
      %v986 = vunpack.c.l.b16 %v955
      %v987 = vunpack.c.l.b16 %v956
      %v988 = vunpack.c.l.b16 %v957
      %v989 = vunpack.c.l.b16 %v958
      %v990 = vunpack.c.l.b16 %v959
      %v991 = vunpack.c.l.b16 %v960
      %v992 = vunpack.c.l.b16 %v961
      %v993 = vunpack.c.l.b16 %v962
      %v994 = vpack.c.b16 %v983, %v982
      %v995 = vpack.c.b16 %v985, %v984
      %v996 = vpack.c.b16 %v987, %v986
      %v997 = vpack.c.b16 %v989, %v988
      %v998 = vpack.c.b16 %v991, %v990
      %v999 = vpack.c.b16 %v993, %v992
      %vm1006 = vcmask 785408
      %v1008 = vsel %vm1006, %v949, 0
      %v1011 = vsel %vm1006, %v950, 0
      %1013 = vmatprep.subr.bf16.mxu0 0
      %1014 = vmatpush1.bf16.msra.mxu0 %v994
      %1015 = vmatprep.subr.bf16.mxu0 0
      %1016 = vmatpush1.bf16.msra.mxu0 %v995
      %1017 = vmatprep.subr.bf16.mxu0 0
      %1018 = vmatpush1.bf16.msra.mxu0 %v996
      %1019 = vmatprep.subr.bf16.mxu0 0
      %1020 = vmatpush1.bf16.msra.mxu0 %v997
      %1021 = vmatprep.subr.bf16.mxu0 0
      %1022 = vmatpush1.bf16.msra.mxu0 %v998
      %1023 = vmatprep.subr.bf16.mxu0 0
      %1024 = vmatpush1.bf16.msra.mxu0 %v999
      %1025 = vmatprep.subr.bf16.mxu0 0
      %1026 = vmatpush1.bf16.msra.mxu0 0
      %1027 = vmatprep.subr.bf16.mxu0 0
      %1028 = vmatpush1.bf16.msra.mxu0 0
      %1029 = vmatprep.subr.bf16.mxu0 0
      %1030 = vmatpush1.bf16.msra.mxu0 0
      %1031 = vmatprep.subr.bf16.mxu0 0
      %1032 = vmatpush1.bf16.msra.mxu0 0
      %1033 = vmatprep.subr.bf16.mxu0 0
      %1034 = vmatpush1.bf16.msra.mxu0 0
      %1035 = vmatprep.subr.bf16.mxu0 0
      %1036 = vmatpush1.bf16.msra.mxu0 0
      %1037 = vmatprep.subr.bf16.mxu0 0
      %1038 = vmatpush1.bf16.msra.mxu0 0
      %1039 = vmatprep.subr.bf16.mxu0 0
      %1040 = vmatpush1.bf16.msra.mxu0 0
      %1041 = vmatprep.subr.bf16.mxu0 0
      %1042 = vmatpush1.bf16.msra.mxu0 0
      %1043 = vmatprep.subr.bf16.mxu0 0
      %1044 = vmatpush1.bf16.msra.mxu0 0
      %1045 = vmatprep.mubr.bf16.mxu0 0
      %1046 = vmatmul.mubr.bf16.gmra.mrb[0].mxu0 %v1008
      %v1047 = vpop.f32.mrb[0].mxu0
      %v1048 = vadd.f32 %v968, %v1047
      %v1049 = vpop.f32.mrb[0].mxu0
      %v1050 = vpop.f32.mrb[0].mxu0
      %v1051 = vadd.f32 %v968, %v1050
      %v1052 = vpop.f32.mrb[0].mxu0
      %1053 = vmatprep.mubr.bf16.mxu0 0
      %1054 = vmatmul.mubr.bf16.gmra.mrb[0].mxu0 %v1011
      %v1055 = vpop.f32.mrb[0].mxu0
      %v1056 = vadd.f32 %v968, %v1055
      %v1057 = vpop.f32.mrb[0].mxu0
      %v1058 = vpop.f32.mrb[0].mxu0
      %v1059 = vadd.f32 %v968, %v1058
      %v1060 = vpop.f32.mrb[0].mxu0
      %1061 = vdwg.mxu0
      %v1062 = vpack.c.bf16 %v1051, %v1048
      %v1063 = vpack.c.bf16 %v1059, %v1056
      %v1064 = vrot.slane %v473, 7
      %v1065 = vrot.slane %v474, 7
      %v1066 = vrot.slane %v475, 7
      %v1067 = vrot.slane %v476, 7
      %v1068 = vsel %vm561, %v1066, %v1067
      %v1069 = vsel %vm561, %v1065, %v1066
      %v1070 = vsel %vm561, %v1064, %v1065
      %v1071 = vsel %vm561, %v1067, %v1064
      %v1072 = vsel %vm570, %v473, %v1071
      %v1073 = vsel %vm571, %v474, %v1070
      %v1074 = vsel %vm572, %v475, %v1069
      %v1075 = vsel %vm573, %v476, %v1068
      %v1076 = vrot.slane %v473, 1
      %v1077 = vrot.slane %v474, 1
      %v1078 = vrot.slane %v475, 1
      %v1079 = vrot.slane %v476, 1
      %v1080 = vsel %vm586, %v1078, %v1079
      %v1081 = vsel %vm586, %v1077, %v1078
      %v1082 = vsel %vm586, %v1076, %v1077
      %v1083 = vsel %vm586, %v1079, %v1076
      %v1084 = vsel %vm595, %v473, %v1082
      %v1085 = vsel %vm596, %v474, %v1081
      %v1086 = vsel %vm597, %v475, %v1080
      %v1087 = vsel %vm598, %v476, %v1083
      %v1088 = vmax.f32 %v1072, %v473
      %v1089 = vmax.f32 %v1073, %v474
      %v1090 = vmax.f32 %v1074, %v475
      %v1091 = vmax.f32 %v1075, %v476
      %v1092 = vmax.f32 %v1088, %v1084
      %v1093 = vmax.f32 %v1089, %v1085
      %v1094 = vmax.f32 %v1090, %v1086
      %v1095 = vmax.f32 %v1091, %v1087
      %v1096 = vlaneseq
      %v1097 = vand.u32 %v1096, 127
      %v1098 = vmul.u32 %v549, 2
      %v1099 = vmul.u32 %v550, 2
      %vm1100 = vcmp.eq.s32.totalorder %v1097, %v1098
      %vm1101 = vcmp.eq.s32.totalorder %v1097, %v1099
      %v1102 = vsel %vm1100, 1.0, 0.0
      %v1103 = vsel %vm1101, 1.0, 0.0
      %v1104 = vpack.c.bf16 %v1103, %v1102
      %v1106 = vsel %vm478, %v1104, 0
      %1108 = vmatprep.subr.bf16.mxu0 0
      %1109 = vmatpush1.bf16.msra.mxu0 %v1062
      %1110 = vmatprep.subr.bf16.mxu0 0
      %1111 = vmatpush1.bf16.msra.mxu0 %v1063
      %1112 = vmatprep.subr.bf16.mxu0 0
      %1113 = vmatpush1.bf16.msra.mxu0 0
      %1114 = vmatprep.subr.bf16.mxu0 0
      %1115 = vmatpush1.bf16.msra.mxu0 0
      %1116 = vmatprep.subr.bf16.mxu0 0
      %1117 = vmatpush1.bf16.msra.mxu0 0
      %1118 = vmatprep.subr.bf16.mxu0 0
      %1119 = vmatpush1.bf16.msra.mxu0 0
      %1120 = vmatprep.subr.bf16.mxu0 0
      %1121 = vmatpush1.bf16.msra.mxu0 0
      %1122 = vmatprep.subr.bf16.mxu0 0
      %1123 = vmatpush1.bf16.msra.mxu0 0
      %1124 = vmatprep.subr.bf16.mxu0 0
      %1125 = vmatpush1.bf16.msra.mxu0 0
      %1126 = vmatprep.subr.bf16.mxu0 0
      %1127 = vmatpush1.bf16.msra.mxu0 0
      %1128 = vmatprep.subr.bf16.mxu0 0
      %1129 = vmatpush1.bf16.msra.mxu0 0
      %1130 = vmatprep.subr.bf16.mxu0 0
      %1131 = vmatpush1.bf16.msra.mxu0 0
      %1132 = vmatprep.subr.bf16.mxu0 0
      %1133 = vmatpush1.bf16.msra.mxu0 0
      %1134 = vmatprep.subr.bf16.mxu0 0
      %1135 = vmatpush1.bf16.msra.mxu0 0
      %1136 = vmatprep.subr.bf16.mxu0 0
      %1137 = vmatpush1.bf16.msra.mxu0 0
      %1138 = vmatprep.subr.bf16.mxu0 0
      %1139 = vmatpush1.bf16.msra.mxu0 0
      %1140 = vmatprep.mubr.bf16.mxu0 0
      %1141 = vmatmul.mubr.bf16.gmra.mrb[0].mxu0 %v1106
      %v1142 = vpop.f32.mrb[0].mxu0
      %v1143 = vadd.f32 0.0, %v1142
      %v1144 = vpop.f32.mrb[0].mxu0
      %v1145 = vpop.f32.mrb[0].mxu0
      %v1146 = vadd.f32 0.0, %v1145
      %v1147 = vpop.f32.mrb[0].mxu0
      %1148 = vdwg.mxu0
      %v1149 = vpack.c.bf16 %v1146, %v1143
      %v1150 = vpack.c.bf16 %v1093, %v1092
      %v1151 = vpack.c.bf16 %v1095, %v1094
      %1153 = vrot.lane.b32.xlu0 %v1149, 120
      %v1154 = vpop.permute.xlu0 %1153
      %1155 = vrot.lane.b32.xlu0 %v1149, 112
      %v1156 = vpop.permute.xlu0 %1155
      %1157 = vrot.lane.b32.xlu0 %v1149, 104
      %v1158 = vpop.permute.xlu0 %1157
      %1159 = vrot.lane.b32.xlu0 %v1149, 96
      %v1160 = vpop.permute.xlu0 %1159
      %vm1161 = vcmask 64512
      %v1163 = vsel %vm1161, %v1149, 0
      %v1166 = vsel %vm1161, %v1160, 0
      %1168 = vmatprep.subr.bf16.mxu0 0
      %1169 = vmatpush1.bf16.xpose.msra.mxu0 %v1166
      %1170 = vmatprep.subr.bf16.mxu0 0
      %1171 = vmatpush1.bf16.xpose.msra.mxu0 0
      %1172 = vmatprep.subr.bf16.mxu0 0
      %1173 = vmatpush1.bf16.xpose.msra.mxu0 0
      %1174 = vmatprep.subr.bf16.mxu0 0
      %1175 = vmatpush1.bf16.xpose.msra.mxu0 0
      %1176 = vmatprep.subr.bf16.mxu0 0
      %1177 = vmatpush1.bf16.xpose.msra.mxu0 0
      %1178 = vmatprep.subr.bf16.mxu0 0
      %1179 = vmatpush1.bf16.xpose.msra.mxu0 0
      %1180 = vmatprep.subr.bf16.mxu0 0
      %1181 = vmatpush1.bf16.xpose.msra.mxu0 0
      %1182 = vmatprep.subr.bf16.mxu0 0
      %1183 = vmatpush1.bf16.xpose.msra.mxu0 0
      %1184 = vmatprep.subr.bf16.mxu0 0
      %1185 = vmatpush1.bf16.xpose.msra.mxu0 0
      %1186 = vmatprep.subr.bf16.mxu0 0
      %1187 = vmatpush1.bf16.xpose.msra.mxu0 0
      %1188 = vmatprep.subr.bf16.mxu0 0
      %1189 = vmatpush1.bf16.xpose.msra.mxu0 0
      %1190 = vmatprep.subr.bf16.mxu0 0
      %1191 = vmatpush1.bf16.xpose.msra.mxu0 0
      %1192 = vmatprep.subr.bf16.mxu0 0
      %1193 = vmatpush1.bf16.xpose.msra.mxu0 0
      %1194 = vmatprep.subr.bf16.mxu0 0
      %1195 = vmatpush1.bf16.xpose.msra.mxu0 0
      %1196 = vmatprep.subr.bf16.mxu0 0
      %1197 = vmatpush1.bf16.xpose.msra.mxu0 0
      %1198 = vmatprep.subr.bf16.mxu0 0
      %1199 = vmatpush1.bf16.xpose.msra.mxu0 0
      %1200 = vmatprep.mubr.bf16.mxu0 0
      %1201 = vmatmul.mubr.bf16.gmra.mrb[0].mxu0 %v1163
      %v1202 = vpop.f32.mrb[0].mxu0
      %v1203 = vadd.f32 0.0, %v1202
      %v1204 = vpop.f32.mrb[0].mxu0
      %v1205 = vpop.f32.mrb[0].mxu0
      %v1206 = vadd.f32 0.0, %v1205
      %v1207 = vpop.f32.mrb[0].mxu0
      %1208 = vdwg.mxu0
      %1209 = vrot.lane.b32.xlu0 %v1154, 96
      %v1210 = vpop.permute.xlu0 %1209
      %v1212 = vsel %vm1161, %v1154, 0
      %v1215 = vsel %vm1161, %v1210, 0
      %1217 = vmatprep.subr.bf16.mxu0 0
      %1218 = vmatpush1.bf16.xpose.msra.mxu0 %v1215
      %1219 = vmatprep.subr.bf16.mxu0 0
      %1220 = vmatpush1.bf16.xpose.msra.mxu0 0
      %1221 = vmatprep.subr.bf16.mxu0 0
      %1222 = vmatpush1.bf16.xpose.msra.mxu0 0
      %1223 = vmatprep.subr.bf16.mxu0 0
      %1224 = vmatpush1.bf16.xpose.msra.mxu0 0
      %1225 = vmatprep.subr.bf16.mxu0 0
      %1226 = vmatpush1.bf16.xpose.msra.mxu0 0
      %1227 = vmatprep.subr.bf16.mxu0 0
      %1228 = vmatpush1.bf16.xpose.msra.mxu0 0
      %1229 = vmatprep.subr.bf16.mxu0 0
      %1230 = vmatpush1.bf16.xpose.msra.mxu0 0
      %1231 = vmatprep.subr.bf16.mxu0 0
      %1232 = vmatpush1.bf16.xpose.msra.mxu0 0
      %1233 = vmatprep.subr.bf16.mxu0 0
      %1234 = vmatpush1.bf16.xpose.msra.mxu0 0
      %1235 = vmatprep.subr.bf16.mxu0 0
      %1236 = vmatpush1.bf16.xpose.msra.mxu0 0
      %1237 = vmatprep.subr.bf16.mxu0 0
      %1238 = vmatpush1.bf16.xpose.msra.mxu0 0
      %1239 = vmatprep.subr.bf16.mxu0 0
      %1240 = vmatpush1.bf16.xpose.msra.mxu0 0
      %1241 = vmatprep.subr.bf16.mxu0 0
      %1242 = vmatpush1.bf16.xpose.msra.mxu0 0
      %1243 = vmatprep.subr.bf16.mxu0 0
      %1244 = vmatpush1.bf16.xpose.msra.mxu0 0
      %1245 = vmatprep.subr.bf16.mxu0 0
      %1246 = vmatpush1.bf16.xpose.msra.mxu0 0
      %1247 = vmatprep.subr.bf16.mxu0 0
      %1248 = vmatpush1.bf16.xpose.msra.mxu0 0
      %1249 = vmatprep.mubr.bf16.mxu0 0
      %1250 = vmatmul.mubr.bf16.gmra.mrb[0].mxu0 %v1212
      %v1251 = vpop.f32.mrb[0].mxu0
      %v1252 = vadd.f32 0.0, %v1251
      %v1253 = vpop.f32.mrb[0].mxu0
      %v1254 = vpop.f32.mrb[0].mxu0
      %v1255 = vadd.f32 0.0, %v1254
      %v1256 = vpop.f32.mrb[0].mxu0
      %1257 = vdwg.mxu0
      %1258 = vrot.lane.b32.xlu0 %v1156, 96
      %v1259 = vpop.permute.xlu0 %1258
      %v1261 = vsel %vm1161, %v1156, 0
      %v1264 = vsel %vm1161, %v1259, 0
      %1266 = vmatprep.subr.bf16.mxu0 0
      %1267 = vmatpush1.bf16.xpose.msra.mxu0 %v1264
      %1268 = vmatprep.subr.bf16.mxu0 0
      %1269 = vmatpush1.bf16.xpose.msra.mxu0 0
      %1270 = vmatprep.subr.bf16.mxu0 0
      %1271 = vmatpush1.bf16.xpose.msra.mxu0 0
      %1272 = vmatprep.subr.bf16.mxu0 0
      %1273 = vmatpush1.bf16.xpose.msra.mxu0 0
      %1274 = vmatprep.subr.bf16.mxu0 0
      %1275 = vmatpush1.bf16.xpose.msra.mxu0 0
      %1276 = vmatprep.subr.bf16.mxu0 0
      %1277 = vmatpush1.bf16.xpose.msra.mxu0 0
      %1278 = vmatprep.subr.bf16.mxu0 0
      %1279 = vmatpush1.bf16.xpose.msra.mxu0 0
      %1280 = vmatprep.subr.bf16.mxu0 0
      %1281 = vmatpush1.bf16.xpose.msra.mxu0 0
      %1282 = vmatprep.subr.bf16.mxu0 0
      %1283 = vmatpush1.bf16.xpose.msra.mxu0 0
      %1284 = vmatprep.subr.bf16.mxu0 0
      %1285 = vmatpush1.bf16.xpose.msra.mxu0 0
      %1286 = vmatprep.subr.bf16.mxu0 0
      %1287 = vmatpush1.bf16.xpose.msra.mxu0 0
      %1288 = vmatprep.subr.bf16.mxu0 0
      %1289 = vmatpush1.bf16.xpose.msra.mxu0 0
      %1290 = vmatprep.subr.bf16.mxu0 0
      %1291 = vmatpush1.bf16.xpose.msra.mxu0 0
      %1292 = vmatprep.subr.bf16.mxu0 0
      %1293 = vmatpush1.bf16.xpose.msra.mxu0 0
      %1294 = vmatprep.subr.bf16.mxu0 0
      %1295 = vmatpush1.bf16.xpose.msra.mxu0 0
      %1296 = vmatprep.subr.bf16.mxu0 0
      %1297 = vmatpush1.bf16.xpose.msra.mxu0 0
      %1298 = vmatprep.mubr.bf16.mxu0 0
      %1299 = vmatmul.mubr.bf16.gmra.mrb[0].mxu0 %v1261
      %v1300 = vpop.f32.mrb[0].mxu0
      %v1301 = vadd.f32 0.0, %v1300
      %v1302 = vpop.f32.mrb[0].mxu0
      %v1303 = vpop.f32.mrb[0].mxu0
      %v1304 = vadd.f32 0.0, %v1303
      %v1305 = vpop.f32.mrb[0].mxu0
      %1306 = vdwg.mxu0
      %1307 = vrot.lane.b32.xlu0 %v1158, 96
      %v1308 = vpop.permute.xlu0 %1307
      %v1310 = vsel %vm1161, %v1158, 0
      %v1313 = vsel %vm1161, %v1308, 0
      %1315 = vmatprep.subr.bf16.mxu0 0
      %1316 = vmatpush1.bf16.xpose.msra.mxu0 %v1313
      %1317 = vmatprep.subr.bf16.mxu0 0
      %1318 = vmatpush1.bf16.xpose.msra.mxu0 0
      %1319 = vmatprep.subr.bf16.mxu0 0
      %1320 = vmatpush1.bf16.xpose.msra.mxu0 0
      %1321 = vmatprep.subr.bf16.mxu0 0
      %1322 = vmatpush1.bf16.xpose.msra.mxu0 0
      %1323 = vmatprep.subr.bf16.mxu0 0
      %1324 = vmatpush1.bf16.xpose.msra.mxu0 0
      %1325 = vmatprep.subr.bf16.mxu0 0
      %1326 = vmatpush1.bf16.xpose.msra.mxu0 0
      %1327 = vmatprep.subr.bf16.mxu0 0
      %1328 = vmatpush1.bf16.xpose.msra.mxu0 0
      %1329 = vmatprep.subr.bf16.mxu0 0
      %1330 = vmatpush1.bf16.xpose.msra.mxu0 0
      %1331 = vmatprep.subr.bf16.mxu0 0
      %1332 = vmatpush1.bf16.xpose.msra.mxu0 0
      %1333 = vmatprep.subr.bf16.mxu0 0
      %1334 = vmatpush1.bf16.xpose.msra.mxu0 0
      %1335 = vmatprep.subr.bf16.mxu0 0
      %1336 = vmatpush1.bf16.xpose.msra.mxu0 0
      %1337 = vmatprep.subr.bf16.mxu0 0
      %1338 = vmatpush1.bf16.xpose.msra.mxu0 0
      %1339 = vmatprep.subr.bf16.mxu0 0
      %1340 = vmatpush1.bf16.xpose.msra.mxu0 0
      %1341 = vmatprep.subr.bf16.mxu0 0
      %1342 = vmatpush1.bf16.xpose.msra.mxu0 0
      %1343 = vmatprep.subr.bf16.mxu0 0
      %1344 = vmatpush1.bf16.xpose.msra.mxu0 0
      %1345 = vmatprep.subr.bf16.mxu0 0
      %1346 = vmatpush1.bf16.xpose.msra.mxu0 0
      %1347 = vmatprep.mubr.bf16.mxu0 0
      %1348 = vmatmul.mubr.bf16.gmra.mrb[0].mxu0 %v1310
      %v1349 = vpop.f32.mrb[0].mxu0
      %v1350 = vadd.f32 0.0, %v1349
      %v1351 = vpop.f32.mrb[0].mxu0
      %v1352 = vpop.f32.mrb[0].mxu0
      %v1353 = vadd.f32 0.0, %v1352
      %v1354 = vpop.f32.mrb[0].mxu0
      %1355 = vdwg.mxu0
      %vm1356 = vcmask 130048
      %v1357 = vsel %vm1356, %v1203, -inf
      %1358 = vmax.xlane.f32.xlu0 %v1357
      %v1359 = vpop.xlane.xlu0 %1358
      %v1360 = vsel %vm1356, %v1206, -inf
      %1361 = vmax.xlane.f32.xlu0 %v1360
      %v1362 = vpop.xlane.xlu0 %1361
      %v1363 = vsel %vm1356, %v1252, -inf
      %1364 = vmax.xlane.f32.xlu0 %v1363
      %v1365 = vpop.xlane.xlu0 %1364
      %v1366 = vsel %vm1356, %v1255, -inf
      %1367 = vmax.xlane.f32.xlu0 %v1366
      %v1368 = vpop.xlane.xlu0 %1367
      %v1369 = vsel %vm1356, %v1301, -inf
      %1370 = vmax.xlane.f32.xlu0 %v1369
      %v1371 = vpop.xlane.xlu0 %1370
      %v1372 = vsel %vm1356, %v1304, -inf
      %1373 = vmax.xlane.f32.xlu0 %v1372
      %v1374 = vpop.xlane.xlu0 %1373
      %v1375 = vsel %vm1356, %v1350, -inf
      %1376 = vmax.xlane.f32.xlu0 %v1375
      %v1377 = vpop.xlane.xlu0 %1376
      %v1378 = vsel %vm1356, %v1353, -inf
      %1379 = vmax.xlane.f32.xlu0 %v1378
      %v1380 = vpop.xlane.xlu0 %1379
      %v1381 = vsub.f32 %v1203, %v1359
      %v1382 = vsub.f32 %v1206, %v1362
      %v1383 = vsub.f32 %v1252, %v1365
      %v1384 = vsub.f32 %v1255, %v1368
      %v1385 = vsub.f32 %v1301, %v1371
      %v1386 = vsub.f32 %v1304, %v1374
      %v1387 = vsub.f32 %v1350, %v1377
      %v1388 = vsub.f32 %v1353, %v1380
      %v1389 = vmul.f32 %v1381, 1.442695
      %v1390 = vpow.pop %v1389
      %v1391 = vmul.f32 %v1382, 1.442695
      %v1392 = vpow.pop %v1391
      %v1393 = vmul.f32 %v1383, 1.442695
      %v1394 = vpow.pop %v1393
      %v1395 = vmul.f32 %v1384, 1.442695
      %v1396 = vpow.pop %v1395
      %v1397 = vmul.f32 %v1385, 1.442695
      %v1398 = vpow.pop %v1397
      %v1399 = vmul.f32 %v1386, 1.442695
      %v1400 = vpow.pop %v1399
      %v1401 = vmul.f32 %v1387, 1.442695
      %v1402 = vpow.pop %v1401
      %v1403 = vmul.f32 %v1388, 1.442695
      %v1404 = vpow.pop %v1403
      %v1405 = vsel %vm1356, %v1390, 0.0
      %1406 = vadd.xlane.f32.xlu0 %v1405
      %v1407 = vpop.xlane.xlu0 %1406
      %v1408 = vsel %vm1356, %v1392, 0.0
      %1409 = vadd.xlane.f32.xlu0 %v1408
      %v1410 = vpop.xlane.xlu0 %1409
      %v1411 = vsel %vm1356, %v1394, 0.0
      %1412 = vadd.xlane.f32.xlu0 %v1411
      %v1413 = vpop.xlane.xlu0 %1412
      %v1414 = vsel %vm1356, %v1396, 0.0
      %1415 = vadd.xlane.f32.xlu0 %v1414
      %v1416 = vpop.xlane.xlu0 %1415
      %v1417 = vsel %vm1356, %v1398, 0.0
      %1418 = vadd.xlane.f32.xlu0 %v1417
      %v1419 = vpop.xlane.xlu0 %1418
      %v1420 = vsel %vm1356, %v1400, 0.0
      %1421 = vadd.xlane.f32.xlu0 %v1420
      %v1422 = vpop.xlane.xlu0 %1421
      %v1423 = vsel %vm1356, %v1402, 0.0
      %1424 = vadd.xlane.f32.xlu0 %v1423
      %v1425 = vpop.xlane.xlu0 %1424
      %v1426 = vsel %vm1356, %v1404, 0.0
      %1427 = vadd.xlane.f32.xlu0 %v1426
      %v1428 = vpop.xlane.xlu0 %1427
      %v1429 = vrcp.pop %v1407
      %v1430 = vrcp.pop %v1410
      %v1431 = vrcp.pop %v1413
      %v1432 = vrcp.pop %v1416
      %v1433 = vrcp.pop %v1419
      %v1434 = vrcp.pop %v1422
      %v1435 = vrcp.pop %v1425
      %v1436 = vrcp.pop %v1428
      %v1437 = vmul.f32 %v1390, %v1429
      %v1438 = vmul.f32 %v1392, %v1430
      %v1439 = vmul.f32 %v1394, %v1431
      %v1440 = vmul.f32 %v1396, %v1432
      %v1441 = vmul.f32 %v1398, %v1433
      %v1442 = vmul.f32 %v1400, %v1434
      %v1443 = vmul.f32 %v1402, %v1435
      %v1444 = vmul.f32 %v1404, %v1436
      %v1445 = vpack.c.bf16 %v1438, %v1437
      %v1446 = vpack.c.bf16 %v1440, %v1439
      %v1447 = vpack.c.bf16 %v1442, %v1441
      %v1448 = vpack.c.bf16 %v1444, %v1443
      %1449 = vrot.lane.b32.xlu0 %v1149, 64
      %v1450 = vpop.permute.xlu0 %1449
      %v1453 = vsel %vm1356, %v1445, 0
      %1455 = vmatprep.subr.bf16.mxu0 0
      %1456 = vmatpush1.bf16.msra.mxu0 %v1450
      %1457 = vmatprep.subr.bf16.mxu0 0
      %1458 = vmatpush1.bf16.msra.mxu0 0
      %1459 = vmatprep.subr.bf16.mxu0 0
      %1460 = vmatpush1.bf16.msra.mxu0 0
      %1461 = vmatprep.subr.bf16.mxu0 0
      %1462 = vmatpush1.bf16.msra.mxu0 0
      %1463 = vmatprep.subr.bf16.mxu0 0
      %1464 = vmatpush1.bf16.msra.mxu0 0
      %1465 = vmatprep.subr.bf16.mxu0 0
      %1466 = vmatpush1.bf16.msra.mxu0 0
      %1467 = vmatprep.subr.bf16.mxu0 0
      %1468 = vmatpush1.bf16.msra.mxu0 0
      %1469 = vmatprep.subr.bf16.mxu0 0
      %1470 = vmatpush1.bf16.msra.mxu0 0
      %1471 = vmatprep.subr.bf16.mxu0 0
      %1472 = vmatpush1.bf16.msra.mxu0 0
      %1473 = vmatprep.subr.bf16.mxu0 0
      %1474 = vmatpush1.bf16.msra.mxu0 0
      %1475 = vmatprep.subr.bf16.mxu0 0
      %1476 = vmatpush1.bf16.msra.mxu0 0
      %1477 = vmatprep.subr.bf16.mxu0 0
      %1478 = vmatpush1.bf16.msra.mxu0 0
      %1479 = vmatprep.subr.bf16.mxu0 0
      %1480 = vmatpush1.bf16.msra.mxu0 0
      %1481 = vmatprep.subr.bf16.mxu0 0
      %1482 = vmatpush1.bf16.msra.mxu0 0
      %1483 = vmatprep.subr.bf16.mxu0 0
      %1484 = vmatpush1.bf16.msra.mxu0 0
      %1485 = vmatprep.subr.bf16.mxu0 0
      %1486 = vmatpush1.bf16.msra.mxu0 0
      %1487 = vmatprep.mubr.bf16.mxu0 0
      %1488 = vmatmul.mubr.bf16.gmra.mrb[0].mxu0 %v1453
      %v1489 = vpop.f32.mrb[0].mxu0
      %v1490 = vadd.f32 0.0, %v1489
      %v1491 = vpop.f32.mrb[0].mxu0
      %v1492 = vpop.f32.mrb[0].mxu0
      %v1493 = vadd.f32 0.0, %v1492
      %v1494 = vpop.f32.mrb[0].mxu0
      %1495 = vdwg.mxu0
      %1496 = vrot.lane.b32.xlu0 %v1154, 64
      %v1497 = vpop.permute.xlu0 %1496
      %v1500 = vsel %vm1356, %v1446, 0
      %1502 = vmatprep.subr.bf16.mxu0 0
      %1503 = vmatpush1.bf16.msra.mxu0 %v1497
      %1504 = vmatprep.subr.bf16.mxu0 0
      %1505 = vmatpush1.bf16.msra.mxu0 0
      %1506 = vmatprep.subr.bf16.mxu0 0
      %1507 = vmatpush1.bf16.msra.mxu0 0
      %1508 = vmatprep.subr.bf16.mxu0 0
      %1509 = vmatpush1.bf16.msra.mxu0 0
      %1510 = vmatprep.subr.bf16.mxu0 0
      %1511 = vmatpush1.bf16.msra.mxu0 0
      %1512 = vmatprep.subr.bf16.mxu0 0
      %1513 = vmatpush1.bf16.msra.mxu0 0
      %1514 = vmatprep.subr.bf16.mxu0 0
      %1515 = vmatpush1.bf16.msra.mxu0 0
      %1516 = vmatprep.subr.bf16.mxu0 0
      %1517 = vmatpush1.bf16.msra.mxu0 0
      %1518 = vmatprep.subr.bf16.mxu0 0
      %1519 = vmatpush1.bf16.msra.mxu0 0
      %1520 = vmatprep.subr.bf16.mxu0 0
      %1521 = vmatpush1.bf16.msra.mxu0 0
      %1522 = vmatprep.subr.bf16.mxu0 0
      %1523 = vmatpush1.bf16.msra.mxu0 0
      %1524 = vmatprep.subr.bf16.mxu0 0
      %1525 = vmatpush1.bf16.msra.mxu0 0
      %1526 = vmatprep.subr.bf16.mxu0 0
      %1527 = vmatpush1.bf16.msra.mxu0 0
      %1528 = vmatprep.subr.bf16.mxu0 0
      %1529 = vmatpush1.bf16.msra.mxu0 0
      %1530 = vmatprep.subr.bf16.mxu0 0
      %1531 = vmatpush1.bf16.msra.mxu0 0
      %1532 = vmatprep.subr.bf16.mxu0 0
      %1533 = vmatpush1.bf16.msra.mxu0 0
      %1534 = vmatprep.mubr.bf16.mxu0 0
      %1535 = vmatmul.mubr.bf16.gmra.mrb[0].mxu0 %v1500
      %v1536 = vpop.f32.mrb[0].mxu0
      %v1537 = vadd.f32 0.0, %v1536
      %v1538 = vpop.f32.mrb[0].mxu0
      %v1539 = vpop.f32.mrb[0].mxu0
      %v1540 = vadd.f32 0.0, %v1539
      %v1541 = vpop.f32.mrb[0].mxu0
      %1542 = vdwg.mxu0
      %1543 = vrot.lane.b32.xlu0 %v1156, 64
      %v1544 = vpop.permute.xlu0 %1543
      %v1547 = vsel %vm1356, %v1447, 0
      %1549 = vmatprep.subr.bf16.mxu0 0
      %1550 = vmatpush1.bf16.msra.mxu0 %v1544
      %1551 = vmatprep.subr.bf16.mxu0 0
      %1552 = vmatpush1.bf16.msra.mxu0 0
      %1553 = vmatprep.subr.bf16.mxu0 0
      %1554 = vmatpush1.bf16.msra.mxu0 0
      %1555 = vmatprep.subr.bf16.mxu0 0
      %1556 = vmatpush1.bf16.msra.mxu0 0
      %1557 = vmatprep.subr.bf16.mxu0 0
      %1558 = vmatpush1.bf16.msra.mxu0 0
      %1559 = vmatprep.subr.bf16.mxu0 0
      %1560 = vmatpush1.bf16.msra.mxu0 0
      %1561 = vmatprep.subr.bf16.mxu0 0
      %1562 = vmatpush1.bf16.msra.mxu0 0
      %1563 = vmatprep.subr.bf16.mxu0 0
      %1564 = vmatpush1.bf16.msra.mxu0 0
      %1565 = vmatprep.subr.bf16.mxu0 0
      %1566 = vmatpush1.bf16.msra.mxu0 0
      %1567 = vmatprep.subr.bf16.mxu0 0
      %1568 = vmatpush1.bf16.msra.mxu0 0
      %1569 = vmatprep.subr.bf16.mxu0 0
      %1570 = vmatpush1.bf16.msra.mxu0 0
      %1571 = vmatprep.subr.bf16.mxu0 0
      %1572 = vmatpush1.bf16.msra.mxu0 0
      %1573 = vmatprep.subr.bf16.mxu0 0
      %1574 = vmatpush1.bf16.msra.mxu0 0
      %1575 = vmatprep.subr.bf16.mxu0 0
      %1576 = vmatpush1.bf16.msra.mxu0 0
      %1577 = vmatprep.subr.bf16.mxu0 0
      %1578 = vmatpush1.bf16.msra.mxu0 0
      %1579 = vmatprep.subr.bf16.mxu0 0
      %1580 = vmatpush1.bf16.msra.mxu0 0
      %1581 = vmatprep.mubr.bf16.mxu0 0
      %1582 = vmatmul.mubr.bf16.gmra.mrb[0].mxu0 %v1547
      %v1583 = vpop.f32.mrb[0].mxu0
      %v1584 = vadd.f32 0.0, %v1583
      %v1585 = vpop.f32.mrb[0].mxu0
      %v1586 = vpop.f32.mrb[0].mxu0
      %v1587 = vadd.f32 0.0, %v1586
      %v1588 = vpop.f32.mrb[0].mxu0
      %1589 = vdwg.mxu0
      %1590 = vrot.lane.b32.xlu0 %v1158, 64
      %v1591 = vpop.permute.xlu0 %1590
      %v1594 = vsel %vm1356, %v1448, 0
      %1596 = vmatprep.subr.bf16.mxu0 0
      %1597 = vmatpush1.bf16.msra.mxu0 %v1591
      %1598 = vmatprep.subr.bf16.mxu0 0
      %1599 = vmatpush1.bf16.msra.mxu0 0
      %1600 = vmatprep.subr.bf16.mxu0 0
      %1601 = vmatpush1.bf16.msra.mxu0 0
      %1602 = vmatprep.subr.bf16.mxu0 0
      %1603 = vmatpush1.bf16.msra.mxu0 0
      %1604 = vmatprep.subr.bf16.mxu0 0
      %1605 = vmatpush1.bf16.msra.mxu0 0
      %1606 = vmatprep.subr.bf16.mxu0 0
      %1607 = vmatpush1.bf16.msra.mxu0 0
      %1608 = vmatprep.subr.bf16.mxu0 0
      %1609 = vmatpush1.bf16.msra.mxu0 0
      %1610 = vmatprep.subr.bf16.mxu0 0
      %1611 = vmatpush1.bf16.msra.mxu0 0
      %1612 = vmatprep.subr.bf16.mxu0 0
      %1613 = vmatpush1.bf16.msra.mxu0 0
      %1614 = vmatprep.subr.bf16.mxu0 0
      %1615 = vmatpush1.bf16.msra.mxu0 0
      %1616 = vmatprep.subr.bf16.mxu0 0
      %1617 = vmatpush1.bf16.msra.mxu0 0
      %1618 = vmatprep.subr.bf16.mxu0 0
      %1619 = vmatpush1.bf16.msra.mxu0 0
      %1620 = vmatprep.subr.bf16.mxu0 0
      %1621 = vmatpush1.bf16.msra.mxu0 0
      %1622 = vmatprep.subr.bf16.mxu0 0
      %1623 = vmatpush1.bf16.msra.mxu0 0
      %1624 = vmatprep.subr.bf16.mxu0 0
      %1625 = vmatpush1.bf16.msra.mxu0 0
      %1626 = vmatprep.subr.bf16.mxu0 0
      %1627 = vmatpush1.bf16.msra.mxu0 0
      %1628 = vmatprep.mubr.bf16.mxu0 0
      %1629 = vmatmul.mubr.bf16.gmra.mrb[0].mxu0 %v1594
      %v1630 = vpop.f32.mrb[0].mxu0
      %v1631 = vadd.f32 0.0, %v1630
      %v1632 = vpop.f32.mrb[0].mxu0
      %v1633 = vpop.f32.mrb[0].mxu0
      %v1634 = vadd.f32 0.0, %v1633
      %v1635 = vpop.f32.mrb[0].mxu0
      %1636 = vdwg.mxu0
      %v1637 = vpack.c.bf16 %v1493, %v1490
      %v1638 = vpack.c.bf16 %v1540, %v1537
      %v1639 = vpack.c.bf16 %v1587, %v1584
      %v1640 = vpack.c.bf16 %v1634, %v1631
      %v1641 = vld [vmem:[%s7] sm:$0xf]
      %v1642 = vld [vmem:[%s7 + $0x4] sm:$0xf]
      %v1643 = vld [vmem:[%s7 + $0x8] sm:$0xf]
      %v1644 = vld [vmem:[%s7 + $0xc] sm:$0xf]
      %v1646 = vsel %vm1161, %v1637, 0
      %vm1648 = vcmask 1043456
      %v1650 = vsel %vm1648, %v1641, 0
      %1652 = vmatprep.subr.bf16.mxu0 0
      %1653 = vmatpush1.bf16.msra.mxu0 %v1650
      %1654 = vmatprep.subr.bf16.mxu0 0
      %1655 = vmatpush1.bf16.msra.mxu0 0
      %1656 = vmatprep.subr.bf16.mxu0 0
      %1657 = vmatpush1.bf16.msra.mxu0 0
      %1658 = vmatprep.subr.bf16.mxu0 0
      %1659 = vmatpush1.bf16.msra.mxu0 0
      %1660 = vmatprep.subr.bf16.mxu0 0
      %1661 = vmatpush1.bf16.msra.mxu0 0
      %1662 = vmatprep.subr.bf16.mxu0 0
      %1663 = vmatpush1.bf16.msra.mxu0 0
      %1664 = vmatprep.subr.bf16.mxu0 0
      %1665 = vmatpush1.bf16.msra.mxu0 0
      %1666 = vmatprep.subr.bf16.mxu0 0
      %1667 = vmatpush1.bf16.msra.mxu0 0
      %1668 = vmatprep.subr.bf16.mxu0 0
      %1669 = vmatpush1.bf16.msra.mxu0 0
      %1670 = vmatprep.subr.bf16.mxu0 0
      %1671 = vmatpush1.bf16.msra.mxu0 0
      %1672 = vmatprep.subr.bf16.mxu0 0
      %1673 = vmatpush1.bf16.msra.mxu0 0
      %1674 = vmatprep.subr.bf16.mxu0 0
      %1675 = vmatpush1.bf16.msra.mxu0 0
      %1676 = vmatprep.subr.bf16.mxu0 0
      %1677 = vmatpush1.bf16.msra.mxu0 0
      %1678 = vmatprep.subr.bf16.mxu0 0
      %1679 = vmatpush1.bf16.msra.mxu0 0
      %1680 = vmatprep.subr.bf16.mxu0 0
      %1681 = vmatpush1.bf16.msra.mxu0 0
      %1682 = vmatprep.subr.bf16.mxu0 0
      %1683 = vmatpush1.bf16.msra.mxu0 0
      %1684 = vmatprep.mubr.bf16.mxu0 0
      %1685 = vmatmul.mubr.bf16.gmra.mrb[0].mxu0 %v1646
      %v1686 = vpop.f32.mrb[0].mxu0
      %v1687 = vadd.f32 0.0, %v1686
      %v1688 = vpop.f32.mrb[0].mxu0
      %v1689 = vpop.f32.mrb[0].mxu0
      %v1690 = vadd.f32 0.0, %v1689
      %v1691 = vpop.f32.mrb[0].mxu0
      %1692 = vdwg.mxu0
      %v1694 = vsel %vm1161, %v1638, 0
      %v1697 = vsel %vm1648, %v1642, 0
      %1699 = vmatprep.subr.bf16.mxu0 0
      %1700 = vmatpush1.bf16.msra.mxu0 %v1697
      %1701 = vmatprep.subr.bf16.mxu0 0
      %1702 = vmatpush1.bf16.msra.mxu0 0
      %1703 = vmatprep.subr.bf16.mxu0 0
      %1704 = vmatpush1.bf16.msra.mxu0 0
      %1705 = vmatprep.subr.bf16.mxu0 0
      %1706 = vmatpush1.bf16.msra.mxu0 0
      %1707 = vmatprep.subr.bf16.mxu0 0
      %1708 = vmatpush1.bf16.msra.mxu0 0
      %1709 = vmatprep.subr.bf16.mxu0 0
      %1710 = vmatpush1.bf16.msra.mxu0 0
      %1711 = vmatprep.subr.bf16.mxu0 0
      %1712 = vmatpush1.bf16.msra.mxu0 0
      %1713 = vmatprep.subr.bf16.mxu0 0
      %1714 = vmatpush1.bf16.msra.mxu0 0
      %1715 = vmatprep.subr.bf16.mxu0 0
      %1716 = vmatpush1.bf16.msra.mxu0 0
      %1717 = vmatprep.subr.bf16.mxu0 0
      %1718 = vmatpush1.bf16.msra.mxu0 0
      %1719 = vmatprep.subr.bf16.mxu0 0
      %1720 = vmatpush1.bf16.msra.mxu0 0
      %1721 = vmatprep.subr.bf16.mxu0 0
      %1722 = vmatpush1.bf16.msra.mxu0 0
      %1723 = vmatprep.subr.bf16.mxu0 0
      %1724 = vmatpush1.bf16.msra.mxu0 0
      %1725 = vmatprep.subr.bf16.mxu0 0
      %1726 = vmatpush1.bf16.msra.mxu0 0
      %1727 = vmatprep.subr.bf16.mxu0 0
      %1728 = vmatpush1.bf16.msra.mxu0 0
      %1729 = vmatprep.subr.bf16.mxu0 0
      %1730 = vmatpush1.bf16.msra.mxu0 0
      %1731 = vmatprep.mubr.bf16.mxu0 0
      %1732 = vmatmul.mubr.bf16.gmra.mrb[0].mxu0 %v1694
      %v1733 = vpop.f32.mrb[0].mxu0
      %v1734 = vadd.f32 0.0, %v1733
      %v1735 = vpop.f32.mrb[0].mxu0
      %v1736 = vpop.f32.mrb[0].mxu0
      %v1737 = vadd.f32 0.0, %v1736
      %v1738 = vpop.f32.mrb[0].mxu0
      %1739 = vdwg.mxu0
      %v1741 = vsel %vm1161, %v1639, 0
      %v1744 = vsel %vm1648, %v1643, 0
      %1746 = vmatprep.subr.bf16.mxu0 0
      %1747 = vmatpush1.bf16.msra.mxu0 %v1744
      %1748 = vmatprep.subr.bf16.mxu0 0
      %1749 = vmatpush1.bf16.msra.mxu0 0
      %1750 = vmatprep.subr.bf16.mxu0 0
      %1751 = vmatpush1.bf16.msra.mxu0 0
      %1752 = vmatprep.subr.bf16.mxu0 0
      %1753 = vmatpush1.bf16.msra.mxu0 0
      %1754 = vmatprep.subr.bf16.mxu0 0
      %1755 = vmatpush1.bf16.msra.mxu0 0
      %1756 = vmatprep.subr.bf16.mxu0 0
      %1757 = vmatpush1.bf16.msra.mxu0 0
      %1758 = vmatprep.subr.bf16.mxu0 0
      %1759 = vmatpush1.bf16.msra.mxu0 0
      %1760 = vmatprep.subr.bf16.mxu0 0
      %1761 = vmatpush1.bf16.msra.mxu0 0
      %1762 = vmatprep.subr.bf16.mxu0 0
      %1763 = vmatpush1.bf16.msra.mxu0 0
      %1764 = vmatprep.subr.bf16.mxu0 0
      %1765 = vmatpush1.bf16.msra.mxu0 0
      %1766 = vmatprep.subr.bf16.mxu0 0
      %1767 = vmatpush1.bf16.msra.mxu0 0
      %1768 = vmatprep.subr.bf16.mxu0 0
      %1769 = vmatpush1.bf16.msra.mxu0 0
      %1770 = vmatprep.subr.bf16.mxu0 0
      %1771 = vmatpush1.bf16.msra.mxu0 0
      %1772 = vmatprep.subr.bf16.mxu0 0
      %1773 = vmatpush1.bf16.msra.mxu0 0
      %1774 = vmatprep.subr.bf16.mxu0 0
      %1775 = vmatpush1.bf16.msra.mxu0 0
      %1776 = vmatprep.subr.bf16.mxu0 0
      %1777 = vmatpush1.bf16.msra.mxu0 0
      %1778 = vmatprep.mubr.bf16.mxu0 0
      %1779 = vmatmul.mubr.bf16.gmra.mrb[0].mxu0 %v1741
      %v1780 = vpop.f32.mrb[0].mxu0
      %v1781 = vadd.f32 0.0, %v1780
      %v1782 = vpop.f32.mrb[0].mxu0
      %v1783 = vpop.f32.mrb[0].mxu0
      %v1784 = vadd.f32 0.0, %v1783
      %v1785 = vpop.f32.mrb[0].mxu0
      %1786 = vdwg.mxu0
      %v1788 = vsel %vm1161, %v1640, 0
      %v1791 = vsel %vm1648, %v1644, 0
      %1793 = vmatprep.subr.bf16.mxu0 0
      %1794 = vmatpush1.bf16.msra.mxu0 %v1791
      %1795 = vmatprep.subr.bf16.mxu0 0
      %1796 = vmatpush1.bf16.msra.mxu0 0
      %1797 = vmatprep.subr.bf16.mxu0 0
      %1798 = vmatpush1.bf16.msra.mxu0 0
      %1799 = vmatprep.subr.bf16.mxu0 0
      %1800 = vmatpush1.bf16.msra.mxu0 0
      %1801 = vmatprep.subr.bf16.mxu0 0
      %1802 = vmatpush1.bf16.msra.mxu0 0
      %1803 = vmatprep.subr.bf16.mxu0 0
      %1804 = vmatpush1.bf16.msra.mxu0 0
      %1805 = vmatprep.subr.bf16.mxu0 0
      %1806 = vmatpush1.bf16.msra.mxu0 0
      %1807 = vmatprep.subr.bf16.mxu0 0
      %1808 = vmatpush1.bf16.msra.mxu0 0
      %1809 = vmatprep.subr.bf16.mxu0 0
      %1810 = vmatpush1.bf16.msra.mxu0 0
      %1811 = vmatprep.subr.bf16.mxu0 0
      %1812 = vmatpush1.bf16.msra.mxu0 0
      %1813 = vmatprep.subr.bf16.mxu0 0
      %1814 = vmatpush1.bf16.msra.mxu0 0
      %1815 = vmatprep.subr.bf16.mxu0 0
      %1816 = vmatpush1.bf16.msra.mxu0 0
      %1817 = vmatprep.subr.bf16.mxu0 0
      %1818 = vmatpush1.bf16.msra.mxu0 0
      %1819 = vmatprep.subr.bf16.mxu0 0
      %1820 = vmatpush1.bf16.msra.mxu0 0
      %1821 = vmatprep.subr.bf16.mxu0 0
      %1822 = vmatpush1.bf16.msra.mxu0 0
      %1823 = vmatprep.subr.bf16.mxu0 0
      %1824 = vmatpush1.bf16.msra.mxu0 0
      %1825 = vmatprep.mubr.bf16.mxu0 0
      %1826 = vmatmul.mubr.bf16.gmra.mrb[0].mxu0 %v1788
      %v1827 = vpop.f32.mrb[0].mxu0
      %v1828 = vadd.f32 0.0, %v1827
      %v1829 = vpop.f32.mrb[0].mxu0
      %v1830 = vpop.f32.mrb[0].mxu0
      %v1831 = vadd.f32 0.0, %v1830
      %v1832 = vpop.f32.mrb[0].mxu0
      %1833 = vdwg.mxu0
      %v1834 = vsel %vm478, %v1687, 0.0
      %v1835 = vsel %vm478, %v1734, 0.0
      %v1836 = vadd.f32 %v1834, %v1835
      %v1837 = vsel %vm478, %v1781, 0.0
      %v1838 = vadd.f32 %v1836, %v1837
      %v1839 = vsel %vm478, %v1828, 0.0
      %v1840 = vadd.f32 %v1838, %v1839
      %v1841 = vsel %vm478, %v1690, 0.0
      %v1842 = vsel %vm478, %v1737, 0.0
      %v1843 = vadd.f32 %v1841, %v1842
      %v1844 = vsel %vm478, %v1784, 0.0
      %v1845 = vadd.f32 %v1843, %v1844
      %v1846 = vsel %vm478, %v1831, 0.0
      %v1847 = vadd.f32 %v1845, %v1846
      %1848 = vmatprep.subr.bf16.mxu0 0
      %1849 = vmatpush1.bf16.msra.mxu0 %v1150
      %1850 = vmatprep.subr.bf16.mxu0 0
      %1851 = vmatpush1.bf16.msra.mxu0 %v1151
      %1852 = vmatprep.subr.bf16.mxu0 0
      %1853 = vmatpush1.bf16.msra.mxu0 0
      %1854 = vmatprep.subr.bf16.mxu0 0
      %1855 = vmatpush1.bf16.msra.mxu0 0
      %1856 = vmatprep.subr.bf16.mxu0 0
      %1857 = vmatpush1.bf16.msra.mxu0 0
      %1858 = vmatprep.subr.bf16.mxu0 0
      %1859 = vmatpush1.bf16.msra.mxu0 0
      %1860 = vmatprep.subr.bf16.mxu0 0
      %1861 = vmatpush1.bf16.msra.mxu0 0
      %1862 = vmatprep.subr.bf16.mxu0 0
      %1863 = vmatpush1.bf16.msra.mxu0 0
      %1864 = vmatprep.subr.bf16.mxu0 0
      %1865 = vmatpush1.bf16.msra.mxu0 0
      %1866 = vmatprep.subr.bf16.mxu0 0
      %1867 = vmatpush1.bf16.msra.mxu0 0
      %1868 = vmatprep.subr.bf16.mxu0 0
      %1869 = vmatpush1.bf16.msra.mxu0 0
      %1870 = vmatprep.subr.bf16.mxu0 0
      %1871 = vmatpush1.bf16.msra.mxu0 0
      %1872 = vmatprep.subr.bf16.mxu0 0
      %1873 = vmatpush1.bf16.msra.mxu0 0
      %1874 = vmatprep.subr.bf16.mxu0 0
      %1875 = vmatpush1.bf16.msra.mxu0 0
      %1876 = vmatprep.subr.bf16.mxu0 0
      %1877 = vmatpush1.bf16.msra.mxu0 0
      %1878 = vmatprep.subr.bf16.mxu0 0
      %1879 = vmatpush1.bf16.msra.mxu0 0
      %1880 = vmatprep.mubr.bf16.mxu0 0
      %1881 = vmatmul.mubr.bf16.gmra.mrb[0].mxu0 %v1106
      %v1882 = vpop.f32.mrb[0].mxu0
      %v1883 = vadd.f32 %v1840, %v1882
      %v1884 = vpop.f32.mrb[0].mxu0
      %v1885 = vpop.f32.mrb[0].mxu0
      %v1886 = vadd.f32 %v1847, %v1885
      %v1887 = vpop.f32.mrb[0].mxu0
      %1888 = vdwg.mxu0
      %v1889 = vld [vmem:[%s8] sm:$0x1]
      %v1891 = vlaneseq
      %v1892 = vshrl.u32 %v1891, 7
      %v1893 = vsub.s32 0, %v1892
      %v1894 = vrot.slane %v1889, %v1893
      %v1896 = vadd.f32 %v1883, %v1894
      %v1897 = vadd.f32 %v1886, %v1894
      %v1898 = vld [vmem:[%s9] sm:$0x3]
      %v1899 = vsel %vm478, %v1896, 0.0
      %1900 = vadd.xlane.f32.xlu0 %v1899
      %v1901 = vpop.xlane.xlu0 %1900
      %v1902 = vsel %vm478, %v1897, 0.0
      %1903 = vadd.xlane.f32.xlu0 %v1902
      %v1904 = vpop.xlane.xlu0 %1903
      %v1905 = vmul.f32 %v1901, %v491
      %v1906 = vmul.f32 %v1904, %v491
      %v1907 = vsub.f32 %v1896, %v1905
      %v1908 = vsub.f32 %v1897, %v1906
      %v1909 = vmul.f32 %v1907, %v1907
      %v1910 = vmul.f32 %v1908, %v1908
      %v1911 = vsel %vm478, %v1909, 0.0
      %1912 = vadd.xlane.f32.xlu0 %v1911
      %v1913 = vpop.xlane.xlu0 %1912
      %v1914 = vsel %vm478, %v1910, 0.0
      %1915 = vadd.xlane.f32.xlu0 %v1914
      %v1916 = vpop.xlane.xlu0 %1915
      %v1917 = vmul.f32 %v1913, %v491
      %v1918 = vmul.f32 %v1916, %v491
      %v1919 = vadd.f32 %v1917, 1e-05
      %v1920 = vadd.f32 %v1918, 1e-05
      %v1921 = vrsqrt.pop %v1919
      %v1922 = vrsqrt.pop %v1920
      %v1923 = vmul.f32 %v1907, %v1921
      %v1924 = vmul.f32 %v1908, %v1922
      %v1925 = vlaneseq
      %v1926 = vshrl.u32 %v1925, 7
      %v1927 = vsub.s32 0, %v1926
      %v1928 = vrot.slane %v1898, %v1927
      %v1929 = vmul.f32 %v1923, %v1928
      %v1930 = vmul.f32 %v1924, %v1928
      %v1931 = vlaneseq
      %v1932 = vshrl.u32 %v1931, 7
      %v1933 = vsub.s32 1, %v1932
      %v1934 = vrot.slane %v1898, %v1933
      %v1935 = vadd.f32 %v1929, %v1934
      %v1936 = vadd.f32 %v1930, %v1934
      %v1937 = vpack.c.bf16 %v1936, %v1935
      %v1938 = vld [vmem:[%s10] sm:$0xf]
      %v1939 = vld [vmem:[%s10 + $0x4] sm:$0xf]
      %v1940 = vld [vmem:[%s10 + $0x8] sm:$0xf]
      %v1941 = vld [vmem:[%s10 + $0xc] sm:$0xf]
      %v1942 = vld [vmem:[%s11] sm:$0x1]
      %v1944 = vlaneseq
      %v1945 = vshrl.u32 %v1944, 7
      %v1946 = vsub.s32 0, %v1945
      %v1947 = vrot.slane %v1942, %v1946
      %v1953 = vunpack.c.l.b16 %v1938
      %v1954 = vunpack.c.l.b16 %v1939
      %v1955 = vunpack.c.l.b16 %v1940
      %v1956 = vunpack.c.l.b16 %v1941
      %v1957 = vpack.c.b16 %v1954, %v1953
      %v1958 = vpack.c.b16 %v1956, %v1955
      %v1962 = vsel %vm478, %v1937, 0
      %1964 = vmatprep.subr.bf16.mxu0 0
      %1965 = vmatpush1.bf16.msra.mxu0 %v1957
      %1966 = vmatprep.subr.bf16.mxu0 0
      %1967 = vmatpush1.bf16.msra.mxu0 %v1958
      %1968 = vmatprep.subr.bf16.mxu0 0
      %1969 = vmatpush1.bf16.msra.mxu0 0
      %1970 = vmatprep.subr.bf16.mxu0 0
      %1971 = vmatpush1.bf16.msra.mxu0 0
      %1972 = vmatprep.subr.bf16.mxu0 0
      %1973 = vmatpush1.bf16.msra.mxu0 0
      %1974 = vmatprep.subr.bf16.mxu0 0
      %1975 = vmatpush1.bf16.msra.mxu0 0
      %1976 = vmatprep.subr.bf16.mxu0 0
      %1977 = vmatpush1.bf16.msra.mxu0 0
      %1978 = vmatprep.subr.bf16.mxu0 0
      %1979 = vmatpush1.bf16.msra.mxu0 0
      %1980 = vmatprep.subr.bf16.mxu0 0
      %1981 = vmatpush1.bf16.msra.mxu0 0
      %1982 = vmatprep.subr.bf16.mxu0 0
      %1983 = vmatpush1.bf16.msra.mxu0 0
      %1984 = vmatprep.subr.bf16.mxu0 0
      %1985 = vmatpush1.bf16.msra.mxu0 0
      %1986 = vmatprep.subr.bf16.mxu0 0
      %1987 = vmatpush1.bf16.msra.mxu0 0
      %1988 = vmatprep.subr.bf16.mxu0 0
      %1989 = vmatpush1.bf16.msra.mxu0 0
      %1990 = vmatprep.subr.bf16.mxu0 0
      %1991 = vmatpush1.bf16.msra.mxu0 0
      %1992 = vmatprep.subr.bf16.mxu0 0
      %1993 = vmatpush1.bf16.msra.mxu0 0
      %1994 = vmatprep.subr.bf16.mxu0 0
      %1995 = vmatpush1.bf16.msra.mxu0 0
      %1996 = vmatprep.mubr.bf16.mxu0 0
      %1997 = vmatmul.mubr.bf16.gmra.mrb[0].mxu0 %v1962
      %v1998 = vpop.f32.mrb[0].mxu0
      %v1999 = vadd.f32 %v1947, %v1998
      %v2000 = vpop.f32.mrb[0].mxu0
      %v2001 = vpop.f32.mrb[0].mxu0
      %v2002 = vadd.f32 %v1947, %v2001
      %v2003 = vpop.f32.mrb[0].mxu0
      %2004 = vdwg.mxu0
      %v2005 = vmul.f32 %v1999, %v1999
      %v2006 = vmul.f32 %v2002, %v2002
      %v2007 = vmul.f32 %v1999, %v2005
      %v2008 = vmul.f32 %v2002, %v2006
      %v2009 = vmul.f32 %v2007, 0.044715
      %v2010 = vmul.f32 %v2008, 0.044715
      %v2011 = vadd.f32 %v1999, %v2009
      %v2012 = vadd.f32 %v2002, %v2010
      %v2013 = vmul.f32 %v2011, 0.7978846
      %v2014 = vmul.f32 %v2012, 0.7978846
      %v2015 = vtanh.pop %v2013
      %v2016 = vtanh.pop %v2014
      %v2017 = vadd.f32 %v2015, 1.0
      %v2018 = vadd.f32 %v2016, 1.0
      %v2019 = vmul.f32 %v2017, 0.5
      %v2020 = vmul.f32 %v2018, 0.5
      %v2021 = vmul.f32 %v1999, %v2019
      %v2022 = vmul.f32 %v2002, %v2020
      %v2023 = vpack.c.bf16 %v2022, %v2021
      %v2024 = vld [vmem:[%s12] sm:$0xf]
      %v2025 = vld [vmem:[%s12 + $0x4] sm:$0xf]
      %v2026 = vld [vmem:[%s12 + $0x8] sm:$0xf]
      %v2027 = vld [vmem:[%s12 + $0xc] sm:$0xf]
      %v2028 = vld [vmem:[%s12 + $0x10] sm:$0xf]
      %v2029 = vld [vmem:[%s12 + $0x14] sm:$0xf]
      %v2030 = vld [vmem:[%s12 + $0x18] sm:$0xf]
      %v2031 = vld [vmem:[%s12 + $0x1c] sm:$0xf]
      %v2032 = vld [vmem:[%s12 + $0x20] sm:$0xf]
      %v2033 = vld [vmem:[%s12 + $0x24] sm:$0xf]
      %v2034 = vld [vmem:[%s12 + $0x28] sm:$0xf]
      %v2035 = vld [vmem:[%s12 + $0x2c] sm:$0xf]
      %v2036 = vld [vmem:[%s12 + $0x30] sm:$0xf]
      %v2037 = vld [vmem:[%s12 + $0x34] sm:$0xf]
      %v2038 = vld [vmem:[%s12 + $0x38] sm:$0xf]
      %v2039 = vld [vmem:[%s12 + $0x3c] sm:$0xf]
      %v2040 = vld [vmem:[%s13] sm:$0x1]
      %v2042 = vlaneseq
      %v2043 = vshrl.u32 %v2042, 7
      %v2044 = vsub.s32 0, %v2043
      %v2045 = vrot.slane %v2040, %v2044
      %v2063 = vunpack.c.l.b16 %v2024
      %v2064 = vunpack.c.l.b16 %v2025
      %v2065 = vunpack.c.l.b16 %v2026
      %v2066 = vunpack.c.l.b16 %v2027
      %v2067 = vunpack.c.l.b16 %v2028
      %v2068 = vunpack.c.l.b16 %v2029
      %v2069 = vunpack.c.l.b16 %v2030
      %v2070 = vunpack.c.l.b16 %v2031
      %v2071 = vunpack.c.l.b16 %v2032
      %v2072 = vunpack.c.l.b16 %v2033
      %v2073 = vunpack.c.l.b16 %v2034
      %v2074 = vunpack.c.l.b16 %v2035
      %v2075 = vunpack.c.l.b16 %v2036
      %v2076 = vunpack.c.l.b16 %v2037
      %v2077 = vunpack.c.l.b16 %v2038
      %v2078 = vunpack.c.l.b16 %v2039
      %v2079 = vpack.c.b16 %v2064, %v2063
      %v2080 = vpack.c.b16 %v2066, %v2065
      %v2081 = vpack.c.b16 %v2068, %v2067
      %v2082 = vpack.c.b16 %v2070, %v2069
      %v2083 = vpack.c.b16 %v2072, %v2071
      %v2084 = vpack.c.b16 %v2074, %v2073
      %v2085 = vpack.c.b16 %v2076, %v2075
      %v2086 = vpack.c.b16 %v2078, %v2077
      %2095 = vmatprep.subr.bf16.mxu0 0
      %2096 = vmatpush1.bf16.msra.mxu0 %v2079
      %2097 = vmatprep.subr.bf16.mxu0 0
      %2098 = vmatpush1.bf16.msra.mxu0 %v2080
      %2099 = vmatprep.subr.bf16.mxu0 0
      %2100 = vmatpush1.bf16.msra.mxu0 %v2081
      %2101 = vmatprep.subr.bf16.mxu0 0
      %2102 = vmatpush1.bf16.msra.mxu0 %v2082
      %2103 = vmatprep.subr.bf16.mxu0 0
      %2104 = vmatpush1.bf16.msra.mxu0 %v2083
      %2105 = vmatprep.subr.bf16.mxu0 0
      %2106 = vmatpush1.bf16.msra.mxu0 %v2084
      %2107 = vmatprep.subr.bf16.mxu0 0
      %2108 = vmatpush1.bf16.msra.mxu0 %v2085
      %2109 = vmatprep.subr.bf16.mxu0 0
      %2110 = vmatpush1.bf16.msra.mxu0 %v2086
      %2111 = vmatprep.subr.bf16.mxu0 0
      %2112 = vmatpush1.bf16.msra.mxu0 0
      %2113 = vmatprep.subr.bf16.mxu0 0
      %2114 = vmatpush1.bf16.msra.mxu0 0
      %2115 = vmatprep.subr.bf16.mxu0 0
      %2116 = vmatpush1.bf16.msra.mxu0 0
      %2117 = vmatprep.subr.bf16.mxu0 0
      %2118 = vmatpush1.bf16.msra.mxu0 0
      %2119 = vmatprep.subr.bf16.mxu0 0
      %2120 = vmatpush1.bf16.msra.mxu0 0
      %2121 = vmatprep.subr.bf16.mxu0 0
      %2122 = vmatpush1.bf16.msra.mxu0 0
      %2123 = vmatprep.subr.bf16.mxu0 0
      %2124 = vmatpush1.bf16.msra.mxu0 0
      %2125 = vmatprep.subr.bf16.mxu0 0
      %2126 = vmatpush1.bf16.msra.mxu0 0
      %2127 = vmatprep.mubr.bf16.mxu0 0
      %2128 = vmatmul.mubr.bf16.gmra.mrb[0].mxu0 %v2023
      %v2129 = vpop.f32.mrb[0].mxu0
      %v2130 = vadd.f32 %v2045, %v2129
      %v2131 = vpop.f32.mrb[0].mxu0
      %v2132 = vpop.f32.mrb[0].mxu0
      %v2133 = vadd.f32 %v2045, %v2132
      %v2134 = vpop.f32.mrb[0].mxu0
      %2135 = vdwg.mxu0
      %v2136 = vadd.f32 %v1896, %v2130
      %v2137 = vadd.f32 %v1897, %v2133
      %v2138 = vpack.c.bf16 %v2137, %v2136
      %v2140 = vunpack.c.l.b16 %v2138
      %v2141 = vunpack.c.h.b16 %v2138
      %v2142 = vpack.c.b16 %v2140, %v2140
      %v2143 = vpack.c.b16 %v2141, %v2141
      %vm2146 = vcmask 257024
      %2147 = vst.msk [vmem:[%s467] sm:$0xf] %vm2146, %v2142
      %2148 = vst.msk [vmem:[%s467 + $0x4] sm:$0xf] %vm2146, %v2143
      %p2149 = scmp.lt.s32.totalorder %s25, 1
      %s2150 = scalar_select %p2149, %s25, 1
      %s2151 = smul.addr %s2150, 2
      %s2152 = smul.addr %s2151, 4
      %s2153 = scalar_lea.vmem %s14, %s2152
      // Predicated region
      $region77: #{_lambda_.7} parent=75 // pred_check
        %p2154 = pneg %p342
      $region78: #{_lambda_.7} parent=75 // pred_check_branch
        %2156 = sbr.rel (%p2154) target = $region80
      $region79: #{_lambda_.7} parent=75 // pred_region
        _
      $region80: #{_lambda_.7} parent=75 // pred_fallthru
        _
    $region76: #{_lambda_.7} parent=5 // pred_fallthru
      _
    %p2157 = scmp.le.s32.totalorder 2, %s20
    // Predicated region
    $region81: #{_lambda_.7} parent=5 // pred_check
      %p2158 = pneg %p2157
    $region82: #{_lambda_.7} parent=5 // pred_check_branch
      %2160 = sbr.rel (%p2158) target = $region84
    $region83: #{_lambda_.7} parent=5 // pred_region
      %s2161 = ssub.s32 %s20, 2
      // Predicated region
      $region85: #{_lambda_.7} parent=83 // pred_check
        %p2162 = pneg %p348
      $region86: #{_lambda_.7} parent=83 // pred_check_branch
        %2164 = sbr.rel (%p2162) target = $region88
      $region87: #{_lambda_.7} parent=83 // pred_region
        %p2165 = scmp.lt.s32.totalorder %s26, 1
        %s2166 = scalar_select %p2165, %s26, 1
        %s2167 = smul.addr %s2166, 2
        %s2168 = smul.addr %s2167, 4
        %s2169 = scalar_lea.vmem %s14, %s2168
      $region88: #{_lambda_.7} parent=83 // pred_fallthru
        _
    $region84: #{_lambda_.7} parent=5 // pred_fallthru
      _
  $region6: #{_lambda_.7} parent=0 // loop_footer
    %s24 = sadd.s32 1, %s20
  $region7: #{_lambda_.7} parent=0 // loop_footer_branch
    %19 = sbr.rel target = $region3
  $region8: #{_lambda_.7} parent=0 // loop_exit
    _

// kernel: _lambda_.6
$region0: #{_lambda_.6}
  #allocation0 [shape = 'u32[]', space=smem, size = 0x4, offset = 0x4, fixed_abs, tag = 'smem constant byte address 0x4 - core index']
  #allocation1 [shape = 'u32[144,128]{1,0:T(1,128)}', space=vmem, size = 0x12000, scoped, tag = 'internal scratch']
  %s0 = inlined_call_operand.vmem [shape: bf16[2,64,32], index: 0, kind: input, shape index: {}]
  %s1 = inlined_call_operand.vmem [shape: f32[2,32], index: 1, kind: input, shape index: {}, may-alias: {1,9}]
  %s2 = inlined_call_operand.vmem [shape: f32[3,3,32], index: 2, kind: input, shape index: {}]
  %s3 = inlined_call_operand.vmem [shape: f32[3,32], index: 3, kind: input, shape index: {}]
  %s4 = inlined_call_operand.vmem [shape: f32[3,32], index: 4, kind: input, shape index: {}]
  %s5 = inlined_call_operand.vmem [shape: bf16[96,96], index: 5, kind: input, shape index: {}]
  %s6 = inlined_call_operand.vmem [shape: f32[1,96], index: 6, kind: input, shape index: {}]
  %s7 = inlined_call_operand.vmem [shape: bf16[4,8,32], index: 7, kind: input, shape index: {}]
  %s8 = inlined_call_operand.vmem [shape: f32[1,32], index: 8, kind: input, shape index: {}, may-alias: {8,13}]
  %s9 = inlined_call_operand.vmem [shape: f32[2,32], index: 9, kind: input, shape index: {}, may-alias: {1,9}]
  %s10 = inlined_call_operand.vmem [shape: bf16[32,128], index: 10, kind: input, shape index: {}]
  %s11 = inlined_call_operand.vmem [shape: f32[1,128], index: 11, kind: input, shape index: {}]
  %s12 = inlined_call_operand.vmem [shape: bf16[128,32], index: 12, kind: input, shape index: {}]
  %s13 = inlined_call_operand.vmem [shape: f32[1,32], index: 13, kind: input, shape index: {}, may-alias: {8,13}]
  %s14 = inlined_call_operand.vmem [shape: bf16[2,32,32], index: 14, kind: output, shape index: {}]
  %s15 = sld [smem:[#allocation0]]
  $region89: #{_lambda_.6} parent=0
    _
  %s17 = ssub.s32 1, %s15
  %s18 = scalar_select 0, %s17, %s15
  loop: start=0, step=1, limit=4
  $region2: #{_lambda_.6} parent=0 // loop_pre_header
    _
  $region3: #{_lambda_.6} parent=0 // loop_header
    %s20 = sphi 0, %s24
    %p21 = scmp.ge.s32.totalorder %s20, 4
    %s30 = sphi 0, %s32
    %s33 = sphi 0, %s30
    %s34 = sphi 0, %s33
    %s50 = sphi 0, %s34
    %s54 = sphi 0, %s54
    %s56 = sphi 0, %s54
    %s57 = sphi 0, %s56
    %s71 = sphi 0, %s57
    %s75 = sphi 0, %s75
    %s77 = sphi 0, %s75
    %s78 = sphi 0, %s77
    %s92 = sphi 0, %s78
    %s96 = sphi 0, %s96
    %s98 = sphi 0, %s96
    %s99 = sphi 0, %s98
    %s113 = sphi 0, %s99
    %s117 = sphi 0, %s117
    %s119 = sphi 0, %s117
    %s120 = sphi 0, %s119
    %s134 = sphi 0, %s120
    %s138 = sphi 0, %s138
    %s140 = sphi 0, %s138
    %s141 = sphi 0, %s140
    %s155 = sphi 0, %s141
    %s159 = sphi 0, %s159
    %s161 = sphi 0, %s159
    %s162 = sphi 0, %s161
    %s176 = sphi 0, %s162
    %s180 = sphi 0, %s180
    %s182 = sphi 0, %s180
    %s183 = sphi 0, %s182
    %s197 = sphi 0, %s183
    %s201 = sphi 0, %s201
    %s203 = sphi 0, %s201
    %s204 = sphi 0, %s203
    %s218 = sphi 0, %s204
    %s222 = sphi 0, %s222
    %s224 = sphi 0, %s222
    %s225 = sphi 0, %s224
    %s239 = sphi 0, %s225
    %s243 = sphi 0, %s243
    %s245 = sphi 0, %s243
    %s246 = sphi 0, %s245
    %s260 = sphi 0, %s246
    %s264 = sphi 0, %s264
    %s266 = sphi 0, %s264
    %s267 = sphi 0, %s266
    %s281 = sphi 0, %s267
    %s285 = sphi 0, %s285
    %s287 = sphi 0, %s285
    %s288 = sphi 0, %s287
    %s302 = sphi 0, %s288
    %s306 = sphi 0, %s306
    %s308 = sphi 0, %s306
    %s309 = sphi 0, %s308
    %s323 = sphi 0, %s309
    %s329 = sphi 0, %s331
    %s332 = sphi 0, %s329
    %s333 = sphi 0, %s332
    %s349 = sphi 0, %s333
  $region4: #{_lambda_.6} parent=0 // loop_header_branch
    %23 = sbr.rel (%p21) target = $region8
  $region5: #{_lambda_.6} parent=0 // loop_body
    %s25 = ssub.s32 %s20, 1
    %s26 = ssub.s32 %s20, 2
    %s27 = sadd.s32 %s20, 1
    %s28 = ssub.s32 %s20, %s27
    %p29 = scmp.eq.s32.totalorder %s28, 0
    %s31 = sadd.s32 %s30, 1
    %s32 = scalar_select %p29, %s30, %s31
    %p35 = pneg %p29
    %p36 = scmp.eq.s32.totalorder %s20, 1
    %p37 = por %p35, %p36
    %p38 = scmp.ne.s32.totalorder %s30, %s33
    %p39 = scmp.eq.s32.totalorder %s20, 0
    %p40 = por %p38, %p39
    %p41 = scmp.ne.s32.totalorder %s30, %s33
    %p42 = scmp.eq.s32.totalorder %s25, 1
    %p43 = por %p41, %p42
    %p44 = scmp.ne.s32.totalorder %s33, %s34
    %p45 = scmp.eq.s32.totalorder %s25, 0
    %p46 = por %p44, %p45
    %p47 = scmp.ne.s32.totalorder %s33, %s34
    %p48 = scmp.eq.s32.totalorder %s26, 1
    %p49 = por %p47, %p48
    %p51 = scmp.ne.s32.totalorder %s34, %s50
    %p52 = scmp.eq.s32.totalorder %s26, 0
    %p53 = por %p51, %p52
    %s55 = sadd.s32 %s54, 1
    %p58 = scmp.eq.s32.totalorder %s20, 1
    %p59 = scmp.ne.s32.totalorder %s54, %s56
    %p60 = scmp.eq.s32.totalorder %s20, 0
    %p61 = por %p59, %p60
    %p62 = scmp.ne.s32.totalorder %s54, %s56
    %p63 = scmp.eq.s32.totalorder %s25, 1
    %p64 = por %p62, %p63
    %p65 = scmp.ne.s32.totalorder %s56, %s57
    %p66 = scmp.eq.s32.totalorder %s25, 0
    %p67 = por %p65, %p66
    %p68 = scmp.ne.s32.totalorder %s56, %s57
    %p69 = scmp.eq.s32.totalorder %s26, 1
    %p70 = por %p68, %p69
    %p72 = scmp.ne.s32.totalorder %s57, %s71
    %p73 = scmp.eq.s32.totalorder %s26, 0
    %p74 = por %p72, %p73
    %s76 = sadd.s32 %s75, 1
    %p79 = scmp.eq.s32.totalorder %s20, 1
    %p80 = scmp.ne.s32.totalorder %s75, %s77
    %p81 = scmp.eq.s32.totalorder %s20, 0
    %p82 = por %p80, %p81
    %p83 = scmp.ne.s32.totalorder %s75, %s77
    %p84 = scmp.eq.s32.totalorder %s25, 1
    %p85 = por %p83, %p84
    %p86 = scmp.ne.s32.totalorder %s77, %s78
    %p87 = scmp.eq.s32.totalorder %s25, 0
    %p88 = por %p86, %p87
    %p89 = scmp.ne.s32.totalorder %s77, %s78
    %p90 = scmp.eq.s32.totalorder %s26, 1
    %p91 = por %p89, %p90
    %p93 = scmp.ne.s32.totalorder %s78, %s92
    %p94 = scmp.eq.s32.totalorder %s26, 0
    %p95 = por %p93, %p94
    %s97 = sadd.s32 %s96, 1
    %p100 = scmp.eq.s32.totalorder %s20, 1
    %p101 = scmp.ne.s32.totalorder %s96, %s98
    %p102 = scmp.eq.s32.totalorder %s20, 0
    %p103 = por %p101, %p102
    %p104 = scmp.ne.s32.totalorder %s96, %s98
    %p105 = scmp.eq.s32.totalorder %s25, 1
    %p106 = por %p104, %p105
    %p107 = scmp.ne.s32.totalorder %s98, %s99
    %p108 = scmp.eq.s32.totalorder %s25, 0
    %p109 = por %p107, %p108
    %p110 = scmp.ne.s32.totalorder %s98, %s99
    %p111 = scmp.eq.s32.totalorder %s26, 1
    %p112 = por %p110, %p111
    %p114 = scmp.ne.s32.totalorder %s99, %s113
    %p115 = scmp.eq.s32.totalorder %s26, 0
    %p116 = por %p114, %p115
    %s118 = sadd.s32 %s117, 1
    %p121 = scmp.eq.s32.totalorder %s20, 1
    %p122 = scmp.ne.s32.totalorder %s117, %s119
    %p123 = scmp.eq.s32.totalorder %s20, 0
    %p124 = por %p122, %p123
    %p125 = scmp.ne.s32.totalorder %s117, %s119
    %p126 = scmp.eq.s32.totalorder %s25, 1
    %p127 = por %p125, %p126
    %p128 = scmp.ne.s32.totalorder %s119, %s120
    %p129 = scmp.eq.s32.totalorder %s25, 0
    %p130 = por %p128, %p129
    %p131 = scmp.ne.s32.totalorder %s119, %s120
    %p132 = scmp.eq.s32.totalorder %s26, 1
    %p133 = por %p131, %p132
    %p135 = scmp.ne.s32.totalorder %s120, %s134
    %p136 = scmp.eq.s32.totalorder %s26, 0
    %p137 = por %p135, %p136
    %s139 = sadd.s32 %s138, 1
    %p142 = scmp.eq.s32.totalorder %s20, 1
    %p143 = scmp.ne.s32.totalorder %s138, %s140
    %p144 = scmp.eq.s32.totalorder %s20, 0
    %p145 = por %p143, %p144
    %p146 = scmp.ne.s32.totalorder %s138, %s140
    %p147 = scmp.eq.s32.totalorder %s25, 1
    %p148 = por %p146, %p147
    %p149 = scmp.ne.s32.totalorder %s140, %s141
    %p150 = scmp.eq.s32.totalorder %s25, 0
    %p151 = por %p149, %p150
    %p152 = scmp.ne.s32.totalorder %s140, %s141
    %p153 = scmp.eq.s32.totalorder %s26, 1
    %p154 = por %p152, %p153
    %p156 = scmp.ne.s32.totalorder %s141, %s155
    %p157 = scmp.eq.s32.totalorder %s26, 0
    %p158 = por %p156, %p157
    %s160 = sadd.s32 %s159, 1
    %p163 = scmp.eq.s32.totalorder %s20, 1
    %p164 = scmp.ne.s32.totalorder %s159, %s161
    %p165 = scmp.eq.s32.totalorder %s20, 0
    %p166 = por %p164, %p165
    %p167 = scmp.ne.s32.totalorder %s159, %s161
    %p168 = scmp.eq.s32.totalorder %s25, 1
    %p169 = por %p167, %p168
    %p170 = scmp.ne.s32.totalorder %s161, %s162
    %p171 = scmp.eq.s32.totalorder %s25, 0
    %p172 = por %p170, %p171
    %p173 = scmp.ne.s32.totalorder %s161, %s162
    %p174 = scmp.eq.s32.totalorder %s26, 1
    %p175 = por %p173, %p174
    %p177 = scmp.ne.s32.totalorder %s162, %s176
    %p178 = scmp.eq.s32.totalorder %s26, 0
    %p179 = por %p177, %p178
    %s181 = sadd.s32 %s180, 1
    %p184 = scmp.eq.s32.totalorder %s20, 1
    %p185 = scmp.ne.s32.totalorder %s180, %s182
    %p186 = scmp.eq.s32.totalorder %s20, 0
    %p187 = por %p185, %p186
    %p188 = scmp.ne.s32.totalorder %s180, %s182
    %p189 = scmp.eq.s32.totalorder %s25, 1
    %p190 = por %p188, %p189
    %p191 = scmp.ne.s32.totalorder %s182, %s183
    %p192 = scmp.eq.s32.totalorder %s25, 0
    %p193 = por %p191, %p192
    %p194 = scmp.ne.s32.totalorder %s182, %s183
    %p195 = scmp.eq.s32.totalorder %s26, 1
    %p196 = por %p194, %p195
    %p198 = scmp.ne.s32.totalorder %s183, %s197
    %p199 = scmp.eq.s32.totalorder %s26, 0
    %p200 = por %p198, %p199
    %s202 = sadd.s32 %s201, 1
    %p205 = scmp.eq.s32.totalorder %s20, 1
    %p206 = scmp.ne.s32.totalorder %s201, %s203
    %p207 = scmp.eq.s32.totalorder %s20, 0
    %p208 = por %p206, %p207
    %p209 = scmp.ne.s32.totalorder %s201, %s203
    %p210 = scmp.eq.s32.totalorder %s25, 1
    %p211 = por %p209, %p210
    %p212 = scmp.ne.s32.totalorder %s203, %s204
    %p213 = scmp.eq.s32.totalorder %s25, 0
    %p214 = por %p212, %p213
    %p215 = scmp.ne.s32.totalorder %s203, %s204
    %p216 = scmp.eq.s32.totalorder %s26, 1
    %p217 = por %p215, %p216
    %p219 = scmp.ne.s32.totalorder %s204, %s218
    %p220 = scmp.eq.s32.totalorder %s26, 0
    %p221 = por %p219, %p220
    %s223 = sadd.s32 %s222, 1
    %p226 = scmp.eq.s32.totalorder %s20, 1
    %p227 = scmp.ne.s32.totalorder %s222, %s224
    %p228 = scmp.eq.s32.totalorder %s20, 0
    %p229 = por %p227, %p228
    %p230 = scmp.ne.s32.totalorder %s222, %s224
    %p231 = scmp.eq.s32.totalorder %s25, 1
    %p232 = por %p230, %p231
    %p233 = scmp.ne.s32.totalorder %s224, %s225
    %p234 = scmp.eq.s32.totalorder %s25, 0
    %p235 = por %p233, %p234
    %p236 = scmp.ne.s32.totalorder %s224, %s225
    %p237 = scmp.eq.s32.totalorder %s26, 1
    %p238 = por %p236, %p237
    %p240 = scmp.ne.s32.totalorder %s225, %s239
    %p241 = scmp.eq.s32.totalorder %s26, 0
    %p242 = por %p240, %p241
    %s244 = sadd.s32 %s243, 1
    %p247 = scmp.eq.s32.totalorder %s20, 1
    %p248 = scmp.ne.s32.totalorder %s243, %s245
    %p249 = scmp.eq.s32.totalorder %s20, 0
    %p250 = por %p248, %p249
    %p251 = scmp.ne.s32.totalorder %s243, %s245
    %p252 = scmp.eq.s32.totalorder %s25, 1
    %p253 = por %p251, %p252
    %p254 = scmp.ne.s32.totalorder %s245, %s246
    %p255 = scmp.eq.s32.totalorder %s25, 0
    %p256 = por %p254, %p255
    %p257 = scmp.ne.s32.totalorder %s245, %s246
    %p258 = scmp.eq.s32.totalorder %s26, 1
    %p259 = por %p257, %p258
    %p261 = scmp.ne.s32.totalorder %s246, %s260
    %p262 = scmp.eq.s32.totalorder %s26, 0
    %p263 = por %p261, %p262
    %s265 = sadd.s32 %s264, 1
    %p268 = scmp.eq.s32.totalorder %s20, 1
    %p269 = scmp.ne.s32.totalorder %s264, %s266
    %p270 = scmp.eq.s32.totalorder %s20, 0
    %p271 = por %p269, %p270
    %p272 = scmp.ne.s32.totalorder %s264, %s266
    %p273 = scmp.eq.s32.totalorder %s25, 1
    %p274 = por %p272, %p273
    %p275 = scmp.ne.s32.totalorder %s266, %s267
    %p276 = scmp.eq.s32.totalorder %s25, 0
    %p277 = por %p275, %p276
    %p278 = scmp.ne.s32.totalorder %s266, %s267
    %p279 = scmp.eq.s32.totalorder %s26, 1
    %p280 = por %p278, %p279
    %p282 = scmp.ne.s32.totalorder %s267, %s281
    %p283 = scmp.eq.s32.totalorder %s26, 0
    %p284 = por %p282, %p283
    %s286 = sadd.s32 %s285, 1
    %p289 = scmp.eq.s32.totalorder %s20, 1
    %p290 = scmp.ne.s32.totalorder %s285, %s287
    %p291 = scmp.eq.s32.totalorder %s20, 0
    %p292 = por %p290, %p291
    %p293 = scmp.ne.s32.totalorder %s285, %s287
    %p294 = scmp.eq.s32.totalorder %s25, 1
    %p295 = por %p293, %p294
    %p296 = scmp.ne.s32.totalorder %s287, %s288
    %p297 = scmp.eq.s32.totalorder %s25, 0
    %p298 = por %p296, %p297
    %p299 = scmp.ne.s32.totalorder %s287, %s288
    %p300 = scmp.eq.s32.totalorder %s26, 1
    %p301 = por %p299, %p300
    %p303 = scmp.ne.s32.totalorder %s288, %s302
    %p304 = scmp.eq.s32.totalorder %s26, 0
    %p305 = por %p303, %p304
    %s307 = sadd.s32 %s306, 1
    %p310 = scmp.eq.s32.totalorder %s20, 1
    %p311 = scmp.ne.s32.totalorder %s306, %s308
    %p312 = scmp.eq.s32.totalorder %s20, 0
    %p313 = por %p311, %p312
    %p314 = scmp.ne.s32.totalorder %s306, %s308
    %p315 = scmp.eq.s32.totalorder %s25, 1
    %p316 = por %p314, %p315
    %p317 = scmp.ne.s32.totalorder %s308, %s309
    %p318 = scmp.eq.s32.totalorder %s25, 0
    %p319 = por %p317, %p318
    %p320 = scmp.ne.s32.totalorder %s308, %s309
    %p321 = scmp.eq.s32.totalorder %s26, 1
    %p322 = por %p320, %p321
    %p324 = scmp.ne.s32.totalorder %s309, %s323
    %p325 = scmp.eq.s32.totalorder %s26, 0
    %p326 = por %p324, %p325
    %s327 = ssub.s32 %s20, %s27
    %p328 = scmp.eq.s32.totalorder %s327, 0
    %s330 = sadd.s32 %s329, 1
    %s331 = scalar_select %p328, %s329, %s330
    %p334 = pneg %p328
    %p335 = scmp.eq.s32.totalorder %s20, 1
    %p336 = por %p334, %p335
    %p337 = scmp.ne.s32.totalorder %s329, %s332
    %p338 = scmp.eq.s32.totalorder %s20, 0
    %p339 = por %p337, %p338
    %p340 = scmp.ne.s32.totalorder %s329, %s332
    %p341 = scmp.eq.s32.totalorder %s25, 1
    %p342 = por %p340, %p341
    %p343 = scmp.ne.s32.totalorder %s332, %s333
    %p344 = scmp.eq.s32.totalorder %s25, 0
    %p345 = por %p343, %p344
    %p346 = scmp.ne.s32.totalorder %s332, %s333
    %p347 = scmp.eq.s32.totalorder %s26, 1
    %p348 = por %p346, %p347
    %p350 = scmp.ne.s32.totalorder %s333, %s349
    %p351 = scmp.eq.s32.totalorder %s26, 0
    %p352 = por %p350, %p351
    %p353 = scmp.le.s32.totalorder 1, %s20
    %p354 = scmp.lt.s32.totalorder %s20, 3
    %p355 = pnand %p353, %p354
    %p356 = pneg %p355
    // Predicated region
    $region9: #{_lambda_.6} parent=5 // pred_check
      _
    $region10: #{_lambda_.6} parent=5 // pred_check_branch
      %358 = sbr.rel (%p355) target = $region12
    $region11: #{_lambda_.6} parent=5 // pred_region
      %s359 = ssub.s32 %s20, 1
      // Predicated region
      $region13: #{_lambda_.6} parent=11 // pred_check
        %p360 = pneg %p67
      $region14: #{_lambda_.6} parent=11 // pred_check_branch
        %362 = sbr.rel (%p360) target = $region16
      $region15: #{_lambda_.6} parent=11 // pred_region
        _
      $region16: #{_lambda_.6} parent=11 // pred_fallthru
        _
      // Predicated region
      $region17: #{_lambda_.6} parent=11 // pred_check
        %p363 = pneg %p88
      $region18: #{_lambda_.6} parent=11 // pred_check_branch
        %365 = sbr.rel (%p363) target = $region20
      $region19: #{_lambda_.6} parent=11 // pred_region
        _
      $region20: #{_lambda_.6} parent=11 // pred_fallthru
        _
      // Predicated region
      $region21: #{_lambda_.6} parent=11 // pred_check
        %p366 = pneg %p109
      $region22: #{_lambda_.6} parent=11 // pred_check_branch
        %368 = sbr.rel (%p366) target = $region24
      $region23: #{_lambda_.6} parent=11 // pred_region
        _
      $region24: #{_lambda_.6} parent=11 // pred_fallthru
        _
      // Predicated region
      $region25: #{_lambda_.6} parent=11 // pred_check
        %p369 = pneg %p130
      $region26: #{_lambda_.6} parent=11 // pred_check_branch
        %371 = sbr.rel (%p369) target = $region28
      $region27: #{_lambda_.6} parent=11 // pred_region
        _
      $region28: #{_lambda_.6} parent=11 // pred_fallthru
        _
      // Predicated region
      $region29: #{_lambda_.6} parent=11 // pred_check
        %p372 = pneg %p151
      $region30: #{_lambda_.6} parent=11 // pred_check_branch
        %374 = sbr.rel (%p372) target = $region32
      $region31: #{_lambda_.6} parent=11 // pred_region
        _
      $region32: #{_lambda_.6} parent=11 // pred_fallthru
        _
      // Predicated region
      $region33: #{_lambda_.6} parent=11 // pred_check
        %p375 = pneg %p172
      $region34: #{_lambda_.6} parent=11 // pred_check_branch
        %377 = sbr.rel (%p375) target = $region36
      $region35: #{_lambda_.6} parent=11 // pred_region
        _
      $region36: #{_lambda_.6} parent=11 // pred_fallthru
        _
      // Predicated region
      $region37: #{_lambda_.6} parent=11 // pred_check
        %p378 = pneg %p193
      $region38: #{_lambda_.6} parent=11 // pred_check_branch
        %380 = sbr.rel (%p378) target = $region40
      $region39: #{_lambda_.6} parent=11 // pred_region
        _
      $region40: #{_lambda_.6} parent=11 // pred_fallthru
        _
      // Predicated region
      $region41: #{_lambda_.6} parent=11 // pred_check
        %p381 = pneg %p214
      $region42: #{_lambda_.6} parent=11 // pred_check_branch
        %383 = sbr.rel (%p381) target = $region44
      $region43: #{_lambda_.6} parent=11 // pred_region
        _
      $region44: #{_lambda_.6} parent=11 // pred_fallthru
        _
      // Predicated region
      $region45: #{_lambda_.6} parent=11 // pred_check
        %p384 = pneg %p235
      $region46: #{_lambda_.6} parent=11 // pred_check_branch
        %386 = sbr.rel (%p384) target = $region48
      $region47: #{_lambda_.6} parent=11 // pred_region
        _
      $region48: #{_lambda_.6} parent=11 // pred_fallthru
        _
      // Predicated region
      $region49: #{_lambda_.6} parent=11 // pred_check
        %p387 = pneg %p256
      $region50: #{_lambda_.6} parent=11 // pred_check_branch
        %389 = sbr.rel (%p387) target = $region52
      $region51: #{_lambda_.6} parent=11 // pred_region
        _
      $region52: #{_lambda_.6} parent=11 // pred_fallthru
        _
      // Predicated region
      $region53: #{_lambda_.6} parent=11 // pred_check
        %p390 = pneg %p277
      $region54: #{_lambda_.6} parent=11 // pred_check_branch
        %392 = sbr.rel (%p390) target = $region56
      $region55: #{_lambda_.6} parent=11 // pred_region
        _
      $region56: #{_lambda_.6} parent=11 // pred_fallthru
        _
      // Predicated region
      $region57: #{_lambda_.6} parent=11 // pred_check
        %p393 = pneg %p298
      $region58: #{_lambda_.6} parent=11 // pred_check_branch
        %395 = sbr.rel (%p393) target = $region60
      $region59: #{_lambda_.6} parent=11 // pred_region
        _
      $region60: #{_lambda_.6} parent=11 // pred_fallthru
        _
      // Predicated region
      $region61: #{_lambda_.6} parent=11 // pred_check
        %p396 = pneg %p319
      $region62: #{_lambda_.6} parent=11 // pred_check_branch
        %398 = sbr.rel (%p396) target = $region64
      $region63: #{_lambda_.6} parent=11 // pred_region
        _
      $region64: #{_lambda_.6} parent=11 // pred_fallthru
        _
    $region12: #{_lambda_.6} parent=5 // pred_fallthru
      _
    %p399 = scmp.lt.s32.totalorder %s20, 2
    // Predicated region
    $region65: #{_lambda_.6} parent=5 // pred_check
      %p400 = pneg %p399
    $region66: #{_lambda_.6} parent=5 // pred_check_branch
      %402 = sbr.rel (%p400) target = $region68
    $region67: #{_lambda_.6} parent=5 // pred_region
      // Predicated region
      $region69: #{_lambda_.6} parent=67 // pred_check
        %p403 = pneg %p40
      $region70: #{_lambda_.6} parent=67 // pred_check_branch
        %405 = sbr.rel (%p403) target = $region72
      $region71: #{_lambda_.6} parent=67 // pred_region
        %p406 = scmp.lt.s32.totalorder %s20, 1
        %s407 = scalar_select %p406, %s20, 1
        %s408 = smul.addr %s407, 8
        %s409 = smul.addr %s408, 4
        %s410 = scalar_lea.vmem %s0, %s409
      $region72: #{_lambda_.6} parent=67 // pred_fallthru
        _
    $region68: #{_lambda_.6} parent=5 // pred_fallthru
      _
    %p411 = scmp.le.s32.totalorder 1, %s20
    %p412 = scmp.lt.s32.totalorder %s20, 3
    %p413 = pnand %p411, %p412
    %p414 = pneg %p413
    // Predicated region
    $region73: #{_lambda_.6} parent=5 // pred_check
      _
    $region74: #{_lambda_.6} parent=5 // pred_check_branch
      %416 = sbr.rel (%p413) target = $region76
    $region75: #{_lambda_.6} parent=5 // pred_region
      %s417 = ssub.s32 %s20, 1
      %p418 = scmp.lt.s32.totalorder %s25, 1
      %s419 = scalar_select %p418, %s25, 1
      %s420 = smul.addr %s419, 8
      %s421 = smul.addr %s420, 4
      %s422 = scalar_lea.vmem %s0, %s421
      %p423 = pneg %p46
      %p424 = pneg %p43
      %p425 = pneg %p67
      %p426 = pneg %p64
      %p427 = pneg %p88
      %p428 = pneg %p85
      %p429 = pneg %p109
      %p430 = pneg %p106
      %p431 = pneg %p130
      %p432 = pneg %p127
      %p433 = pneg %p151
      %p434 = pneg %p148
      %p435 = pneg %p172
      %p436 = pneg %p169
      %p437 = pneg %p193
      %p438 = pneg %p190
      %p439 = pneg %p214
      %p440 = pneg %p211
      %p441 = pneg %p235
      %p442 = pneg %p232
      %p443 = pneg %p256
      %p444 = pneg %p253
      %p445 = pneg %p277
      %p446 = pneg %p274
      %p447 = pneg %p298
      %p448 = pneg %p295
      %p449 = pneg %p319
      %p450 = pneg %p316
      %p451 = pneg %p345
      %p452 = pneg %p342
      %p453 = scmp.lt.s32.totalorder %s25, 1
      %s454 = scalar_select %p453, %s25, 1
      %s455 = smul.addr %s454, 4
      %s456 = smul.addr %s455, 4
      %s457 = scalar_lea.vmem %s14, %s456
      %p458 = scmp.lt.s32.totalorder %s25, 1
      %s459 = scalar_select %p458, %s25, 1
      %s460 = smul.addr %s459, 8
      %s461 = smul.addr %s460, 4
      %s462 = scalar_lea.vmem %s0, %s461
      %p463 = scmp.lt.s32.totalorder %s25, 1
      %s464 = scalar_select %p463, %s25, 1
      %s465 = smul.addr %s464, 4
      %s466 = smul.addr %s465, 4
      %s467 = scalar_lea.vmem %s14, %s466
      %v469 = vld [vmem:[%s462] sm:$0xf]
      %v470 = vld [vmem:[%s462 + $0x4] sm:$0xf]
      %v471 = vld [vmem:[%s462 + $0x8] sm:$0xf]
      %v472 = vld [vmem:[%s462 + $0xc] sm:$0xf]
      %v473 = vld [vmem:[%s462 + $0x10] sm:$0xf]
      %v474 = vld [vmem:[%s462 + $0x14] sm:$0xf]
      %v475 = vld [vmem:[%s462 + $0x18] sm:$0xf]
      %v476 = vld [vmem:[%s462 + $0x1c] sm:$0xf]
      %v477 = vunpack.c.l.bf16 %v469
      %v478 = vunpack.c.l.bf16 %v470
      %v479 = vunpack.c.l.bf16 %v471
      %v480 = vunpack.c.l.bf16 %v472
      %v481 = vunpack.c.l.bf16 %v473
      %v482 = vunpack.c.l.bf16 %v474
      %v483 = vunpack.c.l.bf16 %v475
      %v484 = vunpack.c.l.bf16 %v476
      %v485 = vld [vmem:[%s1] sm:$0x3]
      %vm486 = vcmask 261120
      %v487 = vsel %vm486, %v477, 0.0
      %488 = vadd.xlane.f32.xlu0 %v487
      %v489 = vpop.xlane.xlu0 %488
      %v490 = vsel %vm486, %v478, 0.0
      %491 = vadd.xlane.f32.xlu0 %v490
      %v492 = vpop.xlane.xlu0 %491
      %v493 = vsel %vm486, %v479, 0.0
      %494 = vadd.xlane.f32.xlu0 %v493
      %v495 = vpop.xlane.xlu0 %494
      %v496 = vsel %vm486, %v480, 0.0
      %497 = vadd.xlane.f32.xlu0 %v496
      %v498 = vpop.xlane.xlu0 %497
      %v499 = vsel %vm486, %v481, 0.0
      %500 = vadd.xlane.f32.xlu0 %v499
      %v501 = vpop.xlane.xlu0 %500
      %v502 = vsel %vm486, %v482, 0.0
      %503 = vadd.xlane.f32.xlu0 %v502
      %v504 = vpop.xlane.xlu0 %503
      %v505 = vsel %vm486, %v483, 0.0
      %506 = vadd.xlane.f32.xlu0 %v505
      %v507 = vpop.xlane.xlu0 %506
      %v508 = vsel %vm486, %v484, 0.0
      %509 = vadd.xlane.f32.xlu0 %v508
      %v510 = vpop.xlane.xlu0 %509
      %v511 = vrcp.pop 32.0
      %v512 = vmul.f32 %v489, %v511
      %v513 = vmul.f32 %v492, %v511
      %v514 = vmul.f32 %v495, %v511
      %v515 = vmul.f32 %v498, %v511
      %v516 = vmul.f32 %v501, %v511
      %v517 = vmul.f32 %v504, %v511
      %v518 = vmul.f32 %v507, %v511
      %v519 = vmul.f32 %v510, %v511
      %v520 = vsub.f32 %v477, %v512
      %v521 = vsub.f32 %v478, %v513
      %v522 = vsub.f32 %v479, %v514
      %v523 = vsub.f32 %v480, %v515
      %v524 = vsub.f32 %v481, %v516
      %v525 = vsub.f32 %v482, %v517
      %v526 = vsub.f32 %v483, %v518
      %v527 = vsub.f32 %v484, %v519
      %v528 = vmul.f32 %v520, %v520
      %v529 = vmul.f32 %v521, %v521
      %v530 = vmul.f32 %v522, %v522
      %v531 = vmul.f32 %v523, %v523
      %v532 = vmul.f32 %v524, %v524
      %v533 = vmul.f32 %v525, %v525
      %v534 = vmul.f32 %v526, %v526
      %v535 = vmul.f32 %v527, %v527
      %v536 = vsel %vm486, %v528, 0.0
      %537 = vadd.xlane.f32.xlu0 %v536
      %v538 = vpop.xlane.xlu0 %537
      %v539 = vsel %vm486, %v529, 0.0
      %540 = vadd.xlane.f32.xlu0 %v539
      %v541 = vpop.xlane.xlu0 %540
      %v542 = vsel %vm486, %v530, 0.0
      %543 = vadd.xlane.f32.xlu0 %v542
      %v544 = vpop.xlane.xlu0 %543
      %v545 = vsel %vm486, %v531, 0.0
      %546 = vadd.xlane.f32.xlu0 %v545
      %v547 = vpop.xlane.xlu0 %546
      %v548 = vsel %vm486, %v532, 0.0
      %549 = vadd.xlane.f32.xlu0 %v548
      %v550 = vpop.xlane.xlu0 %549
      %v551 = vsel %vm486, %v533, 0.0
      %552 = vadd.xlane.f32.xlu0 %v551
      %v553 = vpop.xlane.xlu0 %552
      %v554 = vsel %vm486, %v534, 0.0
      %555 = vadd.xlane.f32.xlu0 %v554
      %v556 = vpop.xlane.xlu0 %555
      %v557 = vsel %vm486, %v535, 0.0
      %558 = vadd.xlane.f32.xlu0 %v557
      %v559 = vpop.xlane.xlu0 %558
      %v560 = vmul.f32 %v538, %v511
      %v561 = vmul.f32 %v541, %v511
      %v562 = vmul.f32 %v544, %v511
      %v563 = vmul.f32 %v547, %v511
      %v564 = vmul.f32 %v550, %v511
      %v565 = vmul.f32 %v553, %v511
      %v566 = vmul.f32 %v556, %v511
      %v567 = vmul.f32 %v559, %v511
      %v568 = vadd.f32 %v560, 1e-05
      %v569 = vadd.f32 %v561, 1e-05
      %v570 = vadd.f32 %v562, 1e-05
      %v571 = vadd.f32 %v563, 1e-05
      %v572 = vadd.f32 %v564, 1e-05
      %v573 = vadd.f32 %v565, 1e-05
      %v574 = vadd.f32 %v566, 1e-05
      %v575 = vadd.f32 %v567, 1e-05
      %v576 = vrsqrt.pop %v568
      %v577 = vrsqrt.pop %v569
      %v578 = vrsqrt.pop %v570
      %v579 = vrsqrt.pop %v571
      %v580 = vrsqrt.pop %v572
      %v581 = vrsqrt.pop %v573
      %v582 = vrsqrt.pop %v574
      %v583 = vrsqrt.pop %v575
      %v584 = vmul.f32 %v520, %v576
      %v585 = vmul.f32 %v521, %v577
      %v586 = vmul.f32 %v522, %v578
      %v587 = vmul.f32 %v523, %v579
      %v588 = vmul.f32 %v524, %v580
      %v589 = vmul.f32 %v525, %v581
      %v590 = vmul.f32 %v526, %v582
      %v591 = vmul.f32 %v527, %v583
      %v592 = vlaneseq
      %v593 = vshrl.u32 %v592, 7
      %v594 = vsub.s32 0, %v593
      %v595 = vrot.slane %v485, %v594
      %v596 = vmul.f32 %v584, %v595
      %v597 = vmul.f32 %v585, %v595
      %v598 = vmul.f32 %v586, %v595
      %v599 = vmul.f32 %v587, %v595
      %v600 = vmul.f32 %v588, %v595
      %v601 = vmul.f32 %v589, %v595
      %v602 = vmul.f32 %v590, %v595
      %v603 = vmul.f32 %v591, %v595
      %v604 = vlaneseq
      %v605 = vshrl.u32 %v604, 7
      %v606 = vsub.s32 1, %v605
      %v607 = vrot.slane %v485, %v606
      %v608 = vadd.f32 %v596, %v607
      %v609 = vadd.f32 %v597, %v607
      %v610 = vadd.f32 %v598, %v607
      %v611 = vadd.f32 %v599, %v607
      %v612 = vadd.f32 %v600, %v607
      %v613 = vadd.f32 %v601, %v607
      %v614 = vadd.f32 %v602, %v607
      %v615 = vadd.f32 %v603, %v607
      %v616 = vlaneseq
      %v617 = vshrl.u32 %v616, 7
      %v618 = vadd.s32 %v617, 8
      %v619 = vadd.s32 %v617, 16
      %v620 = vadd.s32 %v617, 24
      %v621 = vadd.s32 %v617, 32
      %v622 = vadd.s32 %v617, 40
      %v623 = vadd.s32 %v617, 48
      %v624 = vadd.s32 %v617, 56
      %vm625 = vcmp.eq.s32.totalorder %v617, 0
      %vm626 = vcmp.eq.s32.totalorder %v618, 0
      %vm627 = vcmp.eq.s32.totalorder %v619, 0
      %vm628 = vcmp.eq.s32.totalorder %v620, 0
      %vm629 = vcmp.eq.s32.totalorder %v621, 0
      %vm630 = vcmp.eq.s32.totalorder %v622, 0
      %vm631 = vcmp.eq.s32.totalorder %v623, 0
      %vm632 = vcmp.eq.s32.totalorder %v624, 0
      %v633 = vrot.slane %v608, 7
      %v634 = vrot.slane %v609, 7
      %v635 = vrot.slane %v610, 7
      %v636 = vrot.slane %v611, 7
      %v637 = vrot.slane %v612, 7
      %v638 = vrot.slane %v613, 7
      %v639 = vrot.slane %v614, 7
      %v640 = vrot.slane %v615, 7
      %vm641 = vcmp.lt.s32.totalorder %v617, 1
      %v642 = vsel %vm641, %v639, %v640
      %v643 = vsel %vm641, %v638, %v639
      %v644 = vsel %vm641, %v637, %v638
      %v645 = vsel %vm641, %v636, %v637
      %v646 = vsel %vm641, %v635, %v636
      %v647 = vsel %vm641, %v634, %v635
      %v648 = vsel %vm641, %v633, %v634
      %v649 = vsel %vm641, %v640, %v633
      %v650 = vsel %vm625, 1, 0
      %v651 = vsel %vm626, 1, 0
      %v652 = vsel %vm627, 1, 0
      %v653 = vsel %vm628, 1, 0
      %v654 = vsel %vm629, 1, 0
      %v655 = vsel %vm630, 1, 0
      %v656 = vsel %vm631, 1, 0
      %v657 = vsel %vm632, 1, 0
      %vm658 = vcmp.eq.s32.totalorder %v650, 1
      %vm659 = vcmp.eq.s32.totalorder %v651, 1
      %vm660 = vcmp.eq.s32.totalorder %v652, 1
      %vm661 = vcmp.eq.s32.totalorder %v653, 1
      %vm662 = vcmp.eq.s32.totalorder %v654, 1
      %vm663 = vcmp.eq.s32.totalorder %v655, 1
      %vm664 = vcmp.eq.s32.totalorder %v656, 1
      %vm665 = vcmp.eq.s32.totalorder %v657, 1
      %v666 = vsel %vm658, 0.0, %v649
      %v667 = vsel %vm659, 0.0, %v648
      %v668 = vsel %vm660, 0.0, %v647
      %v669 = vsel %vm661, 0.0, %v646
      %v670 = vsel %vm662, 0.0, %v645
      %v671 = vsel %vm663, 0.0, %v644
      %v672 = vsel %vm664, 0.0, %v643
      %v673 = vsel %vm665, 0.0, %v642
      %vm674 = vcmp.eq.s32.totalorder %v617, 63
      %vm675 = vcmp.eq.s32.totalorder %v618, 63
      %vm676 = vcmp.eq.s32.totalorder %v619, 63
      %vm677 = vcmp.eq.s32.totalorder %v620, 63
      %vm678 = vcmp.eq.s32.totalorder %v621, 63
      %vm679 = vcmp.eq.s32.totalorder %v622, 63
      %vm680 = vcmp.eq.s32.totalorder %v623, 63
      %vm681 = vcmp.eq.s32.totalorder %v624, 63
      %v682 = vrot.slane %v608, 1
      %v683 = vrot.slane %v609, 1
      %v684 = vrot.slane %v610, 1
      %v685 = vrot.slane %v611, 1
      %v686 = vrot.slane %v612, 1
      %v687 = vrot.slane %v613, 1
      %v688 = vrot.slane %v614, 1
      %v689 = vrot.slane %v615, 1
      %vm690 = vcmp.lt.s32.totalorder %v617, 7
      %v691 = vsel %vm690, %v688, %v689
      %v692 = vsel %vm690, %v687, %v688
      %v693 = vsel %vm690, %v686, %v687
      %v694 = vsel %vm690, %v685, %v686
      %v695 = vsel %vm690, %v684, %v685
      %v696 = vsel %vm690, %v683, %v684
      %v697 = vsel %vm690, %v682, %v683
      %v698 = vsel %vm690, %v689, %v682
      %v699 = vsel %vm674, 1, 0
      %v700 = vsel %vm675, 1, 0
      %v701 = vsel %vm676, 1, 0
      %v702 = vsel %vm677, 1, 0
      %v703 = vsel %vm678, 1, 0
      %v704 = vsel %vm679, 1, 0
      %v705 = vsel %vm680, 1, 0
      %v706 = vsel %vm681, 1, 0
      %vm707 = vcmp.eq.s32.totalorder %v699, 1
      %vm708 = vcmp.eq.s32.totalorder %v700, 1
      %vm709 = vcmp.eq.s32.totalorder %v701, 1
      %vm710 = vcmp.eq.s32.totalorder %v702, 1
      %vm711 = vcmp.eq.s32.totalorder %v703, 1
      %vm712 = vcmp.eq.s32.totalorder %v704, 1
      %vm713 = vcmp.eq.s32.totalorder %v705, 1
      %vm714 = vcmp.eq.s32.totalorder %v706, 1
      %v715 = vsel %vm707, 0.0, %v697
      %v716 = vsel %vm708, 0.0, %v696
      %v717 = vsel %vm709, 0.0, %v695
      %v718 = vsel %vm710, 0.0, %v694
      %v719 = vsel %vm711, 0.0, %v693
      %v720 = vsel %vm712, 0.0, %v692
      %v721 = vsel %vm713, 0.0, %v691
      %v722 = vsel %vm714, 0.0, %v698
      %v723 = vld [vmem:[%s2] sm:$0x7]
      %v724 = vld [vmem:[%s2 + $0x4] sm:$0x7]
      %v725 = vld [vmem:[%s2 + $0x8] sm:$0x7]
      %v726 = vld [vmem:[%s3] sm:$0x7]
      %v727 = vld [vmem:[%s4] sm:$0x7]
      %v728 = vlaneseq
      %v729 = vshrl.u32 %v728, 7
      %v730 = vsub.s32 0, %v729
      %v731 = vrot.slane %v723, %v730
      %v732 = vmul.f32 %v666, %v731
      %v733 = vmul.f32 %v667, %v731
      %v734 = vmul.f32 %v668, %v731
      %v735 = vmul.f32 %v669, %v731
      %v736 = vmul.f32 %v670, %v731
      %v737 = vmul.f32 %v671, %v731
      %v738 = vmul.f32 %v672, %v731
      %v739 = vmul.f32 %v673, %v731
      %v740 = vlaneseq
      %v741 = vshrl.u32 %v740, 7
      %v742 = vsub.s32 1, %v741
      %v743 = vrot.slane %v723, %v742
      %v744 = vmul.f32 %v608, %v743
      %v745 = vmul.f32 %v609, %v743
      %v746 = vmul.f32 %v610, %v743
      %v747 = vmul.f32 %v611, %v743
      %v748 = vmul.f32 %v612, %v743
      %v749 = vmul.f32 %v613, %v743
      %v750 = vmul.f32 %v614, %v743
      %v751 = vmul.f32 %v615, %v743
      %v752 = vadd.f32 %v732, %v744
      %v753 = vadd.f32 %v733, %v745
      %v754 = vadd.f32 %v734, %v746
      %v755 = vadd.f32 %v735, %v747
      %v756 = vadd.f32 %v736, %v748
      %v757 = vadd.f32 %v737, %v749
      %v758 = vadd.f32 %v738, %v750
      %v759 = vadd.f32 %v739, %v751
      %v760 = vlaneseq
      %v761 = vshrl.u32 %v760, 7
      %v762 = vsub.s32 2, %v761
      %v763 = vrot.slane %v723, %v762
      %v764 = vmul.f32 %v715, %v763
      %v765 = vmul.f32 %v716, %v763
      %v766 = vmul.f32 %v717, %v763
      %v767 = vmul.f32 %v718, %v763
      %v768 = vmul.f32 %v719, %v763
      %v769 = vmul.f32 %v720, %v763
      %v770 = vmul.f32 %v721, %v763
      %v771 = vmul.f32 %v722, %v763
      %v772 = vadd.f32 %v752, %v764
      %v773 = vadd.f32 %v753, %v765
      %v774 = vadd.f32 %v754, %v766
      %v775 = vadd.f32 %v755, %v767
      %v776 = vadd.f32 %v756, %v768
      %v777 = vadd.f32 %v757, %v769
      %v778 = vadd.f32 %v758, %v770
      %v779 = vadd.f32 %v759, %v771
      %v780 = vsel %vm486, %v772, 0.0
      %781 = vadd.xlane.f32.xlu0 %v780
      %v782 = vpop.xlane.xlu0 %781
      %v783 = vsel %vm486, %v773, 0.0
      %784 = vadd.xlane.f32.xlu0 %v783
      %v785 = vpop.xlane.xlu0 %784
      %v786 = vsel %vm486, %v774, 0.0
      %787 = vadd.xlane.f32.xlu0 %v786
      %v788 = vpop.xlane.xlu0 %787
      %v789 = vsel %vm486, %v775, 0.0
      %790 = vadd.xlane.f32.xlu0 %v789
      %v791 = vpop.xlane.xlu0 %790
      %v792 = vsel %vm486, %v776, 0.0
      %793 = vadd.xlane.f32.xlu0 %v792
      %v794 = vpop.xlane.xlu0 %793
      %v795 = vsel %vm486, %v777, 0.0
      %796 = vadd.xlane.f32.xlu0 %v795
      %v797 = vpop.xlane.xlu0 %796
      %v798 = vsel %vm486, %v778, 0.0
      %799 = vadd.xlane.f32.xlu0 %v798
      %v800 = vpop.xlane.xlu0 %799
      %v801 = vsel %vm486, %v779, 0.0
      %802 = vadd.xlane.f32.xlu0 %v801
      %v803 = vpop.xlane.xlu0 %802
      %v804 = vmul.f32 %v782, %v511
      %v805 = vmul.f32 %v785, %v511
      %v806 = vmul.f32 %v788, %v511
      %v807 = vmul.f32 %v791, %v511
      %v808 = vmul.f32 %v794, %v511
      %v809 = vmul.f32 %v797, %v511
      %v810 = vmul.f32 %v800, %v511
      %v811 = vmul.f32 %v803, %v511
      %v812 = vsub.f32 %v772, %v804
      %v813 = vsub.f32 %v773, %v805
      %v814 = vsub.f32 %v774, %v806
      %v815 = vsub.f32 %v775, %v807
      %v816 = vsub.f32 %v776, %v808
      %v817 = vsub.f32 %v777, %v809
      %v818 = vsub.f32 %v778, %v810
      %v819 = vsub.f32 %v779, %v811
      %v820 = vmul.f32 %v812, %v812
      %v821 = vmul.f32 %v813, %v813
      %v822 = vmul.f32 %v814, %v814
      %v823 = vmul.f32 %v815, %v815
      %v824 = vmul.f32 %v816, %v816
      %v825 = vmul.f32 %v817, %v817
      %v826 = vmul.f32 %v818, %v818
      %v827 = vmul.f32 %v819, %v819
      %v828 = vsel %vm486, %v820, 0.0
      %829 = vadd.xlane.f32.xlu0 %v828
      %v830 = vpop.xlane.xlu0 %829
      %v831 = vsel %vm486, %v821, 0.0
      %832 = vadd.xlane.f32.xlu0 %v831
      %v833 = vpop.xlane.xlu0 %832
      %v834 = vsel %vm486, %v822, 0.0
      %835 = vadd.xlane.f32.xlu0 %v834
      %v836 = vpop.xlane.xlu0 %835
      %v837 = vsel %vm486, %v823, 0.0
      %838 = vadd.xlane.f32.xlu0 %v837
      %v839 = vpop.xlane.xlu0 %838
      %v840 = vsel %vm486, %v824, 0.0
      %841 = vadd.xlane.f32.xlu0 %v840
      %v842 = vpop.xlane.xlu0 %841
      %v843 = vsel %vm486, %v825, 0.0
      %844 = vadd.xlane.f32.xlu0 %v843
      %v845 = vpop.xlane.xlu0 %844
      %v846 = vsel %vm486, %v826, 0.0
      %847 = vadd.xlane.f32.xlu0 %v846
      %v848 = vpop.xlane.xlu0 %847
      %v849 = vsel %vm486, %v827, 0.0
      %850 = vadd.xlane.f32.xlu0 %v849
      %v851 = vpop.xlane.xlu0 %850
      %v852 = vmul.f32 %v830, %v511
      %v853 = vmul.f32 %v833, %v511
      %v854 = vmul.f32 %v836, %v511
      %v855 = vmul.f32 %v839, %v511
      %v856 = vmul.f32 %v842, %v511
      %v857 = vmul.f32 %v845, %v511
      %v858 = vmul.f32 %v848, %v511
      %v859 = vmul.f32 %v851, %v511
      %v860 = vadd.f32 %v852, 1e-05
      %v861 = vadd.f32 %v853, 1e-05
      %v862 = vadd.f32 %v854, 1e-05
      %v863 = vadd.f32 %v855, 1e-05
      %v864 = vadd.f32 %v856, 1e-05
      %v865 = vadd.f32 %v857, 1e-05
      %v866 = vadd.f32 %v858, 1e-05
      %v867 = vadd.f32 %v859, 1e-05
      %v868 = vrsqrt.pop %v860
      %v869 = vrsqrt.pop %v861
      %v870 = vrsqrt.pop %v862
      %v871 = vrsqrt.pop %v863
      %v872 = vrsqrt.pop %v864
      %v873 = vrsqrt.pop %v865
      %v874 = vrsqrt.pop %v866
      %v875 = vrsqrt.pop %v867
      %v876 = vmul.f32 %v812, %v868
      %v877 = vmul.f32 %v813, %v869
      %v878 = vmul.f32 %v814, %v870
      %v879 = vmul.f32 %v815, %v871
      %v880 = vmul.f32 %v816, %v872
      %v881 = vmul.f32 %v817, %v873
      %v882 = vmul.f32 %v818, %v874
      %v883 = vmul.f32 %v819, %v875
      %v884 = vlaneseq
      %v885 = vshrl.u32 %v884, 7
      %v886 = vsub.s32 0, %v885
      %v887 = vrot.slane %v726, %v886
      %v888 = vmul.f32 %v876, %v887
      %v889 = vmul.f32 %v877, %v887
      %v890 = vmul.f32 %v878, %v887
      %v891 = vmul.f32 %v879, %v887
      %v892 = vmul.f32 %v880, %v887
      %v893 = vmul.f32 %v881, %v887
      %v894 = vmul.f32 %v882, %v887
      %v895 = vmul.f32 %v883, %v887
      %v896 = vlaneseq
      %v897 = vshrl.u32 %v896, 7
      %v898 = vsub.s32 0, %v897
      %v899 = vrot.slane %v727, %v898
      %v900 = vadd.f32 %v888, %v899
      %v901 = vadd.f32 %v889, %v899
      %v902 = vadd.f32 %v890, %v899
      %v903 = vadd.f32 %v891, %v899
      %v904 = vadd.f32 %v892, %v899
      %v905 = vadd.f32 %v893, %v899
      %v906 = vadd.f32 %v894, %v899
      %v907 = vadd.f32 %v895, %v899
      %v908 = vlaneseq
      %v909 = vshrl.u32 %v908, 7
      %v910 = vsub.s32 0, %v909
      %v911 = vrot.slane %v724, %v910
      %v912 = vmul.f32 %v666, %v911
      %v913 = vmul.f32 %v667, %v911
      %v914 = vmul.f32 %v668, %v911
      %v915 = vmul.f32 %v669, %v911
      %v916 = vmul.f32 %v670, %v911
      %v917 = vmul.f32 %v671, %v911
      %v918 = vmul.f32 %v672, %v911
      %v919 = vmul.f32 %v673, %v911
      %v920 = vlaneseq
      %v921 = vshrl.u32 %v920, 7
      %v922 = vsub.s32 1, %v921
      %v923 = vrot.slane %v724, %v922
      %v924 = vmul.f32 %v608, %v923
      %v925 = vmul.f32 %v609, %v923
      %v926 = vmul.f32 %v610, %v923
      %v927 = vmul.f32 %v611, %v923
      %v928 = vmul.f32 %v612, %v923
      %v929 = vmul.f32 %v613, %v923
      %v930 = vmul.f32 %v614, %v923
      %v931 = vmul.f32 %v615, %v923
      %v932 = vadd.f32 %v912, %v924
      %v933 = vadd.f32 %v913, %v925
      %v934 = vadd.f32 %v914, %v926
      %v935 = vadd.f32 %v915, %v927
      %v936 = vadd.f32 %v916, %v928
      %v937 = vadd.f32 %v917, %v929
      %v938 = vadd.f32 %v918, %v930
      %v939 = vadd.f32 %v919, %v931
      %v940 = vlaneseq
      %v941 = vshrl.u32 %v940, 7
      %v942 = vsub.s32 2, %v941
      %v943 = vrot.slane %v724, %v942
      %v944 = vmul.f32 %v715, %v943
      %v945 = vmul.f32 %v716, %v943
      %v946 = vmul.f32 %v717, %v943
      %v947 = vmul.f32 %v718, %v943
      %v948 = vmul.f32 %v719, %v943
      %v949 = vmul.f32 %v720, %v943
      %v950 = vmul.f32 %v721, %v943
      %v951 = vmul.f32 %v722, %v943
      %v952 = vadd.f32 %v932, %v944
      %v953 = vadd.f32 %v933, %v945
      %v954 = vadd.f32 %v934, %v946
      %v955 = vadd.f32 %v935, %v947
      %v956 = vadd.f32 %v936, %v948
      %v957 = vadd.f32 %v937, %v949
      %v958 = vadd.f32 %v938, %v950
      %v959 = vadd.f32 %v939, %v951
      %v960 = vsel %vm486, %v952, 0.0
      %961 = vadd.xlane.f32.xlu0 %v960
      %v962 = vpop.xlane.xlu0 %961
      %v963 = vsel %vm486, %v953, 0.0
      %964 = vadd.xlane.f32.xlu0 %v963
      %v965 = vpop.xlane.xlu0 %964
      %v966 = vsel %vm486, %v954, 0.0
      %967 = vadd.xlane.f32.xlu0 %v966
      %v968 = vpop.xlane.xlu0 %967
      %v969 = vsel %vm486, %v955, 0.0
      %970 = vadd.xlane.f32.xlu0 %v969
      %v971 = vpop.xlane.xlu0 %970
      %v972 = vsel %vm486, %v956, 0.0
      %973 = vadd.xlane.f32.xlu0 %v972
      %v974 = vpop.xlane.xlu0 %973
      %v975 = vsel %vm486, %v957, 0.0
      %976 = vadd.xlane.f32.xlu0 %v975
      %v977 = vpop.xlane.xlu0 %976
      %v978 = vsel %vm486, %v958, 0.0
      %979 = vadd.xlane.f32.xlu0 %v978
      %v980 = vpop.xlane.xlu0 %979
      %v981 = vsel %vm486, %v959, 0.0
      %982 = vadd.xlane.f32.xlu0 %v981
      %v983 = vpop.xlane.xlu0 %982
      %v984 = vmul.f32 %v962, %v511
      %v985 = vmul.f32 %v965, %v511
      %v986 = vmul.f32 %v968, %v511
      %v987 = vmul.f32 %v971, %v511
      %v988 = vmul.f32 %v974, %v511
      %v989 = vmul.f32 %v977, %v511
      %v990 = vmul.f32 %v980, %v511
      %v991 = vmul.f32 %v983, %v511
      %v992 = vsub.f32 %v952, %v984
      %v993 = vsub.f32 %v953, %v985
      %v994 = vsub.f32 %v954, %v986
      %v995 = vsub.f32 %v955, %v987
      %v996 = vsub.f32 %v956, %v988
      %v997 = vsub.f32 %v957, %v989
      %v998 = vsub.f32 %v958, %v990
      %v999 = vsub.f32 %v959, %v991
      %v1000 = vmul.f32 %v992, %v992
      %v1001 = vmul.f32 %v993, %v993
      %v1002 = vmul.f32 %v994, %v994
      %v1003 = vmul.f32 %v995, %v995
      %v1004 = vmul.f32 %v996, %v996
      %v1005 = vmul.f32 %v997, %v997
      %v1006 = vmul.f32 %v998, %v998
      %v1007 = vmul.f32 %v999, %v999
      %v1008 = vsel %vm486, %v1000, 0.0
      %1009 = vadd.xlane.f32.xlu0 %v1008
      %v1010 = vpop.xlane.xlu0 %1009
      %v1011 = vsel %vm486, %v1001, 0.0
      %1012 = vadd.xlane.f32.xlu0 %v1011
      %v1013 = vpop.xlane.xlu0 %1012
      %v1014 = vsel %vm486, %v1002, 0.0
      %1015 = vadd.xlane.f32.xlu0 %v1014
      %v1016 = vpop.xlane.xlu0 %1015
      %v1017 = vsel %vm486, %v1003, 0.0
      %1018 = vadd.xlane.f32.xlu0 %v1017
      %v1019 = vpop.xlane.xlu0 %1018
      %v1020 = vsel %vm486, %v1004, 0.0
      %1021 = vadd.xlane.f32.xlu0 %v1020
      %v1022 = vpop.xlane.xlu0 %1021
      %v1023 = vsel %vm486, %v1005, 0.0
      %1024 = vadd.xlane.f32.xlu0 %v1023
      %v1025 = vpop.xlane.xlu0 %1024
      %v1026 = vsel %vm486, %v1006, 0.0
      %1027 = vadd.xlane.f32.xlu0 %v1026
      %v1028 = vpop.xlane.xlu0 %1027
      %v1029 = vsel %vm486, %v1007, 0.0
      %1030 = vadd.xlane.f32.xlu0 %v1029
      %v1031 = vpop.xlane.xlu0 %1030
      %v1032 = vmul.f32 %v1010, %v511
      %v1033 = vmul.f32 %v1013, %v511
      %v1034 = vmul.f32 %v1016, %v511
      %v1035 = vmul.f32 %v1019, %v511
      %v1036 = vmul.f32 %v1022, %v511
      %v1037 = vmul.f32 %v1025, %v511
      %v1038 = vmul.f32 %v1028, %v511
      %v1039 = vmul.f32 %v1031, %v511
      %v1040 = vadd.f32 %v1032, 1e-05
      %v1041 = vadd.f32 %v1033, 1e-05
      %v1042 = vadd.f32 %v1034, 1e-05
      %v1043 = vadd.f32 %v1035, 1e-05
      %v1044 = vadd.f32 %v1036, 1e-05
      %v1045 = vadd.f32 %v1037, 1e-05
      %v1046 = vadd.f32 %v1038, 1e-05
      %v1047 = vadd.f32 %v1039, 1e-05
      %v1048 = vrsqrt.pop %v1040
      %v1049 = vrsqrt.pop %v1041
      %v1050 = vrsqrt.pop %v1042
      %v1051 = vrsqrt.pop %v1043
      %v1052 = vrsqrt.pop %v1044
      %v1053 = vrsqrt.pop %v1045
      %v1054 = vrsqrt.pop %v1046
      %v1055 = vrsqrt.pop %v1047
      %v1056 = vmul.f32 %v992, %v1048
      %v1057 = vmul.f32 %v993, %v1049
      %v1058 = vmul.f32 %v994, %v1050
      %v1059 = vmul.f32 %v995, %v1051
      %v1060 = vmul.f32 %v996, %v1052
      %v1061 = vmul.f32 %v997, %v1053
      %v1062 = vmul.f32 %v998, %v1054
      %v1063 = vmul.f32 %v999, %v1055
      %v1064 = vlaneseq
      %v1065 = vshrl.u32 %v1064, 7
      %v1066 = vsub.s32 1, %v1065
      %v1067 = vrot.slane %v726, %v1066
      %v1068 = vmul.f32 %v1056, %v1067
      %v1069 = vmul.f32 %v1057, %v1067
      %v1070 = vmul.f32 %v1058, %v1067
      %v1071 = vmul.f32 %v1059, %v1067
      %v1072 = vmul.f32 %v1060, %v1067
      %v1073 = vmul.f32 %v1061, %v1067
      %v1074 = vmul.f32 %v1062, %v1067
      %v1075 = vmul.f32 %v1063, %v1067
      %v1076 = vlaneseq
      %v1077 = vshrl.u32 %v1076, 7
      %v1078 = vsub.s32 1, %v1077
      %v1079 = vrot.slane %v727, %v1078
      %v1080 = vadd.f32 %v1068, %v1079
      %v1081 = vadd.f32 %v1069, %v1079
      %v1082 = vadd.f32 %v1070, %v1079
      %v1083 = vadd.f32 %v1071, %v1079
      %v1084 = vadd.f32 %v1072, %v1079
      %v1085 = vadd.f32 %v1073, %v1079
      %v1086 = vadd.f32 %v1074, %v1079
      %v1087 = vadd.f32 %v1075, %v1079
      %v1088 = vlaneseq
      %v1089 = vshrl.u32 %v1088, 7
      %v1090 = vsub.s32 0, %v1089
      %v1091 = vrot.slane %v725, %v1090
      %v1092 = vmul.f32 %v666, %v1091
      %v1093 = vmul.f32 %v667, %v1091
      %v1094 = vmul.f32 %v668, %v1091
      %v1095 = vmul.f32 %v669, %v1091
      %v1096 = vmul.f32 %v670, %v1091
      %v1097 = vmul.f32 %v671, %v1091
      %v1098 = vmul.f32 %v672, %v1091
      %v1099 = vmul.f32 %v673, %v1091
      %v1100 = vlaneseq
      %v1101 = vshrl.u32 %v1100, 7
      %v1102 = vsub.s32 1, %v1101
      %v1103 = vrot.slane %v725, %v1102
      %v1104 = vmul.f32 %v608, %v1103
      %v1105 = vmul.f32 %v609, %v1103
      %v1106 = vmul.f32 %v610, %v1103
      %v1107 = vmul.f32 %v611, %v1103
      %v1108 = vmul.f32 %v612, %v1103
      %v1109 = vmul.f32 %v613, %v1103
      %v1110 = vmul.f32 %v614, %v1103
      %v1111 = vmul.f32 %v615, %v1103
      %v1112 = vadd.f32 %v1092, %v1104
      %v1113 = vadd.f32 %v1093, %v1105
      %v1114 = vadd.f32 %v1094, %v1106
      %v1115 = vadd.f32 %v1095, %v1107
      %v1116 = vadd.f32 %v1096, %v1108
      %v1117 = vadd.f32 %v1097, %v1109
      %v1118 = vadd.f32 %v1098, %v1110
      %v1119 = vadd.f32 %v1099, %v1111
      %v1120 = vlaneseq
      %v1121 = vshrl.u32 %v1120, 7
      %v1122 = vsub.s32 2, %v1121
      %v1123 = vrot.slane %v725, %v1122
      %v1124 = vmul.f32 %v715, %v1123
      %v1125 = vmul.f32 %v716, %v1123
      %v1126 = vmul.f32 %v717, %v1123
      %v1127 = vmul.f32 %v718, %v1123
      %v1128 = vmul.f32 %v719, %v1123
      %v1129 = vmul.f32 %v720, %v1123
      %v1130 = vmul.f32 %v721, %v1123
      %v1131 = vmul.f32 %v722, %v1123
      %v1132 = vadd.f32 %v1112, %v1124
      %v1133 = vadd.f32 %v1113, %v1125
      %v1134 = vadd.f32 %v1114, %v1126
      %v1135 = vadd.f32 %v1115, %v1127
      %v1136 = vadd.f32 %v1116, %v1128
      %v1137 = vadd.f32 %v1117, %v1129
      %v1138 = vadd.f32 %v1118, %v1130
      %v1139 = vadd.f32 %v1119, %v1131
      %v1140 = vsel %vm486, %v1132, 0.0
      %1141 = vadd.xlane.f32.xlu0 %v1140
      %v1142 = vpop.xlane.xlu0 %1141
      %v1143 = vsel %vm486, %v1133, 0.0
      %1144 = vadd.xlane.f32.xlu0 %v1143
      %v1145 = vpop.xlane.xlu0 %1144
      %v1146 = vsel %vm486, %v1134, 0.0
      %1147 = vadd.xlane.f32.xlu0 %v1146
      %v1148 = vpop.xlane.xlu0 %1147
      %v1149 = vsel %vm486, %v1135, 0.0
      %1150 = vadd.xlane.f32.xlu0 %v1149
      %v1151 = vpop.xlane.xlu0 %1150
      %v1152 = vsel %vm486, %v1136, 0.0
      %1153 = vadd.xlane.f32.xlu0 %v1152
      %v1154 = vpop.xlane.xlu0 %1153
      %v1155 = vsel %vm486, %v1137, 0.0
      %1156 = vadd.xlane.f32.xlu0 %v1155
      %v1157 = vpop.xlane.xlu0 %1156
      %v1158 = vsel %vm486, %v1138, 0.0
      %1159 = vadd.xlane.f32.xlu0 %v1158
      %v1160 = vpop.xlane.xlu0 %1159
      %v1161 = vsel %vm486, %v1139, 0.0
      %1162 = vadd.xlane.f32.xlu0 %v1161
      %v1163 = vpop.xlane.xlu0 %1162
      %v1164 = vmul.f32 %v1142, %v511
      %v1165 = vmul.f32 %v1145, %v511
      %v1166 = vmul.f32 %v1148, %v511
      %v1167 = vmul.f32 %v1151, %v511
      %v1168 = vmul.f32 %v1154, %v511
      %v1169 = vmul.f32 %v1157, %v511
      %v1170 = vmul.f32 %v1160, %v511
      %v1171 = vmul.f32 %v1163, %v511
      %v1172 = vsub.f32 %v1132, %v1164
      %v1173 = vsub.f32 %v1133, %v1165
      %v1174 = vsub.f32 %v1134, %v1166
      %v1175 = vsub.f32 %v1135, %v1167
      %v1176 = vsub.f32 %v1136, %v1168
      %v1177 = vsub.f32 %v1137, %v1169
      %v1178 = vsub.f32 %v1138, %v1170
      %v1179 = vsub.f32 %v1139, %v1171
      %v1180 = vmul.f32 %v1172, %v1172
      %v1181 = vmul.f32 %v1173, %v1173
      %v1182 = vmul.f32 %v1174, %v1174
      %v1183 = vmul.f32 %v1175, %v1175
      %v1184 = vmul.f32 %v1176, %v1176
      %v1185 = vmul.f32 %v1177, %v1177
      %v1186 = vmul.f32 %v1178, %v1178
      %v1187 = vmul.f32 %v1179, %v1179
      %v1188 = vsel %vm486, %v1180, 0.0
      %1189 = vadd.xlane.f32.xlu0 %v1188
      %v1190 = vpop.xlane.xlu0 %1189
      %v1191 = vsel %vm486, %v1181, 0.0
      %1192 = vadd.xlane.f32.xlu0 %v1191
      %v1193 = vpop.xlane.xlu0 %1192
      %v1194 = vsel %vm486, %v1182, 0.0
      %1195 = vadd.xlane.f32.xlu0 %v1194
      %v1196 = vpop.xlane.xlu0 %1195
      %v1197 = vsel %vm486, %v1183, 0.0
      %1198 = vadd.xlane.f32.xlu0 %v1197
      %v1199 = vpop.xlane.xlu0 %1198
      %v1200 = vsel %vm486, %v1184, 0.0
      %1201 = vadd.xlane.f32.xlu0 %v1200
      %v1202 = vpop.xlane.xlu0 %1201
      %v1203 = vsel %vm486, %v1185, 0.0
      %1204 = vadd.xlane.f32.xlu0 %v1203
      %v1205 = vpop.xlane.xlu0 %1204
      %v1206 = vsel %vm486, %v1186, 0.0
      %1207 = vadd.xlane.f32.xlu0 %v1206
      %v1208 = vpop.xlane.xlu0 %1207
      %v1209 = vsel %vm486, %v1187, 0.0
      %1210 = vadd.xlane.f32.xlu0 %v1209
      %v1211 = vpop.xlane.xlu0 %1210
      %v1212 = vmul.f32 %v1190, %v511
      %v1213 = vmul.f32 %v1193, %v511
      %v1214 = vmul.f32 %v1196, %v511
      %v1215 = vmul.f32 %v1199, %v511
      %v1216 = vmul.f32 %v1202, %v511
      %v1217 = vmul.f32 %v1205, %v511
      %v1218 = vmul.f32 %v1208, %v511
      %v1219 = vmul.f32 %v1211, %v511
      %v1220 = vadd.f32 %v1212, 1e-05
      %v1221 = vadd.f32 %v1213, 1e-05
      %v1222 = vadd.f32 %v1214, 1e-05
      %v1223 = vadd.f32 %v1215, 1e-05
      %v1224 = vadd.f32 %v1216, 1e-05
      %v1225 = vadd.f32 %v1217, 1e-05
      %v1226 = vadd.f32 %v1218, 1e-05
      %v1227 = vadd.f32 %v1219, 1e-05
      %v1228 = vrsqrt.pop %v1220
      %v1229 = vrsqrt.pop %v1221
      %v1230 = vrsqrt.pop %v1222
      %v1231 = vrsqrt.pop %v1223
      %v1232 = vrsqrt.pop %v1224
      %v1233 = vrsqrt.pop %v1225
      %v1234 = vrsqrt.pop %v1226
      %v1235 = vrsqrt.pop %v1227
      %v1236 = vmul.f32 %v1172, %v1228
      %v1237 = vmul.f32 %v1173, %v1229
      %v1238 = vmul.f32 %v1174, %v1230
      %v1239 = vmul.f32 %v1175, %v1231
      %v1240 = vmul.f32 %v1176, %v1232
      %v1241 = vmul.f32 %v1177, %v1233
      %v1242 = vmul.f32 %v1178, %v1234
      %v1243 = vmul.f32 %v1179, %v1235
      %v1244 = vlaneseq
      %v1245 = vshrl.u32 %v1244, 7
      %v1246 = vsub.s32 2, %v1245
      %v1247 = vrot.slane %v726, %v1246
      %v1248 = vmul.f32 %v1236, %v1247
      %v1249 = vmul.f32 %v1237, %v1247
      %v1250 = vmul.f32 %v1238, %v1247
      %v1251 = vmul.f32 %v1239, %v1247
      %v1252 = vmul.f32 %v1240, %v1247
      %v1253 = vmul.f32 %v1241, %v1247
      %v1254 = vmul.f32 %v1242, %v1247
      %v1255 = vmul.f32 %v1243, %v1247
      %v1256 = vlaneseq
      %v1257 = vshrl.u32 %v1256, 7
      %v1258 = vsub.s32 2, %v1257
      %v1259 = vrot.slane %v727, %v1258
      %v1260 = vadd.f32 %v1248, %v1259
      %v1261 = vadd.f32 %v1249, %v1259
      %v1262 = vadd.f32 %v1250, %v1259
      %v1263 = vadd.f32 %v1251, %v1259
      %v1264 = vadd.f32 %v1252, %v1259
      %v1265 = vadd.f32 %v1253, %v1259
      %v1266 = vadd.f32 %v1254, %v1259
      %v1267 = vadd.f32 %v1255, %v1259
      %1276 = vrot.lane.b32.xlu0 %v1080, 32
      %v1277 = vpop.permute.xlu0 %1276
      %1278 = vrot.lane.b32.xlu0 %v1081, 32
      %v1279 = vpop.permute.xlu0 %1278
      %1280 = vrot.lane.b32.xlu0 %v1082, 32
      %v1281 = vpop.permute.xlu0 %1280
      %1282 = vrot.lane.b32.xlu0 %v1083, 32
      %v1283 = vpop.permute.xlu0 %1282
      %1284 = vrot.lane.b32.xlu0 %v1084, 32
      %v1285 = vpop.permute.xlu0 %1284
      %1286 = vrot.lane.b32.xlu0 %v1085, 32
      %v1287 = vpop.permute.xlu0 %1286
      %1288 = vrot.lane.b32.xlu0 %v1086, 32
      %v1289 = vpop.permute.xlu0 %1288
      %1290 = vrot.lane.b32.xlu0 %v1087, 32
      %v1291 = vpop.permute.xlu0 %1290
      %1308 = vrot.lane.b32.xlu0 %v1260, 64
      %v1309 = vpop.permute.xlu0 %1308
      %1310 = vrot.lane.b32.xlu0 %v1261, 64
      %v1311 = vpop.permute.xlu0 %1310
      %1312 = vrot.lane.b32.xlu0 %v1262, 64
      %v1313 = vpop.permute.xlu0 %1312
      %1314 = vrot.lane.b32.xlu0 %v1263, 64
      %v1315 = vpop.permute.xlu0 %1314
      %1316 = vrot.lane.b32.xlu0 %v1264, 64
      %v1317 = vpop.permute.xlu0 %1316
      %1318 = vrot.lane.b32.xlu0 %v1265, 64
      %v1319 = vpop.permute.xlu0 %1318
      %1320 = vrot.lane.b32.xlu0 %v1266, 64
      %v1321 = vpop.permute.xlu0 %1320
      %1322 = vrot.lane.b32.xlu0 %v1267, 64
      %v1323 = vpop.permute.xlu0 %1322
      %v1332 = vsel %vm486, %v900, %v1277
      %v1333 = vsel %vm486, %v901, %v1279
      %v1334 = vsel %vm486, %v902, %v1281
      %v1335 = vsel %vm486, %v903, %v1283
      %v1336 = vsel %vm486, %v904, %v1285
      %v1337 = vsel %vm486, %v905, %v1287
      %v1338 = vsel %vm486, %v906, %v1289
      %v1339 = vsel %vm486, %v907, %v1291
      %vm1340 = vcmask 523264
      %v1341 = vsel %vm1340, %v1332, %v1309
      %v1342 = vsel %vm1340, %v1333, %v1311
      %v1343 = vsel %vm1340, %v1334, %v1313
      %v1344 = vsel %vm1340, %v1335, %v1315
      %v1345 = vsel %vm1340, %v1336, %v1317
      %v1346 = vsel %vm1340, %v1337, %v1319
      %v1347 = vsel %vm1340, %v1338, %v1321
      %v1348 = vsel %vm1340, %v1339, %v1323
      %v1349 = vpack.c.bf16 %v1342, %v1341
      %v1350 = vpack.c.bf16 %v1344, %v1343
      %v1351 = vpack.c.bf16 %v1346, %v1345
      %v1352 = vpack.c.bf16 %v1348, %v1347
      %v1353 = vld [vmem:[%s5] sm:$0xf]
      %v1354 = vld [vmem:[%s5 + $0x4] sm:$0xf]
      %v1355 = vld [vmem:[%s5 + $0x8] sm:$0xf]
      %v1356 = vld [vmem:[%s5 + $0xc] sm:$0xf]
      %v1357 = vld [vmem:[%s5 + $0x10] sm:$0xf]
      %v1358 = vld [vmem:[%s5 + $0x14] sm:$0xf]
      %v1359 = vld [vmem:[%s5 + $0x18] sm:$0xf]
      %v1360 = vld [vmem:[%s5 + $0x1c] sm:$0xf]
      %v1361 = vld [vmem:[%s5 + $0x20] sm:$0xf]
      %v1362 = vld [vmem:[%s5 + $0x24] sm:$0xf]
      %v1363 = vld [vmem:[%s5 + $0x28] sm:$0xf]
      %v1364 = vld [vmem:[%s5 + $0x2c] sm:$0xf]
      %v1365 = vld [vmem:[%s6] sm:$0x1]
      %v1367 = vlaneseq
      %v1368 = vshrl.u32 %v1367, 7
      %v1369 = vsub.s32 0, %v1368
      %v1370 = vrot.slane %v1365, %v1369
      %v1384 = vunpack.c.l.b16 %v1353
      %v1385 = vunpack.c.l.b16 %v1354
      %v1386 = vunpack.c.l.b16 %v1355
      %v1387 = vunpack.c.l.b16 %v1356
      %v1388 = vunpack.c.l.b16 %v1357
      %v1389 = vunpack.c.l.b16 %v1358
      %v1390 = vunpack.c.l.b16 %v1359
      %v1391 = vunpack.c.l.b16 %v1360
      %v1392 = vunpack.c.l.b16 %v1361
      %v1393 = vunpack.c.l.b16 %v1362
      %v1394 = vunpack.c.l.b16 %v1363
      %v1395 = vunpack.c.l.b16 %v1364
      %v1396 = vpack.c.b16 %v1385, %v1384
      %v1397 = vpack.c.b16 %v1387, %v1386
      %v1398 = vpack.c.b16 %v1389, %v1388
      %v1399 = vpack.c.b16 %v1391, %v1390
      %v1400 = vpack.c.b16 %v1393, %v1392
      %v1401 = vpack.c.b16 %v1395, %v1394
      %vm1408 = vcmask 785408
      %v1410 = vsel %vm1408, %v1349, 0
      %v1413 = vsel %vm1408, %v1350, 0
      %v1416 = vsel %vm1408, %v1351, 0
      %v1419 = vsel %vm1408, %v1352, 0
      %1421 = vmatprep.subr.bf16.mxu0 0
      %1422 = vmatpush1.bf16.msra.mxu0 %v1396
      %1423 = vmatprep.subr.bf16.mxu0 0
      %1424 = vmatpush1.bf16.msra.mxu0 %v1397
      %1425 = vmatprep.subr.bf16.mxu0 0
      %1426 = vmatpush1.bf16.msra.mxu0 %v1398
      %1427 = vmatprep.subr.bf16.mxu0 0
      %1428 = vmatpush1.bf16.msra.mxu0 %v1399
      %1429 = vmatprep.subr.bf16.mxu0 0
      %1430 = vmatpush1.bf16.msra.mxu0 %v1400
      %1431 = vmatprep.subr.bf16.mxu0 0
      %1432 = vmatpush1.bf16.msra.mxu0 %v1401
      %1433 = vmatprep.subr.bf16.mxu0 0
      %1434 = vmatpush1.bf16.msra.mxu0 0
      %1435 = vmatprep.subr.bf16.mxu0 0
      %1436 = vmatpush1.bf16.msra.mxu0 0
      %1437 = vmatprep.subr.bf16.mxu0 0
      %1438 = vmatpush1.bf16.msra.mxu0 0
      %1439 = vmatprep.subr.bf16.mxu0 0
      %1440 = vmatpush1.bf16.msra.mxu0 0
      %1441 = vmatprep.subr.bf16.mxu0 0
      %1442 = vmatpush1.bf16.msra.mxu0 0
      %1443 = vmatprep.subr.bf16.mxu0 0
      %1444 = vmatpush1.bf16.msra.mxu0 0
      %1445 = vmatprep.subr.bf16.mxu0 0
      %1446 = vmatpush1.bf16.msra.mxu0 0
      %1447 = vmatprep.subr.bf16.mxu0 0
      %1448 = vmatpush1.bf16.msra.mxu0 0
      %1449 = vmatprep.subr.bf16.mxu0 0
      %1450 = vmatpush1.bf16.msra.mxu0 0
      %1451 = vmatprep.subr.bf16.mxu0 0
      %1452 = vmatpush1.bf16.msra.mxu0 0
      %1453 = vmatprep.mubr.bf16.mxu0 0
      %1454 = vmatmul.mubr.bf16.gmra.mrb[0].mxu0 %v1410
      %v1455 = vpop.f32.mrb[0].mxu0
      %v1456 = vadd.f32 %v1370, %v1455
      %v1457 = vpop.f32.mrb[0].mxu0
      %v1458 = vpop.f32.mrb[0].mxu0
      %v1459 = vadd.f32 %v1370, %v1458
      %v1460 = vpop.f32.mrb[0].mxu0
      %1461 = vmatprep.mubr.bf16.mxu0 0
      %1462 = vmatmul.mubr.bf16.gmra.mrb[0].mxu0 %v1413
      %v1463 = vpop.f32.mrb[0].mxu0
      %v1464 = vadd.f32 %v1370, %v1463
      %v1465 = vpop.f32.mrb[0].mxu0
      %v1466 = vpop.f32.mrb[0].mxu0
      %v1467 = vadd.f32 %v1370, %v1466
      %v1468 = vpop.f32.mrb[0].mxu0
      %1469 = vmatprep.mubr.bf16.mxu0 0
      %1470 = vmatmul.mubr.bf16.gmra.mrb[0].mxu0 %v1416
      %v1471 = vpop.f32.mrb[0].mxu0
      %v1472 = vadd.f32 %v1370, %v1471
      %v1473 = vpop.f32.mrb[0].mxu0
      %v1474 = vpop.f32.mrb[0].mxu0
      %v1475 = vadd.f32 %v1370, %v1474
      %v1476 = vpop.f32.mrb[0].mxu0
      %1477 = vmatprep.mubr.bf16.mxu0 0
      %1478 = vmatmul.mubr.bf16.gmra.mrb[0].mxu0 %v1419
      %v1479 = vpop.f32.mrb[0].mxu0
      %v1480 = vadd.f32 %v1370, %v1479
      %v1481 = vpop.f32.mrb[0].mxu0
      %v1482 = vpop.f32.mrb[0].mxu0
      %v1483 = vadd.f32 %v1370, %v1482
      %v1484 = vpop.f32.mrb[0].mxu0
      %1485 = vdwg.mxu0
      %v1486 = vpack.c.bf16 %v1459, %v1456
      %v1487 = vpack.c.bf16 %v1467, %v1464
      %v1488 = vpack.c.bf16 %v1475, %v1472
      %v1489 = vpack.c.bf16 %v1483, %v1480
      %v1490 = vrot.slane %v477, 7
      %v1491 = vrot.slane %v478, 7
      %v1492 = vrot.slane %v479, 7
      %v1493 = vrot.slane %v480, 7
      %v1494 = vrot.slane %v481, 7
      %v1495 = vrot.slane %v482, 7
      %v1496 = vrot.slane %v483, 7
      %v1497 = vrot.slane %v484, 7
      %v1498 = vsel %vm641, %v1496, %v1497
      %v1499 = vsel %vm641, %v1495, %v1496
      %v1500 = vsel %vm641, %v1494, %v1495
      %v1501 = vsel %vm641, %v1493, %v1494
      %v1502 = vsel %vm641, %v1492, %v1493
      %v1503 = vsel %vm641, %v1491, %v1492
      %v1504 = vsel %vm641, %v1490, %v1491
      %v1505 = vsel %vm641, %v1497, %v1490
      %v1506 = vsel %vm658, %v477, %v1505
      %v1507 = vsel %vm659, %v478, %v1504
      %v1508 = vsel %vm660, %v479, %v1503
      %v1509 = vsel %vm661, %v480, %v1502
      %v1510 = vsel %vm662, %v481, %v1501
      %v1511 = vsel %vm663, %v482, %v1500
      %v1512 = vsel %vm664, %v483, %v1499
      %v1513 = vsel %vm665, %v484, %v1498
      %v1514 = vrot.slane %v477, 1
      %v1515 = vrot.slane %v478, 1
      %v1516 = vrot.slane %v479, 1
      %v1517 = vrot.slane %v480, 1
      %v1518 = vrot.slane %v481, 1
      %v1519 = vrot.slane %v482, 1
      %v1520 = vrot.slane %v483, 1
      %v1521 = vrot.slane %v484, 1
      %v1522 = vsel %vm690, %v1520, %v1521
      %v1523 = vsel %vm690, %v1519, %v1520
      %v1524 = vsel %vm690, %v1518, %v1519
      %v1525 = vsel %vm690, %v1517, %v1518
      %v1526 = vsel %vm690, %v1516, %v1517
      %v1527 = vsel %vm690, %v1515, %v1516
      %v1528 = vsel %vm690, %v1514, %v1515
      %v1529 = vsel %vm690, %v1521, %v1514
      %v1530 = vsel %vm707, %v477, %v1528
      %v1531 = vsel %vm708, %v478, %v1527
      %v1532 = vsel %vm709, %v479, %v1526
      %v1533 = vsel %vm710, %v480, %v1525
      %v1534 = vsel %vm711, %v481, %v1524
      %v1535 = vsel %vm712, %v482, %v1523
      %v1536 = vsel %vm713, %v483, %v1522
      %v1537 = vsel %vm714, %v484, %v1529
      %v1538 = vmax.f32 %v1506, %v477
      %v1539 = vmax.f32 %v1507, %v478
      %v1540 = vmax.f32 %v1508, %v479
      %v1541 = vmax.f32 %v1509, %v480
      %v1542 = vmax.f32 %v1510, %v481
      %v1543 = vmax.f32 %v1511, %v482
      %v1544 = vmax.f32 %v1512, %v483
      %v1545 = vmax.f32 %v1513, %v484
      %v1546 = vmax.f32 %v1538, %v1530
      %v1547 = vmax.f32 %v1539, %v1531
      %v1548 = vmax.f32 %v1540, %v1532
      %v1549 = vmax.f32 %v1541, %v1533
      %v1550 = vmax.f32 %v1542, %v1534
      %v1551 = vmax.f32 %v1543, %v1535
      %v1552 = vmax.f32 %v1544, %v1536
      %v1553 = vmax.f32 %v1545, %v1537
      %v1554 = vlaneseq
      %v1555 = vand.u32 %v1554, 127
      %v1556 = vmul.u32 %v617, 2
      %v1557 = vmul.u32 %v618, 2
      %v1558 = vmul.u32 %v619, 2
      %v1559 = vmul.u32 %v620, 2
      %vm1560 = vcmp.eq.s32.totalorder %v1555, %v1556
      %vm1561 = vcmp.eq.s32.totalorder %v1555, %v1557
      %vm1562 = vcmp.eq.s32.totalorder %v1555, %v1558
      %vm1563 = vcmp.eq.s32.totalorder %v1555, %v1559
      %v1564 = vsel %vm1560, 1.0, 0.0
      %v1565 = vsel %vm1561, 1.0, 0.0
      %v1566 = vsel %vm1562, 1.0, 0.0
      %v1567 = vsel %vm1563, 1.0, 0.0
      %v1568 = vpack.c.bf16 %v1565, %v1564
      %v1569 = vpack.c.bf16 %v1567, %v1566
      %v1571 = vsel %vm1340, %v1568, 0
      %v1574 = vsel %vm1340, %v1569, 0
      %1576 = vmatprep.subr.bf16.mxu0 0
      %1577 = vmatpush1.bf16.msra.mxu0 %v1486
      %1578 = vmatprep.subr.bf16.mxu0 0
      %1579 = vmatpush1.bf16.msra.mxu0 %v1487
      %1580 = vmatprep.subr.bf16.mxu0 0
      %1581 = vmatpush1.bf16.msra.mxu0 %v1488
      %1582 = vmatprep.subr.bf16.mxu0 0
      %1583 = vmatpush1.bf16.msra.mxu0 %v1489
      %1584 = vmatprep.subr.bf16.mxu0 0
      %1585 = vmatpush1.bf16.msra.mxu0 0
      %1586 = vmatprep.subr.bf16.mxu0 0
      %1587 = vmatpush1.bf16.msra.mxu0 0
      %1588 = vmatprep.subr.bf16.mxu0 0
      %1589 = vmatpush1.bf16.msra.mxu0 0
      %1590 = vmatprep.subr.bf16.mxu0 0
      %1591 = vmatpush1.bf16.msra.mxu0 0
      %1592 = vmatprep.subr.bf16.mxu0 0
      %1593 = vmatpush1.bf16.msra.mxu0 0
      %1594 = vmatprep.subr.bf16.mxu0 0
      %1595 = vmatpush1.bf16.msra.mxu0 0
      %1596 = vmatprep.subr.bf16.mxu0 0
      %1597 = vmatpush1.bf16.msra.mxu0 0
      %1598 = vmatprep.subr.bf16.mxu0 0
      %1599 = vmatpush1.bf16.msra.mxu0 0
      %1600 = vmatprep.subr.bf16.mxu0 0
      %1601 = vmatpush1.bf16.msra.mxu0 0
      %1602 = vmatprep.subr.bf16.mxu0 0
      %1603 = vmatpush1.bf16.msra.mxu0 0
      %1604 = vmatprep.subr.bf16.mxu0 0
      %1605 = vmatpush1.bf16.msra.mxu0 0
      %1606 = vmatprep.subr.bf16.mxu0 0
      %1607 = vmatpush1.bf16.msra.mxu0 0
      %1608 = vmatprep.mubr.bf16.mxu0 0
      %1609 = vmatmul.mubr.bf16.gmra.mrb[0].mxu0 %v1571
      %v1610 = vpop.f32.mrb[0].mxu0
      %v1611 = vadd.f32 0.0, %v1610
      %v1612 = vpop.f32.mrb[0].mxu0
      %v1613 = vpop.f32.mrb[0].mxu0
      %v1614 = vadd.f32 0.0, %v1613
      %v1615 = vpop.f32.mrb[0].mxu0
      %1616 = vmatprep.mubr.bf16.mxu0 0
      %1617 = vmatmul.mubr.bf16.gmra.mrb[0].mxu0 %v1574
      %v1618 = vpop.f32.mrb[0].mxu0
      %v1619 = vadd.f32 0.0, %v1618
      %v1620 = vpop.f32.mrb[0].mxu0
      %v1621 = vpop.f32.mrb[0].mxu0
      %v1622 = vadd.f32 0.0, %v1621
      %v1623 = vpop.f32.mrb[0].mxu0
      %1624 = vdwg.mxu0
      %v1625 = vpack.c.bf16 %v1614, %v1611
      %v1626 = vpack.c.bf16 %v1622, %v1619
      %v1627 = vpack.c.bf16 %v1547, %v1546
      %v1628 = vpack.c.bf16 %v1549, %v1548
      %v1629 = vpack.c.bf16 %v1551, %v1550
      %v1630 = vpack.c.bf16 %v1553, %v1552
      %1633 = vrot.lane.b32.xlu0 %v1625, 120
      %v1634 = vpop.permute.xlu0 %1633
      %1635 = vrot.lane.b32.xlu0 %v1626, 120
      %v1636 = vpop.permute.xlu0 %1635
      %1637 = vrot.lane.b32.xlu0 %v1625, 112
      %v1638 = vpop.permute.xlu0 %1637
      %1639 = vrot.lane.b32.xlu0 %v1626, 112
      %v1640 = vpop.permute.xlu0 %1639
      %1641 = vrot.lane.b32.xlu0 %v1625, 104
      %v1642 = vpop.permute.xlu0 %1641
      %1643 = vrot.lane.b32.xlu0 %v1626, 104
      %v1644 = vpop.permute.xlu0 %1643
      %1645 = vrot.lane.b32.xlu0 %v1625, 96
      %v1646 = vpop.permute.xlu0 %1645
      %1647 = vrot.lane.b32.xlu0 %v1626, 96
      %v1648 = vpop.permute.xlu0 %1647
      %vm1649 = vcmask 64512
      %v1651 = vsel %vm1649, %v1625, 0
      %v1654 = vsel %vm1649, %v1626, 0
      %v1657 = vsel %vm1649, %v1646, 0
      %v1660 = vsel %vm1649, %v1648, 0
      %1662 = vmatprep.subr.bf16.mxu0 0
      %1663 = vmatpush1.bf16.xpose.msra.mxu0 %v1657
      %1664 = vmatprep.subr.bf16.mxu0 0
      %1665 = vmatpush1.bf16.xpose.msra.mxu0 %v1660
      %1666 = vmatprep.subr.bf16.mxu0 0
      %1667 = vmatpush1.bf16.xpose.msra.mxu0 0
      %1668 = vmatprep.subr.bf16.mxu0 0
      %1669 = vmatpush1.bf16.xpose.msra.mxu0 0
      %1670 = vmatprep.subr.bf16.mxu0 0
      %1671 = vmatpush1.bf16.xpose.msra.mxu0 0
      %1672 = vmatprep.subr.bf16.mxu0 0
      %1673 = vmatpush1.bf16.xpose.msra.mxu0 0
      %1674 = vmatprep.subr.bf16.mxu0 0
      %1675 = vmatpush1.bf16.xpose.msra.mxu0 0
      %1676 = vmatprep.subr.bf16.mxu0 0
      %1677 = vmatpush1.bf16.xpose.msra.mxu0 0
      %1678 = vmatprep.subr.bf16.mxu0 0
      %1679 = vmatpush1.bf16.xpose.msra.mxu0 0
      %1680 = vmatprep.subr.bf16.mxu0 0
      %1681 = vmatpush1.bf16.xpose.msra.mxu0 0
      %1682 = vmatprep.subr.bf16.mxu0 0
      %1683 = vmatpush1.bf16.xpose.msra.mxu0 0
      %1684 = vmatprep.subr.bf16.mxu0 0
      %1685 = vmatpush1.bf16.xpose.msra.mxu0 0
      %1686 = vmatprep.subr.bf16.mxu0 0
      %1687 = vmatpush1.bf16.xpose.msra.mxu0 0
      %1688 = vmatprep.subr.bf16.mxu0 0
      %1689 = vmatpush1.bf16.xpose.msra.mxu0 0
      %1690 = vmatprep.subr.bf16.mxu0 0
      %1691 = vmatpush1.bf16.xpose.msra.mxu0 0
      %1692 = vmatprep.subr.bf16.mxu0 0
      %1693 = vmatpush1.bf16.xpose.msra.mxu0 0
      %1694 = vmatprep.mubr.bf16.mxu0 0
      %1695 = vmatmul.mubr.bf16.gmra.mrb[0].mxu0 %v1651
      %v1696 = vpop.f32.mrb[0].mxu0
      %v1697 = vadd.f32 0.0, %v1696
      %v1698 = vpop.f32.mrb[0].mxu0
      %v1699 = vpop.f32.mrb[0].mxu0
      %v1700 = vadd.f32 0.0, %v1699
      %v1701 = vpop.f32.mrb[0].mxu0
      %1702 = vmatprep.mubr.bf16.mxu0 0
      %1703 = vmatmul.mubr.bf16.gmra.mrb[0].mxu0 %v1654
      %v1704 = vpop.f32.mrb[0].mxu0
      %v1705 = vadd.f32 0.0, %v1704
      %v1706 = vpop.f32.mrb[0].mxu0
      %v1707 = vpop.f32.mrb[0].mxu0
      %v1708 = vadd.f32 0.0, %v1707
      %v1709 = vpop.f32.mrb[0].mxu0
      %1710 = vdwg.mxu0
      %1711 = vrot.lane.b32.xlu0 %v1634, 96
      %v1712 = vpop.permute.xlu0 %1711
      %1713 = vrot.lane.b32.xlu0 %v1636, 96
      %v1714 = vpop.permute.xlu0 %1713
      %v1716 = vsel %vm1649, %v1634, 0
      %v1719 = vsel %vm1649, %v1636, 0
      %v1722 = vsel %vm1649, %v1712, 0
      %v1725 = vsel %vm1649, %v1714, 0
      %1727 = vmatprep.subr.bf16.mxu0 0
      %1728 = vmatpush1.bf16.xpose.msra.mxu0 %v1722
      %1729 = vmatprep.subr.bf16.mxu0 0
      %1730 = vmatpush1.bf16.xpose.msra.mxu0 %v1725
      %1731 = vmatprep.subr.bf16.mxu0 0
      %1732 = vmatpush1.bf16.xpose.msra.mxu0 0
      %1733 = vmatprep.subr.bf16.mxu0 0
      %1734 = vmatpush1.bf16.xpose.msra.mxu0 0
      %1735 = vmatprep.subr.bf16.mxu0 0
      %1736 = vmatpush1.bf16.xpose.msra.mxu0 0
      %1737 = vmatprep.subr.bf16.mxu0 0
      %1738 = vmatpush1.bf16.xpose.msra.mxu0 0
      %1739 = vmatprep.subr.bf16.mxu0 0
      %1740 = vmatpush1.bf16.xpose.msra.mxu0 0
      %1741 = vmatprep.subr.bf16.mxu0 0
      %1742 = vmatpush1.bf16.xpose.msra.mxu0 0
      %1743 = vmatprep.subr.bf16.mxu0 0
      %1744 = vmatpush1.bf16.xpose.msra.mxu0 0
      %1745 = vmatprep.subr.bf16.mxu0 0
      %1746 = vmatpush1.bf16.xpose.msra.mxu0 0
      %1747 = vmatprep.subr.bf16.mxu0 0
      %1748 = vmatpush1.bf16.xpose.msra.mxu0 0
      %1749 = vmatprep.subr.bf16.mxu0 0
      %1750 = vmatpush1.bf16.xpose.msra.mxu0 0
      %1751 = vmatprep.subr.bf16.mxu0 0
      %1752 = vmatpush1.bf16.xpose.msra.mxu0 0
      %1753 = vmatprep.subr.bf16.mxu0 0
      %1754 = vmatpush1.bf16.xpose.msra.mxu0 0
      %1755 = vmatprep.subr.bf16.mxu0 0
      %1756 = vmatpush1.bf16.xpose.msra.mxu0 0
      %1757 = vmatprep.subr.bf16.mxu0 0
      %1758 = vmatpush1.bf16.xpose.msra.mxu0 0
      %1759 = vmatprep.mubr.bf16.mxu0 0
      %1760 = vmatmul.mubr.bf16.gmra.mrb[0].mxu0 %v1716
      %v1761 = vpop.f32.mrb[0].mxu0
      %v1762 = vadd.f32 0.0, %v1761
      %v1763 = vpop.f32.mrb[0].mxu0
      %v1764 = vpop.f32.mrb[0].mxu0
      %v1765 = vadd.f32 0.0, %v1764
      %v1766 = vpop.f32.mrb[0].mxu0
      %1767 = vmatprep.mubr.bf16.mxu0 0
      %1768 = vmatmul.mubr.bf16.gmra.mrb[0].mxu0 %v1719
      %v1769 = vpop.f32.mrb[0].mxu0
      %v1770 = vadd.f32 0.0, %v1769
      %v1771 = vpop.f32.mrb[0].mxu0
      %v1772 = vpop.f32.mrb[0].mxu0
      %v1773 = vadd.f32 0.0, %v1772
      %v1774 = vpop.f32.mrb[0].mxu0
      %1775 = vdwg.mxu0
      %1776 = vrot.lane.b32.xlu0 %v1638, 96
      %v1777 = vpop.permute.xlu0 %1776
      %1778 = vrot.lane.b32.xlu0 %v1640, 96
      %v1779 = vpop.permute.xlu0 %1778
      %v1781 = vsel %vm1649, %v1638, 0
      %v1784 = vsel %vm1649, %v1640, 0
      %v1787 = vsel %vm1649, %v1777, 0
      %v1790 = vsel %vm1649, %v1779, 0
      %1792 = vmatprep.subr.bf16.mxu0 0
      %1793 = vmatpush1.bf16.xpose.msra.mxu0 %v1787
      %1794 = vmatprep.subr.bf16.mxu0 0
      %1795 = vmatpush1.bf16.xpose.msra.mxu0 %v1790
      %1796 = vmatprep.subr.bf16.mxu0 0
      %1797 = vmatpush1.bf16.xpose.msra.mxu0 0
      %1798 = vmatprep.subr.bf16.mxu0 0
      %1799 = vmatpush1.bf16.xpose.msra.mxu0 0
      %1800 = vmatprep.subr.bf16.mxu0 0
      %1801 = vmatpush1.bf16.xpose.msra.mxu0 0
      %1802 = vmatprep.subr.bf16.mxu0 0
      %1803 = vmatpush1.bf16.xpose.msra.mxu0 0
      %1804 = vmatprep.subr.bf16.mxu0 0
      %1805 = vmatpush1.bf16.xpose.msra.mxu0 0
      %1806 = vmatprep.subr.bf16.mxu0 0
      %1807 = vmatpush1.bf16.xpose.msra.mxu0 0
      %1808 = vmatprep.subr.bf16.mxu0 0
      %1809 = vmatpush1.bf16.xpose.msra.mxu0 0
      %1810 = vmatprep.subr.bf16.mxu0 0
      %1811 = vmatpush1.bf16.xpose.msra.mxu0 0
      %1812 = vmatprep.subr.bf16.mxu0 0
      %1813 = vmatpush1.bf16.xpose.msra.mxu0 0
      %1814 = vmatprep.subr.bf16.mxu0 0
      %1815 = vmatpush1.bf16.xpose.msra.mxu0 0
      %1816 = vmatprep.subr.bf16.mxu0 0
      %1817 = vmatpush1.bf16.xpose.msra.mxu0 0
      %1818 = vmatprep.subr.bf16.mxu0 0
      %1819 = vmatpush1.bf16.xpose.msra.mxu0 0
      %1820 = vmatprep.subr.bf16.mxu0 0
      %1821 = vmatpush1.bf16.xpose.msra.mxu0 0
      %1822 = vmatprep.subr.bf16.mxu0 0
      %1823 = vmatpush1.bf16.xpose.msra.mxu0 0
      %1824 = vmatprep.mubr.bf16.mxu0 0
      %1825 = vmatmul.mubr.bf16.gmra.mrb[0].mxu0 %v1781
      %v1826 = vpop.f32.mrb[0].mxu0
      %v1827 = vadd.f32 0.0, %v1826
      %v1828 = vpop.f32.mrb[0].mxu0
      %v1829 = vpop.f32.mrb[0].mxu0
      %v1830 = vadd.f32 0.0, %v1829
      %v1831 = vpop.f32.mrb[0].mxu0
      %1832 = vmatprep.mubr.bf16.mxu0 0
      %1833 = vmatmul.mubr.bf16.gmra.mrb[0].mxu0 %v1784
      %v1834 = vpop.f32.mrb[0].mxu0
      %v1835 = vadd.f32 0.0, %v1834
      %v1836 = vpop.f32.mrb[0].mxu0
      %v1837 = vpop.f32.mrb[0].mxu0
      %v1838 = vadd.f32 0.0, %v1837
      %v1839 = vpop.f32.mrb[0].mxu0
      %1840 = vdwg.mxu0
      %1841 = vrot.lane.b32.xlu0 %v1642, 96
      %v1842 = vpop.permute.xlu0 %1841
      %1843 = vrot.lane.b32.xlu0 %v1644, 96
      %v1844 = vpop.permute.xlu0 %1843
      %v1846 = vsel %vm1649, %v1642, 0
      %v1849 = vsel %vm1649, %v1644, 0
      %v1852 = vsel %vm1649, %v1842, 0
      %v1855 = vsel %vm1649, %v1844, 0
      %1857 = vmatprep.subr.bf16.mxu0 0
      %1858 = vmatpush1.bf16.xpose.msra.mxu0 %v1852
      %1859 = vmatprep.subr.bf16.mxu0 0
      %1860 = vmatpush1.bf16.xpose.msra.mxu0 %v1855
      %1861 = vmatprep.subr.bf16.mxu0 0
      %1862 = vmatpush1.bf16.xpose.msra.mxu0 0
      %1863 = vmatprep.subr.bf16.mxu0 0
      %1864 = vmatpush1.bf16.xpose.msra.mxu0 0
      %1865 = vmatprep.subr.bf16.mxu0 0
      %1866 = vmatpush1.bf16.xpose.msra.mxu0 0
      %1867 = vmatprep.subr.bf16.mxu0 0
      %1868 = vmatpush1.bf16.xpose.msra.mxu0 0
      %1869 = vmatprep.subr.bf16.mxu0 0
      %1870 = vmatpush1.bf16.xpose.msra.mxu0 0
      %1871 = vmatprep.subr.bf16.mxu0 0
      %1872 = vmatpush1.bf16.xpose.msra.mxu0 0
      %1873 = vmatprep.subr.bf16.mxu0 0
      %1874 = vmatpush1.bf16.xpose.msra.mxu0 0
      %1875 = vmatprep.subr.bf16.mxu0 0
      %1876 = vmatpush1.bf16.xpose.msra.mxu0 0
      %1877 = vmatprep.subr.bf16.mxu0 0
      %1878 = vmatpush1.bf16.xpose.msra.mxu0 0
      %1879 = vmatprep.subr.bf16.mxu0 0
      %1880 = vmatpush1.bf16.xpose.msra.mxu0 0
      %1881 = vmatprep.subr.bf16.mxu0 0
      %1882 = vmatpush1.bf16.xpose.msra.mxu0 0
      %1883 = vmatprep.subr.bf16.mxu0 0
      %1884 = vmatpush1.bf16.xpose.msra.mxu0 0
      %1885 = vmatprep.subr.bf16.mxu0 0
      %1886 = vmatpush1.bf16.xpose.msra.mxu0 0
      %1887 = vmatprep.subr.bf16.mxu0 0
      %1888 = vmatpush1.bf16.xpose.msra.mxu0 0
      %1889 = vmatprep.mubr.bf16.mxu0 0
      %1890 = vmatmul.mubr.bf16.gmra.mrb[0].mxu0 %v1846
      %v1891 = vpop.f32.mrb[0].mxu0
      %v1892 = vadd.f32 0.0, %v1891
      %v1893 = vpop.f32.mrb[0].mxu0
      %v1894 = vpop.f32.mrb[0].mxu0
      %v1895 = vadd.f32 0.0, %v1894
      %v1896 = vpop.f32.mrb[0].mxu0
      %1897 = vmatprep.mubr.bf16.mxu0 0
      %1898 = vmatmul.mubr.bf16.gmra.mrb[0].mxu0 %v1849
      %v1899 = vpop.f32.mrb[0].mxu0
      %v1900 = vadd.f32 0.0, %v1899
      %v1901 = vpop.f32.mrb[0].mxu0
      %v1902 = vpop.f32.mrb[0].mxu0
      %v1903 = vadd.f32 0.0, %v1902
      %v1904 = vpop.f32.mrb[0].mxu0
      %1905 = vdwg.mxu0
      %v1906 = vsel %vm486, %v1697, -inf
      %1907 = vmax.xlane.f32.xlu0 %v1906
      %v1908 = vpop.xlane.xlu0 %1907
      %v1909 = vsel %vm486, %v1700, -inf
      %1910 = vmax.xlane.f32.xlu0 %v1909
      %v1911 = vpop.xlane.xlu0 %1910
      %v1912 = vsel %vm486, %v1705, -inf
      %1913 = vmax.xlane.f32.xlu0 %v1912
      %v1914 = vpop.xlane.xlu0 %1913
      %v1915 = vsel %vm486, %v1708, -inf
      %1916 = vmax.xlane.f32.xlu0 %v1915
      %v1917 = vpop.xlane.xlu0 %1916
      %v1918 = vsel %vm486, %v1762, -inf
      %1919 = vmax.xlane.f32.xlu0 %v1918
      %v1920 = vpop.xlane.xlu0 %1919
      %v1921 = vsel %vm486, %v1765, -inf
      %1922 = vmax.xlane.f32.xlu0 %v1921
      %v1923 = vpop.xlane.xlu0 %1922
      %v1924 = vsel %vm486, %v1770, -inf
      %1925 = vmax.xlane.f32.xlu0 %v1924
      %v1926 = vpop.xlane.xlu0 %1925
      %v1927 = vsel %vm486, %v1773, -inf
      %1928 = vmax.xlane.f32.xlu0 %v1927
      %v1929 = vpop.xlane.xlu0 %1928
      %v1930 = vsel %vm486, %v1827, -inf
      %1931 = vmax.xlane.f32.xlu0 %v1930
      %v1932 = vpop.xlane.xlu0 %1931
      %v1933 = vsel %vm486, %v1830, -inf
      %1934 = vmax.xlane.f32.xlu0 %v1933
      %v1935 = vpop.xlane.xlu0 %1934
      %v1936 = vsel %vm486, %v1835, -inf
      %1937 = vmax.xlane.f32.xlu0 %v1936
      %v1938 = vpop.xlane.xlu0 %1937
      %v1939 = vsel %vm486, %v1838, -inf
      %1940 = vmax.xlane.f32.xlu0 %v1939
      %v1941 = vpop.xlane.xlu0 %1940
      %v1942 = vsel %vm486, %v1892, -inf
      %1943 = vmax.xlane.f32.xlu0 %v1942
      %v1944 = vpop.xlane.xlu0 %1943
      %v1945 = vsel %vm486, %v1895, -inf
      %1946 = vmax.xlane.f32.xlu0 %v1945
      %v1947 = vpop.xlane.xlu0 %1946
      %v1948 = vsel %vm486, %v1900, -inf
      %1949 = vmax.xlane.f32.xlu0 %v1948
      %v1950 = vpop.xlane.xlu0 %1949
      %v1951 = vsel %vm486, %v1903, -inf
      %1952 = vmax.xlane.f32.xlu0 %v1951
      %v1953 = vpop.xlane.xlu0 %1952
      %v1954 = vsub.f32 %v1697, %v1908
      %v1955 = vsub.f32 %v1700, %v1911
      %v1956 = vsub.f32 %v1705, %v1914
      %v1957 = vsub.f32 %v1708, %v1917
      %v1958 = vsub.f32 %v1762, %v1920
      %v1959 = vsub.f32 %v1765, %v1923
      %v1960 = vsub.f32 %v1770, %v1926
      %v1961 = vsub.f32 %v1773, %v1929
      %v1962 = vsub.f32 %v1827, %v1932
      %v1963 = vsub.f32 %v1830, %v1935
      %v1964 = vsub.f32 %v1835, %v1938
      %v1965 = vsub.f32 %v1838, %v1941
      %v1966 = vsub.f32 %v1892, %v1944
      %v1967 = vsub.f32 %v1895, %v1947
      %v1968 = vsub.f32 %v1900, %v1950
      %v1969 = vsub.f32 %v1903, %v1953
      %v1970 = vmul.f32 %v1954, 1.442695
      %v1971 = vpow.pop %v1970
      %v1972 = vmul.f32 %v1955, 1.442695
      %v1973 = vpow.pop %v1972
      %v1974 = vmul.f32 %v1956, 1.442695
      %v1975 = vpow.pop %v1974
      %v1976 = vmul.f32 %v1957, 1.442695
      %v1977 = vpow.pop %v1976
      %v1978 = vmul.f32 %v1958, 1.442695
      %v1979 = vpow.pop %v1978
      %v1980 = vmul.f32 %v1959, 1.442695
      %v1981 = vpow.pop %v1980
      %v1982 = vmul.f32 %v1960, 1.442695
      %v1983 = vpow.pop %v1982
      %v1984 = vmul.f32 %v1961, 1.442695
      %v1985 = vpow.pop %v1984
      %v1986 = vmul.f32 %v1962, 1.442695
      %v1987 = vpow.pop %v1986
      %v1988 = vmul.f32 %v1963, 1.442695
      %v1989 = vpow.pop %v1988
      %v1990 = vmul.f32 %v1964, 1.442695
      %v1991 = vpow.pop %v1990
      %v1992 = vmul.f32 %v1965, 1.442695
      %v1993 = vpow.pop %v1992
      %v1994 = vmul.f32 %v1966, 1.442695
      %v1995 = vpow.pop %v1994
      %v1996 = vmul.f32 %v1967, 1.442695
      %v1997 = vpow.pop %v1996
      %v1998 = vmul.f32 %v1968, 1.442695
      %v1999 = vpow.pop %v1998
      %v2000 = vmul.f32 %v1969, 1.442695
      %v2001 = vpow.pop %v2000
      %v2002 = vsel %vm486, %v1971, 0.0
      %2003 = vadd.xlane.f32.xlu0 %v2002
      %v2004 = vpop.xlane.xlu0 %2003
      %v2005 = vsel %vm486, %v1973, 0.0
      %2006 = vadd.xlane.f32.xlu0 %v2005
      %v2007 = vpop.xlane.xlu0 %2006
      %v2008 = vsel %vm486, %v1975, 0.0
      %2009 = vadd.xlane.f32.xlu0 %v2008
      %v2010 = vpop.xlane.xlu0 %2009
      %v2011 = vsel %vm486, %v1977, 0.0
      %2012 = vadd.xlane.f32.xlu0 %v2011
      %v2013 = vpop.xlane.xlu0 %2012
      %v2014 = vsel %vm486, %v1979, 0.0
      %2015 = vadd.xlane.f32.xlu0 %v2014
      %v2016 = vpop.xlane.xlu0 %2015
      %v2017 = vsel %vm486, %v1981, 0.0
      %2018 = vadd.xlane.f32.xlu0 %v2017
      %v2019 = vpop.xlane.xlu0 %2018
      %v2020 = vsel %vm486, %v1983, 0.0
      %2021 = vadd.xlane.f32.xlu0 %v2020
      %v2022 = vpop.xlane.xlu0 %2021
      %v2023 = vsel %vm486, %v1985, 0.0
      %2024 = vadd.xlane.f32.xlu0 %v2023
      %v2025 = vpop.xlane.xlu0 %2024
      %v2026 = vsel %vm486, %v1987, 0.0
      %2027 = vadd.xlane.f32.xlu0 %v2026
      %v2028 = vpop.xlane.xlu0 %2027
      %v2029 = vsel %vm486, %v1989, 0.0
      %2030 = vadd.xlane.f32.xlu0 %v2029
      %v2031 = vpop.xlane.xlu0 %2030
      %v2032 = vsel %vm486, %v1991, 0.0
      %2033 = vadd.xlane.f32.xlu0 %v2032
      %v2034 = vpop.xlane.xlu0 %2033
      %v2035 = vsel %vm486, %v1993, 0.0
      %2036 = vadd.xlane.f32.xlu0 %v2035
      %v2037 = vpop.xlane.xlu0 %2036
      %v2038 = vsel %vm486, %v1995, 0.0
      %2039 = vadd.xlane.f32.xlu0 %v2038
      %v2040 = vpop.xlane.xlu0 %2039
      %v2041 = vsel %vm486, %v1997, 0.0
      %2042 = vadd.xlane.f32.xlu0 %v2041
      %v2043 = vpop.xlane.xlu0 %2042
      %v2044 = vsel %vm486, %v1999, 0.0
      %2045 = vadd.xlane.f32.xlu0 %v2044
      %v2046 = vpop.xlane.xlu0 %2045
      %v2047 = vsel %vm486, %v2001, 0.0
      %2048 = vadd.xlane.f32.xlu0 %v2047
      %v2049 = vpop.xlane.xlu0 %2048
      %v2050 = vrcp.pop %v2004
      %v2051 = vrcp.pop %v2007
      %v2052 = vrcp.pop %v2010
      %v2053 = vrcp.pop %v2013
      %v2054 = vrcp.pop %v2016
      %v2055 = vrcp.pop %v2019
      %v2056 = vrcp.pop %v2022
      %v2057 = vrcp.pop %v2025
      %v2058 = vrcp.pop %v2028
      %v2059 = vrcp.pop %v2031
      %v2060 = vrcp.pop %v2034
      %v2061 = vrcp.pop %v2037
      %v2062 = vrcp.pop %v2040
      %v2063 = vrcp.pop %v2043
      %v2064 = vrcp.pop %v2046
      %v2065 = vrcp.pop %v2049
      %v2066 = vmul.f32 %v1971, %v2050
      %v2067 = vmul.f32 %v1973, %v2051
      %v2068 = vmul.f32 %v1975, %v2052
      %v2069 = vmul.f32 %v1977, %v2053
      %v2070 = vmul.f32 %v1979, %v2054
      %v2071 = vmul.f32 %v1981, %v2055
      %v2072 = vmul.f32 %v1983, %v2056
      %v2073 = vmul.f32 %v1985, %v2057
      %v2074 = vmul.f32 %v1987, %v2058
      %v2075 = vmul.f32 %v1989, %v2059
      %v2076 = vmul.f32 %v1991, %v2060
      %v2077 = vmul.f32 %v1993, %v2061
      %v2078 = vmul.f32 %v1995, %v2062
      %v2079 = vmul.f32 %v1997, %v2063
      %v2080 = vmul.f32 %v1999, %v2064
      %v2081 = vmul.f32 %v2001, %v2065
      %v2082 = vpack.c.bf16 %v2067, %v2066
      %v2083 = vpack.c.bf16 %v2069, %v2068
      %v2084 = vpack.c.bf16 %v2071, %v2070
      %v2085 = vpack.c.bf16 %v2073, %v2072
      %v2086 = vpack.c.bf16 %v2075, %v2074
      %v2087 = vpack.c.bf16 %v2077, %v2076
      %v2088 = vpack.c.bf16 %v2079, %v2078
      %v2089 = vpack.c.bf16 %v2081, %v2080
      %2090 = vrot.lane.b32.xlu0 %v1625, 64
      %v2091 = vpop.permute.xlu0 %2090
      %2092 = vrot.lane.b32.xlu0 %v1626, 64
      %v2093 = vpop.permute.xlu0 %2092
      %v2097 = vsel %vm486, %v2082, 0
      %v2100 = vsel %vm486, %v2083, 0
      %2102 = vmatprep.subr.bf16.mxu0 0
      %2103 = vmatpush1.bf16.msra.mxu0 %v2091
      %2104 = vmatprep.subr.bf16.mxu0 0
      %2105 = vmatpush1.bf16.msra.mxu0 %v2093
      %2106 = vmatprep.subr.bf16.mxu0 0
      %2107 = vmatpush1.bf16.msra.mxu0 0
      %2108 = vmatprep.subr.bf16.mxu0 0
      %2109 = vmatpush1.bf16.msra.mxu0 0
      %2110 = vmatprep.subr.bf16.mxu0 0
      %2111 = vmatpush1.bf16.msra.mxu0 0
      %2112 = vmatprep.subr.bf16.mxu0 0
      %2113 = vmatpush1.bf16.msra.mxu0 0
      %2114 = vmatprep.subr.bf16.mxu0 0
      %2115 = vmatpush1.bf16.msra.mxu0 0
      %2116 = vmatprep.subr.bf16.mxu0 0
      %2117 = vmatpush1.bf16.msra.mxu0 0
      %2118 = vmatprep.subr.bf16.mxu0 0
      %2119 = vmatpush1.bf16.msra.mxu0 0
      %2120 = vmatprep.subr.bf16.mxu0 0
      %2121 = vmatpush1.bf16.msra.mxu0 0
      %2122 = vmatprep.subr.bf16.mxu0 0
      %2123 = vmatpush1.bf16.msra.mxu0 0
      %2124 = vmatprep.subr.bf16.mxu0 0
      %2125 = vmatpush1.bf16.msra.mxu0 0
      %2126 = vmatprep.subr.bf16.mxu0 0
      %2127 = vmatpush1.bf16.msra.mxu0 0
      %2128 = vmatprep.subr.bf16.mxu0 0
      %2129 = vmatpush1.bf16.msra.mxu0 0
      %2130 = vmatprep.subr.bf16.mxu0 0
      %2131 = vmatpush1.bf16.msra.mxu0 0
      %2132 = vmatprep.subr.bf16.mxu0 0
      %2133 = vmatpush1.bf16.msra.mxu0 0
      %2134 = vmatprep.mubr.bf16.mxu0 0
      %2135 = vmatmul.mubr.bf16.gmra.mrb[0].mxu0 %v2097
      %v2136 = vpop.f32.mrb[0].mxu0
      %v2137 = vadd.f32 0.0, %v2136
      %v2138 = vpop.f32.mrb[0].mxu0
      %v2139 = vpop.f32.mrb[0].mxu0
      %v2140 = vadd.f32 0.0, %v2139
      %v2141 = vpop.f32.mrb[0].mxu0
      %2142 = vmatprep.mubr.bf16.mxu0 0
      %2143 = vmatmul.mubr.bf16.gmra.mrb[0].mxu0 %v2100
      %v2144 = vpop.f32.mrb[0].mxu0
      %v2145 = vadd.f32 0.0, %v2144
      %v2146 = vpop.f32.mrb[0].mxu0
      %v2147 = vpop.f32.mrb[0].mxu0
      %v2148 = vadd.f32 0.0, %v2147
      %v2149 = vpop.f32.mrb[0].mxu0
      %2150 = vdwg.mxu0
      %2151 = vrot.lane.b32.xlu0 %v1634, 64
      %v2152 = vpop.permute.xlu0 %2151
      %2153 = vrot.lane.b32.xlu0 %v1636, 64
      %v2154 = vpop.permute.xlu0 %2153
      %v2158 = vsel %vm486, %v2084, 0
      %v2161 = vsel %vm486, %v2085, 0
      %2163 = vmatprep.subr.bf16.mxu0 0
      %2164 = vmatpush1.bf16.msra.mxu0 %v2152
      %2165 = vmatprep.subr.bf16.mxu0 0
      %2166 = vmatpush1.bf16.msra.mxu0 %v2154
      %2167 = vmatprep.subr.bf16.mxu0 0
      %2168 = vmatpush1.bf16.msra.mxu0 0
      %2169 = vmatprep.subr.bf16.mxu0 0
      %2170 = vmatpush1.bf16.msra.mxu0 0
      %2171 = vmatprep.subr.bf16.mxu0 0
      %2172 = vmatpush1.bf16.msra.mxu0 0
      %2173 = vmatprep.subr.bf16.mxu0 0
      %2174 = vmatpush1.bf16.msra.mxu0 0
      %2175 = vmatprep.subr.bf16.mxu0 0
      %2176 = vmatpush1.bf16.msra.mxu0 0
      %2177 = vmatprep.subr.bf16.mxu0 0
      %2178 = vmatpush1.bf16.msra.mxu0 0
      %2179 = vmatprep.subr.bf16.mxu0 0
      %2180 = vmatpush1.bf16.msra.mxu0 0
      %2181 = vmatprep.subr.bf16.mxu0 0
      %2182 = vmatpush1.bf16.msra.mxu0 0
      %2183 = vmatprep.subr.bf16.mxu0 0
      %2184 = vmatpush1.bf16.msra.mxu0 0
      %2185 = vmatprep.subr.bf16.mxu0 0
      %2186 = vmatpush1.bf16.msra.mxu0 0
      %2187 = vmatprep.subr.bf16.mxu0 0
      %2188 = vmatpush1.bf16.msra.mxu0 0
      %2189 = vmatprep.subr.bf16.mxu0 0
      %2190 = vmatpush1.bf16.msra.mxu0 0
      %2191 = vmatprep.subr.bf16.mxu0 0
      %2192 = vmatpush1.bf16.msra.mxu0 0
      %2193 = vmatprep.subr.bf16.mxu0 0
      %2194 = vmatpush1.bf16.msra.mxu0 0
      %2195 = vmatprep.mubr.bf16.mxu0 0
      %2196 = vmatmul.mubr.bf16.gmra.mrb[0].mxu0 %v2158
      %v2197 = vpop.f32.mrb[0].mxu0
      %v2198 = vadd.f32 0.0, %v2197
      %v2199 = vpop.f32.mrb[0].mxu0
      %v2200 = vpop.f32.mrb[0].mxu0
      %v2201 = vadd.f32 0.0, %v2200
      %v2202 = vpop.f32.mrb[0].mxu0
      %2203 = vmatprep.mubr.bf16.mxu0 0
      %2204 = vmatmul.mubr.bf16.gmra.mrb[0].mxu0 %v2161
      %v2205 = vpop.f32.mrb[0].mxu0
      %v2206 = vadd.f32 0.0, %v2205
      %v2207 = vpop.f32.mrb[0].mxu0
      %v2208 = vpop.f32.mrb[0].mxu0
      %v2209 = vadd.f32 0.0, %v2208
      %v2210 = vpop.f32.mrb[0].mxu0
      %2211 = vdwg.mxu0
      %2212 = vrot.lane.b32.xlu0 %v1638, 64
      %v2213 = vpop.permute.xlu0 %2212
      %2214 = vrot.lane.b32.xlu0 %v1640, 64
      %v2215 = vpop.permute.xlu0 %2214
      %v2219 = vsel %vm486, %v2086, 0
      %v2222 = vsel %vm486, %v2087, 0
      %2224 = vmatprep.subr.bf16.mxu0 0
      %2225 = vmatpush1.bf16.msra.mxu0 %v2213
      %2226 = vmatprep.subr.bf16.mxu0 0
      %2227 = vmatpush1.bf16.msra.mxu0 %v2215
      %2228 = vmatprep.subr.bf16.mxu0 0
      %2229 = vmatpush1.bf16.msra.mxu0 0
      %2230 = vmatprep.subr.bf16.mxu0 0
      %2231 = vmatpush1.bf16.msra.mxu0 0
      %2232 = vmatprep.subr.bf16.mxu0 0
      %2233 = vmatpush1.bf16.msra.mxu0 0
      %2234 = vmatprep.subr.bf16.mxu0 0
      %2235 = vmatpush1.bf16.msra.mxu0 0
      %2236 = vmatprep.subr.bf16.mxu0 0
      %2237 = vmatpush1.bf16.msra.mxu0 0
      %2238 = vmatprep.subr.bf16.mxu0 0
      %2239 = vmatpush1.bf16.msra.mxu0 0
      %2240 = vmatprep.subr.bf16.mxu0 0
      %2241 = vmatpush1.bf16.msra.mxu0 0
      %2242 = vmatprep.subr.bf16.mxu0 0
      %2243 = vmatpush1.bf16.msra.mxu0 0
      %2244 = vmatprep.subr.bf16.mxu0 0
      %2245 = vmatpush1.bf16.msra.mxu0 0
      %2246 = vmatprep.subr.bf16.mxu0 0
      %2247 = vmatpush1.bf16.msra.mxu0 0
      %2248 = vmatprep.subr.bf16.mxu0 0
      %2249 = vmatpush1.bf16.msra.mxu0 0
      %2250 = vmatprep.subr.bf16.mxu0 0
      %2251 = vmatpush1.bf16.msra.mxu0 0
      %2252 = vmatprep.subr.bf16.mxu0 0
      %2253 = vmatpush1.bf16.msra.mxu0 0
      %2254 = vmatprep.subr.bf16.mxu0 0
      %2255 = vmatpush1.bf16.msra.mxu0 0
      %2256 = vmatprep.mubr.bf16.mxu0 0
      %2257 = vmatmul.mubr.bf16.gmra.mrb[0].mxu0 %v2219
      %v2258 = vpop.f32.mrb[0].mxu0
      %v2259 = vadd.f32 0.0, %v2258
      %v2260 = vpop.f32.mrb[0].mxu0
      %v2261 = vpop.f32.mrb[0].mxu0
      %v2262 = vadd.f32 0.0, %v2261
      %v2263 = vpop.f32.mrb[0].mxu0
      %2264 = vmatprep.mubr.bf16.mxu0 0
      %2265 = vmatmul.mubr.bf16.gmra.mrb[0].mxu0 %v2222
      %v2266 = vpop.f32.mrb[0].mxu0
      %v2267 = vadd.f32 0.0, %v2266
      %v2268 = vpop.f32.mrb[0].mxu0
      %v2269 = vpop.f32.mrb[0].mxu0
      %v2270 = vadd.f32 0.0, %v2269
      %v2271 = vpop.f32.mrb[0].mxu0
      %2272 = vdwg.mxu0
      %2273 = vrot.lane.b32.xlu0 %v1642, 64
      %v2274 = vpop.permute.xlu0 %2273
      %2275 = vrot.lane.b32.xlu0 %v1644, 64
      %v2276 = vpop.permute.xlu0 %2275
      %v2280 = vsel %vm486, %v2088, 0
      %v2283 = vsel %vm486, %v2089, 0
      %2285 = vmatprep.subr.bf16.mxu0 0
      %2286 = vmatpush1.bf16.msra.mxu0 %v2274
      %2287 = vmatprep.subr.bf16.mxu0 0
      %2288 = vmatpush1.bf16.msra.mxu0 %v2276
      %2289 = vmatprep.subr.bf16.mxu0 0
      %2290 = vmatpush1.bf16.msra.mxu0 0
      %2291 = vmatprep.subr.bf16.mxu0 0
      %2292 = vmatpush1.bf16.msra.mxu0 0
      %2293 = vmatprep.subr.bf16.mxu0 0
      %2294 = vmatpush1.bf16.msra.mxu0 0
      %2295 = vmatprep.subr.bf16.mxu0 0
      %2296 = vmatpush1.bf16.msra.mxu0 0
      %2297 = vmatprep.subr.bf16.mxu0 0
      %2298 = vmatpush1.bf16.msra.mxu0 0
      %2299 = vmatprep.subr.bf16.mxu0 0
      %2300 = vmatpush1.bf16.msra.mxu0 0
      %2301 = vmatprep.subr.bf16.mxu0 0
      %2302 = vmatpush1.bf16.msra.mxu0 0
      %2303 = vmatprep.subr.bf16.mxu0 0
      %2304 = vmatpush1.bf16.msra.mxu0 0
      %2305 = vmatprep.subr.bf16.mxu0 0
      %2306 = vmatpush1.bf16.msra.mxu0 0
      %2307 = vmatprep.subr.bf16.mxu0 0
      %2308 = vmatpush1.bf16.msra.mxu0 0
      %2309 = vmatprep.subr.bf16.mxu0 0
      %2310 = vmatpush1.bf16.msra.mxu0 0
      %2311 = vmatprep.subr.bf16.mxu0 0
      %2312 = vmatpush1.bf16.msra.mxu0 0
      %2313 = vmatprep.subr.bf16.mxu0 0
      %2314 = vmatpush1.bf16.msra.mxu0 0
      %2315 = vmatprep.subr.bf16.mxu0 0
      %2316 = vmatpush1.bf16.msra.mxu0 0
      %2317 = vmatprep.mubr.bf16.mxu0 0
      %2318 = vmatmul.mubr.bf16.gmra.mrb[0].mxu0 %v2280
      %v2319 = vpop.f32.mrb[0].mxu0
      %v2320 = vadd.f32 0.0, %v2319
      %v2321 = vpop.f32.mrb[0].mxu0
      %v2322 = vpop.f32.mrb[0].mxu0
      %v2323 = vadd.f32 0.0, %v2322
      %v2324 = vpop.f32.mrb[0].mxu0
      %2325 = vmatprep.mubr.bf16.mxu0 0
      %2326 = vmatmul.mubr.bf16.gmra.mrb[0].mxu0 %v2283
      %v2327 = vpop.f32.mrb[0].mxu0
      %v2328 = vadd.f32 0.0, %v2327
      %v2329 = vpop.f32.mrb[0].mxu0
      %v2330 = vpop.f32.mrb[0].mxu0
      %v2331 = vadd.f32 0.0, %v2330
      %v2332 = vpop.f32.mrb[0].mxu0
      %2333 = vdwg.mxu0
      %v2334 = vpack.c.bf16 %v2140, %v2137
      %v2335 = vpack.c.bf16 %v2148, %v2145
      %v2336 = vpack.c.bf16 %v2201, %v2198
      %v2337 = vpack.c.bf16 %v2209, %v2206
      %v2338 = vpack.c.bf16 %v2262, %v2259
      %v2339 = vpack.c.bf16 %v2270, %v2267
      %v2340 = vpack.c.bf16 %v2323, %v2320
      %v2341 = vpack.c.bf16 %v2331, %v2328
      %v2342 = vld [vmem:[%s7] sm:$0xf]
      %v2343 = vld [vmem:[%s7 + $0x4] sm:$0xf]
      %v2344 = vld [vmem:[%s7 + $0x8] sm:$0xf]
      %v2345 = vld [vmem:[%s7 + $0xc] sm:$0xf]
      %v2347 = vsel %vm1649, %v2334, 0
      %v2350 = vsel %vm1649, %v2335, 0
      %vm2352 = vcmask 1043456
      %v2354 = vsel %vm2352, %v2342, 0
      %2356 = vmatprep.subr.bf16.mxu0 0
      %2357 = vmatpush1.bf16.msra.mxu0 %v2354
      %2358 = vmatprep.subr.bf16.mxu0 0
      %2359 = vmatpush1.bf16.msra.mxu0 0
      %2360 = vmatprep.subr.bf16.mxu0 0
      %2361 = vmatpush1.bf16.msra.mxu0 0
      %2362 = vmatprep.subr.bf16.mxu0 0
      %2363 = vmatpush1.bf16.msra.mxu0 0
      %2364 = vmatprep.subr.bf16.mxu0 0
      %2365 = vmatpush1.bf16.msra.mxu0 0
      %2366 = vmatprep.subr.bf16.mxu0 0
      %2367 = vmatpush1.bf16.msra.mxu0 0
      %2368 = vmatprep.subr.bf16.mxu0 0
      %2369 = vmatpush1.bf16.msra.mxu0 0
      %2370 = vmatprep.subr.bf16.mxu0 0
      %2371 = vmatpush1.bf16.msra.mxu0 0
      %2372 = vmatprep.subr.bf16.mxu0 0
      %2373 = vmatpush1.bf16.msra.mxu0 0
      %2374 = vmatprep.subr.bf16.mxu0 0
      %2375 = vmatpush1.bf16.msra.mxu0 0
      %2376 = vmatprep.subr.bf16.mxu0 0
      %2377 = vmatpush1.bf16.msra.mxu0 0
      %2378 = vmatprep.subr.bf16.mxu0 0
      %2379 = vmatpush1.bf16.msra.mxu0 0
      %2380 = vmatprep.subr.bf16.mxu0 0
      %2381 = vmatpush1.bf16.msra.mxu0 0
      %2382 = vmatprep.subr.bf16.mxu0 0
      %2383 = vmatpush1.bf16.msra.mxu0 0
      %2384 = vmatprep.subr.bf16.mxu0 0
      %2385 = vmatpush1.bf16.msra.mxu0 0
      %2386 = vmatprep.subr.bf16.mxu0 0
      %2387 = vmatpush1.bf16.msra.mxu0 0
      %2388 = vmatprep.mubr.bf16.mxu0 0
      %2389 = vmatmul.mubr.bf16.gmra.mrb[0].mxu0 %v2347
      %v2390 = vpop.f32.mrb[0].mxu0
      %v2391 = vadd.f32 0.0, %v2390
      %v2392 = vpop.f32.mrb[0].mxu0
      %v2393 = vpop.f32.mrb[0].mxu0
      %v2394 = vadd.f32 0.0, %v2393
      %v2395 = vpop.f32.mrb[0].mxu0
      %2396 = vmatprep.mubr.bf16.mxu0 0
      %2397 = vmatmul.mubr.bf16.gmra.mrb[0].mxu0 %v2350
      %v2398 = vpop.f32.mrb[0].mxu0
      %v2399 = vadd.f32 0.0, %v2398
      %v2400 = vpop.f32.mrb[0].mxu0
      %v2401 = vpop.f32.mrb[0].mxu0
      %v2402 = vadd.f32 0.0, %v2401
      %v2403 = vpop.f32.mrb[0].mxu0
      %2404 = vdwg.mxu0
      %v2406 = vsel %vm1649, %v2336, 0
      %v2409 = vsel %vm1649, %v2337, 0
      %v2412 = vsel %vm2352, %v2343, 0
      %2414 = vmatprep.subr.bf16.mxu0 0
      %2415 = vmatpush1.bf16.msra.mxu0 %v2412
      %2416 = vmatprep.subr.bf16.mxu0 0
      %2417 = vmatpush1.bf16.msra.mxu0 0
      %2418 = vmatprep.subr.bf16.mxu0 0
      %2419 = vmatpush1.bf16.msra.mxu0 0
      %2420 = vmatprep.subr.bf16.mxu0 0
      %2421 = vmatpush1.bf16.msra.mxu0 0
      %2422 = vmatprep.subr.bf16.mxu0 0
      %2423 = vmatpush1.bf16.msra.mxu0 0
      %2424 = vmatprep.subr.bf16.mxu0 0
      %2425 = vmatpush1.bf16.msra.mxu0 0
      %2426 = vmatprep.subr.bf16.mxu0 0
      %2427 = vmatpush1.bf16.msra.mxu0 0
      %2428 = vmatprep.subr.bf16.mxu0 0
      %2429 = vmatpush1.bf16.msra.mxu0 0
      %2430 = vmatprep.subr.bf16.mxu0 0
      %2431 = vmatpush1.bf16.msra.mxu0 0
      %2432 = vmatprep.subr.bf16.mxu0 0
      %2433 = vmatpush1.bf16.msra.mxu0 0
      %2434 = vmatprep.subr.bf16.mxu0 0
      %2435 = vmatpush1.bf16.msra.mxu0 0
      %2436 = vmatprep.subr.bf16.mxu0 0
      %2437 = vmatpush1.bf16.msra.mxu0 0
      %2438 = vmatprep.subr.bf16.mxu0 0
      %2439 = vmatpush1.bf16.msra.mxu0 0
      %2440 = vmatprep.subr.bf16.mxu0 0
      %2441 = vmatpush1.bf16.msra.mxu0 0
      %2442 = vmatprep.subr.bf16.mxu0 0
      %2443 = vmatpush1.bf16.msra.mxu0 0
      %2444 = vmatprep.subr.bf16.mxu0 0
      %2445 = vmatpush1.bf16.msra.mxu0 0
      %2446 = vmatprep.mubr.bf16.mxu0 0
      %2447 = vmatmul.mubr.bf16.gmra.mrb[0].mxu0 %v2406
      %v2448 = vpop.f32.mrb[0].mxu0
      %v2449 = vadd.f32 0.0, %v2448
      %v2450 = vpop.f32.mrb[0].mxu0
      %v2451 = vpop.f32.mrb[0].mxu0
      %v2452 = vadd.f32 0.0, %v2451
      %v2453 = vpop.f32.mrb[0].mxu0
      %2454 = vmatprep.mubr.bf16.mxu0 0
      %2455 = vmatmul.mubr.bf16.gmra.mrb[0].mxu0 %v2409
      %v2456 = vpop.f32.mrb[0].mxu0
      %v2457 = vadd.f32 0.0, %v2456
      %v2458 = vpop.f32.mrb[0].mxu0
      %v2459 = vpop.f32.mrb[0].mxu0
      %v2460 = vadd.f32 0.0, %v2459
      %v2461 = vpop.f32.mrb[0].mxu0
      %2462 = vdwg.mxu0
      %v2464 = vsel %vm1649, %v2338, 0
      %v2467 = vsel %vm1649, %v2339, 0
      %v2470 = vsel %vm2352, %v2344, 0
      %2472 = vmatprep.subr.bf16.mxu0 0
      %2473 = vmatpush1.bf16.msra.mxu0 %v2470
      %2474 = vmatprep.subr.bf16.mxu0 0
      %2475 = vmatpush1.bf16.msra.mxu0 0
      %2476 = vmatprep.subr.bf16.mxu0 0
      %2477 = vmatpush1.bf16.msra.mxu0 0
      %2478 = vmatprep.subr.bf16.mxu0 0
      %2479 = vmatpush1.bf16.msra.mxu0 0
      %2480 = vmatprep.subr.bf16.mxu0 0
      %2481 = vmatpush1.bf16.msra.mxu0 0
      %2482 = vmatprep.subr.bf16.mxu0 0
      %2483 = vmatpush1.bf16.msra.mxu0 0
      %2484 = vmatprep.subr.bf16.mxu0 0
      %2485 = vmatpush1.bf16.msra.mxu0 0
      %2486 = vmatprep.subr.bf16.mxu0 0
      %2487 = vmatpush1.bf16.msra.mxu0 0
      %2488 = vmatprep.subr.bf16.mxu0 0
      %2489 = vmatpush1.bf16.msra.mxu0 0
      %2490 = vmatprep.subr.bf16.mxu0 0
      %2491 = vmatpush1.bf16.msra.mxu0 0
      %2492 = vmatprep.subr.bf16.mxu0 0
      %2493 = vmatpush1.bf16.msra.mxu0 0
      %2494 = vmatprep.subr.bf16.mxu0 0
      %2495 = vmatpush1.bf16.msra.mxu0 0
      %2496 = vmatprep.subr.bf16.mxu0 0
      %2497 = vmatpush1.bf16.msra.mxu0 0
      %2498 = vmatprep.subr.bf16.mxu0 0
      %2499 = vmatpush1.bf16.msra.mxu0 0
      %2500 = vmatprep.subr.bf16.mxu0 0
      %2501 = vmatpush1.bf16.msra.mxu0 0
      %2502 = vmatprep.subr.bf16.mxu0 0
      %2503 = vmatpush1.bf16.msra.mxu0 0
      %2504 = vmatprep.mubr.bf16.mxu0 0
      %2505 = vmatmul.mubr.bf16.gmra.mrb[0].mxu0 %v2464
      %v2506 = vpop.f32.mrb[0].mxu0
      %v2507 = vadd.f32 0.0, %v2506
      %v2508 = vpop.f32.mrb[0].mxu0
      %v2509 = vpop.f32.mrb[0].mxu0
      %v2510 = vadd.f32 0.0, %v2509
      %v2511 = vpop.f32.mrb[0].mxu0
      %2512 = vmatprep.mubr.bf16.mxu0 0
      %2513 = vmatmul.mubr.bf16.gmra.mrb[0].mxu0 %v2467
      %v2514 = vpop.f32.mrb[0].mxu0
      %v2515 = vadd.f32 0.0, %v2514
      %v2516 = vpop.f32.mrb[0].mxu0
      %v2517 = vpop.f32.mrb[0].mxu0
      %v2518 = vadd.f32 0.0, %v2517
      %v2519 = vpop.f32.mrb[0].mxu0
      %2520 = vdwg.mxu0
      %v2522 = vsel %vm1649, %v2340, 0
      %v2525 = vsel %vm1649, %v2341, 0
      %v2528 = vsel %vm2352, %v2345, 0
      %2530 = vmatprep.subr.bf16.mxu0 0
      %2531 = vmatpush1.bf16.msra.mxu0 %v2528
      %2532 = vmatprep.subr.bf16.mxu0 0
      %2533 = vmatpush1.bf16.msra.mxu0 0
      %2534 = vmatprep.subr.bf16.mxu0 0
      %2535 = vmatpush1.bf16.msra.mxu0 0
      %2536 = vmatprep.subr.bf16.mxu0 0
      %2537 = vmatpush1.bf16.msra.mxu0 0
      %2538 = vmatprep.subr.bf16.mxu0 0
      %2539 = vmatpush1.bf16.msra.mxu0 0
      %2540 = vmatprep.subr.bf16.mxu0 0
      %2541 = vmatpush1.bf16.msra.mxu0 0
      %2542 = vmatprep.subr.bf16.mxu0 0
      %2543 = vmatpush1.bf16.msra.mxu0 0
      %2544 = vmatprep.subr.bf16.mxu0 0
      %2545 = vmatpush1.bf16.msra.mxu0 0
      %2546 = vmatprep.subr.bf16.mxu0 0
      %2547 = vmatpush1.bf16.msra.mxu0 0
      %2548 = vmatprep.subr.bf16.mxu0 0
      %2549 = vmatpush1.bf16.msra.mxu0 0
      %2550 = vmatprep.subr.bf16.mxu0 0
      %2551 = vmatpush1.bf16.msra.mxu0 0
      %2552 = vmatprep.subr.bf16.mxu0 0
      %2553 = vmatpush1.bf16.msra.mxu0 0
      %2554 = vmatprep.subr.bf16.mxu0 0
      %2555 = vmatpush1.bf16.msra.mxu0 0
      %2556 = vmatprep.subr.bf16.mxu0 0
      %2557 = vmatpush1.bf16.msra.mxu0 0
      %2558 = vmatprep.subr.bf16.mxu0 0
      %2559 = vmatpush1.bf16.msra.mxu0 0
      %2560 = vmatprep.subr.bf16.mxu0 0
      %2561 = vmatpush1.bf16.msra.mxu0 0
      %2562 = vmatprep.mubr.bf16.mxu0 0
      %2563 = vmatmul.mubr.bf16.gmra.mrb[0].mxu0 %v2522
      %v2564 = vpop.f32.mrb[0].mxu0
      %v2565 = vadd.f32 0.0, %v2564
      %v2566 = vpop.f32.mrb[0].mxu0
      %v2567 = vpop.f32.mrb[0].mxu0
      %v2568 = vadd.f32 0.0, %v2567
      %v2569 = vpop.f32.mrb[0].mxu0
      %2570 = vmatprep.mubr.bf16.mxu0 0
      %2571 = vmatmul.mubr.bf16.gmra.mrb[0].mxu0 %v2525
      %v2572 = vpop.f32.mrb[0].mxu0
      %v2573 = vadd.f32 0.0, %v2572
      %v2574 = vpop.f32.mrb[0].mxu0
      %v2575 = vpop.f32.mrb[0].mxu0
      %v2576 = vadd.f32 0.0, %v2575
      %v2577 = vpop.f32.mrb[0].mxu0
      %2578 = vdwg.mxu0
      %v2579 = vsel %vm486, %v2391, 0.0
      %v2580 = vsel %vm486, %v2449, 0.0
      %v2581 = vadd.f32 %v2579, %v2580
      %v2582 = vsel %vm486, %v2507, 0.0
      %v2583 = vadd.f32 %v2581, %v2582
      %v2584 = vsel %vm486, %v2565, 0.0
      %v2585 = vadd.f32 %v2583, %v2584
      %v2586 = vsel %vm486, %v2394, 0.0
      %v2587 = vsel %vm486, %v2452, 0.0
      %v2588 = vadd.f32 %v2586, %v2587
      %v2589 = vsel %vm486, %v2510, 0.0
      %v2590 = vadd.f32 %v2588, %v2589
      %v2591 = vsel %vm486, %v2568, 0.0
      %v2592 = vadd.f32 %v2590, %v2591
      %v2593 = vsel %vm486, %v2399, 0.0
      %v2594 = vsel %vm486, %v2457, 0.0
      %v2595 = vadd.f32 %v2593, %v2594
      %v2596 = vsel %vm486, %v2515, 0.0
      %v2597 = vadd.f32 %v2595, %v2596
      %v2598 = vsel %vm486, %v2573, 0.0
      %v2599 = vadd.f32 %v2597, %v2598
      %v2600 = vsel %vm486, %v2402, 0.0
      %v2601 = vsel %vm486, %v2460, 0.0
      %v2602 = vadd.f32 %v2600, %v2601
      %v2603 = vsel %vm486, %v2518, 0.0
      %v2604 = vadd.f32 %v2602, %v2603
      %v2605 = vsel %vm486, %v2576, 0.0
      %v2606 = vadd.f32 %v2604, %v2605
      %2607 = vmatprep.subr.bf16.mxu0 0
      %2608 = vmatpush1.bf16.msra.mxu0 %v1627
      %2609 = vmatprep.subr.bf16.mxu0 0
      %2610 = vmatpush1.bf16.msra.mxu0 %v1628
      %2611 = vmatprep.subr.bf16.mxu0 0
      %2612 = vmatpush1.bf16.msra.mxu0 %v1629
      %2613 = vmatprep.subr.bf16.mxu0 0
      %2614 = vmatpush1.bf16.msra.mxu0 %v1630
      %2615 = vmatprep.subr.bf16.mxu0 0
      %2616 = vmatpush1.bf16.msra.mxu0 0
      %2617 = vmatprep.subr.bf16.mxu0 0
      %2618 = vmatpush1.bf16.msra.mxu0 0
      %2619 = vmatprep.subr.bf16.mxu0 0
      %2620 = vmatpush1.bf16.msra.mxu0 0
      %2621 = vmatprep.subr.bf16.mxu0 0
      %2622 = vmatpush1.bf16.msra.mxu0 0
      %2623 = vmatprep.subr.bf16.mxu0 0
      %2624 = vmatpush1.bf16.msra.mxu0 0
      %2625 = vmatprep.subr.bf16.mxu0 0
      %2626 = vmatpush1.bf16.msra.mxu0 0
      %2627 = vmatprep.subr.bf16.mxu0 0
      %2628 = vmatpush1.bf16.msra.mxu0 0
      %2629 = vmatprep.subr.bf16.mxu0 0
      %2630 = vmatpush1.bf16.msra.mxu0 0
      %2631 = vmatprep.subr.bf16.mxu0 0
      %2632 = vmatpush1.bf16.msra.mxu0 0
      %2633 = vmatprep.subr.bf16.mxu0 0
      %2634 = vmatpush1.bf16.msra.mxu0 0
      %2635 = vmatprep.subr.bf16.mxu0 0
      %2636 = vmatpush1.bf16.msra.mxu0 0
      %2637 = vmatprep.subr.bf16.mxu0 0
      %2638 = vmatpush1.bf16.msra.mxu0 0
      %2639 = vmatprep.mubr.bf16.mxu0 0
      %2640 = vmatmul.mubr.bf16.gmra.mrb[0].mxu0 %v1571
      %v2641 = vpop.f32.mrb[0].mxu0
      %v2642 = vadd.f32 %v2585, %v2641
      %v2643 = vpop.f32.mrb[0].mxu0
      %v2644 = vpop.f32.mrb[0].mxu0
      %v2645 = vadd.f32 %v2592, %v2644
      %v2646 = vpop.f32.mrb[0].mxu0
      %2647 = vmatprep.mubr.bf16.mxu0 0
      %2648 = vmatmul.mubr.bf16.gmra.mrb[0].mxu0 %v1574
      %v2649 = vpop.f32.mrb[0].mxu0
      %v2650 = vadd.f32 %v2599, %v2649
      %v2651 = vpop.f32.mrb[0].mxu0
      %v2652 = vpop.f32.mrb[0].mxu0
      %v2653 = vadd.f32 %v2606, %v2652
      %v2654 = vpop.f32.mrb[0].mxu0
      %2655 = vdwg.mxu0
      %v2656 = vld [vmem:[%s8] sm:$0x1]
      %v2658 = vlaneseq
      %v2659 = vshrl.u32 %v2658, 7
      %v2660 = vsub.s32 0, %v2659
      %v2661 = vrot.slane %v2656, %v2660
      %v2663 = vadd.f32 %v2642, %v2661
      %v2664 = vadd.f32 %v2645, %v2661
      %v2665 = vadd.f32 %v2650, %v2661
      %v2666 = vadd.f32 %v2653, %v2661
      %v2667 = vld [vmem:[%s9] sm:$0x3]
      %v2668 = vsel %vm486, %v2663, 0.0
      %2669 = vadd.xlane.f32.xlu0 %v2668
      %v2670 = vpop.xlane.xlu0 %2669
      %v2671 = vsel %vm486, %v2664, 0.0
      %2672 = vadd.xlane.f32.xlu0 %v2671
      %v2673 = vpop.xlane.xlu0 %2672
      %v2674 = vsel %vm486, %v2665, 0.0
      %2675 = vadd.xlane.f32.xlu0 %v2674
      %v2676 = vpop.xlane.xlu0 %2675
      %v2677 = vsel %vm486, %v2666, 0.0
      %2678 = vadd.xlane.f32.xlu0 %v2677
      %v2679 = vpop.xlane.xlu0 %2678
      %v2680 = vmul.f32 %v2670, %v511
      %v2681 = vmul.f32 %v2673, %v511
      %v2682 = vmul.f32 %v2676, %v511
      %v2683 = vmul.f32 %v2679, %v511
      %v2684 = vsub.f32 %v2663, %v2680
      %v2685 = vsub.f32 %v2664, %v2681
      %v2686 = vsub.f32 %v2665, %v2682
      %v2687 = vsub.f32 %v2666, %v2683
      %v2688 = vmul.f32 %v2684, %v2684
      %v2689 = vmul.f32 %v2685, %v2685
      %v2690 = vmul.f32 %v2686, %v2686
      %v2691 = vmul.f32 %v2687, %v2687
      %v2692 = vsel %vm486, %v2688, 0.0
      %2693 = vadd.xlane.f32.xlu0 %v2692
      %v2694 = vpop.xlane.xlu0 %2693
      %v2695 = vsel %vm486, %v2689, 0.0
      %2696 = vadd.xlane.f32.xlu0 %v2695
      %v2697 = vpop.xlane.xlu0 %2696
      %v2698 = vsel %vm486, %v2690, 0.0
      %2699 = vadd.xlane.f32.xlu0 %v2698
      %v2700 = vpop.xlane.xlu0 %2699
      %v2701 = vsel %vm486, %v2691, 0.0
      %2702 = vadd.xlane.f32.xlu0 %v2701
      %v2703 = vpop.xlane.xlu0 %2702
      %v2704 = vmul.f32 %v2694, %v511
      %v2705 = vmul.f32 %v2697, %v511
      %v2706 = vmul.f32 %v2700, %v511
      %v2707 = vmul.f32 %v2703, %v511
      %v2708 = vadd.f32 %v2704, 1e-05
      %v2709 = vadd.f32 %v2705, 1e-05
      %v2710 = vadd.f32 %v2706, 1e-05
      %v2711 = vadd.f32 %v2707, 1e-05
      %v2712 = vrsqrt.pop %v2708
      %v2713 = vrsqrt.pop %v2709
      %v2714 = vrsqrt.pop %v2710
      %v2715 = vrsqrt.pop %v2711
      %v2716 = vmul.f32 %v2684, %v2712
      %v2717 = vmul.f32 %v2685, %v2713
      %v2718 = vmul.f32 %v2686, %v2714
      %v2719 = vmul.f32 %v2687, %v2715
      %v2720 = vlaneseq
      %v2721 = vshrl.u32 %v2720, 7
      %v2722 = vsub.s32 0, %v2721
      %v2723 = vrot.slane %v2667, %v2722
      %v2724 = vmul.f32 %v2716, %v2723
      %v2725 = vmul.f32 %v2717, %v2723
      %v2726 = vmul.f32 %v2718, %v2723
      %v2727 = vmul.f32 %v2719, %v2723
      %v2728 = vlaneseq
      %v2729 = vshrl.u32 %v2728, 7
      %v2730 = vsub.s32 1, %v2729
      %v2731 = vrot.slane %v2667, %v2730
      %v2732 = vadd.f32 %v2724, %v2731
      %v2733 = vadd.f32 %v2725, %v2731
      %v2734 = vadd.f32 %v2726, %v2731
      %v2735 = vadd.f32 %v2727, %v2731
      %v2736 = vpack.c.bf16 %v2733, %v2732
      %v2737 = vpack.c.bf16 %v2735, %v2734
      %v2738 = vld [vmem:[%s10] sm:$0xf]
      %v2739 = vld [vmem:[%s10 + $0x4] sm:$0xf]
      %v2740 = vld [vmem:[%s10 + $0x8] sm:$0xf]
      %v2741 = vld [vmem:[%s10 + $0xc] sm:$0xf]
      %v2742 = vld [vmem:[%s11] sm:$0x1]
      %v2744 = vlaneseq
      %v2745 = vshrl.u32 %v2744, 7
      %v2746 = vsub.s32 0, %v2745
      %v2747 = vrot.slane %v2742, %v2746
      %v2753 = vunpack.c.l.b16 %v2738
      %v2754 = vunpack.c.l.b16 %v2739
      %v2755 = vunpack.c.l.b16 %v2740
      %v2756 = vunpack.c.l.b16 %v2741
      %v2757 = vpack.c.b16 %v2754, %v2753
      %v2758 = vpack.c.b16 %v2756, %v2755
      %v2762 = vsel %vm486, %v2736, 0
      %v2765 = vsel %vm486, %v2737, 0
      %2767 = vmatprep.subr.bf16.mxu0 0
      %2768 = vmatpush1.bf16.msra.mxu0 %v2757
      %2769 = vmatprep.subr.bf16.mxu0 0
      %2770 = vmatpush1.bf16.msra.mxu0 %v2758
      %2771 = vmatprep.subr.bf16.mxu0 0
      %2772 = vmatpush1.bf16.msra.mxu0 0
      %2773 = vmatprep.subr.bf16.mxu0 0
      %2774 = vmatpush1.bf16.msra.mxu0 0
      %2775 = vmatprep.subr.bf16.mxu0 0
      %2776 = vmatpush1.bf16.msra.mxu0 0
      %2777 = vmatprep.subr.bf16.mxu0 0
      %2778 = vmatpush1.bf16.msra.mxu0 0
      %2779 = vmatprep.subr.bf16.mxu0 0
      %2780 = vmatpush1.bf16.msra.mxu0 0
      %2781 = vmatprep.subr.bf16.mxu0 0
      %2782 = vmatpush1.bf16.msra.mxu0 0
      %2783 = vmatprep.subr.bf16.mxu0 0
      %2784 = vmatpush1.bf16.msra.mxu0 0
      %2785 = vmatprep.subr.bf16.mxu0 0
      %2786 = vmatpush1.bf16.msra.mxu0 0
      %2787 = vmatprep.subr.bf16.mxu0 0
      %2788 = vmatpush1.bf16.msra.mxu0 0
      %2789 = vmatprep.subr.bf16.mxu0 0
      %2790 = vmatpush1.bf16.msra.mxu0 0
      %2791 = vmatprep.subr.bf16.mxu0 0
      %2792 = vmatpush1.bf16.msra.mxu0 0
      %2793 = vmatprep.subr.bf16.mxu0 0
      %2794 = vmatpush1.bf16.msra.mxu0 0
      %2795 = vmatprep.subr.bf16.mxu0 0
      %2796 = vmatpush1.bf16.msra.mxu0 0
      %2797 = vmatprep.subr.bf16.mxu0 0
      %2798 = vmatpush1.bf16.msra.mxu0 0
      %2799 = vmatprep.mubr.bf16.mxu0 0
      %2800 = vmatmul.mubr.bf16.gmra.mrb[0].mxu0 %v2762
      %v2801 = vpop.f32.mrb[0].mxu0
      %v2802 = vadd.f32 %v2747, %v2801
      %v2803 = vpop.f32.mrb[0].mxu0
      %v2804 = vpop.f32.mrb[0].mxu0
      %v2805 = vadd.f32 %v2747, %v2804
      %v2806 = vpop.f32.mrb[0].mxu0
      %2807 = vmatprep.mubr.bf16.mxu0 0
      %2808 = vmatmul.mubr.bf16.gmra.mrb[0].mxu0 %v2765
      %v2809 = vpop.f32.mrb[0].mxu0
      %v2810 = vadd.f32 %v2747, %v2809
      %v2811 = vpop.f32.mrb[0].mxu0
      %v2812 = vpop.f32.mrb[0].mxu0
      %v2813 = vadd.f32 %v2747, %v2812
      %v2814 = vpop.f32.mrb[0].mxu0
      %2815 = vdwg.mxu0
      %v2816 = vmul.f32 %v2802, %v2802
      %v2817 = vmul.f32 %v2805, %v2805
      %v2818 = vmul.f32 %v2810, %v2810
      %v2819 = vmul.f32 %v2813, %v2813
      %v2820 = vmul.f32 %v2802, %v2816
      %v2821 = vmul.f32 %v2805, %v2817
      %v2822 = vmul.f32 %v2810, %v2818
      %v2823 = vmul.f32 %v2813, %v2819
      %v2824 = vmul.f32 %v2820, 0.044715
      %v2825 = vmul.f32 %v2821, 0.044715
      %v2826 = vmul.f32 %v2822, 0.044715
      %v2827 = vmul.f32 %v2823, 0.044715
      %v2828 = vadd.f32 %v2802, %v2824
      %v2829 = vadd.f32 %v2805, %v2825
      %v2830 = vadd.f32 %v2810, %v2826
      %v2831 = vadd.f32 %v2813, %v2827
      %v2832 = vmul.f32 %v2828, 0.7978846
      %v2833 = vmul.f32 %v2829, 0.7978846
      %v2834 = vmul.f32 %v2830, 0.7978846
      %v2835 = vmul.f32 %v2831, 0.7978846
      %v2836 = vtanh.pop %v2832
      %v2837 = vtanh.pop %v2833
      %v2838 = vtanh.pop %v2834
      %v2839 = vtanh.pop %v2835
      %v2840 = vadd.f32 %v2836, 1.0
      %v2841 = vadd.f32 %v2837, 1.0
      %v2842 = vadd.f32 %v2838, 1.0
      %v2843 = vadd.f32 %v2839, 1.0
      %v2844 = vmul.f32 %v2840, 0.5
      %v2845 = vmul.f32 %v2841, 0.5
      %v2846 = vmul.f32 %v2842, 0.5
      %v2847 = vmul.f32 %v2843, 0.5
      %v2848 = vmul.f32 %v2802, %v2844
      %v2849 = vmul.f32 %v2805, %v2845
      %v2850 = vmul.f32 %v2810, %v2846
      %v2851 = vmul.f32 %v2813, %v2847
      %v2852 = vpack.c.bf16 %v2849, %v2848
      %v2853 = vpack.c.bf16 %v2851, %v2850
      %v2854 = vld [vmem:[%s12] sm:$0xf]
      %v2855 = vld [vmem:[%s12 + $0x4] sm:$0xf]
      %v2856 = vld [vmem:[%s12 + $0x8] sm:$0xf]
      %v2857 = vld [vmem:[%s12 + $0xc] sm:$0xf]
      %v2858 = vld [vmem:[%s12 + $0x10] sm:$0xf]
      %v2859 = vld [vmem:[%s12 + $0x14] sm:$0xf]
      %v2860 = vld [vmem:[%s12 + $0x18] sm:$0xf]
      %v2861 = vld [vmem:[%s12 + $0x1c] sm:$0xf]
      %v2862 = vld [vmem:[%s12 + $0x20] sm:$0xf]
      %v2863 = vld [vmem:[%s12 + $0x24] sm:$0xf]
      %v2864 = vld [vmem:[%s12 + $0x28] sm:$0xf]
      %v2865 = vld [vmem:[%s12 + $0x2c] sm:$0xf]
      %v2866 = vld [vmem:[%s12 + $0x30] sm:$0xf]
      %v2867 = vld [vmem:[%s12 + $0x34] sm:$0xf]
      %v2868 = vld [vmem:[%s12 + $0x38] sm:$0xf]
      %v2869 = vld [vmem:[%s12 + $0x3c] sm:$0xf]
      %v2870 = vld [vmem:[%s13] sm:$0x1]
      %v2872 = vlaneseq
      %v2873 = vshrl.u32 %v2872, 7
      %v2874 = vsub.s32 0, %v2873
      %v2875 = vrot.slane %v2870, %v2874
      %v2893 = vunpack.c.l.b16 %v2854
      %v2894 = vunpack.c.l.b16 %v2855
      %v2895 = vunpack.c.l.b16 %v2856
      %v2896 = vunpack.c.l.b16 %v2857
      %v2897 = vunpack.c.l.b16 %v2858
      %v2898 = vunpack.c.l.b16 %v2859
      %v2899 = vunpack.c.l.b16 %v2860
      %v2900 = vunpack.c.l.b16 %v2861
      %v2901 = vunpack.c.l.b16 %v2862
      %v2902 = vunpack.c.l.b16 %v2863
      %v2903 = vunpack.c.l.b16 %v2864
      %v2904 = vunpack.c.l.b16 %v2865
      %v2905 = vunpack.c.l.b16 %v2866
      %v2906 = vunpack.c.l.b16 %v2867
      %v2907 = vunpack.c.l.b16 %v2868
      %v2908 = vunpack.c.l.b16 %v2869
      %v2909 = vpack.c.b16 %v2894, %v2893
      %v2910 = vpack.c.b16 %v2896, %v2895
      %v2911 = vpack.c.b16 %v2898, %v2897
      %v2912 = vpack.c.b16 %v2900, %v2899
      %v2913 = vpack.c.b16 %v2902, %v2901
      %v2914 = vpack.c.b16 %v2904, %v2903
      %v2915 = vpack.c.b16 %v2906, %v2905
      %v2916 = vpack.c.b16 %v2908, %v2907
      %2925 = vmatprep.subr.bf16.mxu0 0
      %2926 = vmatpush1.bf16.msra.mxu0 %v2909
      %2927 = vmatprep.subr.bf16.mxu0 0
      %2928 = vmatpush1.bf16.msra.mxu0 %v2910
      %2929 = vmatprep.subr.bf16.mxu0 0
      %2930 = vmatpush1.bf16.msra.mxu0 %v2911
      %2931 = vmatprep.subr.bf16.mxu0 0
      %2932 = vmatpush1.bf16.msra.mxu0 %v2912
      %2933 = vmatprep.subr.bf16.mxu0 0
      %2934 = vmatpush1.bf16.msra.mxu0 %v2913
      %2935 = vmatprep.subr.bf16.mxu0 0
      %2936 = vmatpush1.bf16.msra.mxu0 %v2914
      %2937 = vmatprep.subr.bf16.mxu0 0
      %2938 = vmatpush1.bf16.msra.mxu0 %v2915
      %2939 = vmatprep.subr.bf16.mxu0 0
      %2940 = vmatpush1.bf16.msra.mxu0 %v2916
      %2941 = vmatprep.subr.bf16.mxu0 0
      %2942 = vmatpush1.bf16.msra.mxu0 0
      %2943 = vmatprep.subr.bf16.mxu0 0
      %2944 = vmatpush1.bf16.msra.mxu0 0
      %2945 = vmatprep.subr.bf16.mxu0 0
      %2946 = vmatpush1.bf16.msra.mxu0 0
      %2947 = vmatprep.subr.bf16.mxu0 0
      %2948 = vmatpush1.bf16.msra.mxu0 0
      %2949 = vmatprep.subr.bf16.mxu0 0
      %2950 = vmatpush1.bf16.msra.mxu0 0
      %2951 = vmatprep.subr.bf16.mxu0 0
      %2952 = vmatpush1.bf16.msra.mxu0 0
      %2953 = vmatprep.subr.bf16.mxu0 0
      %2954 = vmatpush1.bf16.msra.mxu0 0
      %2955 = vmatprep.subr.bf16.mxu0 0
      %2956 = vmatpush1.bf16.msra.mxu0 0
      %2957 = vmatprep.mubr.bf16.mxu0 0
      %2958 = vmatmul.mubr.bf16.gmra.mrb[0].mxu0 %v2852
      %v2959 = vpop.f32.mrb[0].mxu0
      %v2960 = vadd.f32 %v2875, %v2959
      %v2961 = vpop.f32.mrb[0].mxu0
      %v2962 = vpop.f32.mrb[0].mxu0
      %v2963 = vadd.f32 %v2875, %v2962
      %v2964 = vpop.f32.mrb[0].mxu0
      %2965 = vmatprep.mubr.bf16.mxu0 0
      %2966 = vmatmul.mubr.bf16.gmra.mrb[0].mxu0 %v2853
      %v2967 = vpop.f32.mrb[0].mxu0
      %v2968 = vadd.f32 %v2875, %v2967
      %v2969 = vpop.f32.mrb[0].mxu0
      %v2970 = vpop.f32.mrb[0].mxu0
      %v2971 = vadd.f32 %v2875, %v2970
      %v2972 = vpop.f32.mrb[0].mxu0
      %2973 = vdwg.mxu0
      %v2974 = vadd.f32 %v2663, %v2960
      %v2975 = vadd.f32 %v2664, %v2963
      %v2976 = vadd.f32 %v2665, %v2968
      %v2977 = vadd.f32 %v2666, %v2971
      %v2978 = vpack.c.bf16 %v2975, %v2974
      %v2979 = vpack.c.bf16 %v2977, %v2976
      %v2982 = vunpack.c.l.b16 %v2978
      %v2983 = vunpack.c.h.b16 %v2978
      %v2984 = vunpack.c.l.b16 %v2979
      %v2985 = vunpack.c.h.b16 %v2979
      %v2986 = vpack.c.b16 %v2982, %v2982
      %v2987 = vpack.c.b16 %v2983, %v2983
      %v2988 = vpack.c.b16 %v2984, %v2984
      %v2989 = vpack.c.b16 %v2985, %v2985
      %vm2994 = vcmask 257024
      %2995 = vst.msk [vmem:[%s467] sm:$0xf] %vm2994, %v2986
      %2996 = vst.msk [vmem:[%s467 + $0x4] sm:$0xf] %vm2994, %v2987
      %2997 = vst.msk [vmem:[%s467 + $0x8] sm:$0xf] %vm2994, %v2988
      %2998 = vst.msk [vmem:[%s467 + $0xc] sm:$0xf] %vm2994, %v2989
      %p2999 = scmp.lt.s32.totalorder %s25, 1
      %s3000 = scalar_select %p2999, %s25, 1
      %s3001 = smul.addr %s3000, 4
      %s3002 = smul.addr %s3001, 4
      %s3003 = scalar_lea.vmem %s14, %s3002
      // Predicated region
      $region77: #{_lambda_.6} parent=75 // pred_check
        %p3004 = pneg %p342
      $region78: #{_lambda_.6} parent=75 // pred_check_branch
        %3006 = sbr.rel (%p3004) target = $region80
      $region79: #{_lambda_.6} parent=75 // pred_region
        _
      $region80: #{_lambda_.6} parent=75 // pred_fallthru
        _
    $region76: #{_lambda_.6} parent=5 // pred_fallthru
      _
    %p3007 = scmp.le.s32.totalorder 2, %s20
    // Predicated region
    $region81: #{_lambda_.6} parent=5 // pred_check
      %p3008 = pneg %p3007
    $region82: #{_lambda_.6} parent=5 // pred_check_branch
      %3010 = sbr.rel (%p3008) target = $region84
    $region83: #{_lambda_.6} parent=5 // pred_region
      %s3011 = ssub.s32 %s20, 2
      // Predicated region
      $region85: #{_lambda_.6} parent=83 // pred_check
        %p3012 = pneg %p348
      $region86: #{_lambda_.6} parent=83 // pred_check_branch
        %3014 = sbr.rel (%p3012) target = $region88
      $region87: #{_lambda_.6} parent=83 // pred_region
        %p3015 = scmp.lt.s32.totalorder %s26, 1
        %s3016 = scalar_select %p3015, %s26, 1
        %s3017 = smul.addr %s3016, 4
        %s3018 = smul.addr %s3017, 4
        %s3019 = scalar_lea.vmem %s14, %s3018
      $region88: #{_lambda_.6} parent=83 // pred_fallthru
        _
    $region84: #{_lambda_.6} parent=5 // pred_fallthru
      _
  $region6: #{_lambda_.6} parent=0 // loop_footer
    %s24 = sadd.s32 1, %s20
  $region7: #{_lambda_.6} parent=0 // loop_footer_branch
    %19 = sbr.rel target = $region3
  $region8: #{_lambda_.6} parent=0 // loop_exit
    _

// kernel: _lambda_.5
$region0: #{_lambda_.5}
  #allocation0 [shape = 'u32[]', space=smem, size = 0x4, offset = 0x4, fixed_abs, tag = 'smem constant byte address 0x4 - core index']
  #allocation1 [shape = 'u32[144,128]{1,0:T(1,128)}', space=vmem, size = 0x12000, scoped, tag = 'internal scratch']
  %s0 = inlined_call_operand.vmem [shape: bf16[2,64,32], index: 0, kind: input, shape index: {}]
  %s1 = inlined_call_operand.vmem [shape: f32[2,32], index: 1, kind: input, shape index: {}, may-alias: {1,9}]
  %s2 = inlined_call_operand.vmem [shape: f32[3,3,32], index: 2, kind: input, shape index: {}]
  %s3 = inlined_call_operand.vmem [shape: f32[3,32], index: 3, kind: input, shape index: {}]
  %s4 = inlined_call_operand.vmem [shape: f32[3,32], index: 4, kind: input, shape index: {}]
  %s5 = inlined_call_operand.vmem [shape: bf16[96,96], index: 5, kind: input, shape index: {}]
  %s6 = inlined_call_operand.vmem [shape: f32[1,96], index: 6, kind: input, shape index: {}]
  %s7 = inlined_call_operand.vmem [shape: bf16[4,8,32], index: 7, kind: input, shape index: {}]
  %s8 = inlined_call_operand.vmem [shape: f32[1,32], index: 8, kind: input, shape index: {}, may-alias: {8,13}]
  %s9 = inlined_call_operand.vmem [shape: f32[2,32], index: 9, kind: input, shape index: {}, may-alias: {1,9}]
  %s10 = inlined_call_operand.vmem [shape: bf16[32,128], index: 10, kind: input, shape index: {}]
  %s11 = inlined_call_operand.vmem [shape: f32[1,128], index: 11, kind: input, shape index: {}]
  %s12 = inlined_call_operand.vmem [shape: bf16[128,32], index: 12, kind: input, shape index: {}]
  %s13 = inlined_call_operand.vmem [shape: f32[1,32], index: 13, kind: input, shape index: {}, may-alias: {8,13}]
  %s14 = inlined_call_operand.vmem [shape: bf16[2,64,32], index: 14, kind: output, shape index: {}]
  %s15 = sld [smem:[#allocation0]]
  $region89: #{_lambda_.5} parent=0
    _
  %s17 = ssub.s32 1, %s15
  %s18 = scalar_select 0, %s17, %s15
  loop: start=0, step=1, limit=4
  $region2: #{_lambda_.5} parent=0 // loop_pre_header
    _
  $region3: #{_lambda_.5} parent=0 // loop_header
    %s20 = sphi 0, %s24
    %p21 = scmp.ge.s32.totalorder %s20, 4
    %s30 = sphi 0, %s32
    %s33 = sphi 0, %s30
    %s34 = sphi 0, %s33
    %s50 = sphi 0, %s34
    %s54 = sphi 0, %s54
    %s56 = sphi 0, %s54
    %s57 = sphi 0, %s56
    %s71 = sphi 0, %s57
    %s75 = sphi 0, %s75
    %s77 = sphi 0, %s75
    %s78 = sphi 0, %s77
    %s92 = sphi 0, %s78
    %s96 = sphi 0, %s96
    %s98 = sphi 0, %s96
    %s99 = sphi 0, %s98
    %s113 = sphi 0, %s99
    %s117 = sphi 0, %s117
    %s119 = sphi 0, %s117
    %s120 = sphi 0, %s119
    %s134 = sphi 0, %s120
    %s138 = sphi 0, %s138
    %s140 = sphi 0, %s138
    %s141 = sphi 0, %s140
    %s155 = sphi 0, %s141
    %s159 = sphi 0, %s159
    %s161 = sphi 0, %s159
    %s162 = sphi 0, %s161
    %s176 = sphi 0, %s162
    %s180 = sphi 0, %s180
    %s182 = sphi 0, %s180
    %s183 = sphi 0, %s182
    %s197 = sphi 0, %s183
    %s201 = sphi 0, %s201
    %s203 = sphi 0, %s201
    %s204 = sphi 0, %s203
    %s218 = sphi 0, %s204
    %s222 = sphi 0, %s222
    %s224 = sphi 0, %s222
    %s225 = sphi 0, %s224
    %s239 = sphi 0, %s225
    %s243 = sphi 0, %s243
    %s245 = sphi 0, %s243
    %s246 = sphi 0, %s245
    %s260 = sphi 0, %s246
    %s264 = sphi 0, %s264
    %s266 = sphi 0, %s264
    %s267 = sphi 0, %s266
    %s281 = sphi 0, %s267
    %s285 = sphi 0, %s285
    %s287 = sphi 0, %s285
    %s288 = sphi 0, %s287
    %s302 = sphi 0, %s288
    %s306 = sphi 0, %s306
    %s308 = sphi 0, %s306
    %s309 = sphi 0, %s308
    %s323 = sphi 0, %s309
    %s329 = sphi 0, %s331
    %s332 = sphi 0, %s329
    %s333 = sphi 0, %s332
    %s349 = sphi 0, %s333
  $region4: #{_lambda_.5} parent=0 // loop_header_branch
    %23 = sbr.rel (%p21) target = $region8
  $region5: #{_lambda_.5} parent=0 // loop_body
    %s25 = ssub.s32 %s20, 1
    %s26 = ssub.s32 %s20, 2
    %s27 = sadd.s32 %s20, 1
    %s28 = ssub.s32 %s20, %s27
    %p29 = scmp.eq.s32.totalorder %s28, 0
    %s31 = sadd.s32 %s30, 1
    %s32 = scalar_select %p29, %s30, %s31
    %p35 = pneg %p29
    %p36 = scmp.eq.s32.totalorder %s20, 1
    %p37 = por %p35, %p36
    %p38 = scmp.ne.s32.totalorder %s30, %s33
    %p39 = scmp.eq.s32.totalorder %s20, 0
    %p40 = por %p38, %p39
    %p41 = scmp.ne.s32.totalorder %s30, %s33
    %p42 = scmp.eq.s32.totalorder %s25, 1
    %p43 = por %p41, %p42
    %p44 = scmp.ne.s32.totalorder %s33, %s34
    %p45 = scmp.eq.s32.totalorder %s25, 0
    %p46 = por %p44, %p45
    %p47 = scmp.ne.s32.totalorder %s33, %s34
    %p48 = scmp.eq.s32.totalorder %s26, 1
    %p49 = por %p47, %p48
    %p51 = scmp.ne.s32.totalorder %s34, %s50
    %p52 = scmp.eq.s32.totalorder %s26, 0
    %p53 = por %p51, %p52
    %s55 = sadd.s32 %s54, 1
    %p58 = scmp.eq.s32.totalorder %s20, 1
    %p59 = scmp.ne.s32.totalorder %s54, %s56
    %p60 = scmp.eq.s32.totalorder %s20, 0
    %p61 = por %p59, %p60
    %p62 = scmp.ne.s32.totalorder %s54, %s56
    %p63 = scmp.eq.s32.totalorder %s25, 1
    %p64 = por %p62, %p63
    %p65 = scmp.ne.s32.totalorder %s56, %s57
    %p66 = scmp.eq.s32.totalorder %s25, 0
    %p67 = por %p65, %p66
    %p68 = scmp.ne.s32.totalorder %s56, %s57
    %p69 = scmp.eq.s32.totalorder %s26, 1
    %p70 = por %p68, %p69
    %p72 = scmp.ne.s32.totalorder %s57, %s71
    %p73 = scmp.eq.s32.totalorder %s26, 0
    %p74 = por %p72, %p73
    %s76 = sadd.s32 %s75, 1
    %p79 = scmp.eq.s32.totalorder %s20, 1
    %p80 = scmp.ne.s32.totalorder %s75, %s77
    %p81 = scmp.eq.s32.totalorder %s20, 0
    %p82 = por %p80, %p81
    %p83 = scmp.ne.s32.totalorder %s75, %s77
    %p84 = scmp.eq.s32.totalorder %s25, 1
    %p85 = por %p83, %p84
    %p86 = scmp.ne.s32.totalorder %s77, %s78
    %p87 = scmp.eq.s32.totalorder %s25, 0
    %p88 = por %p86, %p87
    %p89 = scmp.ne.s32.totalorder %s77, %s78
    %p90 = scmp.eq.s32.totalorder %s26, 1
    %p91 = por %p89, %p90
    %p93 = scmp.ne.s32.totalorder %s78, %s92
    %p94 = scmp.eq.s32.totalorder %s26, 0
    %p95 = por %p93, %p94
    %s97 = sadd.s32 %s96, 1
    %p100 = scmp.eq.s32.totalorder %s20, 1
    %p101 = scmp.ne.s32.totalorder %s96, %s98
    %p102 = scmp.eq.s32.totalorder %s20, 0
    %p103 = por %p101, %p102
    %p104 = scmp.ne.s32.totalorder %s96, %s98
    %p105 = scmp.eq.s32.totalorder %s25, 1
    %p106 = por %p104, %p105
    %p107 = scmp.ne.s32.totalorder %s98, %s99
    %p108 = scmp.eq.s32.totalorder %s25, 0
    %p109 = por %p107, %p108
    %p110 = scmp.ne.s32.totalorder %s98, %s99
    %p111 = scmp.eq.s32.totalorder %s26, 1
    %p112 = por %p110, %p111
    %p114 = scmp.ne.s32.totalorder %s99, %s113
    %p115 = scmp.eq.s32.totalorder %s26, 0
    %p116 = por %p114, %p115
    %s118 = sadd.s32 %s117, 1
    %p121 = scmp.eq.s32.totalorder %s20, 1
    %p122 = scmp.ne.s32.totalorder %s117, %s119
    %p123 = scmp.eq.s32.totalorder %s20, 0
    %p124 = por %p122, %p123
    %p125 = scmp.ne.s32.totalorder %s117, %s119
    %p126 = scmp.eq.s32.totalorder %s25, 1
    %p127 = por %p125, %p126
    %p128 = scmp.ne.s32.totalorder %s119, %s120
    %p129 = scmp.eq.s32.totalorder %s25, 0
    %p130 = por %p128, %p129
    %p131 = scmp.ne.s32.totalorder %s119, %s120
    %p132 = scmp.eq.s32.totalorder %s26, 1
    %p133 = por %p131, %p132
    %p135 = scmp.ne.s32.totalorder %s120, %s134
    %p136 = scmp.eq.s32.totalorder %s26, 0
    %p137 = por %p135, %p136
    %s139 = sadd.s32 %s138, 1
    %p142 = scmp.eq.s32.totalorder %s20, 1
    %p143 = scmp.ne.s32.totalorder %s138, %s140
    %p144 = scmp.eq.s32.totalorder %s20, 0
    %p145 = por %p143, %p144
    %p146 = scmp.ne.s32.totalorder %s138, %s140
    %p147 = scmp.eq.s32.totalorder %s25, 1
    %p148 = por %p146, %p147
    %p149 = scmp.ne.s32.totalorder %s140, %s141
    %p150 = scmp.eq.s32.totalorder %s25, 0
    %p151 = por %p149, %p150
    %p152 = scmp.ne.s32.totalorder %s140, %s141
    %p153 = scmp.eq.s32.totalorder %s26, 1
    %p154 = por %p152, %p153
    %p156 = scmp.ne.s32.totalorder %s141, %s155
    %p157 = scmp.eq.s32.totalorder %s26, 0
    %p158 = por %p156, %p157
    %s160 = sadd.s32 %s159, 1
    %p163 = scmp.eq.s32.totalorder %s20, 1
    %p164 = scmp.ne.s32.totalorder %s159, %s161
    %p165 = scmp.eq.s32.totalorder %s20, 0
    %p166 = por %p164, %p165
    %p167 = scmp.ne.s32.totalorder %s159, %s161
    %p168 = scmp.eq.s32.totalorder %s25, 1
    %p169 = por %p167, %p168
    %p170 = scmp.ne.s32.totalorder %s161, %s162
    %p171 = scmp.eq.s32.totalorder %s25, 0
    %p172 = por %p170, %p171
    %p173 = scmp.ne.s32.totalorder %s161, %s162
    %p174 = scmp.eq.s32.totalorder %s26, 1
    %p175 = por %p173, %p174
    %p177 = scmp.ne.s32.totalorder %s162, %s176
    %p178 = scmp.eq.s32.totalorder %s26, 0
    %p179 = por %p177, %p178
    %s181 = sadd.s32 %s180, 1
    %p184 = scmp.eq.s32.totalorder %s20, 1
    %p185 = scmp.ne.s32.totalorder %s180, %s182
    %p186 = scmp.eq.s32.totalorder %s20, 0
    %p187 = por %p185, %p186
    %p188 = scmp.ne.s32.totalorder %s180, %s182
    %p189 = scmp.eq.s32.totalorder %s25, 1
    %p190 = por %p188, %p189
    %p191 = scmp.ne.s32.totalorder %s182, %s183
    %p192 = scmp.eq.s32.totalorder %s25, 0
    %p193 = por %p191, %p192
    %p194 = scmp.ne.s32.totalorder %s182, %s183
    %p195 = scmp.eq.s32.totalorder %s26, 1
    %p196 = por %p194, %p195
    %p198 = scmp.ne.s32.totalorder %s183, %s197
    %p199 = scmp.eq.s32.totalorder %s26, 0
    %p200 = por %p198, %p199
    %s202 = sadd.s32 %s201, 1
    %p205 = scmp.eq.s32.totalorder %s20, 1
    %p206 = scmp.ne.s32.totalorder %s201, %s203
    %p207 = scmp.eq.s32.totalorder %s20, 0
    %p208 = por %p206, %p207
    %p209 = scmp.ne.s32.totalorder %s201, %s203
    %p210 = scmp.eq.s32.totalorder %s25, 1
    %p211 = por %p209, %p210
    %p212 = scmp.ne.s32.totalorder %s203, %s204
    %p213 = scmp.eq.s32.totalorder %s25, 0
    %p214 = por %p212, %p213
    %p215 = scmp.ne.s32.totalorder %s203, %s204
    %p216 = scmp.eq.s32.totalorder %s26, 1
    %p217 = por %p215, %p216
    %p219 = scmp.ne.s32.totalorder %s204, %s218
    %p220 = scmp.eq.s32.totalorder %s26, 0
    %p221 = por %p219, %p220
    %s223 = sadd.s32 %s222, 1
    %p226 = scmp.eq.s32.totalorder %s20, 1
    %p227 = scmp.ne.s32.totalorder %s222, %s224
    %p228 = scmp.eq.s32.totalorder %s20, 0
    %p229 = por %p227, %p228
    %p230 = scmp.ne.s32.totalorder %s222, %s224
    %p231 = scmp.eq.s32.totalorder %s25, 1
    %p232 = por %p230, %p231
    %p233 = scmp.ne.s32.totalorder %s224, %s225
    %p234 = scmp.eq.s32.totalorder %s25, 0
    %p235 = por %p233, %p234
    %p236 = scmp.ne.s32.totalorder %s224, %s225
    %p237 = scmp.eq.s32.totalorder %s26, 1
    %p238 = por %p236, %p237
    %p240 = scmp.ne.s32.totalorder %s225, %s239
    %p241 = scmp.eq.s32.totalorder %s26, 0
    %p242 = por %p240, %p241
    %s244 = sadd.s32 %s243, 1
    %p247 = scmp.eq.s32.totalorder %s20, 1
    %p248 = scmp.ne.s32.totalorder %s243, %s245
    %p249 = scmp.eq.s32.totalorder %s20, 0
    %p250 = por %p248, %p249
    %p251 = scmp.ne.s32.totalorder %s243, %s245
    %p252 = scmp.eq.s32.totalorder %s25, 1
    %p253 = por %p251, %p252
    %p254 = scmp.ne.s32.totalorder %s245, %s246
    %p255 = scmp.eq.s32.totalorder %s25, 0
    %p256 = por %p254, %p255
    %p257 = scmp.ne.s32.totalorder %s245, %s246
    %p258 = scmp.eq.s32.totalorder %s26, 1
    %p259 = por %p257, %p258
    %p261 = scmp.ne.s32.totalorder %s246, %s260
    %p262 = scmp.eq.s32.totalorder %s26, 0
    %p263 = por %p261, %p262
    %s265 = sadd.s32 %s264, 1
    %p268 = scmp.eq.s32.totalorder %s20, 1
    %p269 = scmp.ne.s32.totalorder %s264, %s266
    %p270 = scmp.eq.s32.totalorder %s20, 0
    %p271 = por %p269, %p270
    %p272 = scmp.ne.s32.totalorder %s264, %s266
    %p273 = scmp.eq.s32.totalorder %s25, 1
    %p274 = por %p272, %p273
    %p275 = scmp.ne.s32.totalorder %s266, %s267
    %p276 = scmp.eq.s32.totalorder %s25, 0
    %p277 = por %p275, %p276
    %p278 = scmp.ne.s32.totalorder %s266, %s267
    %p279 = scmp.eq.s32.totalorder %s26, 1
    %p280 = por %p278, %p279
    %p282 = scmp.ne.s32.totalorder %s267, %s281
    %p283 = scmp.eq.s32.totalorder %s26, 0
    %p284 = por %p282, %p283
    %s286 = sadd.s32 %s285, 1
    %p289 = scmp.eq.s32.totalorder %s20, 1
    %p290 = scmp.ne.s32.totalorder %s285, %s287
    %p291 = scmp.eq.s32.totalorder %s20, 0
    %p292 = por %p290, %p291
    %p293 = scmp.ne.s32.totalorder %s285, %s287
    %p294 = scmp.eq.s32.totalorder %s25, 1
    %p295 = por %p293, %p294
    %p296 = scmp.ne.s32.totalorder %s287, %s288
    %p297 = scmp.eq.s32.totalorder %s25, 0
    %p298 = por %p296, %p297
    %p299 = scmp.ne.s32.totalorder %s287, %s288
    %p300 = scmp.eq.s32.totalorder %s26, 1
    %p301 = por %p299, %p300
    %p303 = scmp.ne.s32.totalorder %s288, %s302
    %p304 = scmp.eq.s32.totalorder %s26, 0
    %p305 = por %p303, %p304
    %s307 = sadd.s32 %s306, 1
    %p310 = scmp.eq.s32.totalorder %s20, 1
    %p311 = scmp.ne.s32.totalorder %s306, %s308
    %p312 = scmp.eq.s32.totalorder %s20, 0
    %p313 = por %p311, %p312
    %p314 = scmp.ne.s32.totalorder %s306, %s308
    %p315 = scmp.eq.s32.totalorder %s25, 1
    %p316 = por %p314, %p315
    %p317 = scmp.ne.s32.totalorder %s308, %s309
    %p318 = scmp.eq.s32.totalorder %s25, 0
    %p319 = por %p317, %p318
    %p320 = scmp.ne.s32.totalorder %s308, %s309
    %p321 = scmp.eq.s32.totalorder %s26, 1
    %p322 = por %p320, %p321
    %p324 = scmp.ne.s32.totalorder %s309, %s323
    %p325 = scmp.eq.s32.totalorder %s26, 0
    %p326 = por %p324, %p325
    %s327 = ssub.s32 %s20, %s27
    %p328 = scmp.eq.s32.totalorder %s327, 0
    %s330 = sadd.s32 %s329, 1
    %s331 = scalar_select %p328, %s329, %s330
    %p334 = pneg %p328
    %p335 = scmp.eq.s32.totalorder %s20, 1
    %p336 = por %p334, %p335
    %p337 = scmp.ne.s32.totalorder %s329, %s332
    %p338 = scmp.eq.s32.totalorder %s20, 0
    %p339 = por %p337, %p338
    %p340 = scmp.ne.s32.totalorder %s329, %s332
    %p341 = scmp.eq.s32.totalorder %s25, 1
    %p342 = por %p340, %p341
    %p343 = scmp.ne.s32.totalorder %s332, %s333
    %p344 = scmp.eq.s32.totalorder %s25, 0
    %p345 = por %p343, %p344
    %p346 = scmp.ne.s32.totalorder %s332, %s333
    %p347 = scmp.eq.s32.totalorder %s26, 1
    %p348 = por %p346, %p347
    %p350 = scmp.ne.s32.totalorder %s333, %s349
    %p351 = scmp.eq.s32.totalorder %s26, 0
    %p352 = por %p350, %p351
    %p353 = scmp.le.s32.totalorder 1, %s20
    %p354 = scmp.lt.s32.totalorder %s20, 3
    %p355 = pnand %p353, %p354
    %p356 = pneg %p355
    // Predicated region
    $region9: #{_lambda_.5} parent=5 // pred_check
      _
    $region10: #{_lambda_.5} parent=5 // pred_check_branch
      %358 = sbr.rel (%p355) target = $region12
    $region11: #{_lambda_.5} parent=5 // pred_region
      %s359 = ssub.s32 %s20, 1
      // Predicated region
      $region13: #{_lambda_.5} parent=11 // pred_check
        %p360 = pneg %p67
      $region14: #{_lambda_.5} parent=11 // pred_check_branch
        %362 = sbr.rel (%p360) target = $region16
      $region15: #{_lambda_.5} parent=11 // pred_region
        _
      $region16: #{_lambda_.5} parent=11 // pred_fallthru
        _
      // Predicated region
      $region17: #{_lambda_.5} parent=11 // pred_check
        %p363 = pneg %p88
      $region18: #{_lambda_.5} parent=11 // pred_check_branch
        %365 = sbr.rel (%p363) target = $region20
      $region19: #{_lambda_.5} parent=11 // pred_region
        _
      $region20: #{_lambda_.5} parent=11 // pred_fallthru
        _
      // Predicated region
      $region21: #{_lambda_.5} parent=11 // pred_check
        %p366 = pneg %p109
      $region22: #{_lambda_.5} parent=11 // pred_check_branch
        %368 = sbr.rel (%p366) target = $region24
      $region23: #{_lambda_.5} parent=11 // pred_region
        _
      $region24: #{_lambda_.5} parent=11 // pred_fallthru
        _
      // Predicated region
      $region25: #{_lambda_.5} parent=11 // pred_check
        %p369 = pneg %p130
      $region26: #{_lambda_.5} parent=11 // pred_check_branch
        %371 = sbr.rel (%p369) target = $region28
      $region27: #{_lambda_.5} parent=11 // pred_region
        _
      $region28: #{_lambda_.5} parent=11 // pred_fallthru
        _
      // Predicated region
      $region29: #{_lambda_.5} parent=11 // pred_check
        %p372 = pneg %p151
      $region30: #{_lambda_.5} parent=11 // pred_check_branch
        %374 = sbr.rel (%p372) target = $region32
      $region31: #{_lambda_.5} parent=11 // pred_region
        _
      $region32: #{_lambda_.5} parent=11 // pred_fallthru
        _
      // Predicated region
      $region33: #{_lambda_.5} parent=11 // pred_check
        %p375 = pneg %p172
      $region34: #{_lambda_.5} parent=11 // pred_check_branch
        %377 = sbr.rel (%p375) target = $region36
      $region35: #{_lambda_.5} parent=11 // pred_region
        _
      $region36: #{_lambda_.5} parent=11 // pred_fallthru
        _
      // Predicated region
      $region37: #{_lambda_.5} parent=11 // pred_check
        %p378 = pneg %p193
      $region38: #{_lambda_.5} parent=11 // pred_check_branch
        %380 = sbr.rel (%p378) target = $region40
      $region39: #{_lambda_.5} parent=11 // pred_region
        _
      $region40: #{_lambda_.5} parent=11 // pred_fallthru
        _
      // Predicated region
      $region41: #{_lambda_.5} parent=11 // pred_check
        %p381 = pneg %p214
      $region42: #{_lambda_.5} parent=11 // pred_check_branch
        %383 = sbr.rel (%p381) target = $region44
      $region43: #{_lambda_.5} parent=11 // pred_region
        _
      $region44: #{_lambda_.5} parent=11 // pred_fallthru
        _
      // Predicated region
      $region45: #{_lambda_.5} parent=11 // pred_check
        %p384 = pneg %p235
      $region46: #{_lambda_.5} parent=11 // pred_check_branch
        %386 = sbr.rel (%p384) target = $region48
      $region47: #{_lambda_.5} parent=11 // pred_region
        _
      $region48: #{_lambda_.5} parent=11 // pred_fallthru
        _
      // Predicated region
      $region49: #{_lambda_.5} parent=11 // pred_check
        %p387 = pneg %p256
      $region50: #{_lambda_.5} parent=11 // pred_check_branch
        %389 = sbr.rel (%p387) target = $region52
      $region51: #{_lambda_.5} parent=11 // pred_region
        _
      $region52: #{_lambda_.5} parent=11 // pred_fallthru
        _
      // Predicated region
      $region53: #{_lambda_.5} parent=11 // pred_check
        %p390 = pneg %p277
      $region54: #{_lambda_.5} parent=11 // pred_check_branch
        %392 = sbr.rel (%p390) target = $region56
      $region55: #{_lambda_.5} parent=11 // pred_region
        _
      $region56: #{_lambda_.5} parent=11 // pred_fallthru
        _
      // Predicated region
      $region57: #{_lambda_.5} parent=11 // pred_check
        %p393 = pneg %p298
      $region58: #{_lambda_.5} parent=11 // pred_check_branch
        %395 = sbr.rel (%p393) target = $region60
      $region59: #{_lambda_.5} parent=11 // pred_region
        _
      $region60: #{_lambda_.5} parent=11 // pred_fallthru
        _
      // Predicated region
      $region61: #{_lambda_.5} parent=11 // pred_check
        %p396 = pneg %p319
      $region62: #{_lambda_.5} parent=11 // pred_check_branch
        %398 = sbr.rel (%p396) target = $region64
      $region63: #{_lambda_.5} parent=11 // pred_region
        _
      $region64: #{_lambda_.5} parent=11 // pred_fallthru
        _
    $region12: #{_lambda_.5} parent=5 // pred_fallthru
      _
    %p399 = scmp.lt.s32.totalorder %s20, 2
    // Predicated region
    $region65: #{_lambda_.5} parent=5 // pred_check
      %p400 = pneg %p399
    $region66: #{_lambda_.5} parent=5 // pred_check_branch
      %402 = sbr.rel (%p400) target = $region68
    $region67: #{_lambda_.5} parent=5 // pred_region
      // Predicated region
      $region69: #{_lambda_.5} parent=67 // pred_check
        %p403 = pneg %p40
      $region70: #{_lambda_.5} parent=67 // pred_check_branch
        %405 = sbr.rel (%p403) target = $region72
      $region71: #{_lambda_.5} parent=67 // pred_region
        %p406 = scmp.lt.s32.totalorder %s20, 1
        %s407 = scalar_select %p406, %s20, 1
        %s408 = smul.addr %s407, 8
        %s409 = smul.addr %s408, 4
        %s410 = scalar_lea.vmem %s0, %s409
      $region72: #{_lambda_.5} parent=67 // pred_fallthru
        _
    $region68: #{_lambda_.5} parent=5 // pred_fallthru
      _
    %p411 = scmp.le.s32.totalorder 1, %s20
    %p412 = scmp.lt.s32.totalorder %s20, 3
    %p413 = pnand %p411, %p412
    %p414 = pneg %p413
    // Predicated region
    $region73: #{_lambda_.5} parent=5 // pred_check
      _
    $region74: #{_lambda_.5} parent=5 // pred_check_branch
      %416 = sbr.rel (%p413) target = $region76
    $region75: #{_lambda_.5} parent=5 // pred_region
      %s417 = ssub.s32 %s20, 1
      %p418 = scmp.lt.s32.totalorder %s25, 1
      %s419 = scalar_select %p418, %s25, 1
      %s420 = smul.addr %s419, 8
      %s421 = smul.addr %s420, 4
      %s422 = scalar_lea.vmem %s0, %s421
      %p423 = pneg %p46
      %p424 = pneg %p43
      %p425 = pneg %p67
      %p426 = pneg %p64
      %p427 = pneg %p88
      %p428 = pneg %p85
      %p429 = pneg %p109
      %p430 = pneg %p106
      %p431 = pneg %p130
      %p432 = pneg %p127
      %p433 = pneg %p151
      %p434 = pneg %p148
      %p435 = pneg %p172
      %p436 = pneg %p169
      %p437 = pneg %p193
      %p438 = pneg %p190
      %p439 = pneg %p214
      %p440 = pneg %p211
      %p441 = pneg %p235
      %p442 = pneg %p232
      %p443 = pneg %p256
      %p444 = pneg %p253
      %p445 = pneg %p277
      %p446 = pneg %p274
      %p447 = pneg %p298
      %p448 = pneg %p295
      %p449 = pneg %p319
      %p450 = pneg %p316
      %p451 = pneg %p345
      %p452 = pneg %p342
      %p453 = scmp.lt.s32.totalorder %s25, 1
      %s454 = scalar_select %p453, %s25, 1
      %s455 = smul.addr %s454, 8
      %s456 = smul.addr %s455, 4
      %s457 = scalar_lea.vmem %s14, %s456
      %p458 = scmp.lt.s32.totalorder %s25, 1
      %s459 = scalar_select %p458, %s25, 1
      %s460 = smul.addr %s459, 8
      %s461 = smul.addr %s460, 4
      %s462 = scalar_lea.vmem %s0, %s461
      %p463 = scmp.lt.s32.totalorder %s25, 1
      %s464 = scalar_select %p463, %s25, 1
      %s465 = smul.addr %s464, 8
      %s466 = smul.addr %s465, 4
      %s467 = scalar_lea.vmem %s14, %s466
      %v469 = vld [vmem:[%s462] sm:$0xf]
      %v470 = vld [vmem:[%s462 + $0x4] sm:$0xf]
      %v471 = vld [vmem:[%s462 + $0x8] sm:$0xf]
      %v472 = vld [vmem:[%s462 + $0xc] sm:$0xf]
      %v473 = vld [vmem:[%s462 + $0x10] sm:$0xf]
      %v474 = vld [vmem:[%s462 + $0x14] sm:$0xf]
      %v475 = vld [vmem:[%s462 + $0x18] sm:$0xf]
      %v476 = vld [vmem:[%s462 + $0x1c] sm:$0xf]
      %v477 = vunpack.c.l.bf16 %v469
      %v478 = vunpack.c.l.bf16 %v470
      %v479 = vunpack.c.l.bf16 %v471
      %v480 = vunpack.c.l.bf16 %v472
      %v481 = vunpack.c.l.bf16 %v473
      %v482 = vunpack.c.l.bf16 %v474
      %v483 = vunpack.c.l.bf16 %v475
      %v484 = vunpack.c.l.bf16 %v476
      %v485 = vld [vmem:[%s1] sm:$0x3]
      %vm486 = vcmask 261120
      %v487 = vsel %vm486, %v477, 0.0
      %488 = vadd.xlane.f32.xlu0 %v487
      %v489 = vpop.xlane.xlu0 %488
      %v490 = vsel %vm486, %v478, 0.0
      %491 = vadd.xlane.f32.xlu0 %v490
      %v492 = vpop.xlane.xlu0 %491
      %v493 = vsel %vm486, %v479, 0.0
      %494 = vadd.xlane.f32.xlu0 %v493
      %v495 = vpop.xlane.xlu0 %494
      %v496 = vsel %vm486, %v480, 0.0
      %497 = vadd.xlane.f32.xlu0 %v496
      %v498 = vpop.xlane.xlu0 %497
      %v499 = vsel %vm486, %v481, 0.0
      %500 = vadd.xlane.f32.xlu0 %v499
      %v501 = vpop.xlane.xlu0 %500
      %v502 = vsel %vm486, %v482, 0.0
      %503 = vadd.xlane.f32.xlu0 %v502
      %v504 = vpop.xlane.xlu0 %503
      %v505 = vsel %vm486, %v483, 0.0
      %506 = vadd.xlane.f32.xlu0 %v505
      %v507 = vpop.xlane.xlu0 %506
      %v508 = vsel %vm486, %v484, 0.0
      %509 = vadd.xlane.f32.xlu0 %v508
      %v510 = vpop.xlane.xlu0 %509
      %v511 = vrcp.pop 32.0
      %v512 = vmul.f32 %v489, %v511
      %v513 = vmul.f32 %v492, %v511
      %v514 = vmul.f32 %v495, %v511
      %v515 = vmul.f32 %v498, %v511
      %v516 = vmul.f32 %v501, %v511
      %v517 = vmul.f32 %v504, %v511
      %v518 = vmul.f32 %v507, %v511
      %v519 = vmul.f32 %v510, %v511
      %v520 = vsub.f32 %v477, %v512
      %v521 = vsub.f32 %v478, %v513
      %v522 = vsub.f32 %v479, %v514
      %v523 = vsub.f32 %v480, %v515
      %v524 = vsub.f32 %v481, %v516
      %v525 = vsub.f32 %v482, %v517
      %v526 = vsub.f32 %v483, %v518
      %v527 = vsub.f32 %v484, %v519
      %v528 = vmul.f32 %v520, %v520
      %v529 = vmul.f32 %v521, %v521
      %v530 = vmul.f32 %v522, %v522
      %v531 = vmul.f32 %v523, %v523
      %v532 = vmul.f32 %v524, %v524
      %v533 = vmul.f32 %v525, %v525
      %v534 = vmul.f32 %v526, %v526
      %v535 = vmul.f32 %v527, %v527
      %v536 = vsel %vm486, %v528, 0.0
      %537 = vadd.xlane.f32.xlu0 %v536
      %v538 = vpop.xlane.xlu0 %537
      %v539 = vsel %vm486, %v529, 0.0
      %540 = vadd.xlane.f32.xlu0 %v539
      %v541 = vpop.xlane.xlu0 %540
      %v542 = vsel %vm486, %v530, 0.0
      %543 = vadd.xlane.f32.xlu0 %v542
      %v544 = vpop.xlane.xlu0 %543
      %v545 = vsel %vm486, %v531, 0.0
      %546 = vadd.xlane.f32.xlu0 %v545
      %v547 = vpop.xlane.xlu0 %546
      %v548 = vsel %vm486, %v532, 0.0
      %549 = vadd.xlane.f32.xlu0 %v548
      %v550 = vpop.xlane.xlu0 %549
      %v551 = vsel %vm486, %v533, 0.0
      %552 = vadd.xlane.f32.xlu0 %v551
      %v553 = vpop.xlane.xlu0 %552
      %v554 = vsel %vm486, %v534, 0.0
      %555 = vadd.xlane.f32.xlu0 %v554
      %v556 = vpop.xlane.xlu0 %555
      %v557 = vsel %vm486, %v535, 0.0
      %558 = vadd.xlane.f32.xlu0 %v557
      %v559 = vpop.xlane.xlu0 %558
      %v560 = vmul.f32 %v538, %v511
      %v561 = vmul.f32 %v541, %v511
      %v562 = vmul.f32 %v544, %v511
      %v563 = vmul.f32 %v547, %v511
      %v564 = vmul.f32 %v550, %v511
      %v565 = vmul.f32 %v553, %v511
      %v566 = vmul.f32 %v556, %v511
      %v567 = vmul.f32 %v559, %v511
      %v568 = vadd.f32 %v560, 1e-05
      %v569 = vadd.f32 %v561, 1e-05
      %v570 = vadd.f32 %v562, 1e-05
      %v571 = vadd.f32 %v563, 1e-05
      %v572 = vadd.f32 %v564, 1e-05
      %v573 = vadd.f32 %v565, 1e-05
      %v574 = vadd.f32 %v566, 1e-05
      %v575 = vadd.f32 %v567, 1e-05
      %v576 = vrsqrt.pop %v568
      %v577 = vrsqrt.pop %v569
      %v578 = vrsqrt.pop %v570
      %v579 = vrsqrt.pop %v571
      %v580 = vrsqrt.pop %v572
      %v581 = vrsqrt.pop %v573
      %v582 = vrsqrt.pop %v574
      %v583 = vrsqrt.pop %v575
      %v584 = vmul.f32 %v520, %v576
      %v585 = vmul.f32 %v521, %v577
      %v586 = vmul.f32 %v522, %v578
      %v587 = vmul.f32 %v523, %v579
      %v588 = vmul.f32 %v524, %v580
      %v589 = vmul.f32 %v525, %v581
      %v590 = vmul.f32 %v526, %v582
      %v591 = vmul.f32 %v527, %v583
      %v592 = vlaneseq
      %v593 = vshrl.u32 %v592, 7
      %v594 = vsub.s32 0, %v593
      %v595 = vrot.slane %v485, %v594
      %v596 = vmul.f32 %v584, %v595
      %v597 = vmul.f32 %v585, %v595
      %v598 = vmul.f32 %v586, %v595
      %v599 = vmul.f32 %v587, %v595
      %v600 = vmul.f32 %v588, %v595
      %v601 = vmul.f32 %v589, %v595
      %v602 = vmul.f32 %v590, %v595
      %v603 = vmul.f32 %v591, %v595
      %v604 = vlaneseq
      %v605 = vshrl.u32 %v604, 7
      %v606 = vsub.s32 1, %v605
      %v607 = vrot.slane %v485, %v606
      %v608 = vadd.f32 %v596, %v607
      %v609 = vadd.f32 %v597, %v607
      %v610 = vadd.f32 %v598, %v607
      %v611 = vadd.f32 %v599, %v607
      %v612 = vadd.f32 %v600, %v607
      %v613 = vadd.f32 %v601, %v607
      %v614 = vadd.f32 %v602, %v607
      %v615 = vadd.f32 %v603, %v607
      %v616 = vlaneseq
      %v617 = vshrl.u32 %v616, 7
      %v618 = vadd.s32 %v617, 8
      %v619 = vadd.s32 %v617, 16
      %v620 = vadd.s32 %v617, 24
      %v621 = vadd.s32 %v617, 32
      %v622 = vadd.s32 %v617, 40
      %v623 = vadd.s32 %v617, 48
      %v624 = vadd.s32 %v617, 56
      %vm625 = vcmp.eq.s32.totalorder %v617, 0
      %vm626 = vcmp.eq.s32.totalorder %v618, 0
      %vm627 = vcmp.eq.s32.totalorder %v619, 0
      %vm628 = vcmp.eq.s32.totalorder %v620, 0
      %vm629 = vcmp.eq.s32.totalorder %v621, 0
      %vm630 = vcmp.eq.s32.totalorder %v622, 0
      %vm631 = vcmp.eq.s32.totalorder %v623, 0
      %vm632 = vcmp.eq.s32.totalorder %v624, 0
      %v633 = vrot.slane %v608, 7
      %v634 = vrot.slane %v609, 7
      %v635 = vrot.slane %v610, 7
      %v636 = vrot.slane %v611, 7
      %v637 = vrot.slane %v612, 7
      %v638 = vrot.slane %v613, 7
      %v639 = vrot.slane %v614, 7
      %v640 = vrot.slane %v615, 7
      %vm641 = vcmp.lt.s32.totalorder %v617, 1
      %v642 = vsel %vm641, %v639, %v640
      %v643 = vsel %vm641, %v638, %v639
      %v644 = vsel %vm641, %v637, %v638
      %v645 = vsel %vm641, %v636, %v637
      %v646 = vsel %vm641, %v635, %v636
      %v647 = vsel %vm641, %v634, %v635
      %v648 = vsel %vm641, %v633, %v634
      %v649 = vsel %vm641, %v640, %v633
      %v650 = vsel %vm625, 1, 0
      %v651 = vsel %vm626, 1, 0
      %v652 = vsel %vm627, 1, 0
      %v653 = vsel %vm628, 1, 0
      %v654 = vsel %vm629, 1, 0
      %v655 = vsel %vm630, 1, 0
      %v656 = vsel %vm631, 1, 0
      %v657 = vsel %vm632, 1, 0
      %vm658 = vcmp.eq.s32.totalorder %v650, 1
      %vm659 = vcmp.eq.s32.totalorder %v651, 1
      %vm660 = vcmp.eq.s32.totalorder %v652, 1
      %vm661 = vcmp.eq.s32.totalorder %v653, 1
      %vm662 = vcmp.eq.s32.totalorder %v654, 1
      %vm663 = vcmp.eq.s32.totalorder %v655, 1
      %vm664 = vcmp.eq.s32.totalorder %v656, 1
      %vm665 = vcmp.eq.s32.totalorder %v657, 1
      %v666 = vsel %vm658, 0.0, %v649
      %v667 = vsel %vm659, 0.0, %v648
      %v668 = vsel %vm660, 0.0, %v647
      %v669 = vsel %vm661, 0.0, %v646
      %v670 = vsel %vm662, 0.0, %v645
      %v671 = vsel %vm663, 0.0, %v644
      %v672 = vsel %vm664, 0.0, %v643
      %v673 = vsel %vm665, 0.0, %v642
      %vm674 = vcmp.eq.s32.totalorder %v617, 63
      %vm675 = vcmp.eq.s32.totalorder %v618, 63
      %vm676 = vcmp.eq.s32.totalorder %v619, 63
      %vm677 = vcmp.eq.s32.totalorder %v620, 63
      %vm678 = vcmp.eq.s32.totalorder %v621, 63
      %vm679 = vcmp.eq.s32.totalorder %v622, 63
      %vm680 = vcmp.eq.s32.totalorder %v623, 63
      %vm681 = vcmp.eq.s32.totalorder %v624, 63
      %v682 = vrot.slane %v608, 1
      %v683 = vrot.slane %v609, 1
      %v684 = vrot.slane %v610, 1
      %v685 = vrot.slane %v611, 1
      %v686 = vrot.slane %v612, 1
      %v687 = vrot.slane %v613, 1
      %v688 = vrot.slane %v614, 1
      %v689 = vrot.slane %v615, 1
      %vm690 = vcmp.lt.s32.totalorder %v617, 7
      %v691 = vsel %vm690, %v688, %v689
      %v692 = vsel %vm690, %v687, %v688
      %v693 = vsel %vm690, %v686, %v687
      %v694 = vsel %vm690, %v685, %v686
      %v695 = vsel %vm690, %v684, %v685
      %v696 = vsel %vm690, %v683, %v684
      %v697 = vsel %vm690, %v682, %v683
      %v698 = vsel %vm690, %v689, %v682
      %v699 = vsel %vm674, 1, 0
      %v700 = vsel %vm675, 1, 0
      %v701 = vsel %vm676, 1, 0
      %v702 = vsel %vm677, 1, 0
      %v703 = vsel %vm678, 1, 0
      %v704 = vsel %vm679, 1, 0
      %v705 = vsel %vm680, 1, 0
      %v706 = vsel %vm681, 1, 0
      %vm707 = vcmp.eq.s32.totalorder %v699, 1
      %vm708 = vcmp.eq.s32.totalorder %v700, 1
      %vm709 = vcmp.eq.s32.totalorder %v701, 1
      %vm710 = vcmp.eq.s32.totalorder %v702, 1
      %vm711 = vcmp.eq.s32.totalorder %v703, 1
      %vm712 = vcmp.eq.s32.totalorder %v704, 1
      %vm713 = vcmp.eq.s32.totalorder %v705, 1
      %vm714 = vcmp.eq.s32.totalorder %v706, 1
      %v715 = vsel %vm707, 0.0, %v697
      %v716 = vsel %vm708, 0.0, %v696
      %v717 = vsel %vm709, 0.0, %v695
      %v718 = vsel %vm710, 0.0, %v694
      %v719 = vsel %vm711, 0.0, %v693
      %v720 = vsel %vm712, 0.0, %v692
      %v721 = vsel %vm713, 0.0, %v691
      %v722 = vsel %vm714, 0.0, %v698
      %v723 = vld [vmem:[%s2] sm:$0x7]
      %v724 = vld [vmem:[%s2 + $0x4] sm:$0x7]
      %v725 = vld [vmem:[%s2 + $0x8] sm:$0x7]
      %v726 = vld [vmem:[%s3] sm:$0x7]
      %v727 = vld [vmem:[%s4] sm:$0x7]
      %v728 = vlaneseq
      %v729 = vshrl.u32 %v728, 7
      %v730 = vsub.s32 0, %v729
      %v731 = vrot.slane %v723, %v730
      %v732 = vmul.f32 %v666, %v731
      %v733 = vmul.f32 %v667, %v731
      %v734 = vmul.f32 %v668, %v731
      %v735 = vmul.f32 %v669, %v731
      %v736 = vmul.f32 %v670, %v731
      %v737 = vmul.f32 %v671, %v731
      %v738 = vmul.f32 %v672, %v731
      %v739 = vmul.f32 %v673, %v731
      %v740 = vlaneseq
      %v741 = vshrl.u32 %v740, 7
      %v742 = vsub.s32 1, %v741
      %v743 = vrot.slane %v723, %v742
      %v744 = vmul.f32 %v608, %v743
      %v745 = vmul.f32 %v609, %v743
      %v746 = vmul.f32 %v610, %v743
      %v747 = vmul.f32 %v611, %v743
      %v748 = vmul.f32 %v612, %v743
      %v749 = vmul.f32 %v613, %v743
      %v750 = vmul.f32 %v614, %v743
      %v751 = vmul.f32 %v615, %v743
      %v752 = vadd.f32 %v732, %v744
      %v753 = vadd.f32 %v733, %v745
      %v754 = vadd.f32 %v734, %v746
      %v755 = vadd.f32 %v735, %v747
      %v756 = vadd.f32 %v736, %v748
      %v757 = vadd.f32 %v737, %v749
      %v758 = vadd.f32 %v738, %v750
      %v759 = vadd.f32 %v739, %v751
      %v760 = vlaneseq
      %v761 = vshrl.u32 %v760, 7
      %v762 = vsub.s32 2, %v761
      %v763 = vrot.slane %v723, %v762
      %v764 = vmul.f32 %v715, %v763
      %v765 = vmul.f32 %v716, %v763
      %v766 = vmul.f32 %v717, %v763
      %v767 = vmul.f32 %v718, %v763
      %v768 = vmul.f32 %v719, %v763
      %v769 = vmul.f32 %v720, %v763
      %v770 = vmul.f32 %v721, %v763
      %v771 = vmul.f32 %v722, %v763
      %v772 = vadd.f32 %v752, %v764
      %v773 = vadd.f32 %v753, %v765
      %v774 = vadd.f32 %v754, %v766
      %v775 = vadd.f32 %v755, %v767
      %v776 = vadd.f32 %v756, %v768
      %v777 = vadd.f32 %v757, %v769
      %v778 = vadd.f32 %v758, %v770
      %v779 = vadd.f32 %v759, %v771
      %v780 = vsel %vm486, %v772, 0.0
      %781 = vadd.xlane.f32.xlu0 %v780
      %v782 = vpop.xlane.xlu0 %781
      %v783 = vsel %vm486, %v773, 0.0
      %784 = vadd.xlane.f32.xlu0 %v783
      %v785 = vpop.xlane.xlu0 %784
      %v786 = vsel %vm486, %v774, 0.0
      %787 = vadd.xlane.f32.xlu0 %v786
      %v788 = vpop.xlane.xlu0 %787
      %v789 = vsel %vm486, %v775, 0.0
      %790 = vadd.xlane.f32.xlu0 %v789
      %v791 = vpop.xlane.xlu0 %790
      %v792 = vsel %vm486, %v776, 0.0
      %793 = vadd.xlane.f32.xlu0 %v792
      %v794 = vpop.xlane.xlu0 %793
      %v795 = vsel %vm486, %v777, 0.0
      %796 = vadd.xlane.f32.xlu0 %v795
      %v797 = vpop.xlane.xlu0 %796
      %v798 = vsel %vm486, %v778, 0.0
      %799 = vadd.xlane.f32.xlu0 %v798
      %v800 = vpop.xlane.xlu0 %799
      %v801 = vsel %vm486, %v779, 0.0
      %802 = vadd.xlane.f32.xlu0 %v801
      %v803 = vpop.xlane.xlu0 %802
      %v804 = vmul.f32 %v782, %v511
      %v805 = vmul.f32 %v785, %v511
      %v806 = vmul.f32 %v788, %v511
      %v807 = vmul.f32 %v791, %v511
      %v808 = vmul.f32 %v794, %v511
      %v809 = vmul.f32 %v797, %v511
      %v810 = vmul.f32 %v800, %v511
      %v811 = vmul.f32 %v803, %v511
      %v812 = vsub.f32 %v772, %v804
      %v813 = vsub.f32 %v773, %v805
      %v814 = vsub.f32 %v774, %v806
      %v815 = vsub.f32 %v775, %v807
      %v816 = vsub.f32 %v776, %v808
      %v817 = vsub.f32 %v777, %v809
      %v818 = vsub.f32 %v778, %v810
      %v819 = vsub.f32 %v779, %v811
      %v820 = vmul.f32 %v812, %v812
      %v821 = vmul.f32 %v813, %v813
      %v822 = vmul.f32 %v814, %v814
      %v823 = vmul.f32 %v815, %v815
      %v824 = vmul.f32 %v816, %v816
      %v825 = vmul.f32 %v817, %v817
      %v826 = vmul.f32 %v818, %v818
      %v827 = vmul.f32 %v819, %v819
      %v828 = vsel %vm486, %v820, 0.0
      %829 = vadd.xlane.f32.xlu0 %v828
      %v830 = vpop.xlane.xlu0 %829
      %v831 = vsel %vm486, %v821, 0.0
      %832 = vadd.xlane.f32.xlu0 %v831
      %v833 = vpop.xlane.xlu0 %832
      %v834 = vsel %vm486, %v822, 0.0
      %835 = vadd.xlane.f32.xlu0 %v834
      %v836 = vpop.xlane.xlu0 %835
      %v837 = vsel %vm486, %v823, 0.0
      %838 = vadd.xlane.f32.xlu0 %v837
      %v839 = vpop.xlane.xlu0 %838
      %v840 = vsel %vm486, %v824, 0.0
      %841 = vadd.xlane.f32.xlu0 %v840
      %v842 = vpop.xlane.xlu0 %841
      %v843 = vsel %vm486, %v825, 0.0
      %844 = vadd.xlane.f32.xlu0 %v843
      %v845 = vpop.xlane.xlu0 %844
      %v846 = vsel %vm486, %v826, 0.0
      %847 = vadd.xlane.f32.xlu0 %v846
      %v848 = vpop.xlane.xlu0 %847
      %v849 = vsel %vm486, %v827, 0.0
      %850 = vadd.xlane.f32.xlu0 %v849
      %v851 = vpop.xlane.xlu0 %850
      %v852 = vmul.f32 %v830, %v511
      %v853 = vmul.f32 %v833, %v511
      %v854 = vmul.f32 %v836, %v511
      %v855 = vmul.f32 %v839, %v511
      %v856 = vmul.f32 %v842, %v511
      %v857 = vmul.f32 %v845, %v511
      %v858 = vmul.f32 %v848, %v511
      %v859 = vmul.f32 %v851, %v511
      %v860 = vadd.f32 %v852, 1e-05
      %v861 = vadd.f32 %v853, 1e-05
      %v862 = vadd.f32 %v854, 1e-05
      %v863 = vadd.f32 %v855, 1e-05
      %v864 = vadd.f32 %v856, 1e-05
      %v865 = vadd.f32 %v857, 1e-05
      %v866 = vadd.f32 %v858, 1e-05
      %v867 = vadd.f32 %v859, 1e-05
      %v868 = vrsqrt.pop %v860
      %v869 = vrsqrt.pop %v861
      %v870 = vrsqrt.pop %v862
      %v871 = vrsqrt.pop %v863
      %v872 = vrsqrt.pop %v864
      %v873 = vrsqrt.pop %v865
      %v874 = vrsqrt.pop %v866
      %v875 = vrsqrt.pop %v867
      %v876 = vmul.f32 %v812, %v868
      %v877 = vmul.f32 %v813, %v869
      %v878 = vmul.f32 %v814, %v870
      %v879 = vmul.f32 %v815, %v871
      %v880 = vmul.f32 %v816, %v872
      %v881 = vmul.f32 %v817, %v873
      %v882 = vmul.f32 %v818, %v874
      %v883 = vmul.f32 %v819, %v875
      %v884 = vlaneseq
      %v885 = vshrl.u32 %v884, 7
      %v886 = vsub.s32 0, %v885
      %v887 = vrot.slane %v726, %v886
      %v888 = vmul.f32 %v876, %v887
      %v889 = vmul.f32 %v877, %v887
      %v890 = vmul.f32 %v878, %v887
      %v891 = vmul.f32 %v879, %v887
      %v892 = vmul.f32 %v880, %v887
      %v893 = vmul.f32 %v881, %v887
      %v894 = vmul.f32 %v882, %v887
      %v895 = vmul.f32 %v883, %v887
      %v896 = vlaneseq
      %v897 = vshrl.u32 %v896, 7
      %v898 = vsub.s32 0, %v897
      %v899 = vrot.slane %v727, %v898
      %v900 = vadd.f32 %v888, %v899
      %v901 = vadd.f32 %v889, %v899
      %v902 = vadd.f32 %v890, %v899
      %v903 = vadd.f32 %v891, %v899
      %v904 = vadd.f32 %v892, %v899
      %v905 = vadd.f32 %v893, %v899
      %v906 = vadd.f32 %v894, %v899
      %v907 = vadd.f32 %v895, %v899
      %v908 = vlaneseq
      %v909 = vshrl.u32 %v908, 7
      %v910 = vsub.s32 0, %v909
      %v911 = vrot.slane %v724, %v910
      %v912 = vmul.f32 %v666, %v911
      %v913 = vmul.f32 %v667, %v911
      %v914 = vmul.f32 %v668, %v911
      %v915 = vmul.f32 %v669, %v911
      %v916 = vmul.f32 %v670, %v911
      %v917 = vmul.f32 %v671, %v911
      %v918 = vmul.f32 %v672, %v911
      %v919 = vmul.f32 %v673, %v911
      %v920 = vlaneseq
      %v921 = vshrl.u32 %v920, 7
      %v922 = vsub.s32 1, %v921
      %v923 = vrot.slane %v724, %v922
      %v924 = vmul.f32 %v608, %v923
      %v925 = vmul.f32 %v609, %v923
      %v926 = vmul.f32 %v610, %v923
      %v927 = vmul.f32 %v611, %v923
      %v928 = vmul.f32 %v612, %v923
      %v929 = vmul.f32 %v613, %v923
      %v930 = vmul.f32 %v614, %v923
      %v931 = vmul.f32 %v615, %v923
      %v932 = vadd.f32 %v912, %v924
      %v933 = vadd.f32 %v913, %v925
      %v934 = vadd.f32 %v914, %v926
      %v935 = vadd.f32 %v915, %v927
      %v936 = vadd.f32 %v916, %v928
      %v937 = vadd.f32 %v917, %v929
      %v938 = vadd.f32 %v918, %v930
      %v939 = vadd.f32 %v919, %v931
      %v940 = vlaneseq
      %v941 = vshrl.u32 %v940, 7
      %v942 = vsub.s32 2, %v941
      %v943 = vrot.slane %v724, %v942
      %v944 = vmul.f32 %v715, %v943
      %v945 = vmul.f32 %v716, %v943
      %v946 = vmul.f32 %v717, %v943
      %v947 = vmul.f32 %v718, %v943
      %v948 = vmul.f32 %v719, %v943
      %v949 = vmul.f32 %v720, %v943
      %v950 = vmul.f32 %v721, %v943
      %v951 = vmul.f32 %v722, %v943
      %v952 = vadd.f32 %v932, %v944
      %v953 = vadd.f32 %v933, %v945
      %v954 = vadd.f32 %v934, %v946
      %v955 = vadd.f32 %v935, %v947
      %v956 = vadd.f32 %v936, %v948
      %v957 = vadd.f32 %v937, %v949
      %v958 = vadd.f32 %v938, %v950
      %v959 = vadd.f32 %v939, %v951
      %v960 = vsel %vm486, %v952, 0.0
      %961 = vadd.xlane.f32.xlu0 %v960
      %v962 = vpop.xlane.xlu0 %961
      %v963 = vsel %vm486, %v953, 0.0
      %964 = vadd.xlane.f32.xlu0 %v963
      %v965 = vpop.xlane.xlu0 %964
      %v966 = vsel %vm486, %v954, 0.0
      %967 = vadd.xlane.f32.xlu0 %v966
      %v968 = vpop.xlane.xlu0 %967
      %v969 = vsel %vm486, %v955, 0.0
      %970 = vadd.xlane.f32.xlu0 %v969
      %v971 = vpop.xlane.xlu0 %970
      %v972 = vsel %vm486, %v956, 0.0
      %973 = vadd.xlane.f32.xlu0 %v972
      %v974 = vpop.xlane.xlu0 %973
      %v975 = vsel %vm486, %v957, 0.0
      %976 = vadd.xlane.f32.xlu0 %v975
      %v977 = vpop.xlane.xlu0 %976
      %v978 = vsel %vm486, %v958, 0.0
      %979 = vadd.xlane.f32.xlu0 %v978
      %v980 = vpop.xlane.xlu0 %979
      %v981 = vsel %vm486, %v959, 0.0
      %982 = vadd.xlane.f32.xlu0 %v981
      %v983 = vpop.xlane.xlu0 %982
      %v984 = vmul.f32 %v962, %v511
      %v985 = vmul.f32 %v965, %v511
      %v986 = vmul.f32 %v968, %v511
      %v987 = vmul.f32 %v971, %v511
      %v988 = vmul.f32 %v974, %v511
      %v989 = vmul.f32 %v977, %v511
      %v990 = vmul.f32 %v980, %v511
      %v991 = vmul.f32 %v983, %v511
      %v992 = vsub.f32 %v952, %v984
      %v993 = vsub.f32 %v953, %v985
      %v994 = vsub.f32 %v954, %v986
      %v995 = vsub.f32 %v955, %v987
      %v996 = vsub.f32 %v956, %v988
      %v997 = vsub.f32 %v957, %v989
      %v998 = vsub.f32 %v958, %v990
      %v999 = vsub.f32 %v959, %v991
      %v1000 = vmul.f32 %v992, %v992
      %v1001 = vmul.f32 %v993, %v993
      %v1002 = vmul.f32 %v994, %v994
      %v1003 = vmul.f32 %v995, %v995
      %v1004 = vmul.f32 %v996, %v996
      %v1005 = vmul.f32 %v997, %v997
      %v1006 = vmul.f32 %v998, %v998
      %v1007 = vmul.f32 %v999, %v999
      %v1008 = vsel %vm486, %v1000, 0.0
      %1009 = vadd.xlane.f32.xlu0 %v1008
      %v1010 = vpop.xlane.xlu0 %1009
      %v1011 = vsel %vm486, %v1001, 0.0
      %1012 = vadd.xlane.f32.xlu0 %v1011
      %v1013 = vpop.xlane.xlu0 %1012
      %v1014 = vsel %vm486, %v1002, 0.0
      %1015 = vadd.xlane.f32.xlu0 %v1014
      %v1016 = vpop.xlane.xlu0 %1015
      %v1017 = vsel %vm486, %v1003, 0.0
      %1018 = vadd.xlane.f32.xlu0 %v1017
      %v1019 = vpop.xlane.xlu0 %1018
      %v1020 = vsel %vm486, %v1004, 0.0
      %1021 = vadd.xlane.f32.xlu0 %v1020
      %v1022 = vpop.xlane.xlu0 %1021
      %v1023 = vsel %vm486, %v1005, 0.0
      %1024 = vadd.xlane.f32.xlu0 %v1023
      %v1025 = vpop.xlane.xlu0 %1024
      %v1026 = vsel %vm486, %v1006, 0.0
      %1027 = vadd.xlane.f32.xlu0 %v1026
      %v1028 = vpop.xlane.xlu0 %1027
      %v1029 = vsel %vm486, %v1007, 0.0
      %1030 = vadd.xlane.f32.xlu0 %v1029
      %v1031 = vpop.xlane.xlu0 %1030
      %v1032 = vmul.f32 %v1010, %v511
      %v1033 = vmul.f32 %v1013, %v511
      %v1034 = vmul.f32 %v1016, %v511
      %v1035 = vmul.f32 %v1019, %v511
      %v1036 = vmul.f32 %v1022, %v511
      %v1037 = vmul.f32 %v1025, %v511
      %v1038 = vmul.f32 %v1028, %v511
      %v1039 = vmul.f32 %v1031, %v511
      %v1040 = vadd.f32 %v1032, 1e-05
      %v1041 = vadd.f32 %v1033, 1e-05
      %v1042 = vadd.f32 %v1034, 1e-05
      %v1043 = vadd.f32 %v1035, 1e-05
      %v1044 = vadd.f32 %v1036, 1e-05
      %v1045 = vadd.f32 %v1037, 1e-05
      %v1046 = vadd.f32 %v1038, 1e-05
      %v1047 = vadd.f32 %v1039, 1e-05
      %v1048 = vrsqrt.pop %v1040
      %v1049 = vrsqrt.pop %v1041
      %v1050 = vrsqrt.pop %v1042
      %v1051 = vrsqrt.pop %v1043
      %v1052 = vrsqrt.pop %v1044
      %v1053 = vrsqrt.pop %v1045
      %v1054 = vrsqrt.pop %v1046
      %v1055 = vrsqrt.pop %v1047
      %v1056 = vmul.f32 %v992, %v1048
      %v1057 = vmul.f32 %v993, %v1049
      %v1058 = vmul.f32 %v994, %v1050
      %v1059 = vmul.f32 %v995, %v1051
      %v1060 = vmul.f32 %v996, %v1052
      %v1061 = vmul.f32 %v997, %v1053
      %v1062 = vmul.f32 %v998, %v1054
      %v1063 = vmul.f32 %v999, %v1055
      %v1064 = vlaneseq
      %v1065 = vshrl.u32 %v1064, 7
      %v1066 = vsub.s32 1, %v1065
      %v1067 = vrot.slane %v726, %v1066
      %v1068 = vmul.f32 %v1056, %v1067
      %v1069 = vmul.f32 %v1057, %v1067
      %v1070 = vmul.f32 %v1058, %v1067
      %v1071 = vmul.f32 %v1059, %v1067
      %v1072 = vmul.f32 %v1060, %v1067
      %v1073 = vmul.f32 %v1061, %v1067
      %v1074 = vmul.f32 %v1062, %v1067
      %v1075 = vmul.f32 %v1063, %v1067
      %v1076 = vlaneseq
      %v1077 = vshrl.u32 %v1076, 7
      %v1078 = vsub.s32 1, %v1077
      %v1079 = vrot.slane %v727, %v1078
      %v1080 = vadd.f32 %v1068, %v1079
      %v1081 = vadd.f32 %v1069, %v1079
      %v1082 = vadd.f32 %v1070, %v1079
      %v1083 = vadd.f32 %v1071, %v1079
      %v1084 = vadd.f32 %v1072, %v1079
      %v1085 = vadd.f32 %v1073, %v1079
      %v1086 = vadd.f32 %v1074, %v1079
      %v1087 = vadd.f32 %v1075, %v1079
      %v1088 = vlaneseq
      %v1089 = vshrl.u32 %v1088, 7
      %v1090 = vsub.s32 0, %v1089
      %v1091 = vrot.slane %v725, %v1090
      %v1092 = vmul.f32 %v666, %v1091
      %v1093 = vmul.f32 %v667, %v1091
      %v1094 = vmul.f32 %v668, %v1091
      %v1095 = vmul.f32 %v669, %v1091
      %v1096 = vmul.f32 %v670, %v1091
      %v1097 = vmul.f32 %v671, %v1091
      %v1098 = vmul.f32 %v672, %v1091
      %v1099 = vmul.f32 %v673, %v1091
      %v1100 = vlaneseq
      %v1101 = vshrl.u32 %v1100, 7
      %v1102 = vsub.s32 1, %v1101
      %v1103 = vrot.slane %v725, %v1102
      %v1104 = vmul.f32 %v608, %v1103
      %v1105 = vmul.f32 %v609, %v1103
      %v1106 = vmul.f32 %v610, %v1103
      %v1107 = vmul.f32 %v611, %v1103
      %v1108 = vmul.f32 %v612, %v1103
      %v1109 = vmul.f32 %v613, %v1103
      %v1110 = vmul.f32 %v614, %v1103
      %v1111 = vmul.f32 %v615, %v1103
      %v1112 = vadd.f32 %v1092, %v1104
      %v1113 = vadd.f32 %v1093, %v1105
      %v1114 = vadd.f32 %v1094, %v1106
      %v1115 = vadd.f32 %v1095, %v1107
      %v1116 = vadd.f32 %v1096, %v1108
      %v1117 = vadd.f32 %v1097, %v1109
      %v1118 = vadd.f32 %v1098, %v1110
      %v1119 = vadd.f32 %v1099, %v1111
      %v1120 = vlaneseq
      %v1121 = vshrl.u32 %v1120, 7
      %v1122 = vsub.s32 2, %v1121
      %v1123 = vrot.slane %v725, %v1122
      %v1124 = vmul.f32 %v715, %v1123
      %v1125 = vmul.f32 %v716, %v1123
      %v1126 = vmul.f32 %v717, %v1123
      %v1127 = vmul.f32 %v718, %v1123
      %v1128 = vmul.f32 %v719, %v1123
      %v1129 = vmul.f32 %v720, %v1123
      %v1130 = vmul.f32 %v721, %v1123
      %v1131 = vmul.f32 %v722, %v1123
      %v1132 = vadd.f32 %v1112, %v1124
      %v1133 = vadd.f32 %v1113, %v1125
      %v1134 = vadd.f32 %v1114, %v1126
      %v1135 = vadd.f32 %v1115, %v1127
      %v1136 = vadd.f32 %v1116, %v1128
      %v1137 = vadd.f32 %v1117, %v1129
      %v1138 = vadd.f32 %v1118, %v1130
      %v1139 = vadd.f32 %v1119, %v1131
      %v1140 = vsel %vm486, %v1132, 0.0
      %1141 = vadd.xlane.f32.xlu0 %v1140
      %v1142 = vpop.xlane.xlu0 %1141
      %v1143 = vsel %vm486, %v1133, 0.0
      %1144 = vadd.xlane.f32.xlu0 %v1143
      %v1145 = vpop.xlane.xlu0 %1144
      %v1146 = vsel %vm486, %v1134, 0.0
      %1147 = vadd.xlane.f32.xlu0 %v1146
      %v1148 = vpop.xlane.xlu0 %1147
      %v1149 = vsel %vm486, %v1135, 0.0
      %1150 = vadd.xlane.f32.xlu0 %v1149
      %v1151 = vpop.xlane.xlu0 %1150
      %v1152 = vsel %vm486, %v1136, 0.0
      %1153 = vadd.xlane.f32.xlu0 %v1152
      %v1154 = vpop.xlane.xlu0 %1153
      %v1155 = vsel %vm486, %v1137, 0.0
      %1156 = vadd.xlane.f32.xlu0 %v1155
      %v1157 = vpop.xlane.xlu0 %1156
      %v1158 = vsel %vm486, %v1138, 0.0
      %1159 = vadd.xlane.f32.xlu0 %v1158
      %v1160 = vpop.xlane.xlu0 %1159
      %v1161 = vsel %vm486, %v1139, 0.0
      %1162 = vadd.xlane.f32.xlu0 %v1161
      %v1163 = vpop.xlane.xlu0 %1162
      %v1164 = vmul.f32 %v1142, %v511
      %v1165 = vmul.f32 %v1145, %v511
      %v1166 = vmul.f32 %v1148, %v511
      %v1167 = vmul.f32 %v1151, %v511
      %v1168 = vmul.f32 %v1154, %v511
      %v1169 = vmul.f32 %v1157, %v511
      %v1170 = vmul.f32 %v1160, %v511
      %v1171 = vmul.f32 %v1163, %v511
      %v1172 = vsub.f32 %v1132, %v1164
      %v1173 = vsub.f32 %v1133, %v1165
      %v1174 = vsub.f32 %v1134, %v1166
      %v1175 = vsub.f32 %v1135, %v1167
      %v1176 = vsub.f32 %v1136, %v1168
      %v1177 = vsub.f32 %v1137, %v1169
      %v1178 = vsub.f32 %v1138, %v1170
      %v1179 = vsub.f32 %v1139, %v1171
      %v1180 = vmul.f32 %v1172, %v1172
      %v1181 = vmul.f32 %v1173, %v1173
      %v1182 = vmul.f32 %v1174, %v1174
      %v1183 = vmul.f32 %v1175, %v1175
      %v1184 = vmul.f32 %v1176, %v1176
      %v1185 = vmul.f32 %v1177, %v1177
      %v1186 = vmul.f32 %v1178, %v1178
      %v1187 = vmul.f32 %v1179, %v1179
      %v1188 = vsel %vm486, %v1180, 0.0
      %1189 = vadd.xlane.f32.xlu0 %v1188
      %v1190 = vpop.xlane.xlu0 %1189
      %v1191 = vsel %vm486, %v1181, 0.0
      %1192 = vadd.xlane.f32.xlu0 %v1191
      %v1193 = vpop.xlane.xlu0 %1192
      %v1194 = vsel %vm486, %v1182, 0.0
      %1195 = vadd.xlane.f32.xlu0 %v1194
      %v1196 = vpop.xlane.xlu0 %1195
      %v1197 = vsel %vm486, %v1183, 0.0
      %1198 = vadd.xlane.f32.xlu0 %v1197
      %v1199 = vpop.xlane.xlu0 %1198
      %v1200 = vsel %vm486, %v1184, 0.0
      %1201 = vadd.xlane.f32.xlu0 %v1200
      %v1202 = vpop.xlane.xlu0 %1201
      %v1203 = vsel %vm486, %v1185, 0.0
      %1204 = vadd.xlane.f32.xlu0 %v1203
      %v1205 = vpop.xlane.xlu0 %1204
      %v1206 = vsel %vm486, %v1186, 0.0
      %1207 = vadd.xlane.f32.xlu0 %v1206
      %v1208 = vpop.xlane.xlu0 %1207
      %v1209 = vsel %vm486, %v1187, 0.0
      %1210 = vadd.xlane.f32.xlu0 %v1209
      %v1211 = vpop.xlane.xlu0 %1210
      %v1212 = vmul.f32 %v1190, %v511
      %v1213 = vmul.f32 %v1193, %v511
      %v1214 = vmul.f32 %v1196, %v511
      %v1215 = vmul.f32 %v1199, %v511
      %v1216 = vmul.f32 %v1202, %v511
      %v1217 = vmul.f32 %v1205, %v511
      %v1218 = vmul.f32 %v1208, %v511
      %v1219 = vmul.f32 %v1211, %v511
      %v1220 = vadd.f32 %v1212, 1e-05
      %v1221 = vadd.f32 %v1213, 1e-05
      %v1222 = vadd.f32 %v1214, 1e-05
      %v1223 = vadd.f32 %v1215, 1e-05
      %v1224 = vadd.f32 %v1216, 1e-05
      %v1225 = vadd.f32 %v1217, 1e-05
      %v1226 = vadd.f32 %v1218, 1e-05
      %v1227 = vadd.f32 %v1219, 1e-05
      %v1228 = vrsqrt.pop %v1220
      %v1229 = vrsqrt.pop %v1221
      %v1230 = vrsqrt.pop %v1222
      %v1231 = vrsqrt.pop %v1223
      %v1232 = vrsqrt.pop %v1224
      %v1233 = vrsqrt.pop %v1225
      %v1234 = vrsqrt.pop %v1226
      %v1235 = vrsqrt.pop %v1227
      %v1236 = vmul.f32 %v1172, %v1228
      %v1237 = vmul.f32 %v1173, %v1229
      %v1238 = vmul.f32 %v1174, %v1230
      %v1239 = vmul.f32 %v1175, %v1231
      %v1240 = vmul.f32 %v1176, %v1232
      %v1241 = vmul.f32 %v1177, %v1233
      %v1242 = vmul.f32 %v1178, %v1234
      %v1243 = vmul.f32 %v1179, %v1235
      %v1244 = vlaneseq
      %v1245 = vshrl.u32 %v1244, 7
      %v1246 = vsub.s32 2, %v1245
      %v1247 = vrot.slane %v726, %v1246
      %v1248 = vmul.f32 %v1236, %v1247
      %v1249 = vmul.f32 %v1237, %v1247
      %v1250 = vmul.f32 %v1238, %v1247
      %v1251 = vmul.f32 %v1239, %v1247
      %v1252 = vmul.f32 %v1240, %v1247
      %v1253 = vmul.f32 %v1241, %v1247
      %v1254 = vmul.f32 %v1242, %v1247
      %v1255 = vmul.f32 %v1243, %v1247
      %v1256 = vlaneseq
      %v1257 = vshrl.u32 %v1256, 7
      %v1258 = vsub.s32 2, %v1257
      %v1259 = vrot.slane %v727, %v1258
      %v1260 = vadd.f32 %v1248, %v1259
      %v1261 = vadd.f32 %v1249, %v1259
      %v1262 = vadd.f32 %v1250, %v1259
      %v1263 = vadd.f32 %v1251, %v1259
      %v1264 = vadd.f32 %v1252, %v1259
      %v1265 = vadd.f32 %v1253, %v1259
      %v1266 = vadd.f32 %v1254, %v1259
      %v1267 = vadd.f32 %v1255, %v1259
      %1276 = vrot.lane.b32.xlu0 %v1080, 32
      %v1277 = vpop.permute.xlu0 %1276
      %1278 = vrot.lane.b32.xlu0 %v1081, 32
      %v1279 = vpop.permute.xlu0 %1278
      %1280 = vrot.lane.b32.xlu0 %v1082, 32
      %v1281 = vpop.permute.xlu0 %1280
      %1282 = vrot.lane.b32.xlu0 %v1083, 32
      %v1283 = vpop.permute.xlu0 %1282
      %1284 = vrot.lane.b32.xlu0 %v1084, 32
      %v1285 = vpop.permute.xlu0 %1284
      %1286 = vrot.lane.b32.xlu0 %v1085, 32
      %v1287 = vpop.permute.xlu0 %1286
      %1288 = vrot.lane.b32.xlu0 %v1086, 32
      %v1289 = vpop.permute.xlu0 %1288
      %1290 = vrot.lane.b32.xlu0 %v1087, 32
      %v1291 = vpop.permute.xlu0 %1290
      %1308 = vrot.lane.b32.xlu0 %v1260, 64
      %v1309 = vpop.permute.xlu0 %1308
      %1310 = vrot.lane.b32.xlu0 %v1261, 64
      %v1311 = vpop.permute.xlu0 %1310
      %1312 = vrot.lane.b32.xlu0 %v1262, 64
      %v1313 = vpop.permute.xlu0 %1312
      %1314 = vrot.lane.b32.xlu0 %v1263, 64
      %v1315 = vpop.permute.xlu0 %1314
      %1316 = vrot.lane.b32.xlu0 %v1264, 64
      %v1317 = vpop.permute.xlu0 %1316
      %1318 = vrot.lane.b32.xlu0 %v1265, 64
      %v1319 = vpop.permute.xlu0 %1318
      %1320 = vrot.lane.b32.xlu0 %v1266, 64
      %v1321 = vpop.permute.xlu0 %1320
      %1322 = vrot.lane.b32.xlu0 %v1267, 64
      %v1323 = vpop.permute.xlu0 %1322
      %v1332 = vsel %vm486, %v900, %v1277
      %v1333 = vsel %vm486, %v901, %v1279
      %v1334 = vsel %vm486, %v902, %v1281
      %v1335 = vsel %vm486, %v903, %v1283
      %v1336 = vsel %vm486, %v904, %v1285
      %v1337 = vsel %vm486, %v905, %v1287
      %v1338 = vsel %vm486, %v906, %v1289
      %v1339 = vsel %vm486, %v907, %v1291
      %vm1340 = vcmask 523264
      %v1341 = vsel %vm1340, %v1332, %v1309
      %v1342 = vsel %vm1340, %v1333, %v1311
      %v1343 = vsel %vm1340, %v1334, %v1313
      %v1344 = vsel %vm1340, %v1335, %v1315
      %v1345 = vsel %vm1340, %v1336, %v1317
      %v1346 = vsel %vm1340, %v1337, %v1319
      %v1347 = vsel %vm1340, %v1338, %v1321
      %v1348 = vsel %vm1340, %v1339, %v1323
      %v1349 = vpack.c.bf16 %v1342, %v1341
      %v1350 = vpack.c.bf16 %v1344, %v1343
      %v1351 = vpack.c.bf16 %v1346, %v1345
      %v1352 = vpack.c.bf16 %v1348, %v1347
      %v1353 = vld [vmem:[%s5] sm:$0xf]
      %v1354 = vld [vmem:[%s5 + $0x4] sm:$0xf]
      %v1355 = vld [vmem:[%s5 + $0x8] sm:$0xf]
      %v1356 = vld [vmem:[%s5 + $0xc] sm:$0xf]
      %v1357 = vld [vmem:[%s5 + $0x10] sm:$0xf]
      %v1358 = vld [vmem:[%s5 + $0x14] sm:$0xf]
      %v1359 = vld [vmem:[%s5 + $0x18] sm:$0xf]
      %v1360 = vld [vmem:[%s5 + $0x1c] sm:$0xf]
      %v1361 = vld [vmem:[%s5 + $0x20] sm:$0xf]
      %v1362 = vld [vmem:[%s5 + $0x24] sm:$0xf]
      %v1363 = vld [vmem:[%s5 + $0x28] sm:$0xf]
      %v1364 = vld [vmem:[%s5 + $0x2c] sm:$0xf]
      %v1365 = vld [vmem:[%s6] sm:$0x1]
      %v1367 = vlaneseq
      %v1368 = vshrl.u32 %v1367, 7
      %v1369 = vsub.s32 0, %v1368
      %v1370 = vrot.slane %v1365, %v1369
      %v1384 = vunpack.c.l.b16 %v1353
      %v1385 = vunpack.c.l.b16 %v1354
      %v1386 = vunpack.c.l.b16 %v1355
      %v1387 = vunpack.c.l.b16 %v1356
      %v1388 = vunpack.c.l.b16 %v1357
      %v1389 = vunpack.c.l.b16 %v1358
      %v1390 = vunpack.c.l.b16 %v1359
      %v1391 = vunpack.c.l.b16 %v1360
      %v1392 = vunpack.c.l.b16 %v1361
      %v1393 = vunpack.c.l.b16 %v1362
      %v1394 = vunpack.c.l.b16 %v1363
      %v1395 = vunpack.c.l.b16 %v1364
      %v1396 = vpack.c.b16 %v1385, %v1384
      %v1397 = vpack.c.b16 %v1387, %v1386
      %v1398 = vpack.c.b16 %v1389, %v1388
      %v1399 = vpack.c.b16 %v1391, %v1390
      %v1400 = vpack.c.b16 %v1393, %v1392
      %v1401 = vpack.c.b16 %v1395, %v1394
      %vm1408 = vcmask 785408
      %v1410 = vsel %vm1408, %v1349, 0
      %v1413 = vsel %vm1408, %v1350, 0
      %v1416 = vsel %vm1408, %v1351, 0
      %v1419 = vsel %vm1408, %v1352, 0
      %1421 = vmatprep.subr.bf16.mxu0 0
      %1422 = vmatpush1.bf16.msra.mxu0 %v1396
      %1423 = vmatprep.subr.bf16.mxu0 0
      %1424 = vmatpush1.bf16.msra.mxu0 %v1397
      %1425 = vmatprep.subr.bf16.mxu0 0
      %1426 = vmatpush1.bf16.msra.mxu0 %v1398
      %1427 = vmatprep.subr.bf16.mxu0 0
      %1428 = vmatpush1.bf16.msra.mxu0 %v1399
      %1429 = vmatprep.subr.bf16.mxu0 0
      %1430 = vmatpush1.bf16.msra.mxu0 %v1400
      %1431 = vmatprep.subr.bf16.mxu0 0
      %1432 = vmatpush1.bf16.msra.mxu0 %v1401
      %1433 = vmatprep.subr.bf16.mxu0 0
      %1434 = vmatpush1.bf16.msra.mxu0 0
      %1435 = vmatprep.subr.bf16.mxu0 0
      %1436 = vmatpush1.bf16.msra.mxu0 0
      %1437 = vmatprep.subr.bf16.mxu0 0
      %1438 = vmatpush1.bf16.msra.mxu0 0
      %1439 = vmatprep.subr.bf16.mxu0 0
      %1440 = vmatpush1.bf16.msra.mxu0 0
      %1441 = vmatprep.subr.bf16.mxu0 0
      %1442 = vmatpush1.bf16.msra.mxu0 0
      %1443 = vmatprep.subr.bf16.mxu0 0
      %1444 = vmatpush1.bf16.msra.mxu0 0
      %1445 = vmatprep.subr.bf16.mxu0 0
      %1446 = vmatpush1.bf16.msra.mxu0 0
      %1447 = vmatprep.subr.bf16.mxu0 0
      %1448 = vmatpush1.bf16.msra.mxu0 0
      %1449 = vmatprep.subr.bf16.mxu0 0
      %1450 = vmatpush1.bf16.msra.mxu0 0
      %1451 = vmatprep.subr.bf16.mxu0 0
      %1452 = vmatpush1.bf16.msra.mxu0 0
      %1453 = vmatprep.mubr.bf16.mxu0 0
      %1454 = vmatmul.mubr.bf16.gmra.mrb[0].mxu0 %v1410
      %v1455 = vpop.f32.mrb[0].mxu0
      %v1456 = vadd.f32 %v1370, %v1455
      %v1457 = vpop.f32.mrb[0].mxu0
      %v1458 = vpop.f32.mrb[0].mxu0
      %v1459 = vadd.f32 %v1370, %v1458
      %v1460 = vpop.f32.mrb[0].mxu0
      %1461 = vmatprep.mubr.bf16.mxu0 0
      %1462 = vmatmul.mubr.bf16.gmra.mrb[0].mxu0 %v1413
      %v1463 = vpop.f32.mrb[0].mxu0
      %v1464 = vadd.f32 %v1370, %v1463
      %v1465 = vpop.f32.mrb[0].mxu0
      %v1466 = vpop.f32.mrb[0].mxu0
      %v1467 = vadd.f32 %v1370, %v1466
      %v1468 = vpop.f32.mrb[0].mxu0
      %1469 = vmatprep.mubr.bf16.mxu0 0
      %1470 = vmatmul.mubr.bf16.gmra.mrb[0].mxu0 %v1416
      %v1471 = vpop.f32.mrb[0].mxu0
      %v1472 = vadd.f32 %v1370, %v1471
      %v1473 = vpop.f32.mrb[0].mxu0
      %v1474 = vpop.f32.mrb[0].mxu0
      %v1475 = vadd.f32 %v1370, %v1474
      %v1476 = vpop.f32.mrb[0].mxu0
      %1477 = vmatprep.mubr.bf16.mxu0 0
      %1478 = vmatmul.mubr.bf16.gmra.mrb[0].mxu0 %v1419
      %v1479 = vpop.f32.mrb[0].mxu0
      %v1480 = vadd.f32 %v1370, %v1479
      %v1481 = vpop.f32.mrb[0].mxu0
      %v1482 = vpop.f32.mrb[0].mxu0
      %v1483 = vadd.f32 %v1370, %v1482
      %v1484 = vpop.f32.mrb[0].mxu0
      %1485 = vdwg.mxu0
      %v1486 = vpack.c.bf16 %v1459, %v1456
      %v1487 = vpack.c.bf16 %v1467, %v1464
      %v1488 = vpack.c.bf16 %v1475, %v1472
      %v1489 = vpack.c.bf16 %v1483, %v1480
      %1494 = vrot.lane.b32.xlu0 %v1486, 120
      %v1495 = vpop.permute.xlu0 %1494
      %1496 = vrot.lane.b32.xlu0 %v1487, 120
      %v1497 = vpop.permute.xlu0 %1496
      %1498 = vrot.lane.b32.xlu0 %v1488, 120
      %v1499 = vpop.permute.xlu0 %1498
      %1500 = vrot.lane.b32.xlu0 %v1489, 120
      %v1501 = vpop.permute.xlu0 %1500
      %1502 = vrot.lane.b32.xlu0 %v1486, 112
      %v1503 = vpop.permute.xlu0 %1502
      %1504 = vrot.lane.b32.xlu0 %v1487, 112
      %v1505 = vpop.permute.xlu0 %1504
      %1506 = vrot.lane.b32.xlu0 %v1488, 112
      %v1507 = vpop.permute.xlu0 %1506
      %1508 = vrot.lane.b32.xlu0 %v1489, 112
      %v1509 = vpop.permute.xlu0 %1508
      %1510 = vrot.lane.b32.xlu0 %v1486, 104
      %v1511 = vpop.permute.xlu0 %1510
      %1512 = vrot.lane.b32.xlu0 %v1487, 104
      %v1513 = vpop.permute.xlu0 %1512
      %1514 = vrot.lane.b32.xlu0 %v1488, 104
      %v1515 = vpop.permute.xlu0 %1514
      %1516 = vrot.lane.b32.xlu0 %v1489, 104
      %v1517 = vpop.permute.xlu0 %1516
      %1518 = vrot.lane.b32.xlu0 %v1486, 96
      %v1519 = vpop.permute.xlu0 %1518
      %1520 = vrot.lane.b32.xlu0 %v1487, 96
      %v1521 = vpop.permute.xlu0 %1520
      %1522 = vrot.lane.b32.xlu0 %v1488, 96
      %v1523 = vpop.permute.xlu0 %1522
      %1524 = vrot.lane.b32.xlu0 %v1489, 96
      %v1525 = vpop.permute.xlu0 %1524
      %vm1526 = vcmask 64512
      %v1528 = vsel %vm1526, %v1486, 0
      %v1531 = vsel %vm1526, %v1487, 0
      %v1534 = vsel %vm1526, %v1488, 0
      %v1537 = vsel %vm1526, %v1489, 0
      %v1540 = vsel %vm1526, %v1519, 0
      %v1543 = vsel %vm1526, %v1521, 0
      %v1546 = vsel %vm1526, %v1523, 0
      %v1549 = vsel %vm1526, %v1525, 0
      %1551 = vmatprep.subr.bf16.mxu0 0
      %1552 = vmatpush1.bf16.xpose.msra.mxu0 %v1540
      %1553 = vmatprep.subr.bf16.mxu0 0
      %1554 = vmatpush1.bf16.xpose.msra.mxu0 %v1543
      %1555 = vmatprep.subr.bf16.mxu0 0
      %1556 = vmatpush1.bf16.xpose.msra.mxu0 %v1546
      %1557 = vmatprep.subr.bf16.mxu0 0
      %1558 = vmatpush1.bf16.xpose.msra.mxu0 %v1549
      %1559 = vmatprep.subr.bf16.mxu0 0
      %1560 = vmatpush1.bf16.xpose.msra.mxu0 0
      %1561 = vmatprep.subr.bf16.mxu0 0
      %1562 = vmatpush1.bf16.xpose.msra.mxu0 0
      %1563 = vmatprep.subr.bf16.mxu0 0
      %1564 = vmatpush1.bf16.xpose.msra.mxu0 0
      %1565 = vmatprep.subr.bf16.mxu0 0
      %1566 = vmatpush1.bf16.xpose.msra.mxu0 0
      %1567 = vmatprep.subr.bf16.mxu0 0
      %1568 = vmatpush1.bf16.xpose.msra.mxu0 0
      %1569 = vmatprep.subr.bf16.mxu0 0
      %1570 = vmatpush1.bf16.xpose.msra.mxu0 0
      %1571 = vmatprep.subr.bf16.mxu0 0
      %1572 = vmatpush1.bf16.xpose.msra.mxu0 0
      %1573 = vmatprep.subr.bf16.mxu0 0
      %1574 = vmatpush1.bf16.xpose.msra.mxu0 0
      %1575 = vmatprep.subr.bf16.mxu0 0
      %1576 = vmatpush1.bf16.xpose.msra.mxu0 0
      %1577 = vmatprep.subr.bf16.mxu0 0
      %1578 = vmatpush1.bf16.xpose.msra.mxu0 0
      %1579 = vmatprep.subr.bf16.mxu0 0
      %1580 = vmatpush1.bf16.xpose.msra.mxu0 0
      %1581 = vmatprep.subr.bf16.mxu0 0
      %1582 = vmatpush1.bf16.xpose.msra.mxu0 0
      %1583 = vmatprep.mubr.bf16.mxu0 0
      %1584 = vmatmul.mubr.bf16.gmra.mrb[0].mxu0 %v1528
      %v1585 = vpop.f32.mrb[0].mxu0
      %v1586 = vadd.f32 0.0, %v1585
      %v1587 = vpop.f32.mrb[0].mxu0
      %v1588 = vpop.f32.mrb[0].mxu0
      %v1589 = vadd.f32 0.0, %v1588
      %v1590 = vpop.f32.mrb[0].mxu0
      %1591 = vmatprep.mubr.bf16.mxu0 0
      %1592 = vmatmul.mubr.bf16.gmra.mrb[0].mxu0 %v1531
      %v1593 = vpop.f32.mrb[0].mxu0
      %v1594 = vadd.f32 0.0, %v1593
      %v1595 = vpop.f32.mrb[0].mxu0
      %v1596 = vpop.f32.mrb[0].mxu0
      %v1597 = vadd.f32 0.0, %v1596
      %v1598 = vpop.f32.mrb[0].mxu0
      %1599 = vmatprep.mubr.bf16.mxu0 0
      %1600 = vmatmul.mubr.bf16.gmra.mrb[0].mxu0 %v1534
      %v1601 = vpop.f32.mrb[0].mxu0
      %v1602 = vadd.f32 0.0, %v1601
      %v1603 = vpop.f32.mrb[0].mxu0
      %v1604 = vpop.f32.mrb[0].mxu0
      %v1605 = vadd.f32 0.0, %v1604
      %v1606 = vpop.f32.mrb[0].mxu0
      %1607 = vmatprep.mubr.bf16.mxu0 0
      %1608 = vmatmul.mubr.bf16.gmra.mrb[0].mxu0 %v1537
      %v1609 = vpop.f32.mrb[0].mxu0
      %v1610 = vadd.f32 0.0, %v1609
      %v1611 = vpop.f32.mrb[0].mxu0
      %v1612 = vpop.f32.mrb[0].mxu0
      %v1613 = vadd.f32 0.0, %v1612
      %v1614 = vpop.f32.mrb[0].mxu0
      %1615 = vdwg.mxu0
      %1616 = vrot.lane.b32.xlu0 %v1495, 96
      %v1617 = vpop.permute.xlu0 %1616
      %1618 = vrot.lane.b32.xlu0 %v1497, 96
      %v1619 = vpop.permute.xlu0 %1618
      %1620 = vrot.lane.b32.xlu0 %v1499, 96
      %v1621 = vpop.permute.xlu0 %1620
      %1622 = vrot.lane.b32.xlu0 %v1501, 96
      %v1623 = vpop.permute.xlu0 %1622
      %v1625 = vsel %vm1526, %v1495, 0
      %v1628 = vsel %vm1526, %v1497, 0
      %v1631 = vsel %vm1526, %v1499, 0
      %v1634 = vsel %vm1526, %v1501, 0
      %v1637 = vsel %vm1526, %v1617, 0
      %v1640 = vsel %vm1526, %v1619, 0
      %v1643 = vsel %vm1526, %v1621, 0
      %v1646 = vsel %vm1526, %v1623, 0
      %1648 = vmatprep.subr.bf16.mxu0 0
      %1649 = vmatpush1.bf16.xpose.msra.mxu0 %v1637
      %1650 = vmatprep.subr.bf16.mxu0 0
      %1651 = vmatpush1.bf16.xpose.msra.mxu0 %v1640
      %1652 = vmatprep.subr.bf16.mxu0 0
      %1653 = vmatpush1.bf16.xpose.msra.mxu0 %v1643
      %1654 = vmatprep.subr.bf16.mxu0 0
      %1655 = vmatpush1.bf16.xpose.msra.mxu0 %v1646
      %1656 = vmatprep.subr.bf16.mxu0 0
      %1657 = vmatpush1.bf16.xpose.msra.mxu0 0
      %1658 = vmatprep.subr.bf16.mxu0 0
      %1659 = vmatpush1.bf16.xpose.msra.mxu0 0
      %1660 = vmatprep.subr.bf16.mxu0 0
      %1661 = vmatpush1.bf16.xpose.msra.mxu0 0
      %1662 = vmatprep.subr.bf16.mxu0 0
      %1663 = vmatpush1.bf16.xpose.msra.mxu0 0
      %1664 = vmatprep.subr.bf16.mxu0 0
      %1665 = vmatpush1.bf16.xpose.msra.mxu0 0
      %1666 = vmatprep.subr.bf16.mxu0 0
      %1667 = vmatpush1.bf16.xpose.msra.mxu0 0
      %1668 = vmatprep.subr.bf16.mxu0 0
      %1669 = vmatpush1.bf16.xpose.msra.mxu0 0
      %1670 = vmatprep.subr.bf16.mxu0 0
      %1671 = vmatpush1.bf16.xpose.msra.mxu0 0
      %1672 = vmatprep.subr.bf16.mxu0 0
      %1673 = vmatpush1.bf16.xpose.msra.mxu0 0
      %1674 = vmatprep.subr.bf16.mxu0 0
      %1675 = vmatpush1.bf16.xpose.msra.mxu0 0
      %1676 = vmatprep.subr.bf16.mxu0 0
      %1677 = vmatpush1.bf16.xpose.msra.mxu0 0
      %1678 = vmatprep.subr.bf16.mxu0 0
      %1679 = vmatpush1.bf16.xpose.msra.mxu0 0
      %1680 = vmatprep.mubr.bf16.mxu0 0
      %1681 = vmatmul.mubr.bf16.gmra.mrb[0].mxu0 %v1625
      %v1682 = vpop.f32.mrb[0].mxu0
      %v1683 = vadd.f32 0.0, %v1682
      %v1684 = vpop.f32.mrb[0].mxu0
      %v1685 = vpop.f32.mrb[0].mxu0
      %v1686 = vadd.f32 0.0, %v1685
      %v1687 = vpop.f32.mrb[0].mxu0
      %1688 = vmatprep.mubr.bf16.mxu0 0
      %1689 = vmatmul.mubr.bf16.gmra.mrb[0].mxu0 %v1628
      %v1690 = vpop.f32.mrb[0].mxu0
      %v1691 = vadd.f32 0.0, %v1690
      %v1692 = vpop.f32.mrb[0].mxu0
      %v1693 = vpop.f32.mrb[0].mxu0
      %v1694 = vadd.f32 0.0, %v1693
      %v1695 = vpop.f32.mrb[0].mxu0
      %1696 = vmatprep.mubr.bf16.mxu0 0
      %1697 = vmatmul.mubr.bf16.gmra.mrb[0].mxu0 %v1631
      %v1698 = vpop.f32.mrb[0].mxu0
      %v1699 = vadd.f32 0.0, %v1698
      %v1700 = vpop.f32.mrb[0].mxu0
      %v1701 = vpop.f32.mrb[0].mxu0
      %v1702 = vadd.f32 0.0, %v1701
      %v1703 = vpop.f32.mrb[0].mxu0
      %1704 = vmatprep.mubr.bf16.mxu0 0
      %1705 = vmatmul.mubr.bf16.gmra.mrb[0].mxu0 %v1634
      %v1706 = vpop.f32.mrb[0].mxu0
      %v1707 = vadd.f32 0.0, %v1706
      %v1708 = vpop.f32.mrb[0].mxu0
      %v1709 = vpop.f32.mrb[0].mxu0
      %v1710 = vadd.f32 0.0, %v1709
      %v1711 = vpop.f32.mrb[0].mxu0
      %1712 = vdwg.mxu0
      %1713 = vrot.lane.b32.xlu0 %v1503, 96
      %v1714 = vpop.permute.xlu0 %1713
      %1715 = vrot.lane.b32.xlu0 %v1505, 96
      %v1716 = vpop.permute.xlu0 %1715
      %1717 = vrot.lane.b32.xlu0 %v1507, 96
      %v1718 = vpop.permute.xlu0 %1717
      %1719 = vrot.lane.b32.xlu0 %v1509, 96
      %v1720 = vpop.permute.xlu0 %1719
      %v1722 = vsel %vm1526, %v1503, 0
      %v1725 = vsel %vm1526, %v1505, 0
      %v1728 = vsel %vm1526, %v1507, 0
      %v1731 = vsel %vm1526, %v1509, 0
      %v1734 = vsel %vm1526, %v1714, 0
      %v1737 = vsel %vm1526, %v1716, 0
      %v1740 = vsel %vm1526, %v1718, 0
      %v1743 = vsel %vm1526, %v1720, 0
      %1745 = vmatprep.subr.bf16.mxu0 0
      %1746 = vmatpush1.bf16.xpose.msra.mxu0 %v1734
      %1747 = vmatprep.subr.bf16.mxu0 0
      %1748 = vmatpush1.bf16.xpose.msra.mxu0 %v1737
      %1749 = vmatprep.subr.bf16.mxu0 0
      %1750 = vmatpush1.bf16.xpose.msra.mxu0 %v1740
      %1751 = vmatprep.subr.bf16.mxu0 0
      %1752 = vmatpush1.bf16.xpose.msra.mxu0 %v1743
      %1753 = vmatprep.subr.bf16.mxu0 0
      %1754 = vmatpush1.bf16.xpose.msra.mxu0 0
      %1755 = vmatprep.subr.bf16.mxu0 0
      %1756 = vmatpush1.bf16.xpose.msra.mxu0 0
      %1757 = vmatprep.subr.bf16.mxu0 0
      %1758 = vmatpush1.bf16.xpose.msra.mxu0 0
      %1759 = vmatprep.subr.bf16.mxu0 0
      %1760 = vmatpush1.bf16.xpose.msra.mxu0 0
      %1761 = vmatprep.subr.bf16.mxu0 0
      %1762 = vmatpush1.bf16.xpose.msra.mxu0 0
      %1763 = vmatprep.subr.bf16.mxu0 0
      %1764 = vmatpush1.bf16.xpose.msra.mxu0 0
      %1765 = vmatprep.subr.bf16.mxu0 0
      %1766 = vmatpush1.bf16.xpose.msra.mxu0 0
      %1767 = vmatprep.subr.bf16.mxu0 0
      %1768 = vmatpush1.bf16.xpose.msra.mxu0 0
      %1769 = vmatprep.subr.bf16.mxu0 0
      %1770 = vmatpush1.bf16.xpose.msra.mxu0 0
      %1771 = vmatprep.subr.bf16.mxu0 0
      %1772 = vmatpush1.bf16.xpose.msra.mxu0 0
      %1773 = vmatprep.subr.bf16.mxu0 0
      %1774 = vmatpush1.bf16.xpose.msra.mxu0 0
      %1775 = vmatprep.subr.bf16.mxu0 0
      %1776 = vmatpush1.bf16.xpose.msra.mxu0 0
      %1777 = vmatprep.mubr.bf16.mxu0 0
      %1778 = vmatmul.mubr.bf16.gmra.mrb[0].mxu0 %v1722
      %v1779 = vpop.f32.mrb[0].mxu0
      %v1780 = vadd.f32 0.0, %v1779
      %v1781 = vpop.f32.mrb[0].mxu0
      %v1782 = vpop.f32.mrb[0].mxu0
      %v1783 = vadd.f32 0.0, %v1782
      %v1784 = vpop.f32.mrb[0].mxu0
      %1785 = vmatprep.mubr.bf16.mxu0 0
      %1786 = vmatmul.mubr.bf16.gmra.mrb[0].mxu0 %v1725
      %v1787 = vpop.f32.mrb[0].mxu0
      %v1788 = vadd.f32 0.0, %v1787
      %v1789 = vpop.f32.mrb[0].mxu0
      %v1790 = vpop.f32.mrb[0].mxu0
      %v1791 = vadd.f32 0.0, %v1790
      %v1792 = vpop.f32.mrb[0].mxu0
      %1793 = vmatprep.mubr.bf16.mxu0 0
      %1794 = vmatmul.mubr.bf16.gmra.mrb[0].mxu0 %v1728
      %v1795 = vpop.f32.mrb[0].mxu0
      %v1796 = vadd.f32 0.0, %v1795
      %v1797 = vpop.f32.mrb[0].mxu0
      %v1798 = vpop.f32.mrb[0].mxu0
      %v1799 = vadd.f32 0.0, %v1798
      %v1800 = vpop.f32.mrb[0].mxu0
      %1801 = vmatprep.mubr.bf16.mxu0 0
      %1802 = vmatmul.mubr.bf16.gmra.mrb[0].mxu0 %v1731
      %v1803 = vpop.f32.mrb[0].mxu0
      %v1804 = vadd.f32 0.0, %v1803
      %v1805 = vpop.f32.mrb[0].mxu0
      %v1806 = vpop.f32.mrb[0].mxu0
      %v1807 = vadd.f32 0.0, %v1806
      %v1808 = vpop.f32.mrb[0].mxu0
      %1809 = vdwg.mxu0
      %1810 = vrot.lane.b32.xlu0 %v1511, 96
      %v1811 = vpop.permute.xlu0 %1810
      %1812 = vrot.lane.b32.xlu0 %v1513, 96
      %v1813 = vpop.permute.xlu0 %1812
      %1814 = vrot.lane.b32.xlu0 %v1515, 96
      %v1815 = vpop.permute.xlu0 %1814
      %1816 = vrot.lane.b32.xlu0 %v1517, 96
      %v1817 = vpop.permute.xlu0 %1816
      %v1819 = vsel %vm1526, %v1511, 0
      %v1822 = vsel %vm1526, %v1513, 0
      %v1825 = vsel %vm1526, %v1515, 0
      %v1828 = vsel %vm1526, %v1517, 0
      %v1831 = vsel %vm1526, %v1811, 0
      %v1834 = vsel %vm1526, %v1813, 0
      %v1837 = vsel %vm1526, %v1815, 0
      %v1840 = vsel %vm1526, %v1817, 0
      %1842 = vmatprep.subr.bf16.mxu0 0
      %1843 = vmatpush1.bf16.xpose.msra.mxu0 %v1831
      %1844 = vmatprep.subr.bf16.mxu0 0
      %1845 = vmatpush1.bf16.xpose.msra.mxu0 %v1834
      %1846 = vmatprep.subr.bf16.mxu0 0
      %1847 = vmatpush1.bf16.xpose.msra.mxu0 %v1837
      %1848 = vmatprep.subr.bf16.mxu0 0
      %1849 = vmatpush1.bf16.xpose.msra.mxu0 %v1840
      %1850 = vmatprep.subr.bf16.mxu0 0
      %1851 = vmatpush1.bf16.xpose.msra.mxu0 0
      %1852 = vmatprep.subr.bf16.mxu0 0
      %1853 = vmatpush1.bf16.xpose.msra.mxu0 0
      %1854 = vmatprep.subr.bf16.mxu0 0
      %1855 = vmatpush1.bf16.xpose.msra.mxu0 0
      %1856 = vmatprep.subr.bf16.mxu0 0
      %1857 = vmatpush1.bf16.xpose.msra.mxu0 0
      %1858 = vmatprep.subr.bf16.mxu0 0
      %1859 = vmatpush1.bf16.xpose.msra.mxu0 0
      %1860 = vmatprep.subr.bf16.mxu0 0
      %1861 = vmatpush1.bf16.xpose.msra.mxu0 0
      %1862 = vmatprep.subr.bf16.mxu0 0
      %1863 = vmatpush1.bf16.xpose.msra.mxu0 0
      %1864 = vmatprep.subr.bf16.mxu0 0
      %1865 = vmatpush1.bf16.xpose.msra.mxu0 0
      %1866 = vmatprep.subr.bf16.mxu0 0
      %1867 = vmatpush1.bf16.xpose.msra.mxu0 0
      %1868 = vmatprep.subr.bf16.mxu0 0
      %1869 = vmatpush1.bf16.xpose.msra.mxu0 0
      %1870 = vmatprep.subr.bf16.mxu0 0
      %1871 = vmatpush1.bf16.xpose.msra.mxu0 0
      %1872 = vmatprep.subr.bf16.mxu0 0
      %1873 = vmatpush1.bf16.xpose.msra.mxu0 0
      %1874 = vmatprep.mubr.bf16.mxu0 0
      %1875 = vmatmul.mubr.bf16.gmra.mrb[0].mxu0 %v1819
      %v1876 = vpop.f32.mrb[0].mxu0
      %v1877 = vadd.f32 0.0, %v1876
      %v1878 = vpop.f32.mrb[0].mxu0
      %v1879 = vpop.f32.mrb[0].mxu0
      %v1880 = vadd.f32 0.0, %v1879
      %v1881 = vpop.f32.mrb[0].mxu0
      %1882 = vmatprep.mubr.bf16.mxu0 0
      %1883 = vmatmul.mubr.bf16.gmra.mrb[0].mxu0 %v1822
      %v1884 = vpop.f32.mrb[0].mxu0
      %v1885 = vadd.f32 0.0, %v1884
      %v1886 = vpop.f32.mrb[0].mxu0
      %v1887 = vpop.f32.mrb[0].mxu0
      %v1888 = vadd.f32 0.0, %v1887
      %v1889 = vpop.f32.mrb[0].mxu0
      %1890 = vmatprep.mubr.bf16.mxu0 0
      %1891 = vmatmul.mubr.bf16.gmra.mrb[0].mxu0 %v1825
      %v1892 = vpop.f32.mrb[0].mxu0
      %v1893 = vadd.f32 0.0, %v1892
      %v1894 = vpop.f32.mrb[0].mxu0
      %v1895 = vpop.f32.mrb[0].mxu0
      %v1896 = vadd.f32 0.0, %v1895
      %v1897 = vpop.f32.mrb[0].mxu0
      %1898 = vmatprep.mubr.bf16.mxu0 0
      %1899 = vmatmul.mubr.bf16.gmra.mrb[0].mxu0 %v1828
      %v1900 = vpop.f32.mrb[0].mxu0
      %v1901 = vadd.f32 0.0, %v1900
      %v1902 = vpop.f32.mrb[0].mxu0
      %v1903 = vpop.f32.mrb[0].mxu0
      %v1904 = vadd.f32 0.0, %v1903
      %v1905 = vpop.f32.mrb[0].mxu0
      %1906 = vdwg.mxu0
      %v1907 = vsel %vm1340, %v1586, -inf
      %1908 = vmax.xlane.f32.xlu0 %v1907
      %v1909 = vpop.xlane.xlu0 %1908
      %v1910 = vsel %vm1340, %v1589, -inf
      %1911 = vmax.xlane.f32.xlu0 %v1910
      %v1912 = vpop.xlane.xlu0 %1911
      %v1913 = vsel %vm1340, %v1594, -inf
      %1914 = vmax.xlane.f32.xlu0 %v1913
      %v1915 = vpop.xlane.xlu0 %1914
      %v1916 = vsel %vm1340, %v1597, -inf
      %1917 = vmax.xlane.f32.xlu0 %v1916
      %v1918 = vpop.xlane.xlu0 %1917
      %v1919 = vsel %vm1340, %v1602, -inf
      %1920 = vmax.xlane.f32.xlu0 %v1919
      %v1921 = vpop.xlane.xlu0 %1920
      %v1922 = vsel %vm1340, %v1605, -inf
      %1923 = vmax.xlane.f32.xlu0 %v1922
      %v1924 = vpop.xlane.xlu0 %1923
      %v1925 = vsel %vm1340, %v1610, -inf
      %1926 = vmax.xlane.f32.xlu0 %v1925
      %v1927 = vpop.xlane.xlu0 %1926
      %v1928 = vsel %vm1340, %v1613, -inf
      %1929 = vmax.xlane.f32.xlu0 %v1928
      %v1930 = vpop.xlane.xlu0 %1929
      %v1931 = vsel %vm1340, %v1683, -inf
      %1932 = vmax.xlane.f32.xlu0 %v1931
      %v1933 = vpop.xlane.xlu0 %1932
      %v1934 = vsel %vm1340, %v1686, -inf
      %1935 = vmax.xlane.f32.xlu0 %v1934
      %v1936 = vpop.xlane.xlu0 %1935
      %v1937 = vsel %vm1340, %v1691, -inf
      %1938 = vmax.xlane.f32.xlu0 %v1937
      %v1939 = vpop.xlane.xlu0 %1938
      %v1940 = vsel %vm1340, %v1694, -inf
      %1941 = vmax.xlane.f32.xlu0 %v1940
      %v1942 = vpop.xlane.xlu0 %1941
      %v1943 = vsel %vm1340, %v1699, -inf
      %1944 = vmax.xlane.f32.xlu0 %v1943
      %v1945 = vpop.xlane.xlu0 %1944
      %v1946 = vsel %vm1340, %v1702, -inf
      %1947 = vmax.xlane.f32.xlu0 %v1946
      %v1948 = vpop.xlane.xlu0 %1947
      %v1949 = vsel %vm1340, %v1707, -inf
      %1950 = vmax.xlane.f32.xlu0 %v1949
      %v1951 = vpop.xlane.xlu0 %1950
      %v1952 = vsel %vm1340, %v1710, -inf
      %1953 = vmax.xlane.f32.xlu0 %v1952
      %v1954 = vpop.xlane.xlu0 %1953
      %v1955 = vsel %vm1340, %v1780, -inf
      %1956 = vmax.xlane.f32.xlu0 %v1955
      %v1957 = vpop.xlane.xlu0 %1956
      %v1958 = vsel %vm1340, %v1783, -inf
      %1959 = vmax.xlane.f32.xlu0 %v1958
      %v1960 = vpop.xlane.xlu0 %1959
      %v1961 = vsel %vm1340, %v1788, -inf
      %1962 = vmax.xlane.f32.xlu0 %v1961
      %v1963 = vpop.xlane.xlu0 %1962
      %v1964 = vsel %vm1340, %v1791, -inf
      %1965 = vmax.xlane.f32.xlu0 %v1964
      %v1966 = vpop.xlane.xlu0 %1965
      %v1967 = vsel %vm1340, %v1796, -inf
      %1968 = vmax.xlane.f32.xlu0 %v1967
      %v1969 = vpop.xlane.xlu0 %1968
      %v1970 = vsel %vm1340, %v1799, -inf
      %1971 = vmax.xlane.f32.xlu0 %v1970
      %v1972 = vpop.xlane.xlu0 %1971
      %v1973 = vsel %vm1340, %v1804, -inf
      %1974 = vmax.xlane.f32.xlu0 %v1973
      %v1975 = vpop.xlane.xlu0 %1974
      %v1976 = vsel %vm1340, %v1807, -inf
      %1977 = vmax.xlane.f32.xlu0 %v1976
      %v1978 = vpop.xlane.xlu0 %1977
      %v1979 = vsel %vm1340, %v1877, -inf
      %1980 = vmax.xlane.f32.xlu0 %v1979
      %v1981 = vpop.xlane.xlu0 %1980
      %v1982 = vsel %vm1340, %v1880, -inf
      %1983 = vmax.xlane.f32.xlu0 %v1982
      %v1984 = vpop.xlane.xlu0 %1983
      %v1985 = vsel %vm1340, %v1885, -inf
      %1986 = vmax.xlane.f32.xlu0 %v1985
      %v1987 = vpop.xlane.xlu0 %1986
      %v1988 = vsel %vm1340, %v1888, -inf
      %1989 = vmax.xlane.f32.xlu0 %v1988
      %v1990 = vpop.xlane.xlu0 %1989
      %v1991 = vsel %vm1340, %v1893, -inf
      %1992 = vmax.xlane.f32.xlu0 %v1991
      %v1993 = vpop.xlane.xlu0 %1992
      %v1994 = vsel %vm1340, %v1896, -inf
      %1995 = vmax.xlane.f32.xlu0 %v1994
      %v1996 = vpop.xlane.xlu0 %1995
      %v1997 = vsel %vm1340, %v1901, -inf
      %1998 = vmax.xlane.f32.xlu0 %v1997
      %v1999 = vpop.xlane.xlu0 %1998
      %v2000 = vsel %vm1340, %v1904, -inf
      %2001 = vmax.xlane.f32.xlu0 %v2000
      %v2002 = vpop.xlane.xlu0 %2001
      %v2003 = vsub.f32 %v1586, %v1909
      %v2004 = vsub.f32 %v1589, %v1912
      %v2005 = vsub.f32 %v1594, %v1915
      %v2006 = vsub.f32 %v1597, %v1918
      %v2007 = vsub.f32 %v1602, %v1921
      %v2008 = vsub.f32 %v1605, %v1924
      %v2009 = vsub.f32 %v1610, %v1927
      %v2010 = vsub.f32 %v1613, %v1930
      %v2011 = vsub.f32 %v1683, %v1933
      %v2012 = vsub.f32 %v1686, %v1936
      %v2013 = vsub.f32 %v1691, %v1939
      %v2014 = vsub.f32 %v1694, %v1942
      %v2015 = vsub.f32 %v1699, %v1945
      %v2016 = vsub.f32 %v1702, %v1948
      %v2017 = vsub.f32 %v1707, %v1951
      %v2018 = vsub.f32 %v1710, %v1954
      %v2019 = vsub.f32 %v1780, %v1957
      %v2020 = vsub.f32 %v1783, %v1960
      %v2021 = vsub.f32 %v1788, %v1963
      %v2022 = vsub.f32 %v1791, %v1966
      %v2023 = vsub.f32 %v1796, %v1969
      %v2024 = vsub.f32 %v1799, %v1972
      %v2025 = vsub.f32 %v1804, %v1975
      %v2026 = vsub.f32 %v1807, %v1978
      %v2027 = vsub.f32 %v1877, %v1981
      %v2028 = vsub.f32 %v1880, %v1984
      %v2029 = vsub.f32 %v1885, %v1987
      %v2030 = vsub.f32 %v1888, %v1990
      %v2031 = vsub.f32 %v1893, %v1993
      %v2032 = vsub.f32 %v1896, %v1996
      %v2033 = vsub.f32 %v1901, %v1999
      %v2034 = vsub.f32 %v1904, %v2002
      %v2035 = vmul.f32 %v2003, 1.442695
      %v2036 = vpow.pop %v2035
      %v2037 = vmul.f32 %v2004, 1.442695
      %v2038 = vpow.pop %v2037
      %v2039 = vmul.f32 %v2005, 1.442695
      %v2040 = vpow.pop %v2039
      %v2041 = vmul.f32 %v2006, 1.442695
      %v2042 = vpow.pop %v2041
      %v2043 = vmul.f32 %v2007, 1.442695
      %v2044 = vpow.pop %v2043
      %v2045 = vmul.f32 %v2008, 1.442695
      %v2046 = vpow.pop %v2045
      %v2047 = vmul.f32 %v2009, 1.442695
      %v2048 = vpow.pop %v2047
      %v2049 = vmul.f32 %v2010, 1.442695
      %v2050 = vpow.pop %v2049
      %v2051 = vmul.f32 %v2011, 1.442695
      %v2052 = vpow.pop %v2051
      %v2053 = vmul.f32 %v2012, 1.442695
      %v2054 = vpow.pop %v2053
      %v2055 = vmul.f32 %v2013, 1.442695
      %v2056 = vpow.pop %v2055
      %v2057 = vmul.f32 %v2014, 1.442695
      %v2058 = vpow.pop %v2057
      %v2059 = vmul.f32 %v2015, 1.442695
      %v2060 = vpow.pop %v2059
      %v2061 = vmul.f32 %v2016, 1.442695
      %v2062 = vpow.pop %v2061
      %v2063 = vmul.f32 %v2017, 1.442695
      %v2064 = vpow.pop %v2063
      %v2065 = vmul.f32 %v2018, 1.442695
      %v2066 = vpow.pop %v2065
      %v2067 = vmul.f32 %v2019, 1.442695
      %v2068 = vpow.pop %v2067
      %v2069 = vmul.f32 %v2020, 1.442695
      %v2070 = vpow.pop %v2069
      %v2071 = vmul.f32 %v2021, 1.442695
      %v2072 = vpow.pop %v2071
      %v2073 = vmul.f32 %v2022, 1.442695
      %v2074 = vpow.pop %v2073
      %v2075 = vmul.f32 %v2023, 1.442695
      %v2076 = vpow.pop %v2075
      %v2077 = vmul.f32 %v2024, 1.442695
      %v2078 = vpow.pop %v2077
      %v2079 = vmul.f32 %v2025, 1.442695
      %v2080 = vpow.pop %v2079
      %v2081 = vmul.f32 %v2026, 1.442695
      %v2082 = vpow.pop %v2081
      %v2083 = vmul.f32 %v2027, 1.442695
      %v2084 = vpow.pop %v2083
      %v2085 = vmul.f32 %v2028, 1.442695
      %v2086 = vpow.pop %v2085
      %v2087 = vmul.f32 %v2029, 1.442695
      %v2088 = vpow.pop %v2087
      %v2089 = vmul.f32 %v2030, 1.442695
      %v2090 = vpow.pop %v2089
      %v2091 = vmul.f32 %v2031, 1.442695
      %v2092 = vpow.pop %v2091
      %v2093 = vmul.f32 %v2032, 1.442695
      %v2094 = vpow.pop %v2093
      %v2095 = vmul.f32 %v2033, 1.442695
      %v2096 = vpow.pop %v2095
      %v2097 = vmul.f32 %v2034, 1.442695
      %v2098 = vpow.pop %v2097
      %v2099 = vsel %vm1340, %v2036, 0.0
      %2100 = vadd.xlane.f32.xlu0 %v2099
      %v2101 = vpop.xlane.xlu0 %2100
      %v2102 = vsel %vm1340, %v2038, 0.0
      %2103 = vadd.xlane.f32.xlu0 %v2102
      %v2104 = vpop.xlane.xlu0 %2103
      %v2105 = vsel %vm1340, %v2040, 0.0
      %2106 = vadd.xlane.f32.xlu0 %v2105
      %v2107 = vpop.xlane.xlu0 %2106
      %v2108 = vsel %vm1340, %v2042, 0.0
      %2109 = vadd.xlane.f32.xlu0 %v2108
      %v2110 = vpop.xlane.xlu0 %2109
      %v2111 = vsel %vm1340, %v2044, 0.0
      %2112 = vadd.xlane.f32.xlu0 %v2111
      %v2113 = vpop.xlane.xlu0 %2112
      %v2114 = vsel %vm1340, %v2046, 0.0
      %2115 = vadd.xlane.f32.xlu0 %v2114
      %v2116 = vpop.xlane.xlu0 %2115
      %v2117 = vsel %vm1340, %v2048, 0.0
      %2118 = vadd.xlane.f32.xlu0 %v2117
      %v2119 = vpop.xlane.xlu0 %2118
      %v2120 = vsel %vm1340, %v2050, 0.0
      %2121 = vadd.xlane.f32.xlu0 %v2120
      %v2122 = vpop.xlane.xlu0 %2121
      %v2123 = vsel %vm1340, %v2052, 0.0
      %2124 = vadd.xlane.f32.xlu0 %v2123
      %v2125 = vpop.xlane.xlu0 %2124
      %v2126 = vsel %vm1340, %v2054, 0.0
      %2127 = vadd.xlane.f32.xlu0 %v2126
      %v2128 = vpop.xlane.xlu0 %2127
      %v2129 = vsel %vm1340, %v2056, 0.0
      %2130 = vadd.xlane.f32.xlu0 %v2129
      %v2131 = vpop.xlane.xlu0 %2130
      %v2132 = vsel %vm1340, %v2058, 0.0
      %2133 = vadd.xlane.f32.xlu0 %v2132
      %v2134 = vpop.xlane.xlu0 %2133
      %v2135 = vsel %vm1340, %v2060, 0.0
      %2136 = vadd.xlane.f32.xlu0 %v2135
      %v2137 = vpop.xlane.xlu0 %2136
      %v2138 = vsel %vm1340, %v2062, 0.0
      %2139 = vadd.xlane.f32.xlu0 %v2138
      %v2140 = vpop.xlane.xlu0 %2139
      %v2141 = vsel %vm1340, %v2064, 0.0
      %2142 = vadd.xlane.f32.xlu0 %v2141
      %v2143 = vpop.xlane.xlu0 %2142
      %v2144 = vsel %vm1340, %v2066, 0.0
      %2145 = vadd.xlane.f32.xlu0 %v2144
      %v2146 = vpop.xlane.xlu0 %2145
      %v2147 = vsel %vm1340, %v2068, 0.0
      %2148 = vadd.xlane.f32.xlu0 %v2147
      %v2149 = vpop.xlane.xlu0 %2148
      %v2150 = vsel %vm1340, %v2070, 0.0
      %2151 = vadd.xlane.f32.xlu0 %v2150
      %v2152 = vpop.xlane.xlu0 %2151
      %v2153 = vsel %vm1340, %v2072, 0.0
      %2154 = vadd.xlane.f32.xlu0 %v2153
      %v2155 = vpop.xlane.xlu0 %2154
      %v2156 = vsel %vm1340, %v2074, 0.0
      %2157 = vadd.xlane.f32.xlu0 %v2156
      %v2158 = vpop.xlane.xlu0 %2157
      %v2159 = vsel %vm1340, %v2076, 0.0
      %2160 = vadd.xlane.f32.xlu0 %v2159
      %v2161 = vpop.xlane.xlu0 %2160
      %v2162 = vsel %vm1340, %v2078, 0.0
      %2163 = vadd.xlane.f32.xlu0 %v2162
      %v2164 = vpop.xlane.xlu0 %2163
      %v2165 = vsel %vm1340, %v2080, 0.0
      %2166 = vadd.xlane.f32.xlu0 %v2165
      %v2167 = vpop.xlane.xlu0 %2166
      %v2168 = vsel %vm1340, %v2082, 0.0
      %2169 = vadd.xlane.f32.xlu0 %v2168
      %v2170 = vpop.xlane.xlu0 %2169
      %v2171 = vsel %vm1340, %v2084, 0.0
      %2172 = vadd.xlane.f32.xlu0 %v2171
      %v2173 = vpop.xlane.xlu0 %2172
      %v2174 = vsel %vm1340, %v2086, 0.0
      %2175 = vadd.xlane.f32.xlu0 %v2174
      %v2176 = vpop.xlane.xlu0 %2175
      %v2177 = vsel %vm1340, %v2088, 0.0
      %2178 = vadd.xlane.f32.xlu0 %v2177
      %v2179 = vpop.xlane.xlu0 %2178
      %v2180 = vsel %vm1340, %v2090, 0.0
      %2181 = vadd.xlane.f32.xlu0 %v2180
      %v2182 = vpop.xlane.xlu0 %2181
      %v2183 = vsel %vm1340, %v2092, 0.0
      %2184 = vadd.xlane.f32.xlu0 %v2183
      %v2185 = vpop.xlane.xlu0 %2184
      %v2186 = vsel %vm1340, %v2094, 0.0
      %2187 = vadd.xlane.f32.xlu0 %v2186
      %v2188 = vpop.xlane.xlu0 %2187
      %v2189 = vsel %vm1340, %v2096, 0.0
      %2190 = vadd.xlane.f32.xlu0 %v2189
      %v2191 = vpop.xlane.xlu0 %2190
      %v2192 = vsel %vm1340, %v2098, 0.0
      %2193 = vadd.xlane.f32.xlu0 %v2192
      %v2194 = vpop.xlane.xlu0 %2193
      %v2195 = vrcp.pop %v2101
      %v2196 = vrcp.pop %v2104
      %v2197 = vrcp.pop %v2107
      %v2198 = vrcp.pop %v2110
      %v2199 = vrcp.pop %v2113
      %v2200 = vrcp.pop %v2116
      %v2201 = vrcp.pop %v2119
      %v2202 = vrcp.pop %v2122
      %v2203 = vrcp.pop %v2125
      %v2204 = vrcp.pop %v2128
      %v2205 = vrcp.pop %v2131
      %v2206 = vrcp.pop %v2134
      %v2207 = vrcp.pop %v2137
      %v2208 = vrcp.pop %v2140
      %v2209 = vrcp.pop %v2143
      %v2210 = vrcp.pop %v2146
      %v2211 = vrcp.pop %v2149
      %v2212 = vrcp.pop %v2152
      %v2213 = vrcp.pop %v2155
      %v2214 = vrcp.pop %v2158
      %v2215 = vrcp.pop %v2161
      %v2216 = vrcp.pop %v2164
      %v2217 = vrcp.pop %v2167
      %v2218 = vrcp.pop %v2170
      %v2219 = vrcp.pop %v2173
      %v2220 = vrcp.pop %v2176
      %v2221 = vrcp.pop %v2179
      %v2222 = vrcp.pop %v2182
      %v2223 = vrcp.pop %v2185
      %v2224 = vrcp.pop %v2188
      %v2225 = vrcp.pop %v2191
      %v2226 = vrcp.pop %v2194
      %v2227 = vmul.f32 %v2036, %v2195
      %v2228 = vmul.f32 %v2038, %v2196
      %v2229 = vmul.f32 %v2040, %v2197
      %v2230 = vmul.f32 %v2042, %v2198
      %v2231 = vmul.f32 %v2044, %v2199
      %v2232 = vmul.f32 %v2046, %v2200
      %v2233 = vmul.f32 %v2048, %v2201
      %v2234 = vmul.f32 %v2050, %v2202
      %v2235 = vmul.f32 %v2052, %v2203
      %v2236 = vmul.f32 %v2054, %v2204
      %v2237 = vmul.f32 %v2056, %v2205
      %v2238 = vmul.f32 %v2058, %v2206
      %v2239 = vmul.f32 %v2060, %v2207
      %v2240 = vmul.f32 %v2062, %v2208
      %v2241 = vmul.f32 %v2064, %v2209
      %v2242 = vmul.f32 %v2066, %v2210
      %v2243 = vmul.f32 %v2068, %v2211
      %v2244 = vmul.f32 %v2070, %v2212
      %v2245 = vmul.f32 %v2072, %v2213
      %v2246 = vmul.f32 %v2074, %v2214
      %v2247 = vmul.f32 %v2076, %v2215
      %v2248 = vmul.f32 %v2078, %v2216
      %v2249 = vmul.f32 %v2080, %v2217
      %v2250 = vmul.f32 %v2082, %v2218
      %v2251 = vmul.f32 %v2084, %v2219
      %v2252 = vmul.f32 %v2086, %v2220
      %v2253 = vmul.f32 %v2088, %v2221
      %v2254 = vmul.f32 %v2090, %v2222
      %v2255 = vmul.f32 %v2092, %v2223
      %v2256 = vmul.f32 %v2094, %v2224
      %v2257 = vmul.f32 %v2096, %v2225
      %v2258 = vmul.f32 %v2098, %v2226
      %v2259 = vpack.c.bf16 %v2228, %v2227
      %v2260 = vpack.c.bf16 %v2230, %v2229
      %v2261 = vpack.c.bf16 %v2232, %v2231
      %v2262 = vpack.c.bf16 %v2234, %v2233
      %v2263 = vpack.c.bf16 %v2236, %v2235
      %v2264 = vpack.c.bf16 %v2238, %v2237
      %v2265 = vpack.c.bf16 %v2240, %v2239
      %v2266 = vpack.c.bf16 %v2242, %v2241
      %v2267 = vpack.c.bf16 %v2244, %v2243
      %v2268 = vpack.c.bf16 %v2246, %v2245
      %v2269 = vpack.c.bf16 %v2248, %v2247
      %v2270 = vpack.c.bf16 %v2250, %v2249
      %v2271 = vpack.c.bf16 %v2252, %v2251
      %v2272 = vpack.c.bf16 %v2254, %v2253
      %v2273 = vpack.c.bf16 %v2256, %v2255
      %v2274 = vpack.c.bf16 %v2258, %v2257
      %2275 = vrot.lane.b32.xlu0 %v1486, 64
      %v2276 = vpop.permute.xlu0 %2275
      %2277 = vrot.lane.b32.xlu0 %v1487, 64
      %v2278 = vpop.permute.xlu0 %2277
      %2279 = vrot.lane.b32.xlu0 %v1488, 64
      %v2280 = vpop.permute.xlu0 %2279
      %2281 = vrot.lane.b32.xlu0 %v1489, 64
      %v2282 = vpop.permute.xlu0 %2281
      %v2288 = vsel %vm1340, %v2259, 0
      %v2291 = vsel %vm1340, %v2260, 0
      %v2294 = vsel %vm1340, %v2261, 0
      %v2297 = vsel %vm1340, %v2262, 0
      %2299 = vmatprep.subr.bf16.mxu0 0
      %2300 = vmatpush1.bf16.msra.mxu0 %v2276
      %2301 = vmatprep.subr.bf16.mxu0 0
      %2302 = vmatpush1.bf16.msra.mxu0 %v2278
      %2303 = vmatprep.subr.bf16.mxu0 0
      %2304 = vmatpush1.bf16.msra.mxu0 %v2280
      %2305 = vmatprep.subr.bf16.mxu0 0
      %2306 = vmatpush1.bf16.msra.mxu0 %v2282
      %2307 = vmatprep.subr.bf16.mxu0 0
      %2308 = vmatpush1.bf16.msra.mxu0 0
      %2309 = vmatprep.subr.bf16.mxu0 0
      %2310 = vmatpush1.bf16.msra.mxu0 0
      %2311 = vmatprep.subr.bf16.mxu0 0
      %2312 = vmatpush1.bf16.msra.mxu0 0
      %2313 = vmatprep.subr.bf16.mxu0 0
      %2314 = vmatpush1.bf16.msra.mxu0 0
      %2315 = vmatprep.subr.bf16.mxu0 0
      %2316 = vmatpush1.bf16.msra.mxu0 0
      %2317 = vmatprep.subr.bf16.mxu0 0
      %2318 = vmatpush1.bf16.msra.mxu0 0
      %2319 = vmatprep.subr.bf16.mxu0 0
      %2320 = vmatpush1.bf16.msra.mxu0 0
      %2321 = vmatprep.subr.bf16.mxu0 0
      %2322 = vmatpush1.bf16.msra.mxu0 0
      %2323 = vmatprep.subr.bf16.mxu0 0
      %2324 = vmatpush1.bf16.msra.mxu0 0
      %2325 = vmatprep.subr.bf16.mxu0 0
      %2326 = vmatpush1.bf16.msra.mxu0 0
      %2327 = vmatprep.subr.bf16.mxu0 0
      %2328 = vmatpush1.bf16.msra.mxu0 0
      %2329 = vmatprep.subr.bf16.mxu0 0
      %2330 = vmatpush1.bf16.msra.mxu0 0
      %2331 = vmatprep.mubr.bf16.mxu0 0
      %2332 = vmatmul.mubr.bf16.gmra.mrb[0].mxu0 %v2288
      %v2333 = vpop.f32.mrb[0].mxu0
      %v2334 = vadd.f32 0.0, %v2333
      %v2335 = vpop.f32.mrb[0].mxu0
      %v2336 = vpop.f32.mrb[0].mxu0
      %v2337 = vadd.f32 0.0, %v2336
      %v2338 = vpop.f32.mrb[0].mxu0
      %2339 = vmatprep.mubr.bf16.mxu0 0
      %2340 = vmatmul.mubr.bf16.gmra.mrb[0].mxu0 %v2291
      %v2341 = vpop.f32.mrb[0].mxu0
      %v2342 = vadd.f32 0.0, %v2341
      %v2343 = vpop.f32.mrb[0].mxu0
      %v2344 = vpop.f32.mrb[0].mxu0
      %v2345 = vadd.f32 0.0, %v2344
      %v2346 = vpop.f32.mrb[0].mxu0
      %2347 = vmatprep.mubr.bf16.mxu0 0
      %2348 = vmatmul.mubr.bf16.gmra.mrb[0].mxu0 %v2294
      %v2349 = vpop.f32.mrb[0].mxu0
      %v2350 = vadd.f32 0.0, %v2349
      %v2351 = vpop.f32.mrb[0].mxu0
      %v2352 = vpop.f32.mrb[0].mxu0
      %v2353 = vadd.f32 0.0, %v2352
      %v2354 = vpop.f32.mrb[0].mxu0
      %2355 = vmatprep.mubr.bf16.mxu0 0
      %2356 = vmatmul.mubr.bf16.gmra.mrb[0].mxu0 %v2297
      %v2357 = vpop.f32.mrb[0].mxu0
      %v2358 = vadd.f32 0.0, %v2357
      %v2359 = vpop.f32.mrb[0].mxu0
      %v2360 = vpop.f32.mrb[0].mxu0
      %v2361 = vadd.f32 0.0, %v2360
      %v2362 = vpop.f32.mrb[0].mxu0
      %2363 = vdwg.mxu0
      %2364 = vrot.lane.b32.xlu0 %v1495, 64
      %v2365 = vpop.permute.xlu0 %2364
      %2366 = vrot.lane.b32.xlu0 %v1497, 64
      %v2367 = vpop.permute.xlu0 %2366
      %2368 = vrot.lane.b32.xlu0 %v1499, 64
      %v2369 = vpop.permute.xlu0 %2368
      %2370 = vrot.lane.b32.xlu0 %v1501, 64
      %v2371 = vpop.permute.xlu0 %2370
      %v2377 = vsel %vm1340, %v2263, 0
      %v2380 = vsel %vm1340, %v2264, 0
      %v2383 = vsel %vm1340, %v2265, 0
      %v2386 = vsel %vm1340, %v2266, 0
      %2388 = vmatprep.subr.bf16.mxu0 0
      %2389 = vmatpush1.bf16.msra.mxu0 %v2365
      %2390 = vmatprep.subr.bf16.mxu0 0
      %2391 = vmatpush1.bf16.msra.mxu0 %v2367
      %2392 = vmatprep.subr.bf16.mxu0 0
      %2393 = vmatpush1.bf16.msra.mxu0 %v2369
      %2394 = vmatprep.subr.bf16.mxu0 0
      %2395 = vmatpush1.bf16.msra.mxu0 %v2371
      %2396 = vmatprep.subr.bf16.mxu0 0
      %2397 = vmatpush1.bf16.msra.mxu0 0
      %2398 = vmatprep.subr.bf16.mxu0 0
      %2399 = vmatpush1.bf16.msra.mxu0 0
      %2400 = vmatprep.subr.bf16.mxu0 0
      %2401 = vmatpush1.bf16.msra.mxu0 0
      %2402 = vmatprep.subr.bf16.mxu0 0
      %2403 = vmatpush1.bf16.msra.mxu0 0
      %2404 = vmatprep.subr.bf16.mxu0 0
      %2405 = vmatpush1.bf16.msra.mxu0 0
      %2406 = vmatprep.subr.bf16.mxu0 0
      %2407 = vmatpush1.bf16.msra.mxu0 0
      %2408 = vmatprep.subr.bf16.mxu0 0
      %2409 = vmatpush1.bf16.msra.mxu0 0
      %2410 = vmatprep.subr.bf16.mxu0 0
      %2411 = vmatpush1.bf16.msra.mxu0 0
      %2412 = vmatprep.subr.bf16.mxu0 0
      %2413 = vmatpush1.bf16.msra.mxu0 0
      %2414 = vmatprep.subr.bf16.mxu0 0
      %2415 = vmatpush1.bf16.msra.mxu0 0
      %2416 = vmatprep.subr.bf16.mxu0 0
      %2417 = vmatpush1.bf16.msra.mxu0 0
      %2418 = vmatprep.subr.bf16.mxu0 0
      %2419 = vmatpush1.bf16.msra.mxu0 0
      %2420 = vmatprep.mubr.bf16.mxu0 0
      %2421 = vmatmul.mubr.bf16.gmra.mrb[0].mxu0 %v2377
      %v2422 = vpop.f32.mrb[0].mxu0
      %v2423 = vadd.f32 0.0, %v2422
      %v2424 = vpop.f32.mrb[0].mxu0
      %v2425 = vpop.f32.mrb[0].mxu0
      %v2426 = vadd.f32 0.0, %v2425
      %v2427 = vpop.f32.mrb[0].mxu0
      %2428 = vmatprep.mubr.bf16.mxu0 0
      %2429 = vmatmul.mubr.bf16.gmra.mrb[0].mxu0 %v2380
      %v2430 = vpop.f32.mrb[0].mxu0
      %v2431 = vadd.f32 0.0, %v2430
      %v2432 = vpop.f32.mrb[0].mxu0
      %v2433 = vpop.f32.mrb[0].mxu0
      %v2434 = vadd.f32 0.0, %v2433
      %v2435 = vpop.f32.mrb[0].mxu0
      %2436 = vmatprep.mubr.bf16.mxu0 0
      %2437 = vmatmul.mubr.bf16.gmra.mrb[0].mxu0 %v2383
      %v2438 = vpop.f32.mrb[0].mxu0
      %v2439 = vadd.f32 0.0, %v2438
      %v2440 = vpop.f32.mrb[0].mxu0
      %v2441 = vpop.f32.mrb[0].mxu0
      %v2442 = vadd.f32 0.0, %v2441
      %v2443 = vpop.f32.mrb[0].mxu0
      %2444 = vmatprep.mubr.bf16.mxu0 0
      %2445 = vmatmul.mubr.bf16.gmra.mrb[0].mxu0 %v2386
      %v2446 = vpop.f32.mrb[0].mxu0
      %v2447 = vadd.f32 0.0, %v2446
      %v2448 = vpop.f32.mrb[0].mxu0
      %v2449 = vpop.f32.mrb[0].mxu0
      %v2450 = vadd.f32 0.0, %v2449
      %v2451 = vpop.f32.mrb[0].mxu0
      %2452 = vdwg.mxu0
      %2453 = vrot.lane.b32.xlu0 %v1503, 64
      %v2454 = vpop.permute.xlu0 %2453
      %2455 = vrot.lane.b32.xlu0 %v1505, 64
      %v2456 = vpop.permute.xlu0 %2455
      %2457 = vrot.lane.b32.xlu0 %v1507, 64
      %v2458 = vpop.permute.xlu0 %2457
      %2459 = vrot.lane.b32.xlu0 %v1509, 64
      %v2460 = vpop.permute.xlu0 %2459
      %v2466 = vsel %vm1340, %v2267, 0
      %v2469 = vsel %vm1340, %v2268, 0
      %v2472 = vsel %vm1340, %v2269, 0
      %v2475 = vsel %vm1340, %v2270, 0
      %2477 = vmatprep.subr.bf16.mxu0 0
      %2478 = vmatpush1.bf16.msra.mxu0 %v2454
      %2479 = vmatprep.subr.bf16.mxu0 0
      %2480 = vmatpush1.bf16.msra.mxu0 %v2456
      %2481 = vmatprep.subr.bf16.mxu0 0
      %2482 = vmatpush1.bf16.msra.mxu0 %v2458
      %2483 = vmatprep.subr.bf16.mxu0 0
      %2484 = vmatpush1.bf16.msra.mxu0 %v2460
      %2485 = vmatprep.subr.bf16.mxu0 0
      %2486 = vmatpush1.bf16.msra.mxu0 0
      %2487 = vmatprep.subr.bf16.mxu0 0
      %2488 = vmatpush1.bf16.msra.mxu0 0
      %2489 = vmatprep.subr.bf16.mxu0 0
      %2490 = vmatpush1.bf16.msra.mxu0 0
      %2491 = vmatprep.subr.bf16.mxu0 0
      %2492 = vmatpush1.bf16.msra.mxu0 0
      %2493 = vmatprep.subr.bf16.mxu0 0
      %2494 = vmatpush1.bf16.msra.mxu0 0
      %2495 = vmatprep.subr.bf16.mxu0 0
      %2496 = vmatpush1.bf16.msra.mxu0 0
      %2497 = vmatprep.subr.bf16.mxu0 0
      %2498 = vmatpush1.bf16.msra.mxu0 0
      %2499 = vmatprep.subr.bf16.mxu0 0
      %2500 = vmatpush1.bf16.msra.mxu0 0
      %2501 = vmatprep.subr.bf16.mxu0 0
      %2502 = vmatpush1.bf16.msra.mxu0 0
      %2503 = vmatprep.subr.bf16.mxu0 0
      %2504 = vmatpush1.bf16.msra.mxu0 0
      %2505 = vmatprep.subr.bf16.mxu0 0
      %2506 = vmatpush1.bf16.msra.mxu0 0
      %2507 = vmatprep.subr.bf16.mxu0 0
      %2508 = vmatpush1.bf16.msra.mxu0 0
      %2509 = vmatprep.mubr.bf16.mxu0 0
      %2510 = vmatmul.mubr.bf16.gmra.mrb[0].mxu0 %v2466
      %v2511 = vpop.f32.mrb[0].mxu0
      %v2512 = vadd.f32 0.0, %v2511
      %v2513 = vpop.f32.mrb[0].mxu0
      %v2514 = vpop.f32.mrb[0].mxu0
      %v2515 = vadd.f32 0.0, %v2514
      %v2516 = vpop.f32.mrb[0].mxu0
      %2517 = vmatprep.mubr.bf16.mxu0 0
      %2518 = vmatmul.mubr.bf16.gmra.mrb[0].mxu0 %v2469
      %v2519 = vpop.f32.mrb[0].mxu0
      %v2520 = vadd.f32 0.0, %v2519
      %v2521 = vpop.f32.mrb[0].mxu0
      %v2522 = vpop.f32.mrb[0].mxu0
      %v2523 = vadd.f32 0.0, %v2522
      %v2524 = vpop.f32.mrb[0].mxu0
      %2525 = vmatprep.mubr.bf16.mxu0 0
      %2526 = vmatmul.mubr.bf16.gmra.mrb[0].mxu0 %v2472
      %v2527 = vpop.f32.mrb[0].mxu0
      %v2528 = vadd.f32 0.0, %v2527
      %v2529 = vpop.f32.mrb[0].mxu0
      %v2530 = vpop.f32.mrb[0].mxu0
      %v2531 = vadd.f32 0.0, %v2530
      %v2532 = vpop.f32.mrb[0].mxu0
      %2533 = vmatprep.mubr.bf16.mxu0 0
      %2534 = vmatmul.mubr.bf16.gmra.mrb[0].mxu0 %v2475
      %v2535 = vpop.f32.mrb[0].mxu0
      %v2536 = vadd.f32 0.0, %v2535
      %v2537 = vpop.f32.mrb[0].mxu0
      %v2538 = vpop.f32.mrb[0].mxu0
      %v2539 = vadd.f32 0.0, %v2538
      %v2540 = vpop.f32.mrb[0].mxu0
      %2541 = vdwg.mxu0
      %2542 = vrot.lane.b32.xlu0 %v1511, 64
      %v2543 = vpop.permute.xlu0 %2542
      %2544 = vrot.lane.b32.xlu0 %v1513, 64
      %v2545 = vpop.permute.xlu0 %2544
      %2546 = vrot.lane.b32.xlu0 %v1515, 64
      %v2547 = vpop.permute.xlu0 %2546
      %2548 = vrot.lane.b32.xlu0 %v1517, 64
      %v2549 = vpop.permute.xlu0 %2548
      %v2555 = vsel %vm1340, %v2271, 0
      %v2558 = vsel %vm1340, %v2272, 0
      %v2561 = vsel %vm1340, %v2273, 0
      %v2564 = vsel %vm1340, %v2274, 0
      %2566 = vmatprep.subr.bf16.mxu0 0
      %2567 = vmatpush1.bf16.msra.mxu0 %v2543
      %2568 = vmatprep.subr.bf16.mxu0 0
      %2569 = vmatpush1.bf16.msra.mxu0 %v2545
      %2570 = vmatprep.subr.bf16.mxu0 0
      %2571 = vmatpush1.bf16.msra.mxu0 %v2547
      %2572 = vmatprep.subr.bf16.mxu0 0
      %2573 = vmatpush1.bf16.msra.mxu0 %v2549
      %2574 = vmatprep.subr.bf16.mxu0 0
      %2575 = vmatpush1.bf16.msra.mxu0 0
      %2576 = vmatprep.subr.bf16.mxu0 0
      %2577 = vmatpush1.bf16.msra.mxu0 0
      %2578 = vmatprep.subr.bf16.mxu0 0
      %2579 = vmatpush1.bf16.msra.mxu0 0
      %2580 = vmatprep.subr.bf16.mxu0 0
      %2581 = vmatpush1.bf16.msra.mxu0 0
      %2582 = vmatprep.subr.bf16.mxu0 0
      %2583 = vmatpush1.bf16.msra.mxu0 0
      %2584 = vmatprep.subr.bf16.mxu0 0
      %2585 = vmatpush1.bf16.msra.mxu0 0
      %2586 = vmatprep.subr.bf16.mxu0 0
      %2587 = vmatpush1.bf16.msra.mxu0 0
      %2588 = vmatprep.subr.bf16.mxu0 0
      %2589 = vmatpush1.bf16.msra.mxu0 0
      %2590 = vmatprep.subr.bf16.mxu0 0
      %2591 = vmatpush1.bf16.msra.mxu0 0
      %2592 = vmatprep.subr.bf16.mxu0 0
      %2593 = vmatpush1.bf16.msra.mxu0 0
      %2594 = vmatprep.subr.bf16.mxu0 0
      %2595 = vmatpush1.bf16.msra.mxu0 0
      %2596 = vmatprep.subr.bf16.mxu0 0
      %2597 = vmatpush1.bf16.msra.mxu0 0
      %2598 = vmatprep.mubr.bf16.mxu0 0
      %2599 = vmatmul.mubr.bf16.gmra.mrb[0].mxu0 %v2555
      %v2600 = vpop.f32.mrb[0].mxu0
      %v2601 = vadd.f32 0.0, %v2600
      %v2602 = vpop.f32.mrb[0].mxu0
      %v2603 = vpop.f32.mrb[0].mxu0
      %v2604 = vadd.f32 0.0, %v2603
      %v2605 = vpop.f32.mrb[0].mxu0
      %2606 = vmatprep.mubr.bf16.mxu0 0
      %2607 = vmatmul.mubr.bf16.gmra.mrb[0].mxu0 %v2558
      %v2608 = vpop.f32.mrb[0].mxu0
      %v2609 = vadd.f32 0.0, %v2608
      %v2610 = vpop.f32.mrb[0].mxu0
      %v2611 = vpop.f32.mrb[0].mxu0
      %v2612 = vadd.f32 0.0, %v2611
      %v2613 = vpop.f32.mrb[0].mxu0
      %2614 = vmatprep.mubr.bf16.mxu0 0
      %2615 = vmatmul.mubr.bf16.gmra.mrb[0].mxu0 %v2561
      %v2616 = vpop.f32.mrb[0].mxu0
      %v2617 = vadd.f32 0.0, %v2616
      %v2618 = vpop.f32.mrb[0].mxu0
      %v2619 = vpop.f32.mrb[0].mxu0
      %v2620 = vadd.f32 0.0, %v2619
      %v2621 = vpop.f32.mrb[0].mxu0
      %2622 = vmatprep.mubr.bf16.mxu0 0
      %2623 = vmatmul.mubr.bf16.gmra.mrb[0].mxu0 %v2564
      %v2624 = vpop.f32.mrb[0].mxu0
      %v2625 = vadd.f32 0.0, %v2624
      %v2626 = vpop.f32.mrb[0].mxu0
      %v2627 = vpop.f32.mrb[0].mxu0
      %v2628 = vadd.f32 0.0, %v2627
      %v2629 = vpop.f32.mrb[0].mxu0
      %2630 = vdwg.mxu0
      %v2631 = vpack.c.bf16 %v2337, %v2334
      %v2632 = vpack.c.bf16 %v2345, %v2342
      %v2633 = vpack.c.bf16 %v2353, %v2350
      %v2634 = vpack.c.bf16 %v2361, %v2358
      %v2635 = vpack.c.bf16 %v2426, %v2423
      %v2636 = vpack.c.bf16 %v2434, %v2431
      %v2637 = vpack.c.bf16 %v2442, %v2439
      %v2638 = vpack.c.bf16 %v2450, %v2447
      %v2639 = vpack.c.bf16 %v2515, %v2512
      %v2640 = vpack.c.bf16 %v2523, %v2520
      %v2641 = vpack.c.bf16 %v2531, %v2528
      %v2642 = vpack.c.bf16 %v2539, %v2536
      %v2643 = vpack.c.bf16 %v2604, %v2601
      %v2644 = vpack.c.bf16 %v2612, %v2609
      %v2645 = vpack.c.bf16 %v2620, %v2617
      %v2646 = vpack.c.bf16 %v2628, %v2625
      %v2647 = vld [vmem:[%s7] sm:$0xf]
      %v2648 = vld [vmem:[%s7 + $0x4] sm:$0xf]
      %v2649 = vld [vmem:[%s7 + $0x8] sm:$0xf]
      %v2650 = vld [vmem:[%s7 + $0xc] sm:$0xf]
      %v2652 = vsel %vm1526, %v2631, 0
      %v2655 = vsel %vm1526, %v2632, 0
      %v2658 = vsel %vm1526, %v2633, 0
      %v2661 = vsel %vm1526, %v2634, 0
      %vm2663 = vcmask 1043456
      %v2665 = vsel %vm2663, %v2647, 0
      %2667 = vmatprep.subr.bf16.mxu0 0
      %2668 = vmatpush1.bf16.msra.mxu0 %v2665
      %2669 = vmatprep.subr.bf16.mxu0 0
      %2670 = vmatpush1.bf16.msra.mxu0 0
      %2671 = vmatprep.subr.bf16.mxu0 0
      %2672 = vmatpush1.bf16.msra.mxu0 0
      %2673 = vmatprep.subr.bf16.mxu0 0
      %2674 = vmatpush1.bf16.msra.mxu0 0
      %2675 = vmatprep.subr.bf16.mxu0 0
      %2676 = vmatpush1.bf16.msra.mxu0 0
      %2677 = vmatprep.subr.bf16.mxu0 0
      %2678 = vmatpush1.bf16.msra.mxu0 0
      %2679 = vmatprep.subr.bf16.mxu0 0
      %2680 = vmatpush1.bf16.msra.mxu0 0
      %2681 = vmatprep.subr.bf16.mxu0 0
      %2682 = vmatpush1.bf16.msra.mxu0 0
      %2683 = vmatprep.subr.bf16.mxu0 0
      %2684 = vmatpush1.bf16.msra.mxu0 0
      %2685 = vmatprep.subr.bf16.mxu0 0
      %2686 = vmatpush1.bf16.msra.mxu0 0
      %2687 = vmatprep.subr.bf16.mxu0 0
      %2688 = vmatpush1.bf16.msra.mxu0 0
      %2689 = vmatprep.subr.bf16.mxu0 0
      %2690 = vmatpush1.bf16.msra.mxu0 0
      %2691 = vmatprep.subr.bf16.mxu0 0
      %2692 = vmatpush1.bf16.msra.mxu0 0
      %2693 = vmatprep.subr.bf16.mxu0 0
      %2694 = vmatpush1.bf16.msra.mxu0 0
      %2695 = vmatprep.subr.bf16.mxu0 0
      %2696 = vmatpush1.bf16.msra.mxu0 0
      %2697 = vmatprep.subr.bf16.mxu0 0
      %2698 = vmatpush1.bf16.msra.mxu0 0
      %2699 = vmatprep.mubr.bf16.mxu0 0
      %2700 = vmatmul.mubr.bf16.gmra.mrb[0].mxu0 %v2652
      %v2701 = vpop.f32.mrb[0].mxu0
      %v2702 = vadd.f32 0.0, %v2701
      %v2703 = vpop.f32.mrb[0].mxu0
      %v2704 = vpop.f32.mrb[0].mxu0
      %v2705 = vadd.f32 0.0, %v2704
      %v2706 = vpop.f32.mrb[0].mxu0
      %2707 = vmatprep.mubr.bf16.mxu0 0
      %2708 = vmatmul.mubr.bf16.gmra.mrb[0].mxu0 %v2655
      %v2709 = vpop.f32.mrb[0].mxu0
      %v2710 = vadd.f32 0.0, %v2709
      %v2711 = vpop.f32.mrb[0].mxu0
      %v2712 = vpop.f32.mrb[0].mxu0
      %v2713 = vadd.f32 0.0, %v2712
      %v2714 = vpop.f32.mrb[0].mxu0
      %2715 = vmatprep.mubr.bf16.mxu0 0
      %2716 = vmatmul.mubr.bf16.gmra.mrb[0].mxu0 %v2658
      %v2717 = vpop.f32.mrb[0].mxu0
      %v2718 = vadd.f32 0.0, %v2717
      %v2719 = vpop.f32.mrb[0].mxu0
      %v2720 = vpop.f32.mrb[0].mxu0
      %v2721 = vadd.f32 0.0, %v2720
      %v2722 = vpop.f32.mrb[0].mxu0
      %2723 = vmatprep.mubr.bf16.mxu0 0
      %2724 = vmatmul.mubr.bf16.gmra.mrb[0].mxu0 %v2661
      %v2725 = vpop.f32.mrb[0].mxu0
      %v2726 = vadd.f32 0.0, %v2725
      %v2727 = vpop.f32.mrb[0].mxu0
      %v2728 = vpop.f32.mrb[0].mxu0
      %v2729 = vadd.f32 0.0, %v2728
      %v2730 = vpop.f32.mrb[0].mxu0
      %2731 = vdwg.mxu0
      %v2733 = vsel %vm1526, %v2635, 0
      %v2736 = vsel %vm1526, %v2636, 0
      %v2739 = vsel %vm1526, %v2637, 0
      %v2742 = vsel %vm1526, %v2638, 0
      %v2745 = vsel %vm2663, %v2648, 0
      %2747 = vmatprep.subr.bf16.mxu0 0
      %2748 = vmatpush1.bf16.msra.mxu0 %v2745
      %2749 = vmatprep.subr.bf16.mxu0 0
      %2750 = vmatpush1.bf16.msra.mxu0 0
      %2751 = vmatprep.subr.bf16.mxu0 0
      %2752 = vmatpush1.bf16.msra.mxu0 0
      %2753 = vmatprep.subr.bf16.mxu0 0
      %2754 = vmatpush1.bf16.msra.mxu0 0
      %2755 = vmatprep.subr.bf16.mxu0 0
      %2756 = vmatpush1.bf16.msra.mxu0 0
      %2757 = vmatprep.subr.bf16.mxu0 0
      %2758 = vmatpush1.bf16.msra.mxu0 0
      %2759 = vmatprep.subr.bf16.mxu0 0
      %2760 = vmatpush1.bf16.msra.mxu0 0
      %2761 = vmatprep.subr.bf16.mxu0 0
      %2762 = vmatpush1.bf16.msra.mxu0 0
      %2763 = vmatprep.subr.bf16.mxu0 0
      %2764 = vmatpush1.bf16.msra.mxu0 0
      %2765 = vmatprep.subr.bf16.mxu0 0
      %2766 = vmatpush1.bf16.msra.mxu0 0
      %2767 = vmatprep.subr.bf16.mxu0 0
      %2768 = vmatpush1.bf16.msra.mxu0 0
      %2769 = vmatprep.subr.bf16.mxu0 0
      %2770 = vmatpush1.bf16.msra.mxu0 0
      %2771 = vmatprep.subr.bf16.mxu0 0
      %2772 = vmatpush1.bf16.msra.mxu0 0
      %2773 = vmatprep.subr.bf16.mxu0 0
      %2774 = vmatpush1.bf16.msra.mxu0 0
      %2775 = vmatprep.subr.bf16.mxu0 0
      %2776 = vmatpush1.bf16.msra.mxu0 0
      %2777 = vmatprep.subr.bf16.mxu0 0
      %2778 = vmatpush1.bf16.msra.mxu0 0
      %2779 = vmatprep.mubr.bf16.mxu0 0
      %2780 = vmatmul.mubr.bf16.gmra.mrb[0].mxu0 %v2733
      %v2781 = vpop.f32.mrb[0].mxu0
      %v2782 = vadd.f32 0.0, %v2781
      %v2783 = vpop.f32.mrb[0].mxu0
      %v2784 = vpop.f32.mrb[0].mxu0
      %v2785 = vadd.f32 0.0, %v2784
      %v2786 = vpop.f32.mrb[0].mxu0
      %2787 = vmatprep.mubr.bf16.mxu0 0
      %2788 = vmatmul.mubr.bf16.gmra.mrb[0].mxu0 %v2736
      %v2789 = vpop.f32.mrb[0].mxu0
      %v2790 = vadd.f32 0.0, %v2789
      %v2791 = vpop.f32.mrb[0].mxu0
      %v2792 = vpop.f32.mrb[0].mxu0
      %v2793 = vadd.f32 0.0, %v2792
      %v2794 = vpop.f32.mrb[0].mxu0
      %2795 = vmatprep.mubr.bf16.mxu0 0
      %2796 = vmatmul.mubr.bf16.gmra.mrb[0].mxu0 %v2739
      %v2797 = vpop.f32.mrb[0].mxu0
      %v2798 = vadd.f32 0.0, %v2797
      %v2799 = vpop.f32.mrb[0].mxu0
      %v2800 = vpop.f32.mrb[0].mxu0
      %v2801 = vadd.f32 0.0, %v2800
      %v2802 = vpop.f32.mrb[0].mxu0
      %2803 = vmatprep.mubr.bf16.mxu0 0
      %2804 = vmatmul.mubr.bf16.gmra.mrb[0].mxu0 %v2742
      %v2805 = vpop.f32.mrb[0].mxu0
      %v2806 = vadd.f32 0.0, %v2805
      %v2807 = vpop.f32.mrb[0].mxu0
      %v2808 = vpop.f32.mrb[0].mxu0
      %v2809 = vadd.f32 0.0, %v2808
      %v2810 = vpop.f32.mrb[0].mxu0
      %2811 = vdwg.mxu0
      %v2813 = vsel %vm1526, %v2639, 0
      %v2816 = vsel %vm1526, %v2640, 0
      %v2819 = vsel %vm1526, %v2641, 0
      %v2822 = vsel %vm1526, %v2642, 0
      %v2825 = vsel %vm2663, %v2649, 0
      %2827 = vmatprep.subr.bf16.mxu0 0
      %2828 = vmatpush1.bf16.msra.mxu0 %v2825
      %2829 = vmatprep.subr.bf16.mxu0 0
      %2830 = vmatpush1.bf16.msra.mxu0 0
      %2831 = vmatprep.subr.bf16.mxu0 0
      %2832 = vmatpush1.bf16.msra.mxu0 0
      %2833 = vmatprep.subr.bf16.mxu0 0
      %2834 = vmatpush1.bf16.msra.mxu0 0
      %2835 = vmatprep.subr.bf16.mxu0 0
      %2836 = vmatpush1.bf16.msra.mxu0 0
      %2837 = vmatprep.subr.bf16.mxu0 0
      %2838 = vmatpush1.bf16.msra.mxu0 0
      %2839 = vmatprep.subr.bf16.mxu0 0
      %2840 = vmatpush1.bf16.msra.mxu0 0
      %2841 = vmatprep.subr.bf16.mxu0 0
      %2842 = vmatpush1.bf16.msra.mxu0 0
      %2843 = vmatprep.subr.bf16.mxu0 0
      %2844 = vmatpush1.bf16.msra.mxu0 0
      %2845 = vmatprep.subr.bf16.mxu0 0
      %2846 = vmatpush1.bf16.msra.mxu0 0
      %2847 = vmatprep.subr.bf16.mxu0 0
      %2848 = vmatpush1.bf16.msra.mxu0 0
      %2849 = vmatprep.subr.bf16.mxu0 0
      %2850 = vmatpush1.bf16.msra.mxu0 0
      %2851 = vmatprep.subr.bf16.mxu0 0
      %2852 = vmatpush1.bf16.msra.mxu0 0
      %2853 = vmatprep.subr.bf16.mxu0 0
      %2854 = vmatpush1.bf16.msra.mxu0 0
      %2855 = vmatprep.subr.bf16.mxu0 0
      %2856 = vmatpush1.bf16.msra.mxu0 0
      %2857 = vmatprep.subr.bf16.mxu0 0
      %2858 = vmatpush1.bf16.msra.mxu0 0
      %2859 = vmatprep.mubr.bf16.mxu0 0
      %2860 = vmatmul.mubr.bf16.gmra.mrb[0].mxu0 %v2813
      %v2861 = vpop.f32.mrb[0].mxu0
      %v2862 = vadd.f32 0.0, %v2861
      %v2863 = vpop.f32.mrb[0].mxu0
      %v2864 = vpop.f32.mrb[0].mxu0
      %v2865 = vadd.f32 0.0, %v2864
      %v2866 = vpop.f32.mrb[0].mxu0
      %2867 = vmatprep.mubr.bf16.mxu0 0
      %2868 = vmatmul.mubr.bf16.gmra.mrb[0].mxu0 %v2816
      %v2869 = vpop.f32.mrb[0].mxu0
      %v2870 = vadd.f32 0.0, %v2869
      %v2871 = vpop.f32.mrb[0].mxu0
      %v2872 = vpop.f32.mrb[0].mxu0
      %v2873 = vadd.f32 0.0, %v2872
      %v2874 = vpop.f32.mrb[0].mxu0
      %2875 = vmatprep.mubr.bf16.mxu0 0
      %2876 = vmatmul.mubr.bf16.gmra.mrb[0].mxu0 %v2819
      %v2877 = vpop.f32.mrb[0].mxu0
      %v2878 = vadd.f32 0.0, %v2877
      %v2879 = vpop.f32.mrb[0].mxu0
      %v2880 = vpop.f32.mrb[0].mxu0
      %v2881 = vadd.f32 0.0, %v2880
      %v2882 = vpop.f32.mrb[0].mxu0
      %2883 = vmatprep.mubr.bf16.mxu0 0
      %2884 = vmatmul.mubr.bf16.gmra.mrb[0].mxu0 %v2822
      %v2885 = vpop.f32.mrb[0].mxu0
      %v2886 = vadd.f32 0.0, %v2885
      %v2887 = vpop.f32.mrb[0].mxu0
      %v2888 = vpop.f32.mrb[0].mxu0
      %v2889 = vadd.f32 0.0, %v2888
      %v2890 = vpop.f32.mrb[0].mxu0
      %2891 = vdwg.mxu0
      %v2893 = vsel %vm1526, %v2643, 0
      %v2896 = vsel %vm1526, %v2644, 0
      %v2899 = vsel %vm1526, %v2645, 0
      %v2902 = vsel %vm1526, %v2646, 0
      %v2905 = vsel %vm2663, %v2650, 0
      %2907 = vmatprep.subr.bf16.mxu0 0
      %2908 = vmatpush1.bf16.msra.mxu0 %v2905
      %2909 = vmatprep.subr.bf16.mxu0 0
      %2910 = vmatpush1.bf16.msra.mxu0 0
      %2911 = vmatprep.subr.bf16.mxu0 0
      %2912 = vmatpush1.bf16.msra.mxu0 0
      %2913 = vmatprep.subr.bf16.mxu0 0
      %2914 = vmatpush1.bf16.msra.mxu0 0
      %2915 = vmatprep.subr.bf16.mxu0 0
      %2916 = vmatpush1.bf16.msra.mxu0 0
      %2917 = vmatprep.subr.bf16.mxu0 0
      %2918 = vmatpush1.bf16.msra.mxu0 0
      %2919 = vmatprep.subr.bf16.mxu0 0
      %2920 = vmatpush1.bf16.msra.mxu0 0
      %2921 = vmatprep.subr.bf16.mxu0 0
      %2922 = vmatpush1.bf16.msra.mxu0 0
      %2923 = vmatprep.subr.bf16.mxu0 0
      %2924 = vmatpush1.bf16.msra.mxu0 0
      %2925 = vmatprep.subr.bf16.mxu0 0
      %2926 = vmatpush1.bf16.msra.mxu0 0
      %2927 = vmatprep.subr.bf16.mxu0 0
      %2928 = vmatpush1.bf16.msra.mxu0 0
      %2929 = vmatprep.subr.bf16.mxu0 0
      %2930 = vmatpush1.bf16.msra.mxu0 0
      %2931 = vmatprep.subr.bf16.mxu0 0
      %2932 = vmatpush1.bf16.msra.mxu0 0
      %2933 = vmatprep.subr.bf16.mxu0 0
      %2934 = vmatpush1.bf16.msra.mxu0 0
      %2935 = vmatprep.subr.bf16.mxu0 0
      %2936 = vmatpush1.bf16.msra.mxu0 0
      %2937 = vmatprep.subr.bf16.mxu0 0
      %2938 = vmatpush1.bf16.msra.mxu0 0
      %2939 = vmatprep.mubr.bf16.mxu0 0
      %2940 = vmatmul.mubr.bf16.gmra.mrb[0].mxu0 %v2893
      %v2941 = vpop.f32.mrb[0].mxu0
      %v2942 = vadd.f32 0.0, %v2941
      %v2943 = vpop.f32.mrb[0].mxu0
      %v2944 = vpop.f32.mrb[0].mxu0
      %v2945 = vadd.f32 0.0, %v2944
      %v2946 = vpop.f32.mrb[0].mxu0
      %2947 = vmatprep.mubr.bf16.mxu0 0
      %2948 = vmatmul.mubr.bf16.gmra.mrb[0].mxu0 %v2896
      %v2949 = vpop.f32.mrb[0].mxu0
      %v2950 = vadd.f32 0.0, %v2949
      %v2951 = vpop.f32.mrb[0].mxu0
      %v2952 = vpop.f32.mrb[0].mxu0
      %v2953 = vadd.f32 0.0, %v2952
      %v2954 = vpop.f32.mrb[0].mxu0
      %2955 = vmatprep.mubr.bf16.mxu0 0
      %2956 = vmatmul.mubr.bf16.gmra.mrb[0].mxu0 %v2899
      %v2957 = vpop.f32.mrb[0].mxu0
      %v2958 = vadd.f32 0.0, %v2957
      %v2959 = vpop.f32.mrb[0].mxu0
      %v2960 = vpop.f32.mrb[0].mxu0
      %v2961 = vadd.f32 0.0, %v2960
      %v2962 = vpop.f32.mrb[0].mxu0
      %2963 = vmatprep.mubr.bf16.mxu0 0
      %2964 = vmatmul.mubr.bf16.gmra.mrb[0].mxu0 %v2902
      %v2965 = vpop.f32.mrb[0].mxu0
      %v2966 = vadd.f32 0.0, %v2965
      %v2967 = vpop.f32.mrb[0].mxu0
      %v2968 = vpop.f32.mrb[0].mxu0
      %v2969 = vadd.f32 0.0, %v2968
      %v2970 = vpop.f32.mrb[0].mxu0
      %2971 = vdwg.mxu0
      %v2972 = vsel %vm486, %v2702, 0.0
      %v2973 = vsel %vm486, %v2782, 0.0
      %v2974 = vadd.f32 %v2972, %v2973
      %v2975 = vsel %vm486, %v2862, 0.0
      %v2976 = vadd.f32 %v2974, %v2975
      %v2977 = vsel %vm486, %v2942, 0.0
      %v2978 = vadd.f32 %v2976, %v2977
      %v2979 = vsel %vm486, %v2705, 0.0
      %v2980 = vsel %vm486, %v2785, 0.0
      %v2981 = vadd.f32 %v2979, %v2980
      %v2982 = vsel %vm486, %v2865, 0.0
      %v2983 = vadd.f32 %v2981, %v2982
      %v2984 = vsel %vm486, %v2945, 0.0
      %v2985 = vadd.f32 %v2983, %v2984
      %v2986 = vsel %vm486, %v2710, 0.0
      %v2987 = vsel %vm486, %v2790, 0.0
      %v2988 = vadd.f32 %v2986, %v2987
      %v2989 = vsel %vm486, %v2870, 0.0
      %v2990 = vadd.f32 %v2988, %v2989
      %v2991 = vsel %vm486, %v2950, 0.0
      %v2992 = vadd.f32 %v2990, %v2991
      %v2993 = vsel %vm486, %v2713, 0.0
      %v2994 = vsel %vm486, %v2793, 0.0
      %v2995 = vadd.f32 %v2993, %v2994
      %v2996 = vsel %vm486, %v2873, 0.0
      %v2997 = vadd.f32 %v2995, %v2996
      %v2998 = vsel %vm486, %v2953, 0.0
      %v2999 = vadd.f32 %v2997, %v2998
      %v3000 = vsel %vm486, %v2718, 0.0
      %v3001 = vsel %vm486, %v2798, 0.0
      %v3002 = vadd.f32 %v3000, %v3001
      %v3003 = vsel %vm486, %v2878, 0.0
      %v3004 = vadd.f32 %v3002, %v3003
      %v3005 = vsel %vm486, %v2958, 0.0
      %v3006 = vadd.f32 %v3004, %v3005
      %v3007 = vsel %vm486, %v2721, 0.0
      %v3008 = vsel %vm486, %v2801, 0.0
      %v3009 = vadd.f32 %v3007, %v3008
      %v3010 = vsel %vm486, %v2881, 0.0
      %v3011 = vadd.f32 %v3009, %v3010
      %v3012 = vsel %vm486, %v2961, 0.0
      %v3013 = vadd.f32 %v3011, %v3012
      %v3014 = vsel %vm486, %v2726, 0.0
      %v3015 = vsel %vm486, %v2806, 0.0
      %v3016 = vadd.f32 %v3014, %v3015
      %v3017 = vsel %vm486, %v2886, 0.0
      %v3018 = vadd.f32 %v3016, %v3017
      %v3019 = vsel %vm486, %v2966, 0.0
      %v3020 = vadd.f32 %v3018, %v3019
      %v3021 = vsel %vm486, %v2729, 0.0
      %v3022 = vsel %vm486, %v2809, 0.0
      %v3023 = vadd.f32 %v3021, %v3022
      %v3024 = vsel %vm486, %v2889, 0.0
      %v3025 = vadd.f32 %v3023, %v3024
      %v3026 = vsel %vm486, %v2969, 0.0
      %v3027 = vadd.f32 %v3025, %v3026
      %v3028 = vadd.f32 %v477, %v2978
      %v3029 = vadd.f32 %v478, %v2985
      %v3030 = vadd.f32 %v479, %v2992
      %v3031 = vadd.f32 %v480, %v2999
      %v3032 = vadd.f32 %v481, %v3006
      %v3033 = vadd.f32 %v482, %v3013
      %v3034 = vadd.f32 %v483, %v3020
      %v3035 = vadd.f32 %v484, %v3027
      %v3036 = vld [vmem:[%s8] sm:$0x1]
      %v3038 = vlaneseq
      %v3039 = vshrl.u32 %v3038, 7
      %v3040 = vsub.s32 0, %v3039
      %v3041 = vrot.slane %v3036, %v3040
      %v3043 = vadd.f32 %v3028, %v3041
      %v3044 = vadd.f32 %v3029, %v3041
      %v3045 = vadd.f32 %v3030, %v3041
      %v3046 = vadd.f32 %v3031, %v3041
      %v3047 = vadd.f32 %v3032, %v3041
      %v3048 = vadd.f32 %v3033, %v3041
      %v3049 = vadd.f32 %v3034, %v3041
      %v3050 = vadd.f32 %v3035, %v3041
      %v3051 = vld [vmem:[%s9] sm:$0x3]
      %v3052 = vsel %vm486, %v3043, 0.0
      %3053 = vadd.xlane.f32.xlu0 %v3052
      %v3054 = vpop.xlane.xlu0 %3053
      %v3055 = vsel %vm486, %v3044, 0.0
      %3056 = vadd.xlane.f32.xlu0 %v3055
      %v3057 = vpop.xlane.xlu0 %3056
      %v3058 = vsel %vm486, %v3045, 0.0
      %3059 = vadd.xlane.f32.xlu0 %v3058
      %v3060 = vpop.xlane.xlu0 %3059
      %v3061 = vsel %vm486, %v3046, 0.0
      %3062 = vadd.xlane.f32.xlu0 %v3061
      %v3063 = vpop.xlane.xlu0 %3062
      %v3064 = vsel %vm486, %v3047, 0.0
      %3065 = vadd.xlane.f32.xlu0 %v3064
      %v3066 = vpop.xlane.xlu0 %3065
      %v3067 = vsel %vm486, %v3048, 0.0
      %3068 = vadd.xlane.f32.xlu0 %v3067
      %v3069 = vpop.xlane.xlu0 %3068
      %v3070 = vsel %vm486, %v3049, 0.0
      %3071 = vadd.xlane.f32.xlu0 %v3070
      %v3072 = vpop.xlane.xlu0 %3071
      %v3073 = vsel %vm486, %v3050, 0.0
      %3074 = vadd.xlane.f32.xlu0 %v3073
      %v3075 = vpop.xlane.xlu0 %3074
      %v3076 = vmul.f32 %v3054, %v511
      %v3077 = vmul.f32 %v3057, %v511
      %v3078 = vmul.f32 %v3060, %v511
      %v3079 = vmul.f32 %v3063, %v511
      %v3080 = vmul.f32 %v3066, %v511
      %v3081 = vmul.f32 %v3069, %v511
      %v3082 = vmul.f32 %v3072, %v511
      %v3083 = vmul.f32 %v3075, %v511
      %v3084 = vsub.f32 %v3043, %v3076
      %v3085 = vsub.f32 %v3044, %v3077
      %v3086 = vsub.f32 %v3045, %v3078
      %v3087 = vsub.f32 %v3046, %v3079
      %v3088 = vsub.f32 %v3047, %v3080
      %v3089 = vsub.f32 %v3048, %v3081
      %v3090 = vsub.f32 %v3049, %v3082
      %v3091 = vsub.f32 %v3050, %v3083
      %v3092 = vmul.f32 %v3084, %v3084
      %v3093 = vmul.f32 %v3085, %v3085
      %v3094 = vmul.f32 %v3086, %v3086
      %v3095 = vmul.f32 %v3087, %v3087
      %v3096 = vmul.f32 %v3088, %v3088
      %v3097 = vmul.f32 %v3089, %v3089
      %v3098 = vmul.f32 %v3090, %v3090
      %v3099 = vmul.f32 %v3091, %v3091
      %v3100 = vsel %vm486, %v3092, 0.0
      %3101 = vadd.xlane.f32.xlu0 %v3100
      %v3102 = vpop.xlane.xlu0 %3101
      %v3103 = vsel %vm486, %v3093, 0.0
      %3104 = vadd.xlane.f32.xlu0 %v3103
      %v3105 = vpop.xlane.xlu0 %3104
      %v3106 = vsel %vm486, %v3094, 0.0
      %3107 = vadd.xlane.f32.xlu0 %v3106
      %v3108 = vpop.xlane.xlu0 %3107
      %v3109 = vsel %vm486, %v3095, 0.0
      %3110 = vadd.xlane.f32.xlu0 %v3109
      %v3111 = vpop.xlane.xlu0 %3110
      %v3112 = vsel %vm486, %v3096, 0.0
      %3113 = vadd.xlane.f32.xlu0 %v3112
      %v3114 = vpop.xlane.xlu0 %3113
      %v3115 = vsel %vm486, %v3097, 0.0
      %3116 = vadd.xlane.f32.xlu0 %v3115
      %v3117 = vpop.xlane.xlu0 %3116
      %v3118 = vsel %vm486, %v3098, 0.0
      %3119 = vadd.xlane.f32.xlu0 %v3118
      %v3120 = vpop.xlane.xlu0 %3119
      %v3121 = vsel %vm486, %v3099, 0.0
      %3122 = vadd.xlane.f32.xlu0 %v3121
      %v3123 = vpop.xlane.xlu0 %3122
      %v3124 = vmul.f32 %v3102, %v511
      %v3125 = vmul.f32 %v3105, %v511
      %v3126 = vmul.f32 %v3108, %v511
      %v3127 = vmul.f32 %v3111, %v511
      %v3128 = vmul.f32 %v3114, %v511
      %v3129 = vmul.f32 %v3117, %v511
      %v3130 = vmul.f32 %v3120, %v511
      %v3131 = vmul.f32 %v3123, %v511
      %v3132 = vadd.f32 %v3124, 1e-05
      %v3133 = vadd.f32 %v3125, 1e-05
      %v3134 = vadd.f32 %v3126, 1e-05
      %v3135 = vadd.f32 %v3127, 1e-05
      %v3136 = vadd.f32 %v3128, 1e-05
      %v3137 = vadd.f32 %v3129, 1e-05
      %v3138 = vadd.f32 %v3130, 1e-05
      %v3139 = vadd.f32 %v3131, 1e-05
      %v3140 = vrsqrt.pop %v3132
      %v3141 = vrsqrt.pop %v3133
      %v3142 = vrsqrt.pop %v3134
      %v3143 = vrsqrt.pop %v3135
      %v3144 = vrsqrt.pop %v3136
      %v3145 = vrsqrt.pop %v3137
      %v3146 = vrsqrt.pop %v3138
      %v3147 = vrsqrt.pop %v3139
      %v3148 = vmul.f32 %v3084, %v3140
      %v3149 = vmul.f32 %v3085, %v3141
      %v3150 = vmul.f32 %v3086, %v3142
      %v3151 = vmul.f32 %v3087, %v3143
      %v3152 = vmul.f32 %v3088, %v3144
      %v3153 = vmul.f32 %v3089, %v3145
      %v3154 = vmul.f32 %v3090, %v3146
      %v3155 = vmul.f32 %v3091, %v3147
      %v3156 = vlaneseq
      %v3157 = vshrl.u32 %v3156, 7
      %v3158 = vsub.s32 0, %v3157
      %v3159 = vrot.slane %v3051, %v3158
      %v3160 = vmul.f32 %v3148, %v3159
      %v3161 = vmul.f32 %v3149, %v3159
      %v3162 = vmul.f32 %v3150, %v3159
      %v3163 = vmul.f32 %v3151, %v3159
      %v3164 = vmul.f32 %v3152, %v3159
      %v3165 = vmul.f32 %v3153, %v3159
      %v3166 = vmul.f32 %v3154, %v3159
      %v3167 = vmul.f32 %v3155, %v3159
      %v3168 = vlaneseq
      %v3169 = vshrl.u32 %v3168, 7
      %v3170 = vsub.s32 1, %v3169
      %v3171 = vrot.slane %v3051, %v3170
      %v3172 = vadd.f32 %v3160, %v3171
      %v3173 = vadd.f32 %v3161, %v3171
      %v3174 = vadd.f32 %v3162, %v3171
      %v3175 = vadd.f32 %v3163, %v3171
      %v3176 = vadd.f32 %v3164, %v3171
      %v3177 = vadd.f32 %v3165, %v3171
      %v3178 = vadd.f32 %v3166, %v3171
      %v3179 = vadd.f32 %v3167, %v3171
      %v3180 = vpack.c.bf16 %v3173, %v3172
      %v3181 = vpack.c.bf16 %v3175, %v3174
      %v3182 = vpack.c.bf16 %v3177, %v3176
      %v3183 = vpack.c.bf16 %v3179, %v3178
      %v3184 = vld [vmem:[%s10] sm:$0xf]
      %v3185 = vld [vmem:[%s10 + $0x4] sm:$0xf]
      %v3186 = vld [vmem:[%s10 + $0x8] sm:$0xf]
      %v3187 = vld [vmem:[%s10 + $0xc] sm:$0xf]
      %v3188 = vld [vmem:[%s11] sm:$0x1]
      %v3190 = vlaneseq
      %v3191 = vshrl.u32 %v3190, 7
      %v3192 = vsub.s32 0, %v3191
      %v3193 = vrot.slane %v3188, %v3192
      %v3199 = vunpack.c.l.b16 %v3184
      %v3200 = vunpack.c.l.b16 %v3185
      %v3201 = vunpack.c.l.b16 %v3186
      %v3202 = vunpack.c.l.b16 %v3187
      %v3203 = vpack.c.b16 %v3200, %v3199
      %v3204 = vpack.c.b16 %v3202, %v3201
      %v3208 = vsel %vm486, %v3180, 0
      %v3211 = vsel %vm486, %v3181, 0
      %v3214 = vsel %vm486, %v3182, 0
      %v3217 = vsel %vm486, %v3183, 0
      %3219 = vmatprep.subr.bf16.mxu0 0
      %3220 = vmatpush1.bf16.msra.mxu0 %v3203
      %3221 = vmatprep.subr.bf16.mxu0 0
      %3222 = vmatpush1.bf16.msra.mxu0 %v3204
      %3223 = vmatprep.subr.bf16.mxu0 0
      %3224 = vmatpush1.bf16.msra.mxu0 0
      %3225 = vmatprep.subr.bf16.mxu0 0
      %3226 = vmatpush1.bf16.msra.mxu0 0
      %3227 = vmatprep.subr.bf16.mxu0 0
      %3228 = vmatpush1.bf16.msra.mxu0 0
      %3229 = vmatprep.subr.bf16.mxu0 0
      %3230 = vmatpush1.bf16.msra.mxu0 0
      %3231 = vmatprep.subr.bf16.mxu0 0
      %3232 = vmatpush1.bf16.msra.mxu0 0
      %3233 = vmatprep.subr.bf16.mxu0 0
      %3234 = vmatpush1.bf16.msra.mxu0 0
      %3235 = vmatprep.subr.bf16.mxu0 0
      %3236 = vmatpush1.bf16.msra.mxu0 0
      %3237 = vmatprep.subr.bf16.mxu0 0
      %3238 = vmatpush1.bf16.msra.mxu0 0
      %3239 = vmatprep.subr.bf16.mxu0 0
      %3240 = vmatpush1.bf16.msra.mxu0 0
      %3241 = vmatprep.subr.bf16.mxu0 0
      %3242 = vmatpush1.bf16.msra.mxu0 0
      %3243 = vmatprep.subr.bf16.mxu0 0
      %3244 = vmatpush1.bf16.msra.mxu0 0
      %3245 = vmatprep.subr.bf16.mxu0 0
      %3246 = vmatpush1.bf16.msra.mxu0 0
      %3247 = vmatprep.subr.bf16.mxu0 0
      %3248 = vmatpush1.bf16.msra.mxu0 0
      %3249 = vmatprep.subr.bf16.mxu0 0
      %3250 = vmatpush1.bf16.msra.mxu0 0
      %3251 = vmatprep.mubr.bf16.mxu0 0
      %3252 = vmatmul.mubr.bf16.gmra.mrb[0].mxu0 %v3208
      %v3253 = vpop.f32.mrb[0].mxu0
      %v3254 = vadd.f32 %v3193, %v3253
      %v3255 = vpop.f32.mrb[0].mxu0
      %v3256 = vpop.f32.mrb[0].mxu0
      %v3257 = vadd.f32 %v3193, %v3256
      %v3258 = vpop.f32.mrb[0].mxu0
      %3259 = vmatprep.mubr.bf16.mxu0 0
      %3260 = vmatmul.mubr.bf16.gmra.mrb[0].mxu0 %v3211
      %v3261 = vpop.f32.mrb[0].mxu0
      %v3262 = vadd.f32 %v3193, %v3261
      %v3263 = vpop.f32.mrb[0].mxu0
      %v3264 = vpop.f32.mrb[0].mxu0
      %v3265 = vadd.f32 %v3193, %v3264
      %v3266 = vpop.f32.mrb[0].mxu0
      %3267 = vmatprep.mubr.bf16.mxu0 0
      %3268 = vmatmul.mubr.bf16.gmra.mrb[0].mxu0 %v3214
      %v3269 = vpop.f32.mrb[0].mxu0
      %v3270 = vadd.f32 %v3193, %v3269
      %v3271 = vpop.f32.mrb[0].mxu0
      %v3272 = vpop.f32.mrb[0].mxu0
      %v3273 = vadd.f32 %v3193, %v3272
      %v3274 = vpop.f32.mrb[0].mxu0
      %3275 = vmatprep.mubr.bf16.mxu0 0
      %3276 = vmatmul.mubr.bf16.gmra.mrb[0].mxu0 %v3217
      %v3277 = vpop.f32.mrb[0].mxu0
      %v3278 = vadd.f32 %v3193, %v3277
      %v3279 = vpop.f32.mrb[0].mxu0
      %v3280 = vpop.f32.mrb[0].mxu0
      %v3281 = vadd.f32 %v3193, %v3280
      %v3282 = vpop.f32.mrb[0].mxu0
      %3283 = vdwg.mxu0
      %v3284 = vmul.f32 %v3254, %v3254
      %v3285 = vmul.f32 %v3257, %v3257
      %v3286 = vmul.f32 %v3262, %v3262
      %v3287 = vmul.f32 %v3265, %v3265
      %v3288 = vmul.f32 %v3270, %v3270
      %v3289 = vmul.f32 %v3273, %v3273
      %v3290 = vmul.f32 %v3278, %v3278
      %v3291 = vmul.f32 %v3281, %v3281
      %v3292 = vmul.f32 %v3254, %v3284
      %v3293 = vmul.f32 %v3257, %v3285
      %v3294 = vmul.f32 %v3262, %v3286
      %v3295 = vmul.f32 %v3265, %v3287
      %v3296 = vmul.f32 %v3270, %v3288
      %v3297 = vmul.f32 %v3273, %v3289
      %v3298 = vmul.f32 %v3278, %v3290
      %v3299 = vmul.f32 %v3281, %v3291
      %v3300 = vmul.f32 %v3292, 0.044715
      %v3301 = vmul.f32 %v3293, 0.044715
      %v3302 = vmul.f32 %v3294, 0.044715
      %v3303 = vmul.f32 %v3295, 0.044715
      %v3304 = vmul.f32 %v3296, 0.044715
      %v3305 = vmul.f32 %v3297, 0.044715
      %v3306 = vmul.f32 %v3298, 0.044715
      %v3307 = vmul.f32 %v3299, 0.044715
      %v3308 = vadd.f32 %v3254, %v3300
      %v3309 = vadd.f32 %v3257, %v3301
      %v3310 = vadd.f32 %v3262, %v3302
      %v3311 = vadd.f32 %v3265, %v3303
      %v3312 = vadd.f32 %v3270, %v3304
      %v3313 = vadd.f32 %v3273, %v3305
      %v3314 = vadd.f32 %v3278, %v3306
      %v3315 = vadd.f32 %v3281, %v3307
      %v3316 = vmul.f32 %v3308, 0.7978846
      %v3317 = vmul.f32 %v3309, 0.7978846
      %v3318 = vmul.f32 %v3310, 0.7978846
      %v3319 = vmul.f32 %v3311, 0.7978846
      %v3320 = vmul.f32 %v3312, 0.7978846
      %v3321 = vmul.f32 %v3313, 0.7978846
      %v3322 = vmul.f32 %v3314, 0.7978846
      %v3323 = vmul.f32 %v3315, 0.7978846
      %v3324 = vtanh.pop %v3316
      %v3325 = vtanh.pop %v3317
      %v3326 = vtanh.pop %v3318
      %v3327 = vtanh.pop %v3319
      %v3328 = vtanh.pop %v3320
      %v3329 = vtanh.pop %v3321
      %v3330 = vtanh.pop %v3322
      %v3331 = vtanh.pop %v3323
      %v3332 = vadd.f32 %v3324, 1.0
      %v3333 = vadd.f32 %v3325, 1.0
      %v3334 = vadd.f32 %v3326, 1.0
      %v3335 = vadd.f32 %v3327, 1.0
      %v3336 = vadd.f32 %v3328, 1.0
      %v3337 = vadd.f32 %v3329, 1.0
      %v3338 = vadd.f32 %v3330, 1.0
      %v3339 = vadd.f32 %v3331, 1.0
      %v3340 = vmul.f32 %v3332, 0.5
      %v3341 = vmul.f32 %v3333, 0.5
      %v3342 = vmul.f32 %v3334, 0.5
      %v3343 = vmul.f32 %v3335, 0.5
      %v3344 = vmul.f32 %v3336, 0.5
      %v3345 = vmul.f32 %v3337, 0.5
      %v3346 = vmul.f32 %v3338, 0.5
      %v3347 = vmul.f32 %v3339, 0.5
      %v3348 = vmul.f32 %v3254, %v3340
      %v3349 = vmul.f32 %v3257, %v3341
      %v3350 = vmul.f32 %v3262, %v3342
      %v3351 = vmul.f32 %v3265, %v3343
      %v3352 = vmul.f32 %v3270, %v3344
      %v3353 = vmul.f32 %v3273, %v3345
      %v3354 = vmul.f32 %v3278, %v3346
      %v3355 = vmul.f32 %v3281, %v3347
      %v3356 = vpack.c.bf16 %v3349, %v3348
      %v3357 = vpack.c.bf16 %v3351, %v3350
      %v3358 = vpack.c.bf16 %v3353, %v3352
      %v3359 = vpack.c.bf16 %v3355, %v3354
      %v3360 = vld [vmem:[%s12] sm:$0xf]
      %v3361 = vld [vmem:[%s12 + $0x4] sm:$0xf]
      %v3362 = vld [vmem:[%s12 + $0x8] sm:$0xf]
      %v3363 = vld [vmem:[%s12 + $0xc] sm:$0xf]
      %v3364 = vld [vmem:[%s12 + $0x10] sm:$0xf]
      %v3365 = vld [vmem:[%s12 + $0x14] sm:$0xf]
      %v3366 = vld [vmem:[%s12 + $0x18] sm:$0xf]
      %v3367 = vld [vmem:[%s12 + $0x1c] sm:$0xf]
      %v3368 = vld [vmem:[%s12 + $0x20] sm:$0xf]
      %v3369 = vld [vmem:[%s12 + $0x24] sm:$0xf]
      %v3370 = vld [vmem:[%s12 + $0x28] sm:$0xf]
      %v3371 = vld [vmem:[%s12 + $0x2c] sm:$0xf]
      %v3372 = vld [vmem:[%s12 + $0x30] sm:$0xf]
      %v3373 = vld [vmem:[%s12 + $0x34] sm:$0xf]
      %v3374 = vld [vmem:[%s12 + $0x38] sm:$0xf]
      %v3375 = vld [vmem:[%s12 + $0x3c] sm:$0xf]
      %v3376 = vld [vmem:[%s13] sm:$0x1]
      %v3378 = vlaneseq
      %v3379 = vshrl.u32 %v3378, 7
      %v3380 = vsub.s32 0, %v3379
      %v3381 = vrot.slane %v3376, %v3380
      %v3399 = vunpack.c.l.b16 %v3360
      %v3400 = vunpack.c.l.b16 %v3361
      %v3401 = vunpack.c.l.b16 %v3362
      %v3402 = vunpack.c.l.b16 %v3363
      %v3403 = vunpack.c.l.b16 %v3364
      %v3404 = vunpack.c.l.b16 %v3365
      %v3405 = vunpack.c.l.b16 %v3366
      %v3406 = vunpack.c.l.b16 %v3367
      %v3407 = vunpack.c.l.b16 %v3368
      %v3408 = vunpack.c.l.b16 %v3369
      %v3409 = vunpack.c.l.b16 %v3370
      %v3410 = vunpack.c.l.b16 %v3371
      %v3411 = vunpack.c.l.b16 %v3372
      %v3412 = vunpack.c.l.b16 %v3373
      %v3413 = vunpack.c.l.b16 %v3374
      %v3414 = vunpack.c.l.b16 %v3375
      %v3415 = vpack.c.b16 %v3400, %v3399
      %v3416 = vpack.c.b16 %v3402, %v3401
      %v3417 = vpack.c.b16 %v3404, %v3403
      %v3418 = vpack.c.b16 %v3406, %v3405
      %v3419 = vpack.c.b16 %v3408, %v3407
      %v3420 = vpack.c.b16 %v3410, %v3409
      %v3421 = vpack.c.b16 %v3412, %v3411
      %v3422 = vpack.c.b16 %v3414, %v3413
      %3431 = vmatprep.subr.bf16.mxu0 0
      %3432 = vmatpush1.bf16.msra.mxu0 %v3415
      %3433 = vmatprep.subr.bf16.mxu0 0
      %3434 = vmatpush1.bf16.msra.mxu0 %v3416
      %3435 = vmatprep.subr.bf16.mxu0 0
      %3436 = vmatpush1.bf16.msra.mxu0 %v3417
      %3437 = vmatprep.subr.bf16.mxu0 0
      %3438 = vmatpush1.bf16.msra.mxu0 %v3418
      %3439 = vmatprep.subr.bf16.mxu0 0
      %3440 = vmatpush1.bf16.msra.mxu0 %v3419
      %3441 = vmatprep.subr.bf16.mxu0 0
      %3442 = vmatpush1.bf16.msra.mxu0 %v3420
      %3443 = vmatprep.subr.bf16.mxu0 0
      %3444 = vmatpush1.bf16.msra.mxu0 %v3421
      %3445 = vmatprep.subr.bf16.mxu0 0
      %3446 = vmatpush1.bf16.msra.mxu0 %v3422
      %3447 = vmatprep.subr.bf16.mxu0 0
      %3448 = vmatpush1.bf16.msra.mxu0 0
      %3449 = vmatprep.subr.bf16.mxu0 0
      %3450 = vmatpush1.bf16.msra.mxu0 0
      %3451 = vmatprep.subr.bf16.mxu0 0
      %3452 = vmatpush1.bf16.msra.mxu0 0
      %3453 = vmatprep.subr.bf16.mxu0 0
      %3454 = vmatpush1.bf16.msra.mxu0 0
      %3455 = vmatprep.subr.bf16.mxu0 0
      %3456 = vmatpush1.bf16.msra.mxu0 0
      %3457 = vmatprep.subr.bf16.mxu0 0
      %3458 = vmatpush1.bf16.msra.mxu0 0
      %3459 = vmatprep.subr.bf16.mxu0 0
      %3460 = vmatpush1.bf16.msra.mxu0 0
      %3461 = vmatprep.subr.bf16.mxu0 0
      %3462 = vmatpush1.bf16.msra.mxu0 0
      %3463 = vmatprep.mubr.bf16.mxu0 0
      %3464 = vmatmul.mubr.bf16.gmra.mrb[0].mxu0 %v3356
      %v3465 = vpop.f32.mrb[0].mxu0
      %v3466 = vadd.f32 %v3381, %v3465
      %v3467 = vpop.f32.mrb[0].mxu0
      %v3468 = vpop.f32.mrb[0].mxu0
      %v3469 = vadd.f32 %v3381, %v3468
      %v3470 = vpop.f32.mrb[0].mxu0
      %3471 = vmatprep.mubr.bf16.mxu0 0
      %3472 = vmatmul.mubr.bf16.gmra.mrb[0].mxu0 %v3357
      %v3473 = vpop.f32.mrb[0].mxu0
      %v3474 = vadd.f32 %v3381, %v3473
      %v3475 = vpop.f32.mrb[0].mxu0
      %v3476 = vpop.f32.mrb[0].mxu0
      %v3477 = vadd.f32 %v3381, %v3476
      %v3478 = vpop.f32.mrb[0].mxu0
      %3479 = vmatprep.mubr.bf16.mxu0 0
      %3480 = vmatmul.mubr.bf16.gmra.mrb[0].mxu0 %v3358
      %v3481 = vpop.f32.mrb[0].mxu0
      %v3482 = vadd.f32 %v3381, %v3481
      %v3483 = vpop.f32.mrb[0].mxu0
      %v3484 = vpop.f32.mrb[0].mxu0
      %v3485 = vadd.f32 %v3381, %v3484
      %v3486 = vpop.f32.mrb[0].mxu0
      %3487 = vmatprep.mubr.bf16.mxu0 0
      %3488 = vmatmul.mubr.bf16.gmra.mrb[0].mxu0 %v3359
      %v3489 = vpop.f32.mrb[0].mxu0
      %v3490 = vadd.f32 %v3381, %v3489
      %v3491 = vpop.f32.mrb[0].mxu0
      %v3492 = vpop.f32.mrb[0].mxu0
      %v3493 = vadd.f32 %v3381, %v3492
      %v3494 = vpop.f32.mrb[0].mxu0
      %3495 = vdwg.mxu0
      %v3496 = vadd.f32 %v3043, %v3466
      %v3497 = vadd.f32 %v3044, %v3469
      %v3498 = vadd.f32 %v3045, %v3474
      %v3499 = vadd.f32 %v3046, %v3477
      %v3500 = vadd.f32 %v3047, %v3482
      %v3501 = vadd.f32 %v3048, %v3485
      %v3502 = vadd.f32 %v3049, %v3490
      %v3503 = vadd.f32 %v3050, %v3493
      %v3504 = vpack.c.bf16 %v3497, %v3496
      %v3505 = vpack.c.bf16 %v3499, %v3498
      %v3506 = vpack.c.bf16 %v3501, %v3500
      %v3507 = vpack.c.bf16 %v3503, %v3502
      %v3512 = vunpack.c.l.b16 %v3504
      %v3513 = vunpack.c.h.b16 %v3504
      %v3514 = vunpack.c.l.b16 %v3505
      %v3515 = vunpack.c.h.b16 %v3505
      %v3516 = vunpack.c.l.b16 %v3506
      %v3517 = vunpack.c.h.b16 %v3506
      %v3518 = vunpack.c.l.b16 %v3507
      %v3519 = vunpack.c.h.b16 %v3507
      %v3520 = vpack.c.b16 %v3512, %v3512
      %v3521 = vpack.c.b16 %v3513, %v3513
      %v3522 = vpack.c.b16 %v3514, %v3514
      %v3523 = vpack.c.b16 %v3515, %v3515
      %v3524 = vpack.c.b16 %v3516, %v3516
      %v3525 = vpack.c.b16 %v3517, %v3517
      %v3526 = vpack.c.b16 %v3518, %v3518
      %v3527 = vpack.c.b16 %v3519, %v3519
      %vm3536 = vcmask 257024
      %3537 = vst.msk [vmem:[%s467] sm:$0xf] %vm3536, %v3520
      %3538 = vst.msk [vmem:[%s467 + $0x4] sm:$0xf] %vm3536, %v3521
      %3539 = vst.msk [vmem:[%s467 + $0x8] sm:$0xf] %vm3536, %v3522
      %3540 = vst.msk [vmem:[%s467 + $0xc] sm:$0xf] %vm3536, %v3523
      %3541 = vst.msk [vmem:[%s467 + $0x10] sm:$0xf] %vm3536, %v3524
      %3542 = vst.msk [vmem:[%s467 + $0x14] sm:$0xf] %vm3536, %v3525
      %3543 = vst.msk [vmem:[%s467 + $0x18] sm:$0xf] %vm3536, %v3526
      %3544 = vst.msk [vmem:[%s467 + $0x1c] sm:$0xf] %vm3536, %v3527
      %p3545 = scmp.lt.s32.totalorder %s25, 1
      %s3546 = scalar_select %p3545, %s25, 1
      %s3547 = smul.addr %s3546, 8
      %s3548 = smul.addr %s3547, 4
      %s3549 = scalar_lea.vmem %s14, %s3548
      // Predicated region
      $region77: #{_lambda_.5} parent=75 // pred_check
        %p3550 = pneg %p342
      $region78: #{_lambda_.5} parent=75 // pred_check_branch
        %3552 = sbr.rel (%p3550) target = $region80
      $region79: #{_lambda_.5} parent=75 // pred_region
        _
      $region80: #{_lambda_.5} parent=75 // pred_fallthru
        _
    $region76: #{_lambda_.5} parent=5 // pred_fallthru
      _
    %p3553 = scmp.le.s32.totalorder 2, %s20
    // Predicated region
    $region81: #{_lambda_.5} parent=5 // pred_check
      %p3554 = pneg %p3553
    $region82: #{_lambda_.5} parent=5 // pred_check_branch
      %3556 = sbr.rel (%p3554) target = $region84
    $region83: #{_lambda_.5} parent=5 // pred_region
      %s3557 = ssub.s32 %s20, 2
      // Predicated region
      $region85: #{_lambda_.5} parent=83 // pred_check
        %p3558 = pneg %p348
      $region86: #{_lambda_.5} parent=83 // pred_check_branch
        %3560 = sbr.rel (%p3558) target = $region88
      $region87: #{_lambda_.5} parent=83 // pred_region
        %p3561 = scmp.lt.s32.totalorder %s26, 1
        %s3562 = scalar_select %p3561, %s26, 1
        %s3563 = smul.addr %s3562, 8
        %s3564 = smul.addr %s3563, 4
        %s3565 = scalar_lea.vmem %s14, %s3564
      $region88: #{_lambda_.5} parent=83 // pred_fallthru
        _
    $region84: #{_lambda_.5} parent=5 // pred_fallthru
      _
  $region6: #{_lambda_.5} parent=0 // loop_footer
    %s24 = sadd.s32 1, %s20
  $region7: #{_lambda_.5} parent=0 // loop_footer_branch
    %19 = sbr.rel target = $region3
  $region8: #{_lambda_.5} parent=0 // loop_exit
    _

</llo_original>
